<compile_context>
chip_gen: v5e
topology: v5e:2x2
jax: 0.10.0
libtpu: 0.0.40
codegen_flags: <defaults>
</compile_context>

<pallas_src>
import functools

import jax
import jax.numpy as jnp
import numpy as np
from jax import lax
from jax.experimental import pallas as pl
from jax.experimental.pallas import tpu as pltpu

EPS = 1e-5  # torch.nn.LayerNorm default


# ----------------------------- kernel helpers --------------------------------
def _conv_taps(pad_ref, band_ref, bias_ref):
    """KxK 'same' conv: kh taps are static leading-dim slices of a zero-halo
    staging buffer (free views); kw taps + w-padding are folded into band_ref.

    pad_ref:  (H + K - 1, Bt, n_in)  bf16 zero-halo staging buffer
    band_ref: (K, n_in, n_out)       bf16 banded weights
    bias_ref: (1, n_out)             f32
    returns   (H, Bt, n_out)         f32
    """
    K, n_in, n_out = band_ref.shape
    Hh = pad_ref.shape[0] - (K - 1)
    Bt = pad_ref.shape[1]
    acc = jnp.dot(pad_ref[0:Hh, :, :].reshape(Hh * Bt, n_in), band_ref[0],
                  preferred_element_type=jnp.float32)
    for u in range(1, K):                       # static, unrolled kh-tap loop
        acc = acc + jnp.dot(pad_ref[u:u + Hh, :, :].reshape(Hh * Bt, n_in),
                            band_ref[u], preferred_element_type=jnp.float32)
    return (acc + bias_ref[...]).reshape(Hh, Bt, n_out)


def _sample_layernorm(h3, g_ref, b_ref):
    """LayerNorm over all (row, lane) elements of each batch column.

    Two-pass mean/variance (review note: single-pass E[x^2]-E[x]^2 loses
    precision for large-mean post-ReLU activations).  h3: (H, Bt, n) f32;
    g_ref/b_ref: (H, 1, n) f32 broadcast over the batch (sublane) axis.
    """
    cnt = float(h3.shape[0] * h3.shape[2])
    mu = jnp.sum(jnp.sum(h3, axis=2, keepdims=True), axis=0, keepdims=True) / cnt
    d = h3 - mu
    var = jnp.sum(jnp.sum(d * d, axis=2, keepdims=True), axis=0, keepdims=True) / cnt
    return d * lax.rsqrt(var + EPS) * g_ref[...] + b_ref[...]


# --------------------------------- kernel ------------------------------------
def transfer_kernel(x_ref, band1_ref, b1_ref, g1_ref, be1_ref,
                    band2_ref, b2_ref, band3_ref, b3_ref,
                    g2_ref, be2_ref, wo_ref, bo_ref,
                    out_ref, pad2_ref, pad3_ref, *, H):
    Bt = x_ref.shape[1]
    n_in = x_ref.shape[2]                 # W*Cin zero-padded to a 128 multiple
    K1 = band1_ref.shape[0] // n_in       # 5
    P1 = K1 // 2

    # ---- conv1 (5x5): kh taps folded -> one (H*Bt, K1*n_in) @ (K1*n_in, W*32)
    # matmul.  Row shifts are leading-dim slices; the lane concat is tile
    # aligned because n_in is a multiple of 128.
    xb = x_ref[...]                                            # (H, Bt, n_in) bf16
    zrow = jnp.zeros((P1, Bt, n_in), xb.dtype)
    xpad = jnp.concatenate([zrow, xb, zrow], axis=0)           # (H+2*P1, Bt, n_in)
    lhs1 = jnp.concatenate([xpad[u:u + H] for u in range(K1)],
                           axis=-1).reshape(H * Bt, K1 * n_in)
    h = jnp.dot(lhs1, band1_ref[...], preferred_element_type=jnp.float32)
    h = jnp.maximum(h + b1_ref[...], 0.0).reshape(H, Bt, -1)   # (H, Bt, W*32) f32

    # ---- LayerNorm1, then stage bf16 ONCE into the conv2 zero-halo buffer.
    h = _sample_layernorm(h, g1_ref, be1_ref)
    n1 = h.shape[-1]
    p2 = (pad2_ref.shape[0] - H) // 2
    pad2_ref[0:p2, :, :] = jnp.zeros((p2, Bt, n1), pad2_ref.dtype)
    pad2_ref[p2 + H:2 * p2 + H, :, :] = jnp.zeros((p2, Bt, n1), pad2_ref.dtype)
    pad2_ref[p2:p2 + H, :, :] = h.astype(pad2_ref.dtype)

    # ---- conv2 (5x5) + ReLU, stage bf16 into the conv3 zero-halo buffer.
    h = jnp.maximum(_conv_taps(pad2_ref, band2_ref, b2_ref), 0.0)
    n2 = h.shape[-1]
    p3 = (pad3_ref.shape[0] - H) // 2
    pad3_ref[0:p3, :, :] = jnp.zeros((p3, Bt, n2), pad3_ref.dtype)
    pad3_ref[p3 + H:2 * p3 + H, :, :] = jnp.zeros((p3, Bt, n2), pad3_ref.dtype)
    pad3_ref[p3:p3 + H, :, :] = h.astype(pad3_ref.dtype)

    # ---- conv3 (3x3) + ReLU, LayerNorm2.
    h = jnp.maximum(_conv_taps(pad3_ref, band3_ref, b3_ref), 0.0)
    f = _sample_layernorm(h, g2_ref, be2_ref).astype(jnp.bfloat16)  # (H, Bt, W*8)

    # ---- classifier head: H accumulated (Bt, W*8) @ (W*8, C_pad) bf16 matmuls.
    # Per-row slices are free leading-dim views -> no sublane->lane relayout,
    # and the output block is a lane-dense (Bt, C_pad) store.
    acc = jnp.dot(f[0], wo_ref[0], preferred_element_type=jnp.float32)
    for r in range(1, H):
        acc = acc + jnp.dot(f[r], wo_ref[r], preferred_element_type=jnp.float32)
    out_ref[...] = (acc + bo_ref[...]).astype(out_ref.dtype)


# -------------------------------- wrapper -------------------------------------
def transfer_forward(x, kp, *, in_channels, H, W, num_classes, b_tile=32):
    """x: (B, H*W, in_channels) token embeddings.  kp: kernel-layout params."""
    B = x.shape[0]
    n_in = W * in_channels
    n_in_pad = ((n_in + 127) // 128) * 128   # lane-pad so conv1's fold is aligned

    # (B, H*W, C) -> (H, B, W*C): image rows on the leading axis, batch on the
    # sublane axis, (w, c) dense on lanes.  bf16 end to end (halves input DMA).
    x_rows = jnp.transpose(x.reshape(B, H, n_in), (1, 0, 2)).astype(jnp.bfloat16)

    # Batch tile: multiple of 8 (sublane quantum) so leading/sublane merges are
    # free; for B > b_tile the grid has >= 2 steps so v7x's two TensorCores can
    # both pick up work along the "parallel" batch axis.
    bt = min(b_tile, ((B + 7) // 8) * 8)
    B_pad = ((B + bt - 1) // bt) * bt
    grid_b = B_pad // bt
    x_rows = jnp.pad(x_rows, ((0, 0), (0, B_pad - B), (0, n_in_pad - n_in)))

    c_pad = kp["wo"].shape[-1]               # num_classes padded to 128 lanes

    def rep(a):                               # replicated (weight) block
        return pl.BlockSpec(a.shape, lambda b, _nd=a.ndim: (0,) * _nd)

    kern = functools.partial(transfer_kernel, H=H)

    out = pl.pallas_call(
        kern,
        out_shape=jax.ShapeDtypeStruct((B_pad, c_pad), jnp.float32),
        grid=(grid_b,),
        in_specs=[
            pl.BlockSpec((H, bt, n_in_pad), lambda b: (0, b, 0)),
            rep(kp["band1"]), rep(kp["b1"]), rep(kp["g1"]), rep(kp["be1"]),
            rep(kp["band2"]), rep(kp["b2"]),
            rep(kp["band3"]), rep(kp["b3"]),
            rep(kp["g2"]), rep(kp["be2"]),
            rep(kp["wo"]), rep(kp["bo"]),
        ],
        out_specs=pl.BlockSpec((bt, c_pad), lambda b: (b, 0)),
        scratch_shapes=[
            pltpu.VMEM((H + 4, bt, W * 32), jnp.bfloat16),   # conv2 input + h halo
            pltpu.VMEM((H + 2, bt, W * 16), jnp.bfloat16),   # conv3 input + h halo
        ],
        compiler_params=pltpu.CompilerParams(
            dimension_semantics=("parallel",)),
    )(x_rows,
      kp["band1"], kp["b1"], kp["g1"], kp["be1"],
      kp["band2"], kp["b2"], kp["band3"], kp["b3"],
      kp["g2"], kp["be2"], kp["wo"], kp["bo"])

    # Padded batch columns / class lanes are dead (the per-sample LayerNorms
    # never reduce over the batch axis) and are sliced off here.
    return out[:B, :num_classes]


# ----------------------------- parameters -------------------------------------
def init_params(key, in_channels, H, W, num_classes):
    """Deterministic parameters in PyTorch layout (OIHW convs, CHW LayerNorm)."""
    ks = jax.random.split(key, 12)

    def uni(k, shape, fan_in):
        bound = 1.0 / np.sqrt(fan_in)
        return jax.random.uniform(k, shape, jnp.float32, -bound, bound)

    p = {}
    p["w1"] = uni(ks[0], (32, in_channels, 5, 5), in_channels * 25)
    p["b1"] = uni(ks[1], (32,), in_channels * 25)
    p["g1"] = 1.0 + 0.1 * jax.random.normal(ks[2], (32, H, W), jnp.float32)
    p["be1"] = 0.1 * jax.random.normal(ks[3], (32, H, W), jnp.float32)
    p["w2"] = uni(ks[4], (16, 32, 5, 5), 32 * 25)
    p["b2"] = uni(ks[5], (16,), 32 * 25)
    p["w3"] = uni(ks[6], (8, 16, 3, 3), 16 * 9)
    p["b3"] = uni(ks[7], (8,), 16 * 9)
    p["g2"] = 1.0 + 0.1 * jax.random.normal(ks[8], (8 * H * W,), jnp.float32)
    p["be2"] = 0.1 * jax.random.normal(ks[9], (8 * H * W,), jnp.float32)
    p["wo"] = uni(ks[10], (num_classes, 8 * H * W), 8 * H * W)
    p["bo"] = uni(ks[11], (num_classes,), 8 * H * W)
    return p


def _banded_weight(wt, W):
    """OIHW conv weight -> (K, W*Cin, W*Cout) banded matrices (kw + w-padding folded)."""
    wt = np.asarray(wt, np.float32)          # (Cout, Cin, K, K)
    Cout, Cin, K, _ = wt.shape
    pad = K // 2
    band = np.zeros((K, W * Cin, W * Cout), np.float32)
    for u in range(K):
        for w_out in range(W):
            for v in range(K):
                w_in = w_out + v - pad
                if 0 <= w_in < W:
                    band[u, w_in * Cin:(w_in + 1) * Cin,
                         w_out * Cout:(w_out + 1) * Cout] = wt[:, :, u, v].T
    return band


def to_kernel_params(p, H, W, num_classes):
    """Convert PyTorch-layout params into the kernel's (h, batch, w*c) layout."""
    cin = p["w1"].shape[1]
    n_in = W * cin
    n_in_pad = ((n_in + 127) // 128) * 128
    c_pad = ((num_classes + 127) // 128) * 128

    k = {}
    # conv1: banded (K, W*Cin, W*32), zero-padded to n_in_pad lanes, kh folded
    # into the contraction -> (K*n_in_pad, W*32).
    band1 = _banded_weight(p["w1"], W)
    K1 = band1.shape[0]
    band1p = np.zeros((K1, n_in_pad, band1.shape[2]), np.float32)
    band1p[:, :n_in, :] = band1
    k["band1"] = jnp.asarray(band1p.reshape(K1 * n_in_pad, -1), jnp.bfloat16)
    k["b1"] = jnp.tile(p["b1"], W).reshape(1, W * 32).astype(jnp.float32)
    k["g1"] = jnp.transpose(p["g1"], (1, 2, 0)).reshape(H, 1, W * 32).astype(jnp.float32)
    k["be1"] = jnp.transpose(p["be1"], (1, 2, 0)).reshape(H, 1, W * 32).astype(jnp.float32)

    k["band2"] = jnp.asarray(_banded_weight(p["w2"], W), jnp.bfloat16)
    k["b2"] = jnp.tile(p["b2"], W).reshape(1, W * 16).astype(jnp.float32)
    k["band3"] = jnp.asarray(_banded_weight(p["w3"], W), jnp.bfloat16)
    k["b3"] = jnp.tile(p["b3"], W).reshape(1, W * 8).astype(jnp.float32)

    # LayerNorm2 / Linear act on the NCHW flatten (c*H*W + h*W + w); the kernel
    # works in (h, w, c) order, so permute the parameters accordingly, and pad
    # the class dim to a lane-dense 128 multiple.
    k["g2"] = jnp.transpose(p["g2"].reshape(8, H, W), (1, 2, 0)
                            ).reshape(H, 1, W * 8).astype(jnp.float32)
    k["be2"] = jnp.transpose(p["be2"].reshape(8, H, W), (1, 2, 0)
                             ).reshape(H, 1, W * 8).astype(jnp.float32)
    wo = jnp.transpose(p["wo"].reshape(num_classes, 8, H, W),
                       (2, 3, 1, 0)).reshape(H, W * 8, num_classes)
    k["wo"] = jnp.pad(wo, ((0, 0), (0, 0), (0, c_pad - num_classes))
                      ).astype(jnp.bfloat16)
    k["bo"] = jnp.pad(p["bo"].reshape(1, num_classes),
                      ((0, 0), (0, c_pad - num_classes))).astype(jnp.float32)
    return k


# --------------------------- pure-JAX reference -------------------------------
def reference_forward(x, p, *, in_channels, H, W):
    e = x.reshape(-1, H, W, in_channels).astype(jnp.float32)
    e = jnp.transpose(e, (0, 3, 1, 2))                       # NCHW (torch permute)

    def conv(h, w, b, pad):
        y = lax.conv_general_dilated(
            h, w, window_strides=(1, 1), padding=((pad, pad), (pad, pad)),
            dimension_numbers=("NCHW", "OIHW", "NCHW"),
            precision=lax.Precision.HIGHEST)
        return y + b[None, :, None, None]

    h = jnp.maximum(conv(e, p["w1"], p["b1"], 2), 0.0)
    mu = h.mean(axis=(1, 2, 3), keepdims=True)
    var = h.var(axis=(1, 2, 3), keepdims=True)
    h = (h - mu) / jnp.sqrt(var + EPS) * p["g1"][None] + p["be1"][None]
    h = jnp.maximum(conv(h, p["w2"], p["b2"], 2), 0.0)
    h = jnp.maximum(conv(h, p["w3"], p["b3"], 1), 0.0)
    f = h.reshape(h.shape[0], -1)                            # NCHW flatten
    mu = f.mean(axis=-1, keepdims=True)
    var = f.var(axis=-1, keepdims=True)
    f = (f - mu) / jnp.sqrt(var + EPS) * p["g2"][None] + p["be2"][None]
    return f @ p["wo"].T + p["bo"][None]


if __name__ == "__main__":
    B, C_IN, H, W, NUM_CLASSES = 2, 4, 16, 16, 1  # small TransferNetwork(4, 16, 16, 1)
    key = jax.random.PRNGKey(0)
    k_x, k_p = jax.random.split(key)
    x = jax.random.normal(k_x, (B, H * W, C_IN), jnp.float32)  # token embeddings

    torch_params = init_params(k_p, C_IN, H, W, NUM_CLASSES)
    kernel_params = to_kernel_params(torch_params, H, W, NUM_CLASSES)

    out = transfer_forward(x, kernel_params, in_channels=C_IN, H=H, W=W,
                           num_classes=NUM_CLASSES)
    out = jax.block_until_ready(out)

    ref = jax.block_until_ready(
        reference_forward(x, torch_params, in_channels=C_IN, H=H, W=W))
    # bf16 MXU operands (f32 accumulate) => ~1e-2-level agreement expected
    # against the f32 HIGHEST-precision reference.
    np.testing.assert_allclose(np.asarray(out), np.asarray(ref),
                               rtol=3e-2, atol=3e-2)
    print("KERNEL_OK")
</pallas_src>

<mosaic_0001>
module attributes {stable_mosaic.version = 11 : i64} {
  func.func @transfer_kernel(%arg0: i32, %arg1: memref<16x8x128xbf16, #tpu.memory_space<vmem>>, %arg2: memref<640x512xbf16, #tpu.memory_space<vmem>>, %arg3: memref<1x512xf32, #tpu.memory_space<vmem>>, %arg4: memref<16x1x512xf32, #tpu.memory_space<vmem>>, %arg5: memref<16x1x512xf32, #tpu.memory_space<vmem>>, %arg6: memref<5x512x256xbf16, #tpu.memory_space<vmem>>, %arg7: memref<1x256xf32, #tpu.memory_space<vmem>>, %arg8: memref<3x256x128xbf16, #tpu.memory_space<vmem>>, %arg9: memref<1x128xf32, #tpu.memory_space<vmem>>, %arg10: memref<16x1x128xf32, #tpu.memory_space<vmem>>, %arg11: memref<16x1x128xf32, #tpu.memory_space<vmem>>, %arg12: memref<16x128x128xbf16, #tpu.memory_space<vmem>>, %arg13: memref<1x128xf32, #tpu.memory_space<vmem>>, %arg14: memref<8x128xf32, #tpu.memory_space<vmem>>, %arg15: memref<20x8x512xbf16, #tpu.memory_space<vmem>>, %arg16: memref<18x8x256xbf16, #tpu.memory_space<vmem>>) attributes {dimension_semantics = [#tpu.dimension_semantics<parallel>], iteration_bounds = array<i64: 1>, scalar_prefetch = 0 : i64, scratch_operands = 2 : i64, tpu.core_type = #tpu.core_type<tc>, window_params = [{transform_indices = @transform_0, window_bounds = array<i64: 16, 8, 128>}, {pipeline_mode = #tpu.pipeline_mode<synchronous>, transform_indices = @transform_1, window_bounds = array<i64: 640, 512>}, {pipeline_mode = #tpu.pipeline_mode<synchronous>, transform_indices = @transform_2, window_bounds = array<i64: 1, 512>}, {pipeline_mode = #tpu.pipeline_mode<synchronous>, transform_indices = @transform_3, window_bounds = array<i64: 16, 1, 512>}, {pipeline_mode = #tpu.pipeline_mode<synchronous>, transform_indices = @transform_4, window_bounds = array<i64: 16, 1, 512>}, {pipeline_mode = #tpu.pipeline_mode<synchronous>, transform_indices = @transform_5, window_bounds = array<i64: 5, 512, 256>}, {pipeline_mode = #tpu.pipeline_mode<synchronous>, transform_indices = @transform_6, window_bounds = array<i64: 1, 256>}, {pipeline_mode = #tpu.pipeline_mode<synchronous>, transform_indices = @transform_7, window_bounds = array<i64: 3, 256, 128>}, {pipeline_mode = #tpu.pipeline_mode<synchronous>, transform_indices = @transform_8, window_bounds = array<i64: 1, 128>}, {pipeline_mode = #tpu.pipeline_mode<synchronous>, transform_indices = @transform_9, window_bounds = array<i64: 16, 1, 128>}, {pipeline_mode = #tpu.pipeline_mode<synchronous>, transform_indices = @transform_10, window_bounds = array<i64: 16, 1, 128>}, {pipeline_mode = #tpu.pipeline_mode<synchronous>, transform_indices = @transform_11, window_bounds = array<i64: 16, 128, 128>}, {pipeline_mode = #tpu.pipeline_mode<synchronous>, transform_indices = @transform_12, window_bounds = array<i64: 1, 128>}, {transform_indices = @transform_13, window_bounds = array<i64: 8, 128>}]} {
    %c0 = arith.constant 0 : index
    %c0_0 = arith.constant 0 : index
    %c0_1 = arith.constant 0 : index
    %0 = vector.load %arg1[%c0, %c0_0, %c0_1] : memref<16x8x128xbf16, #tpu.memory_space<vmem>>, vector<16x8x128xbf16>
    %cst = arith.constant 0.000000e+00 : bf16
    %1 = vector.broadcast %cst : bf16 to vector<2x8x128xbf16>
    %2 = tpu.concatenate %1, %0, %1 in 0 : vector<2x8x128xbf16>, vector<16x8x128xbf16>, vector<2x8x128xbf16> -> vector<20x8x128xbf16>
    %3 = vector.extract_strided_slice %2 {offsets = [0, 0, 0], sizes = [16, 8, 128], strides = [1, 1, 1]} : vector<20x8x128xbf16> to vector<16x8x128xbf16>
    %4 = vector.extract_strided_slice %2 {offsets = [1, 0, 0], sizes = [16, 8, 128], strides = [1, 1, 1]} : vector<20x8x128xbf16> to vector<16x8x128xbf16>
    %5 = vector.extract_strided_slice %2 {offsets = [2, 0, 0], sizes = [16, 8, 128], strides = [1, 1, 1]} : vector<20x8x128xbf16> to vector<16x8x128xbf16>
    %6 = vector.extract_strided_slice %2 {offsets = [3, 0, 0], sizes = [16, 8, 128], strides = [1, 1, 1]} : vector<20x8x128xbf16> to vector<16x8x128xbf16>
    %7 = vector.extract_strided_slice %2 {offsets = [4, 0, 0], sizes = [16, 8, 128], strides = [1, 1, 1]} : vector<20x8x128xbf16> to vector<16x8x128xbf16>
    %8 = tpu.concatenate %3, %4, %5, %6, %7 in 2 : vector<16x8x128xbf16>, vector<16x8x128xbf16>, vector<16x8x128xbf16>, vector<16x8x128xbf16>, vector<16x8x128xbf16> -> vector<16x8x640xbf16>
    %9 = vector.shape_cast %8 : vector<16x8x640xbf16> to vector<128x640xbf16>
    %c0_2 = arith.constant 0 : index
    %c0_3 = arith.constant 0 : index
    %10 = vector.load %arg2[%c0_2, %c0_3] : memref<640x512xbf16, #tpu.memory_space<vmem>>, vector<640x512xbf16>
    %cst_4 = arith.constant dense<0.000000e+00> : vector<128x512xf32>
    %11 = tpu.matmul %9, %10, %cst_4 {dimension_numbers = #tpu.dot_dimension_numbers<[1], [0], [0], [1], [0, 0, 1, 1], [], []>} : vector<128x640xbf16>, vector<640x512xbf16>, vector<128x512xf32> -> vector<128x512xf32>
    %c0_5 = arith.constant 0 : index
    %c0_6 = arith.constant 0 : index
    %12 = vector.load %arg3[%c0_5, %c0_6] : memref<1x512xf32, #tpu.memory_space<vmem>>, vector<1x512xf32>
    %13 = vector.broadcast %12 : vector<1x512xf32> to vector<128x512xf32>
    %14 = arith.addf %11, %13 : vector<128x512xf32>
    %cst_7 = arith.constant 0.000000e+00 : f32
    %15 = vector.broadcast %cst_7 : f32 to vector<128x512xf32>
    %16 = arith.maximumf %14, %15 : vector<128x512xf32>
    %17 = vector.shape_cast %16 : vector<128x512xf32> to vector<16x8x512xf32>
    %cst_8 = arith.constant dense<0.000000e+00> : vector<16x8xf32>
    %18 = vector.multi_reduction <add>, %17, %cst_8 [2] : vector<16x8x512xf32> to vector<16x8xf32>
    %19 = vector.shape_cast %18 : vector<16x8xf32> to vector<16x8x1xf32>
    %cst_9 = arith.constant dense<0.000000e+00> : vector<8x1xf32>
    %20 = vector.multi_reduction <add>, %19, %cst_9 [0] : vector<16x8x1xf32> to vector<8x1xf32>
    %21 = vector.shape_cast %20 : vector<8x1xf32> to vector<1x8x1xf32>
    %cst_10 = arith.constant 8.192000e+03 : f32
    %22 = vector.broadcast %cst_10 : f32 to vector<1x8x1xf32>
    %23 = arith.divf %21, %22 : vector<1x8x1xf32>
    %24 = vector.broadcast %23 : vector<1x8x1xf32> to vector<16x8x512xf32>
    %25 = arith.subf %17, %24 : vector<16x8x512xf32>
    %26 = arith.mulf %25, %25 : vector<16x8x512xf32>
    %cst_11 = arith.constant dense<0.000000e+00> : vector<16x8xf32>
    %27 = vector.multi_reduction <add>, %26, %cst_11 [2] : vector<16x8x512xf32> to vector<16x8xf32>
    %28 = vector.shape_cast %27 : vector<16x8xf32> to vector<16x8x1xf32>
    %cst_12 = arith.constant dense<0.000000e+00> : vector<8x1xf32>
    %29 = vector.multi_reduction <add>, %28, %cst_12 [0] : vector<16x8x1xf32> to vector<8x1xf32>
    %30 = vector.shape_cast %29 : vector<8x1xf32> to vector<1x8x1xf32>
    %cst_13 = arith.constant 8.192000e+03 : f32
    %31 = vector.broadcast %cst_13 : f32 to vector<1x8x1xf32>
    %32 = arith.divf %30, %31 : vector<1x8x1xf32>
    %cst_14 = arith.constant 9.99999974E-6 : f32
    %33 = vector.broadcast %cst_14 : f32 to vector<1x8x1xf32>
    %34 = arith.addf %32, %33 : vector<1x8x1xf32>
    %35 = math.rsqrt %34 : vector<1x8x1xf32>
    %36 = vector.broadcast %35 : vector<1x8x1xf32> to vector<16x8x512xf32>
    %37 = arith.mulf %25, %36 : vector<16x8x512xf32>
    %c0_15 = arith.constant 0 : index
    %c0_16 = arith.constant 0 : index
    %c0_17 = arith.constant 0 : index
    %38 = vector.load %arg4[%c0_15, %c0_16, %c0_17] : memref<16x1x512xf32, #tpu.memory_space<vmem>>, vector<16x1x512xf32>
    %39 = vector.broadcast %38 : vector<16x1x512xf32> to vector<16x8x512xf32>
    %40 = arith.mulf %37, %39 : vector<16x8x512xf32>
    %c0_18 = arith.constant 0 : index
    %c0_19 = arith.constant 0 : index
    %c0_20 = arith.constant 0 : index
    %41 = vector.load %arg5[%c0_18, %c0_19, %c0_20] : memref<16x1x512xf32, #tpu.memory_space<vmem>>, vector<16x1x512xf32>
    %42 = vector.broadcast %41 : vector<16x1x512xf32> to vector<16x8x512xf32>
    %43 = arith.addf %40, %42 : vector<16x8x512xf32>
    %cst_21 = arith.constant 0.000000e+00 : bf16
    %44 = vector.broadcast %cst_21 : bf16 to vector<2x8x512xbf16>
    %c0_22 = arith.constant 0 : index
    %c0_23 = arith.constant 0 : index
    %c0_24 = arith.constant 0 : index
    %45 = vector.load %arg15[%c0_22, %c0_23, %c0_24] : memref<20x8x512xbf16, #tpu.memory_space<vmem>>, vector<2x8x512xbf16>
    tpu.vector_store %arg15[%c0_22, %c0_23, %c0_24], %44 {strides = array<i32>} : memref<20x8x512xbf16, #tpu.memory_space<vmem>>, vector<2x8x512xbf16>,
    %cst_25 = arith.constant 0.000000e+00 : bf16
    %46 = vector.broadcast %cst_25 : bf16 to vector<2x8x512xbf16>
    %c18 = arith.constant 18 : index
    %c0_26 = arith.constant 0 : index
    %c0_27 = arith.constant 0 : index
    %47 = vector.load %arg15[%c18, %c0_26, %c0_27] : memref<20x8x512xbf16, #tpu.memory_space<vmem>>, vector<2x8x512xbf16>
    tpu.vector_store %arg15[%c18, %c0_26, %c0_27], %46 {strides = array<i32>} : memref<20x8x512xbf16, #tpu.memory_space<vmem>>, vector<2x8x512xbf16>,
    %48 = arith.truncf %43 : vector<16x8x512xf32> to vector<16x8x512xbf16>
    %c2 = arith.constant 2 : index
    %c0_28 = arith.constant 0 : index
    %c0_29 = arith.constant 0 : index
    %49 = vector.load %arg15[%c2, %c0_28, %c0_29] : memref<20x8x512xbf16, #tpu.memory_space<vmem>>, vector<16x8x512xbf16>
    tpu.vector_store %arg15[%c2, %c0_28, %c0_29], %48 {strides = array<i32>} : memref<20x8x512xbf16, #tpu.memory_space<vmem>>, vector<16x8x512xbf16>,
    %c0_30 = arith.constant 0 : index
    %c0_31 = arith.constant 0 : index
    %c0_32 = arith.constant 0 : index
    %50 = vector.load %arg15[%c0_30, %c0_31, %c0_32] : memref<20x8x512xbf16, #tpu.memory_space<vmem>>, vector<16x8x512xbf16>
    %51 = vector.shape_cast %50 : vector<16x8x512xbf16> to vector<128x512xbf16>
    %c0_33 = arith.constant 0 : index
    %c0_34 = arith.constant 0 : index
    %c0_35 = arith.constant 0 : index
    %52 = vector.load %arg6[%c0_33, %c0_34, %c0_35] : memref<5x512x256xbf16, #tpu.memory_space<vmem>>, vector<1x512x256xbf16>
    %53 = vector.shape_cast %52 : vector<1x512x256xbf16> to vector<512x256xbf16>
    %cst_36 = arith.constant dense<0.000000e+00> : vector<128x256xf32>
    %54 = tpu.matmul %51, %53, %cst_36 {dimension_numbers = #tpu.dot_dimension_numbers<[1], [0], [0], [1], [0, 0, 1, 1], [], []>} : vector<128x512xbf16>, vector<512x256xbf16>, vector<128x256xf32> -> vector<128x256xf32>
    %c1 = arith.constant 1 : index
    %c0_37 = arith.constant 0 : index
    %c0_38 = arith.constant 0 : index
    %55 = vector.load %arg15[%c1, %c0_37, %c0_38] : memref<20x8x512xbf16, #tpu.memory_space<vmem>>, vector<16x8x512xbf16>
    %56 = vector.shape_cast %55 : vector<16x8x512xbf16> to vector<128x512xbf16>
    %c1_39 = arith.constant 1 : index
    %c0_40 = arith.constant 0 : index
    %c0_41 = arith.constant 0 : index
    %57 = vector.load %arg6[%c1_39, %c0_40, %c0_41] : memref<5x512x256xbf16, #tpu.memory_space<vmem>>, vector<1x512x256xbf16>
    %58 = vector.shape_cast %57 : vector<1x512x256xbf16> to vector<512x256xbf16>
    %cst_42 = arith.constant dense<0.000000e+00> : vector<128x256xf32>
    %59 = tpu.matmul %56, %58, %cst_42 {dimension_numbers = #tpu.dot_dimension_numbers<[1], [0], [0], [1], [0, 0, 1, 1], [], []>} : vector<128x512xbf16>, vector<512x256xbf16>, vector<128x256xf32> -> vector<128x256xf32>
    %60 = arith.addf %54, %59 : vector<128x256xf32>
    %c2_43 = arith.constant 2 : index
    %c0_44 = arith.constant 0 : index
    %c0_45 = arith.constant 0 : index
    %61 = vector.load %arg15[%c2_43, %c0_44, %c0_45] : memref<20x8x512xbf16, #tpu.memory_space<vmem>>, vector<16x8x512xbf16>
    %62 = vector.shape_cast %61 : vector<16x8x512xbf16> to vector<128x512xbf16>
    %c2_46 = arith.constant 2 : index
    %c0_47 = arith.constant 0 : index
    %c0_48 = arith.constant 0 : index
    %63 = vector.load %arg6[%c2_46, %c0_47, %c0_48] : memref<5x512x256xbf16, #tpu.memory_space<vmem>>, vector<1x512x256xbf16>
    %64 = vector.shape_cast %63 : vector<1x512x256xbf16> to vector<512x256xbf16>
    %cst_49 = arith.constant dense<0.000000e+00> : vector<128x256xf32>
    %65 = tpu.matmul %62, %64, %cst_49 {dimension_numbers = #tpu.dot_dimension_numbers<[1], [0], [0], [1], [0, 0, 1, 1], [], []>} : vector<128x512xbf16>, vector<512x256xbf16>, vector<128x256xf32> -> vector<128x256xf32>
    %66 = arith.addf %60, %65 : vector<128x256xf32>
    %c3 = arith.constant 3 : index
    %c0_50 = arith.constant 0 : index
    %c0_51 = arith.constant 0 : index
    %67 = vector.load %arg15[%c3, %c0_50, %c0_51] : memref<20x8x512xbf16, #tpu.memory_space<vmem>>, vector<16x8x512xbf16>
    %68 = vector.shape_cast %67 : vector<16x8x512xbf16> to vector<128x512xbf16>
    %c3_52 = arith.constant 3 : index
    %c0_53 = arith.constant 0 : index
    %c0_54 = arith.constant 0 : index
    %69 = vector.load %arg6[%c3_52, %c0_53, %c0_54] : memref<5x512x256xbf16, #tpu.memory_space<vmem>>, vector<1x512x256xbf16>
    %70 = vector.shape_cast %69 : vector<1x512x256xbf16> to vector<512x256xbf16>
    %cst_55 = arith.constant dense<0.000000e+00> : vector<128x256xf32>
    %71 = tpu.matmul %68, %70, %cst_55 {dimension_numbers = #tpu.dot_dimension_numbers<[1], [0], [0], [1], [0, 0, 1, 1], [], []>} : vector<128x512xbf16>, vector<512x256xbf16>, vector<128x256xf32> -> vector<128x256xf32>
    %72 = arith.addf %66, %71 : vector<128x256xf32>
    %c4 = arith.constant 4 : index
    %c0_56 = arith.constant 0 : index
    %c0_57 = arith.constant 0 : index
    %73 = vector.load %arg15[%c4, %c0_56, %c0_57] : memref<20x8x512xbf16, #tpu.memory_space<vmem>>, vector<16x8x512xbf16>
    %74 = vector.shape_cast %73 : vector<16x8x512xbf16> to vector<128x512xbf16>
    %c4_58 = arith.constant 4 : index
    %c0_59 = arith.constant 0 : index
    %c0_60 = arith.constant 0 : index
    %75 = vector.load %arg6[%c4_58, %c0_59, %c0_60] : memref<5x512x256xbf16, #tpu.memory_space<vmem>>, vector<1x512x256xbf16>
    %76 = vector.shape_cast %75 : vector<1x512x256xbf16> to vector<512x256xbf16>
    %cst_61 = arith.constant dense<0.000000e+00> : vector<128x256xf32>
    %77 = tpu.matmul %74, %76, %cst_61 {dimension_numbers = #tpu.dot_dimension_numbers<[1], [0], [0], [1], [0, 0, 1, 1], [], []>} : vector<128x512xbf16>, vector<512x256xbf16>, vector<128x256xf32> -> vector<128x256xf32>
    %78 = arith.addf %72, %77 : vector<128x256xf32>
    %c0_62 = arith.constant 0 : index
    %c0_63 = arith.constant 0 : index
    %79 = vector.load %arg7[%c0_62, %c0_63] : memref<1x256xf32, #tpu.memory_space<vmem>>, vector<1x256xf32>
    %80 = vector.broadcast %79 : vector<1x256xf32> to vector<128x256xf32>
    %81 = arith.addf %78, %80 : vector<128x256xf32>
    %82 = vector.shape_cast %81 : vector<128x256xf32> to vector<16x8x256xf32>
    %cst_64 = arith.constant 0.000000e+00 : f32
    %83 = vector.broadcast %cst_64 : f32 to vector<16x8x256xf32>
    %84 = arith.maximumf %82, %83 : vector<16x8x256xf32>
    %cst_65 = arith.constant 0.000000e+00 : bf16
    %85 = vector.broadcast %cst_65 : bf16 to vector<1x8x256xbf16>
    %c0_66 = arith.constant 0 : index
    %c0_67 = arith.constant 0 : index
    %c0_68 = arith.constant 0 : index
    %86 = vector.load %arg16[%c0_66, %c0_67, %c0_68] : memref<18x8x256xbf16, #tpu.memory_space<vmem>>, vector<1x8x256xbf16>
    tpu.vector_store %arg16[%c0_66, %c0_67, %c0_68], %85 {strides = array<i32>} : memref<18x8x256xbf16, #tpu.memory_space<vmem>>, vector<1x8x256xbf16>,
    %cst_69 = arith.constant 0.000000e+00 : bf16
    %87 = vector.broadcast %cst_69 : bf16 to vector<1x8x256xbf16>
    %c17 = arith.constant 17 : index
    %c0_70 = arith.constant 0 : index
    %c0_71 = arith.constant 0 : index
    %88 = vector.load %arg16[%c17, %c0_70, %c0_71] : memref<18x8x256xbf16, #tpu.memory_space<vmem>>, vector<1x8x256xbf16>
    tpu.vector_store %arg16[%c17, %c0_70, %c0_71], %87 {strides = array<i32>} : memref<18x8x256xbf16, #tpu.memory_space<vmem>>, vector<1x8x256xbf16>,
    %89 = arith.truncf %84 : vector<16x8x256xf32> to vector<16x8x256xbf16>
    %c1_72 = arith.constant 1 : index
    %c0_73 = arith.constant 0 : index
    %c0_74 = arith.constant 0 : index
    %90 = vector.load %arg16[%c1_72, %c0_73, %c0_74] : memref<18x8x256xbf16, #tpu.memory_space<vmem>>, vector<16x8x256xbf16>
    tpu.vector_store %arg16[%c1_72, %c0_73, %c0_74], %89 {strides = array<i32>} : memref<18x8x256xbf16, #tpu.memory_space<vmem>>, vector<16x8x256xbf16>,
    %c0_75 = arith.constant 0 : index
    %c0_76 = arith.constant 0 : index
    %c0_77 = arith.constant 0 : index
    %91 = vector.load %arg16[%c0_75, %c0_76, %c0_77] : memref<18x8x256xbf16, #tpu.memory_space<vmem>>, vector<16x8x256xbf16>
    %92 = vector.shape_cast %91 : vector<16x8x256xbf16> to vector<128x256xbf16>
    %c0_78 = arith.constant 0 : index
    %c0_79 = arith.constant 0 : index
    %c0_80 = arith.constant 0 : index
    %93 = vector.load %arg8[%c0_78, %c0_79, %c0_80] : memref<3x256x128xbf16, #tpu.memory_space<vmem>>, vector<1x256x128xbf16>
    %94 = vector.shape_cast %93 : vector<1x256x128xbf16> to vector<256x128xbf16>
    %cst_81 = arith.constant dense<0.000000e+00> : vector<128x128xf32>
    %95 = tpu.matmul %92, %94, %cst_81 {dimension_numbers = #tpu.dot_dimension_numbers<[1], [0], [0], [1], [0, 0, 1, 1], [], []>} : vector<128x256xbf16>, vector<256x128xbf16>, vector<128x128xf32> -> vector<128x128xf32>
    %c1_82 = arith.constant 1 : index
    %c0_83 = arith.constant 0 : index
    %c0_84 = arith.constant 0 : index
    %96 = vector.load %arg16[%c1_82, %c0_83, %c0_84] : memref<18x8x256xbf16, #tpu.memory_space<vmem>>, vector<16x8x256xbf16>
    %97 = vector.shape_cast %96 : vector<16x8x256xbf16> to vector<128x256xbf16>
    %c1_85 = arith.constant 1 : index
    %c0_86 = arith.constant 0 : index
    %c0_87 = arith.constant 0 : index
    %98 = vector.load %arg8[%c1_85, %c0_86, %c0_87] : memref<3x256x128xbf16, #tpu.memory_space<vmem>>, vector<1x256x128xbf16>
    %99 = vector.shape_cast %98 : vector<1x256x128xbf16> to vector<256x128xbf16>
    %cst_88 = arith.constant dense<0.000000e+00> : vector<128x128xf32>
    %100 = tpu.matmul %97, %99, %cst_88 {dimension_numbers = #tpu.dot_dimension_numbers<[1], [0], [0], [1], [0, 0, 1, 1], [], []>} : vector<128x256xbf16>, vector<256x128xbf16>, vector<128x128xf32> -> vector<128x128xf32>
    %101 = arith.addf %95, %100 : vector<128x128xf32>
    %c2_89 = arith.constant 2 : index
    %c0_90 = arith.constant 0 : index
    %c0_91 = arith.constant 0 : index
    %102 = vector.load %arg16[%c2_89, %c0_90, %c0_91] : memref<18x8x256xbf16, #tpu.memory_space<vmem>>, vector<16x8x256xbf16>
    %103 = vector.shape_cast %102 : vector<16x8x256xbf16> to vector<128x256xbf16>
    %c2_92 = arith.constant 2 : index
    %c0_93 = arith.constant 0 : index
    %c0_94 = arith.constant 0 : index
    %104 = vector.load %arg8[%c2_92, %c0_93, %c0_94] : memref<3x256x128xbf16, #tpu.memory_space<vmem>>, vector<1x256x128xbf16>
    %105 = vector.shape_cast %104 : vector<1x256x128xbf16> to vector<256x128xbf16>
    %cst_95 = arith.constant dense<0.000000e+00> : vector<128x128xf32>
    %106 = tpu.matmul %103, %105, %cst_95 {dimension_numbers = #tpu.dot_dimension_numbers<[1], [0], [0], [1], [0, 0, 1, 1], [], []>} : vector<128x256xbf16>, vector<256x128xbf16>, vector<128x128xf32> -> vector<128x128xf32>
    %107 = arith.addf %101, %106 : vector<128x128xf32>
    %c0_96 = arith.constant 0 : index
    %c0_97 = arith.constant 0 : index
    %108 = vector.load %arg9[%c0_96, %c0_97] : memref<1x128xf32, #tpu.memory_space<vmem>>, vector<1x128xf32>
    %109 = vector.broadcast %108 : vector<1x128xf32> to vector<128x128xf32>
    %110 = arith.addf %107, %109 : vector<128x128xf32>
    %111 = vector.shape_cast %110 : vector<128x128xf32> to vector<16x8x128xf32>
    %cst_98 = arith.constant 0.000000e+00 : f32
    %112 = vector.broadcast %cst_98 : f32 to vector<16x8x128xf32>
    %113 = arith.maximumf %111, %112 : vector<16x8x128xf32>
    %cst_99 = arith.constant dense<0.000000e+00> : vector<16x8xf32>
    %114 = vector.multi_reduction <add>, %113, %cst_99 [2] : vector<16x8x128xf32> to vector<16x8xf32>
    %115 = vector.shape_cast %114 : vector<16x8xf32> to vector<16x8x1xf32>
    %cst_100 = arith.constant dense<0.000000e+00> : vector<8x1xf32>
    %116 = vector.multi_reduction <add>, %115, %cst_100 [0] : vector<16x8x1xf32> to vector<8x1xf32>
    %117 = vector.shape_cast %116 : vector<8x1xf32> to vector<1x8x1xf32>
    %cst_101 = arith.constant 2.048000e+03 : f32
    %118 = vector.broadcast %cst_101 : f32 to vector<1x8x1xf32>
    %119 = arith.divf %117, %118 : vector<1x8x1xf32>
    %120 = vector.broadcast %119 : vector<1x8x1xf32> to vector<16x8x128xf32>
    %121 = arith.subf %113, %120 : vector<16x8x128xf32>
    %122 = arith.mulf %121, %121 : vector<16x8x128xf32>
    %cst_102 = arith.constant dense<0.000000e+00> : vector<16x8xf32>
    %123 = vector.multi_reduction <add>, %122, %cst_102 [2] : vector<16x8x128xf32> to vector<16x8xf32>
    %124 = vector.shape_cast %123 : vector<16x8xf32> to vector<16x8x1xf32>
    %cst_103 = arith.constant dense<0.000000e+00> : vector<8x1xf32>
    %125 = vector.multi_reduction <add>, %124, %cst_103 [0] : vector<16x8x1xf32> to vector<8x1xf32>
    %126 = vector.shape_cast %125 : vector<8x1xf32> to vector<1x8x1xf32>
    %cst_104 = arith.constant 2.048000e+03 : f32
    %127 = vector.broadcast %cst_104 : f32 to vector<1x8x1xf32>
    %128 = arith.divf %126, %127 : vector<1x8x1xf32>
    %cst_105 = arith.constant 9.99999974E-6 : f32
    %129 = vector.broadcast %cst_105 : f32 to vector<1x8x1xf32>
    %130 = arith.addf %128, %129 : vector<1x8x1xf32>
    %131 = math.rsqrt %130 : vector<1x8x1xf32>
    %132 = vector.broadcast %131 : vector<1x8x1xf32> to vector<16x8x128xf32>
    %133 = arith.mulf %121, %132 : vector<16x8x128xf32>
    %c0_106 = arith.constant 0 : index
    %c0_107 = arith.constant 0 : index
    %c0_108 = arith.constant 0 : index
    %134 = vector.load %arg10[%c0_106, %c0_107, %c0_108] : memref<16x1x128xf32, #tpu.memory_space<vmem>>, vector<16x1x128xf32>
    %135 = vector.broadcast %134 : vector<16x1x128xf32> to vector<16x8x128xf32>
    %136 = arith.mulf %133, %135 : vector<16x8x128xf32>
    %c0_109 = arith.constant 0 : index
    %c0_110 = arith.constant 0 : index
    %c0_111 = arith.constant 0 : index
    %137 = vector.load %arg11[%c0_109, %c0_110, %c0_111] : memref<16x1x128xf32, #tpu.memory_space<vmem>>, vector<16x1x128xf32>
    %138 = vector.broadcast %137 : vector<16x1x128xf32> to vector<16x8x128xf32>
    %139 = arith.addf %136, %138 : vector<16x8x128xf32>
    %140 = arith.truncf %139 : vector<16x8x128xf32> to vector<16x8x128xbf16>
    %141 = vector.extract_strided_slice %140 {offsets = [0, 0, 0], sizes = [1, 8, 128], strides = [1, 1, 1]} : vector<16x8x128xbf16> to vector<1x8x128xbf16>
    %142 = vector.shape_cast %141 : vector<1x8x128xbf16> to vector<8x128xbf16>
    %c0_112 = arith.constant 0 : index
    %c0_113 = arith.constant 0 : index
    %c0_114 = arith.constant 0 : index
    %143 = vector.load %arg12[%c0_112, %c0_113, %c0_114] : memref<16x128x128xbf16, #tpu.memory_space<vmem>>, vector<1x128x128xbf16>
    %144 = vector.shape_cast %143 : vector<1x128x128xbf16> to vector<128x128xbf16>
    %cst_115 = arith.constant dense<0.000000e+00> : vector<8x128xf32>
    %145 = tpu.matmul %142, %144, %cst_115 {dimension_numbers = #tpu.dot_dimension_numbers<[1], [0], [0], [1], [0, 0, 1, 1], [], []>} : vector<8x128xbf16>, vector<128x128xbf16>, vector<8x128xf32> -> vector<8x128xf32>
    %146 = vector.extract_strided_slice %140 {offsets = [1, 0, 0], sizes = [1, 8, 128], strides = [1, 1, 1]} : vector<16x8x128xbf16> to vector<1x8x128xbf16>
    %147 = vector.shape_cast %146 : vector<1x8x128xbf16> to vector<8x128xbf16>
    %c1_116 = arith.constant 1 : index
    %c0_117 = arith.constant 0 : index
    %c0_118 = arith.constant 0 : index
    %148 = vector.load %arg12[%c1_116, %c0_117, %c0_118] : memref<16x128x128xbf16, #tpu.memory_space<vmem>>, vector<1x128x128xbf16>
    %149 = vector.shape_cast %148 : vector<1x128x128xbf16> to vector<128x128xbf16>
    %cst_119 = arith.constant dense<0.000000e+00> : vector<8x128xf32>
    %150 = tpu.matmul %147, %149, %cst_119 {dimension_numbers = #tpu.dot_dimension_numbers<[1], [0], [0], [1], [0, 0, 1, 1], [], []>} : vector<8x128xbf16>, vector<128x128xbf16>, vector<8x128xf32> -> vector<8x128xf32>
    %151 = arith.addf %145, %150 : vector<8x128xf32>
    %152 = vector.extract_strided_slice %140 {offsets = [2, 0, 0], sizes = [1, 8, 128], strides = [1, 1, 1]} : vector<16x8x128xbf16> to vector<1x8x128xbf16>
    %153 = vector.shape_cast %152 : vector<1x8x128xbf16> to vector<8x128xbf16>
    %c2_120 = arith.constant 2 : index
    %c0_121 = arith.constant 0 : index
    %c0_122 = arith.constant 0 : index
    %154 = vector.load %arg12[%c2_120, %c0_121, %c0_122] : memref<16x128x128xbf16, #tpu.memory_space<vmem>>, vector<1x128x128xbf16>
    %155 = vector.shape_cast %154 : vector<1x128x128xbf16> to vector<128x128xbf16>
    %cst_123 = arith.constant dense<0.000000e+00> : vector<8x128xf32>
    %156 = tpu.matmul %153, %155, %cst_123 {dimension_numbers = #tpu.dot_dimension_numbers<[1], [0], [0], [1], [0, 0, 1, 1], [], []>} : vector<8x128xbf16>, vector<128x128xbf16>, vector<8x128xf32> -> vector<8x128xf32>
    %157 = arith.addf %151, %156 : vector<8x128xf32>
    %158 = vector.extract_strided_slice %140 {offsets = [3, 0, 0], sizes = [1, 8, 128], strides = [1, 1, 1]} : vector<16x8x128xbf16> to vector<1x8x128xbf16>
    %159 = vector.shape_cast %158 : vector<1x8x128xbf16> to vector<8x128xbf16>
    %c3_124 = arith.constant 3 : index
    %c0_125 = arith.constant 0 : index
    %c0_126 = arith.constant 0 : index
    %160 = vector.load %arg12[%c3_124, %c0_125, %c0_126] : memref<16x128x128xbf16, #tpu.memory_space<vmem>>, vector<1x128x128xbf16>
    %161 = vector.shape_cast %160 : vector<1x128x128xbf16> to vector<128x128xbf16>
    %cst_127 = arith.constant dense<0.000000e+00> : vector<8x128xf32>
    %162 = tpu.matmul %159, %161, %cst_127 {dimension_numbers = #tpu.dot_dimension_numbers<[1], [0], [0], [1], [0, 0, 1, 1], [], []>} : vector<8x128xbf16>, vector<128x128xbf16>, vector<8x128xf32> -> vector<8x128xf32>
    %163 = arith.addf %157, %162 : vector<8x128xf32>
    %164 = vector.extract_strided_slice %140 {offsets = [4, 0, 0], sizes = [1, 8, 128], strides = [1, 1, 1]} : vector<16x8x128xbf16> to vector<1x8x128xbf16>
    %165 = vector.shape_cast %164 : vector<1x8x128xbf16> to vector<8x128xbf16>
    %c4_128 = arith.constant 4 : index
    %c0_129 = arith.constant 0 : index
    %c0_130 = arith.constant 0 : index
    %166 = vector.load %arg12[%c4_128, %c0_129, %c0_130] : memref<16x128x128xbf16, #tpu.memory_space<vmem>>, vector<1x128x128xbf16>
    %167 = vector.shape_cast %166 : vector<1x128x128xbf16> to vector<128x128xbf16>
    %cst_131 = arith.constant dense<0.000000e+00> : vector<8x128xf32>
    %168 = tpu.matmul %165, %167, %cst_131 {dimension_numbers = #tpu.dot_dimension_numbers<[1], [0], [0], [1], [0, 0, 1, 1], [], []>} : vector<8x128xbf16>, vector<128x128xbf16>, vector<8x128xf32> -> vector<8x128xf32>
    %169 = arith.addf %163, %168 : vector<8x128xf32>
    %170 = vector.extract_strided_slice %140 {offsets = [5, 0, 0], sizes = [1, 8, 128], strides = [1, 1, 1]} : vector<16x8x128xbf16> to vector<1x8x128xbf16>
    %171 = vector.shape_cast %170 : vector<1x8x128xbf16> to vector<8x128xbf16>
    %c5 = arith.constant 5 : index
    %c0_132 = arith.constant 0 : index
    %c0_133 = arith.constant 0 : index
    %172 = vector.load %arg12[%c5, %c0_132, %c0_133] : memref<16x128x128xbf16, #tpu.memory_space<vmem>>, vector<1x128x128xbf16>
    %173 = vector.shape_cast %172 : vector<1x128x128xbf16> to vector<128x128xbf16>
    %cst_134 = arith.constant dense<0.000000e+00> : vector<8x128xf32>
    %174 = tpu.matmul %171, %173, %cst_134 {dimension_numbers = #tpu.dot_dimension_numbers<[1], [0], [0], [1], [0, 0, 1, 1], [], []>} : vector<8x128xbf16>, vector<128x128xbf16>, vector<8x128xf32> -> vector<8x128xf32>
    %175 = arith.addf %169, %174 : vector<8x128xf32>
    %176 = vector.extract_strided_slice %140 {offsets = [6, 0, 0], sizes = [1, 8, 128], strides = [1, 1, 1]} : vector<16x8x128xbf16> to vector<1x8x128xbf16>
    %177 = vector.shape_cast %176 : vector<1x8x128xbf16> to vector<8x128xbf16>
    %c6 = arith.constant 6 : index
    %c0_135 = arith.constant 0 : index
    %c0_136 = arith.constant 0 : index
    %178 = vector.load %arg12[%c6, %c0_135, %c0_136] : memref<16x128x128xbf16, #tpu.memory_space<vmem>>, vector<1x128x128xbf16>
    %179 = vector.shape_cast %178 : vector<1x128x128xbf16> to vector<128x128xbf16>
    %cst_137 = arith.constant dense<0.000000e+00> : vector<8x128xf32>
    %180 = tpu.matmul %177, %179, %cst_137 {dimension_numbers = #tpu.dot_dimension_numbers<[1], [0], [0], [1], [0, 0, 1, 1], [], []>} : vector<8x128xbf16>, vector<128x128xbf16>, vector<8x128xf32> -> vector<8x128xf32>
    %181 = arith.addf %175, %180 : vector<8x128xf32>
    %182 = vector.extract_strided_slice %140 {offsets = [7, 0, 0], sizes = [1, 8, 128], strides = [1, 1, 1]} : vector<16x8x128xbf16> to vector<1x8x128xbf16>
    %183 = vector.shape_cast %182 : vector<1x8x128xbf16> to vector<8x128xbf16>
    %c7 = arith.constant 7 : index
    %c0_138 = arith.constant 0 : index
    %c0_139 = arith.constant 0 : index
    %184 = vector.load %arg12[%c7, %c0_138, %c0_139] : memref<16x128x128xbf16, #tpu.memory_space<vmem>>, vector<1x128x128xbf16>
    %185 = vector.shape_cast %184 : vector<1x128x128xbf16> to vector<128x128xbf16>
    %cst_140 = arith.constant dense<0.000000e+00> : vector<8x128xf32>
    %186 = tpu.matmul %183, %185, %cst_140 {dimension_numbers = #tpu.dot_dimension_numbers<[1], [0], [0], [1], [0, 0, 1, 1], [], []>} : vector<8x128xbf16>, vector<128x128xbf16>, vector<8x128xf32> -> vector<8x128xf32>
    %187 = arith.addf %181, %186 : vector<8x128xf32>
    %188 = vector.extract_strided_slice %140 {offsets = [8, 0, 0], sizes = [1, 8, 128], strides = [1, 1, 1]} : vector<16x8x128xbf16> to vector<1x8x128xbf16>
    %189 = vector.shape_cast %188 : vector<1x8x128xbf16> to vector<8x128xbf16>
    %c8 = arith.constant 8 : index
    %c0_141 = arith.constant 0 : index
    %c0_142 = arith.constant 0 : index
    %190 = vector.load %arg12[%c8, %c0_141, %c0_142] : memref<16x128x128xbf16, #tpu.memory_space<vmem>>, vector<1x128x128xbf16>
    %191 = vector.shape_cast %190 : vector<1x128x128xbf16> to vector<128x128xbf16>
    %cst_143 = arith.constant dense<0.000000e+00> : vector<8x128xf32>
    %192 = tpu.matmul %189, %191, %cst_143 {dimension_numbers = #tpu.dot_dimension_numbers<[1], [0], [0], [1], [0, 0, 1, 1], [], []>} : vector<8x128xbf16>, vector<128x128xbf16>, vector<8x128xf32> -> vector<8x128xf32>
    %193 = arith.addf %187, %192 : vector<8x128xf32>
    %194 = vector.extract_strided_slice %140 {offsets = [9, 0, 0], sizes = [1, 8, 128], strides = [1, 1, 1]} : vector<16x8x128xbf16> to vector<1x8x128xbf16>
    %195 = vector.shape_cast %194 : vector<1x8x128xbf16> to vector<8x128xbf16>
    %c9 = arith.constant 9 : index
    %c0_144 = arith.constant 0 : index
    %c0_145 = arith.constant 0 : index
    %196 = vector.load %arg12[%c9, %c0_144, %c0_145] : memref<16x128x128xbf16, #tpu.memory_space<vmem>>, vector<1x128x128xbf16>
    %197 = vector.shape_cast %196 : vector<1x128x128xbf16> to vector<128x128xbf16>
    %cst_146 = arith.constant dense<0.000000e+00> : vector<8x128xf32>
    %198 = tpu.matmul %195, %197, %cst_146 {dimension_numbers = #tpu.dot_dimension_numbers<[1], [0], [0], [1], [0, 0, 1, 1], [], []>} : vector<8x128xbf16>, vector<128x128xbf16>, vector<8x128xf32> -> vector<8x128xf32>
    %199 = arith.addf %193, %198 : vector<8x128xf32>
    %200 = vector.extract_strided_slice %140 {offsets = [10, 0, 0], sizes = [1, 8, 128], strides = [1, 1, 1]} : vector<16x8x128xbf16> to vector<1x8x128xbf16>
    %201 = vector.shape_cast %200 : vector<1x8x128xbf16> to vector<8x128xbf16>
    %c10 = arith.constant 10 : index
    %c0_147 = arith.constant 0 : index
    %c0_148 = arith.constant 0 : index
    %202 = vector.load %arg12[%c10, %c0_147, %c0_148] : memref<16x128x128xbf16, #tpu.memory_space<vmem>>, vector<1x128x128xbf16>
    %203 = vector.shape_cast %202 : vector<1x128x128xbf16> to vector<128x128xbf16>
    %cst_149 = arith.constant dense<0.000000e+00> : vector<8x128xf32>
    %204 = tpu.matmul %201, %203, %cst_149 {dimension_numbers = #tpu.dot_dimension_numbers<[1], [0], [0], [1], [0, 0, 1, 1], [], []>} : vector<8x128xbf16>, vector<128x128xbf16>, vector<8x128xf32> -> vector<8x128xf32>
    %205 = arith.addf %199, %204 : vector<8x128xf32>
    %206 = vector.extract_strided_slice %140 {offsets = [11, 0, 0], sizes = [1, 8, 128], strides = [1, 1, 1]} : vector<16x8x128xbf16> to vector<1x8x128xbf16>
    %207 = vector.shape_cast %206 : vector<1x8x128xbf16> to vector<8x128xbf16>
    %c11 = arith.constant 11 : index
    %c0_150 = arith.constant 0 : index
    %c0_151 = arith.constant 0 : index
    %208 = vector.load %arg12[%c11, %c0_150, %c0_151] : memref<16x128x128xbf16, #tpu.memory_space<vmem>>, vector<1x128x128xbf16>
    %209 = vector.shape_cast %208 : vector<1x128x128xbf16> to vector<128x128xbf16>
    %cst_152 = arith.constant dense<0.000000e+00> : vector<8x128xf32>
    %210 = tpu.matmul %207, %209, %cst_152 {dimension_numbers = #tpu.dot_dimension_numbers<[1], [0], [0], [1], [0, 0, 1, 1], [], []>} : vector<8x128xbf16>, vector<128x128xbf16>, vector<8x128xf32> -> vector<8x128xf32>
    %211 = arith.addf %205, %210 : vector<8x128xf32>
    %212 = vector.extract_strided_slice %140 {offsets = [12, 0, 0], sizes = [1, 8, 128], strides = [1, 1, 1]} : vector<16x8x128xbf16> to vector<1x8x128xbf16>
    %213 = vector.shape_cast %212 : vector<1x8x128xbf16> to vector<8x128xbf16>
    %c12 = arith.constant 12 : index
    %c0_153 = arith.constant 0 : index
    %c0_154 = arith.constant 0 : index
    %214 = vector.load %arg12[%c12, %c0_153, %c0_154] : memref<16x128x128xbf16, #tpu.memory_space<vmem>>, vector<1x128x128xbf16>
    %215 = vector.shape_cast %214 : vector<1x128x128xbf16> to vector<128x128xbf16>
    %cst_155 = arith.constant dense<0.000000e+00> : vector<8x128xf32>
    %216 = tpu.matmul %213, %215, %cst_155 {dimension_numbers = #tpu.dot_dimension_numbers<[1], [0], [0], [1], [0, 0, 1, 1], [], []>} : vector<8x128xbf16>, vector<128x128xbf16>, vector<8x128xf32> -> vector<8x128xf32>
    %217 = arith.addf %211, %216 : vector<8x128xf32>
    %218 = vector.extract_strided_slice %140 {offsets = [13, 0, 0], sizes = [1, 8, 128], strides = [1, 1, 1]} : vector<16x8x128xbf16> to vector<1x8x128xbf16>
    %219 = vector.shape_cast %218 : vector<1x8x128xbf16> to vector<8x128xbf16>
    %c13 = arith.constant 13 : index
    %c0_156 = arith.constant 0 : index
    %c0_157 = arith.constant 0 : index
    %220 = vector.load %arg12[%c13, %c0_156, %c0_157] : memref<16x128x128xbf16, #tpu.memory_space<vmem>>, vector<1x128x128xbf16>
    %221 = vector.shape_cast %220 : vector<1x128x128xbf16> to vector<128x128xbf16>
    %cst_158 = arith.constant dense<0.000000e+00> : vector<8x128xf32>
    %222 = tpu.matmul %219, %221, %cst_158 {dimension_numbers = #tpu.dot_dimension_numbers<[1], [0], [0], [1], [0, 0, 1, 1], [], []>} : vector<8x128xbf16>, vector<128x128xbf16>, vector<8x128xf32> -> vector<8x128xf32>
    %223 = arith.addf %217, %222 : vector<8x128xf32>
    %224 = vector.extract_strided_slice %140 {offsets = [14, 0, 0], sizes = [1, 8, 128], strides = [1, 1, 1]} : vector<16x8x128xbf16> to vector<1x8x128xbf16>
    %225 = vector.shape_cast %224 : vector<1x8x128xbf16> to vector<8x128xbf16>
    %c14 = arith.constant 14 : index
    %c0_159 = arith.constant 0 : index
    %c0_160 = arith.constant 0 : index
    %226 = vector.load %arg12[%c14, %c0_159, %c0_160] : memref<16x128x128xbf16, #tpu.memory_space<vmem>>, vector<1x128x128xbf16>
    %227 = vector.shape_cast %226 : vector<1x128x128xbf16> to vector<128x128xbf16>
    %cst_161 = arith.constant dense<0.000000e+00> : vector<8x128xf32>
    %228 = tpu.matmul %225, %227, %cst_161 {dimension_numbers = #tpu.dot_dimension_numbers<[1], [0], [0], [1], [0, 0, 1, 1], [], []>} : vector<8x128xbf16>, vector<128x128xbf16>, vector<8x128xf32> -> vector<8x128xf32>
    %229 = arith.addf %223, %228 : vector<8x128xf32>
    %230 = vector.extract_strided_slice %140 {offsets = [15, 0, 0], sizes = [1, 8, 128], strides = [1, 1, 1]} : vector<16x8x128xbf16> to vector<1x8x128xbf16>
    %231 = vector.shape_cast %230 : vector<1x8x128xbf16> to vector<8x128xbf16>
    %c15 = arith.constant 15 : index
    %c0_162 = arith.constant 0 : index
    %c0_163 = arith.constant 0 : index
    %232 = vector.load %arg12[%c15, %c0_162, %c0_163] : memref<16x128x128xbf16, #tpu.memory_space<vmem>>, vector<1x128x128xbf16>
    %233 = vector.shape_cast %232 : vector<1x128x128xbf16> to vector<128x128xbf16>
    %cst_164 = arith.constant dense<0.000000e+00> : vector<8x128xf32>
    %234 = tpu.matmul %231, %233, %cst_164 {dimension_numbers = #tpu.dot_dimension_numbers<[1], [0], [0], [1], [0, 0, 1, 1], [], []>} : vector<8x128xbf16>, vector<128x128xbf16>, vector<8x128xf32> -> vector<8x128xf32>
    %235 = arith.addf %229, %234 : vector<8x128xf32>
    %c0_165 = arith.constant 0 : index
    %c0_166 = arith.constant 0 : index
    %236 = vector.load %arg13[%c0_165, %c0_166] : memref<1x128xf32, #tpu.memory_space<vmem>>, vector<1x128xf32>
    %237 = vector.broadcast %236 : vector<1x128xf32> to vector<8x128xf32>
    %238 = arith.addf %235, %237 : vector<8x128xf32>
    %c0_167 = arith.constant 0 : index
    %c0_168 = arith.constant 0 : index
    %239 = vector.load %arg14[%c0_167, %c0_168] : memref<8x128xf32, #tpu.memory_space<vmem>>, vector<8x128xf32>
    tpu.vector_store %arg14[%c0_167, %c0_168], %238 {strides = array<i32>} : memref<8x128xf32, #tpu.memory_space<vmem>>, vector<8x128xf32>,
    return
  }
  func.func @transform_0(%arg0: i32) -> (i32, i32, i32) {
    %c0_i32 = arith.constant 0 : i32
    %c0_i32_0 = arith.constant 0 : i32
    %c0_i32_1 = arith.constant 0 : i32
    return %c0_i32, %arg0, %c0_i32_0 : i32, i32, i32
  }
  func.func @transform_1(%arg0: i32) -> (i32, i32) {
    %c0_i32 = arith.constant 0 : i32
    %c0_i32_0 = arith.constant 0 : i32
    %c0_i32_1 = arith.constant 0 : i32
    return %c0_i32, %c0_i32_0 : i32, i32
  }
  func.func @transform_2(%arg0: i32) -> (i32, i32) {
    %c0_i32 = arith.constant 0 : i32
    %c0_i32_0 = arith.constant 0 : i32
    %c0_i32_1 = arith.constant 0 : i32
    return %c0_i32, %c0_i32_0 : i32, i32
  }
  func.func @transform_3(%arg0: i32) -> (i32, i32, i32) {
    %c0_i32 = arith.constant 0 : i32
    %c0_i32_0 = arith.constant 0 : i32
    %c0_i32_1 = arith.constant 0 : i32
    %c0_i32_2 = arith.constant 0 : i32
    return %c0_i32, %c0_i32_0, %c0_i32_1 : i32, i32, i32
  }
  func.func @transform_4(%arg0: i32) -> (i32, i32, i32) {
    %c0_i32 = arith.constant 0 : i32
    %c0_i32_0 = arith.constant 0 : i32
    %c0_i32_1 = arith.constant 0 : i32
    %c0_i32_2 = arith.constant 0 : i32
    return %c0_i32, %c0_i32_0, %c0_i32_1 : i32, i32, i32
  }
  func.func @transform_5(%arg0: i32) -> (i32, i32, i32) {
    %c0_i32 = arith.constant 0 : i32
    %c0_i32_0 = arith.constant 0 : i32
    %c0_i32_1 = arith.constant 0 : i32
    %c0_i32_2 = arith.constant 0 : i32
    return %c0_i32, %c0_i32_0, %c0_i32_1 : i32, i32, i32
  }
  func.func @transform_6(%arg0: i32) -> (i32, i32) {
    %c0_i32 = arith.constant 0 : i32
    %c0_i32_0 = arith.constant 0 : i32
    %c0_i32_1 = arith.constant 0 : i32
    return %c0_i32, %c0_i32_0 : i32, i32
  }
  func.func @transform_7(%arg0: i32) -> (i32, i32, i32) {
    %c0_i32 = arith.constant 0 : i32
    %c0_i32_0 = arith.constant 0 : i32
    %c0_i32_1 = arith.constant 0 : i32
    %c0_i32_2 = arith.constant 0 : i32
    return %c0_i32, %c0_i32_0, %c0_i32_1 : i32, i32, i32
  }
  func.func @transform_8(%arg0: i32) -> (i32, i32) {
    %c0_i32 = arith.constant 0 : i32
    %c0_i32_0 = arith.constant 0 : i32
    %c0_i32_1 = arith.constant 0 : i32
    return %c0_i32, %c0_i32_0 : i32, i32
  }
  func.func @transform_9(%arg0: i32) -> (i32, i32, i32) {
    %c0_i32 = arith.constant 0 : i32
    %c0_i32_0 = arith.constant 0 : i32
    %c0_i32_1 = arith.constant 0 : i32
    %c0_i32_2 = arith.constant 0 : i32
    return %c0_i32, %c0_i32_0, %c0_i32_1 : i32, i32, i32
  }
  func.func @transform_10(%arg0: i32) -> (i32, i32, i32) {
    %c0_i32 = arith.constant 0 : i32
    %c0_i32_0 = arith.constant 0 : i32
    %c0_i32_1 = arith.constant 0 : i32
    %c0_i32_2 = arith.constant 0 : i32
    return %c0_i32, %c0_i32_0, %c0_i32_1 : i32, i32, i32
  }
  func.func @transform_11(%arg0: i32) -> (i32, i32, i32) {
    %c0_i32 = arith.constant 0 : i32
    %c0_i32_0 = arith.constant 0 : i32
    %c0_i32_1 = arith.constant 0 : i32
    %c0_i32_2 = arith.constant 0 : i32
    return %c0_i32, %c0_i32_0, %c0_i32_1 : i32, i32, i32
  }
  func.func @transform_12(%arg0: i32) -> (i32, i32) {
    %c0_i32 = arith.constant 0 : i32
    %c0_i32_0 = arith.constant 0 : i32
    %c0_i32_1 = arith.constant 0 : i32
    return %c0_i32, %c0_i32_0 : i32, i32
  }
  func.func @transform_13(%arg0: i32) -> (i32, i32) {
    %c0_i32 = arith.constant 0 : i32
    %c0_i32_0 = arith.constant 0 : i32
    return %arg0, %c0_i32 : i32, i32
  }
}

</mosaic_0001>

<llo_original>
// kernel: tpu_custom_call.1
$region0: #{tpu_custom_call.1}
  #allocation0 [shape = 'u32[]', space=smem, size = 0x4, offset = 0x4, fixed_abs, tag = 'smem constant byte address 0x4 - core index']
  #allocation1 [shape = 'u32[72,128]{1,0:T(1,128)}', space=vmem, size = 0x9000, scoped, tag = 'internal scratch']
  #allocation2 [shape = 'bf16[20,8,512]{2,1,0:T(8,128)(2,1)}', space=vmem, size = 0x28000, scoped, tag = 'scratch operand']
  #allocation3 [shape = 'bf16[18,8,256]{2,1,0:T(8,128)(2,1)}', space=vmem, size = 0x12000, scoped, tag = 'scratch operand']
  %s0 = inlined_call_operand.hbm [shape: bf16[16,8,128], index: 0, kind: input, shape index: {}]
  %s1 = inlined_call_operand.hbm [shape: bf16[640,512], index: 1, kind: input, shape index: {}]
  %s2 = inlined_call_operand.hbm [shape: f32[1,512], index: 2, kind: input, shape index: {}]
  %s3 = inlined_call_operand.hbm [shape: f32[16,1,512], index: 3, kind: input, shape index: {}]
  %s4 = inlined_call_operand.hbm [shape: f32[16,1,512], index: 4, kind: input, shape index: {}]
  %s5 = inlined_call_operand.hbm [shape: bf16[5,512,256], index: 5, kind: input, shape index: {}]
  %s6 = inlined_call_operand.hbm [shape: f32[1,256], index: 6, kind: input, shape index: {}]
  %s7 = inlined_call_operand.hbm [shape: bf16[3,256,128], index: 7, kind: input, shape index: {}]
  %s8 = inlined_call_operand.hbm [shape: f32[1,128], index: 8, kind: input, shape index: {}]
  %s9 = inlined_call_operand.hbm [shape: f32[16,1,128], index: 9, kind: input, shape index: {}]
  %s10 = inlined_call_operand.hbm [shape: f32[16,1,128], index: 10, kind: input, shape index: {}]
  %s11 = inlined_call_operand.hbm [shape: bf16[16,128,128], index: 11, kind: input, shape index: {}]
  %s12 = inlined_call_operand.hbm [shape: f32[1,128], index: 12, kind: input, shape index: {}]
  %s13 = inlined_call_operand.hbm [shape: f32[8,128], index: 13, kind: output, shape index: {}]
  %s14 = sld [smem:[#allocation0]]
  $region114: #{tpu_custom_call.1} parent=0
    _
  %s16 = ssub.s32 1, %s14
  %s17 = scalar_select 0, %s16, %s14
  $region1: #{tpu_custom_call.1} parent=0
    #allocation4 [shape = 'u8[32768]{0}', space=vmem, size = 0x8000, scoped, tag = 'input window, operand 0, single buffered']
    #allocation5 [shape = 's32[1]{0}', space=sflag, size = 0x4, scoped, tag = 'scoped memory for tpu_custom_call.1']
    #allocation6 [shape = 's32[1]{0}', space=sflag, size = 0x4, scoped, tag = 'scoped memory for tpu_custom_call.1']
    #allocation7 [shape = 'u8[655360]{0}', space=vmem, size = 0xa0000, scoped, tag = 'input window, operand 1, single buffered']
    #allocation8 [shape = 's32[1]{0}', space=sflag, size = 0x4, scoped, tag = 'scoped memory for tpu_custom_call.1']
    #allocation9 [shape = 'u8[2048]{0}', space=vmem, size = 0x800, scoped, tag = 'input window, operand 2, single buffered']
    #allocation10 [shape = 'u8[32768]{0}', space=vmem, size = 0x8000, scoped, tag = 'input window, operand 3, single buffered']
    #allocation11 [shape = 's32[1]{0}', space=sflag, size = 0x4, scoped, tag = 'scoped memory for tpu_custom_call.1']
    #allocation12 [shape = 'u8[32768]{0}', space=vmem, size = 0x8000, scoped, tag = 'input window, operand 4, single buffered']
    #allocation13 [shape = 'u8[1310720]{0}', space=vmem, size = 0x140000, scoped, tag = 'input window, operand 5, single buffered']
    #allocation14 [shape = 's32[1]{0}', space=sflag, size = 0x4, scoped, tag = 'scoped memory for tpu_custom_call.1']
    #allocation15 [shape = 'u8[1024]{0}', space=vmem, size = 0x400, scoped, tag = 'input window, operand 6, single buffered']
    #allocation16 [shape = 'u8[196608]{0}', space=vmem, size = 0x30000, scoped, tag = 'input window, operand 7, single buffered']
    #allocation17 [shape = 's32[1]{0}', space=sflag, size = 0x4, scoped, tag = 'scoped memory for tpu_custom_call.1']
    #allocation18 [shape = 'u8[512]{0}', space=vmem, size = 0x400, scoped, tag = 'input window, operand 8, single buffered']
    #allocation19 [shape = 'u8[8192]{0}', space=vmem, size = 0x2000, scoped, tag = 'input window, operand 9, single buffered']
    #allocation20 [shape = 's32[1]{0}', space=sflag, size = 0x4, scoped, tag = 'scoped memory for tpu_custom_call.1']
    #allocation21 [shape = 'u8[8192]{0}', space=vmem, size = 0x2000, scoped, tag = 'input window, operand 10, single buffered']
    #allocation22 [shape = 'u8[524288]{0}', space=vmem, size = 0x80000, scoped, tag = 'input window, operand 11, single buffered']
    #allocation23 [shape = 's32[1]{0}', space=sflag, size = 0x4, scoped, tag = 'scoped memory for tpu_custom_call.1']
    #allocation24 [shape = 'u8[512]{0}', space=vmem, size = 0x400, scoped, tag = 'input window, operand 12, single buffered']
    #allocation25 [shape = 'u8[4096]{0}', space=vmem, size = 0x1000, scoped, tag = 'output window, operand 0, single buffered']
    %18 = vsyncpa [#allocation5], 0
    %19 = vsyncpa [#allocation8], 0
    %20 = vsyncpa [#allocation11], 0
    %21 = vsyncpa [#allocation14], 0
    %22 = vsyncpa [#allocation17], 0
    %23 = vsyncpa [#allocation20], 0
    %24 = vsyncpa [#allocation23], 0
    %25 = vsyncpa [#allocation6], 0
    // Predicated region
    $region2: #{tpu_custom_call.1} parent=1 // pred_check
      _
    $region3: #{tpu_custom_call.1} parent=1 // pred_check_branch
      %27 = sbr.rel (0) target = $region5
    $region4: #{tpu_custom_call.1} parent=1 // pred_region
      %29 = vsyncadd [#allocation5], 0
      %s30 = sshll.u32 %s0, 4
      %s31 = int_to_ptr.hbm [resolvable:$true] %s30
      %s32 = sshll.u32 [#allocation4], 4
      %s33 = int_to_ptr.vmem [resolvable:$true] %s32
      %38 = dma.hbm_to_vmem [thread:$0]  %s31, 1024, %s33, [#allocation5], 64, 64, 4
    $region5: #{tpu_custom_call.1} parent=1 // pred_fallthru
      _
    // Predicated region
    $region6: #{tpu_custom_call.1} parent=1 // pred_check
      _
    $region7: #{tpu_custom_call.1} parent=1 // pred_check_branch
      %40 = sbr.rel (0) target = $region9
    $region8: #{tpu_custom_call.1} parent=1 // pred_region
      %42 = vsyncadd [#allocation8], 0
      %s43 = sshll.u32 %s1, 4
      %s44 = int_to_ptr.hbm [resolvable:$true] %s43
      %s45 = sshll.u32 [#allocation7], 4
      %s46 = int_to_ptr.vmem [resolvable:$true] %s45
      %51 = dma.hbm_to_vmem [thread:$0]  %s44, 20480, %s46, [#allocation8], 256, 256, 16
    $region9: #{tpu_custom_call.1} parent=1 // pred_fallthru
      _
    // Predicated region
    $region10: #{tpu_custom_call.1} parent=1 // pred_check
      _
    $region11: #{tpu_custom_call.1} parent=1 // pred_check_branch
      %53 = sbr.rel (0) target = $region13
    $region12: #{tpu_custom_call.1} parent=1 // pred_region
      %55 = vsyncadd [#allocation8], 0
      %s57 = sshll.u32 %s2, 4
      %s58 = int_to_ptr.hbm [resolvable:$true] %s57
      %s59 = sshll.u32 [#allocation9], 4
      %s60 = int_to_ptr.vmem [resolvable:$true] %s59
      %62 = dma.hbm_to_vmem [thread:$0]  %s58, 64, %s60, [#allocation8]
    $region13: #{tpu_custom_call.1} parent=1 // pred_fallthru
      _
    // Predicated region
    $region14: #{tpu_custom_call.1} parent=1 // pred_check
      _
    $region15: #{tpu_custom_call.1} parent=1 // pred_check_branch
      %64 = sbr.rel (0) target = $region17
    $region16: #{tpu_custom_call.1} parent=1 // pred_region
      %66 = vsyncadd [#allocation11], 0
      %s67 = sshll.u32 %s3, 4
      %s68 = int_to_ptr.hbm [resolvable:$true] %s67
      %s69 = sshll.u32 [#allocation10], 4
      %s70 = int_to_ptr.vmem [resolvable:$true] %s69
      %75 = dma.hbm_to_vmem [thread:$0]  %s68, 1024, %s70, [#allocation11], 64, 64, 4
    $region17: #{tpu_custom_call.1} parent=1 // pred_fallthru
      _
    // Predicated region
    $region18: #{tpu_custom_call.1} parent=1 // pred_check
      _
    $region19: #{tpu_custom_call.1} parent=1 // pred_check_branch
      %77 = sbr.rel (0) target = $region21
    $region20: #{tpu_custom_call.1} parent=1 // pred_region
      %79 = vsyncadd [#allocation11], 0
      %s80 = sshll.u32 %s4, 4
      %s81 = int_to_ptr.hbm [resolvable:$true] %s80
      %s82 = sshll.u32 [#allocation12], 4
      %s83 = int_to_ptr.vmem [resolvable:$true] %s82
      %88 = dma.hbm_to_vmem [thread:$0]  %s81, 1024, %s83, [#allocation11], 64, 64, 4
    $region21: #{tpu_custom_call.1} parent=1 // pred_fallthru
      _
    // Predicated region
    $region22: #{tpu_custom_call.1} parent=1 // pred_check
      _
    $region23: #{tpu_custom_call.1} parent=1 // pred_check_branch
      %90 = sbr.rel (0) target = $region25
    $region24: #{tpu_custom_call.1} parent=1 // pred_region
      %92 = vsyncadd [#allocation14], 0
      %s93 = sshll.u32 %s5, 4
      %s94 = int_to_ptr.hbm [resolvable:$true] %s93
      %s95 = sshll.u32 [#allocation13], 4
      %s96 = int_to_ptr.vmem [resolvable:$true] %s95
      %101 = dma.hbm_to_vmem [thread:$0]  %s94, 40960, %s96, [#allocation14], 128, 128, 8
    $region25: #{tpu_custom_call.1} parent=1 // pred_fallthru
      _
    // Predicated region
    $region26: #{tpu_custom_call.1} parent=1 // pred_check
      _
    $region27: #{tpu_custom_call.1} parent=1 // pred_check_branch
      %103 = sbr.rel (0) target = $region29
    $region28: #{tpu_custom_call.1} parent=1 // pred_region
      %105 = vsyncadd [#allocation14], 0
      %s107 = sshll.u32 %s6, 4
      %s108 = int_to_ptr.hbm [resolvable:$true] %s107
      %s109 = sshll.u32 [#allocation15], 4
      %s110 = int_to_ptr.vmem [resolvable:$true] %s109
      %112 = dma.hbm_to_vmem [thread:$0]  %s108, 32, %s110, [#allocation14]
    $region29: #{tpu_custom_call.1} parent=1 // pred_fallthru
      _
    // Predicated region
    $region30: #{tpu_custom_call.1} parent=1 // pred_check
      _
    $region31: #{tpu_custom_call.1} parent=1 // pred_check_branch
      %114 = sbr.rel (0) target = $region33
    $region32: #{tpu_custom_call.1} parent=1 // pred_region
      %116 = vsyncadd [#allocation17], 0
      %s117 = sshll.u32 %s7, 4
      %s118 = int_to_ptr.hbm [resolvable:$true] %s117
      %s119 = sshll.u32 [#allocation16], 4
      %s120 = int_to_ptr.vmem [resolvable:$true] %s119
      %125 = dma.hbm_to_vmem [thread:$0]  %s118, 6144, %s120, [#allocation17], 64, 64, 4
    $region33: #{tpu_custom_call.1} parent=1 // pred_fallthru
      _
    // Predicated region
    $region34: #{tpu_custom_call.1} parent=1 // pred_check
      _
    $region35: #{tpu_custom_call.1} parent=1 // pred_check_branch
      %127 = sbr.rel (0) target = $region37
    $region36: #{tpu_custom_call.1} parent=1 // pred_region
      %129 = vsyncadd [#allocation17], 0
      %s131 = sshll.u32 %s8, 4
      %s132 = int_to_ptr.hbm [resolvable:$true] %s131
      %s133 = sshll.u32 [#allocation18], 4
      %s134 = int_to_ptr.vmem [resolvable:$true] %s133
      %136 = dma.hbm_to_vmem [thread:$0]  %s132, 16, %s134, [#allocation17]
    $region37: #{tpu_custom_call.1} parent=1 // pred_fallthru
      _
    // Predicated region
    $region38: #{tpu_custom_call.1} parent=1 // pred_check
      _
    $region39: #{tpu_custom_call.1} parent=1 // pred_check_branch
      %138 = sbr.rel (0) target = $region41
    $region40: #{tpu_custom_call.1} parent=1 // pred_region
      %140 = vsyncadd [#allocation20], 0
      %s141 = sshll.u32 %s9, 4
      %s142 = int_to_ptr.hbm [resolvable:$true] %s141
      %s143 = sshll.u32 [#allocation19], 4
      %s144 = int_to_ptr.vmem [resolvable:$true] %s143
      %149 = dma.hbm_to_vmem [thread:$0]  %s142, 256, %s144, [#allocation20], 16, 16, 1
    $region41: #{tpu_custom_call.1} parent=1 // pred_fallthru
      _
    // Predicated region
    $region42: #{tpu_custom_call.1} parent=1 // pred_check
      _
    $region43: #{tpu_custom_call.1} parent=1 // pred_check_branch
      %151 = sbr.rel (0) target = $region45
    $region44: #{tpu_custom_call.1} parent=1 // pred_region
      %153 = vsyncadd [#allocation20], 0
      %s154 = sshll.u32 %s10, 4
      %s155 = int_to_ptr.hbm [resolvable:$true] %s154
      %s156 = sshll.u32 [#allocation21], 4
      %s157 = int_to_ptr.vmem [resolvable:$true] %s156
      %162 = dma.hbm_to_vmem [thread:$0]  %s155, 256, %s157, [#allocation20], 16, 16, 1
    $region45: #{tpu_custom_call.1} parent=1 // pred_fallthru
      _
    // Predicated region
    $region46: #{tpu_custom_call.1} parent=1 // pred_check
      _
    $region47: #{tpu_custom_call.1} parent=1 // pred_check_branch
      %164 = sbr.rel (0) target = $region49
    $region48: #{tpu_custom_call.1} parent=1 // pred_region
      %166 = vsyncadd [#allocation23], 0
      %s167 = sshll.u32 %s11, 4
      %s168 = int_to_ptr.hbm [resolvable:$true] %s167
      %s169 = sshll.u32 [#allocation22], 4
      %s170 = int_to_ptr.vmem [resolvable:$true] %s169
      %175 = dma.hbm_to_vmem [thread:$0]  %s168, 16384, %s170, [#allocation23], 64, 64, 4
    $region49: #{tpu_custom_call.1} parent=1 // pred_fallthru
      _
    // Predicated region
    $region50: #{tpu_custom_call.1} parent=1 // pred_check
      _
    $region51: #{tpu_custom_call.1} parent=1 // pred_check_branch
      %177 = sbr.rel (0) target = $region53
    $region52: #{tpu_custom_call.1} parent=1 // pred_region
      %179 = vsyncadd [#allocation23], 0
      %s181 = sshll.u32 %s12, 4
      %s182 = int_to_ptr.hbm [resolvable:$true] %s181
      %s183 = sshll.u32 [#allocation24], 4
      %s184 = int_to_ptr.vmem [resolvable:$true] %s183
      %186 = dma.hbm_to_vmem [thread:$0]  %s182, 16, %s184, [#allocation23]
    $region53: #{tpu_custom_call.1} parent=1 // pred_fallthru
      _
    // Predicated region
    $region54: #{tpu_custom_call.1} parent=1 // pred_check
      _
    $region55: #{tpu_custom_call.1} parent=1 // pred_check_branch
      %188 = sbr.rel (0) target = $region57
    $region56: #{tpu_custom_call.1} parent=1 // pred_region
      %190 = dma.done [#allocation5], 1024
    $region57: #{tpu_custom_call.1} parent=1 // pred_fallthru
      _
    // Predicated region
    $region58: #{tpu_custom_call.1} parent=1 // pred_check
      _
    $region59: #{tpu_custom_call.1} parent=1 // pred_check_branch
      %192 = sbr.rel (0) target = $region61
    $region60: #{tpu_custom_call.1} parent=1 // pred_region
      %194 = dma.done [#allocation8], 20480
    $region61: #{tpu_custom_call.1} parent=1 // pred_fallthru
      _
    // Predicated region
    $region62: #{tpu_custom_call.1} parent=1 // pred_check
      _
    $region63: #{tpu_custom_call.1} parent=1 // pred_check_branch
      %196 = sbr.rel (0) target = $region65
    $region64: #{tpu_custom_call.1} parent=1 // pred_region
      %198 = dma.done [#allocation8], 64
    $region65: #{tpu_custom_call.1} parent=1 // pred_fallthru
      _
    // Predicated region
    $region66: #{tpu_custom_call.1} parent=1 // pred_check
      _
    $region67: #{tpu_custom_call.1} parent=1 // pred_check_branch
      %200 = sbr.rel (0) target = $region69
    $region68: #{tpu_custom_call.1} parent=1 // pred_region
      %202 = dma.done [#allocation11], 1024
    $region69: #{tpu_custom_call.1} parent=1 // pred_fallthru
      _
    // Predicated region
    $region70: #{tpu_custom_call.1} parent=1 // pred_check
      _
    $region71: #{tpu_custom_call.1} parent=1 // pred_check_branch
      %204 = sbr.rel (0) target = $region73
    $region72: #{tpu_custom_call.1} parent=1 // pred_region
      %206 = dma.done [#allocation11], 1024
    $region73: #{tpu_custom_call.1} parent=1 // pred_fallthru
      _
    // Predicated region
    $region74: #{tpu_custom_call.1} parent=1 // pred_check
      _
    $region75: #{tpu_custom_call.1} parent=1 // pred_check_branch
      %208 = sbr.rel (0) target = $region77
    $region76: #{tpu_custom_call.1} parent=1 // pred_region
      %210 = dma.done [#allocation14], 40960
    $region77: #{tpu_custom_call.1} parent=1 // pred_fallthru
      _
    // Predicated region
    $region78: #{tpu_custom_call.1} parent=1 // pred_check
      _
    $region79: #{tpu_custom_call.1} parent=1 // pred_check_branch
      %212 = sbr.rel (0) target = $region81
    $region80: #{tpu_custom_call.1} parent=1 // pred_region
      %214 = dma.done [#allocation14], 32
    $region81: #{tpu_custom_call.1} parent=1 // pred_fallthru
      _
    // Predicated region
    $region82: #{tpu_custom_call.1} parent=1 // pred_check
      _
    $region83: #{tpu_custom_call.1} parent=1 // pred_check_branch
      %216 = sbr.rel (0) target = $region85
    $region84: #{tpu_custom_call.1} parent=1 // pred_region
      %218 = dma.done [#allocation17], 6144
    $region85: #{tpu_custom_call.1} parent=1 // pred_fallthru
      _
    // Predicated region
    $region86: #{tpu_custom_call.1} parent=1 // pred_check
      _
    $region87: #{tpu_custom_call.1} parent=1 // pred_check_branch
      %220 = sbr.rel (0) target = $region89
    $region88: #{tpu_custom_call.1} parent=1 // pred_region
      %222 = dma.done [#allocation17], 16
    $region89: #{tpu_custom_call.1} parent=1 // pred_fallthru
      _
    // Predicated region
    $region90: #{tpu_custom_call.1} parent=1 // pred_check
      _
    $region91: #{tpu_custom_call.1} parent=1 // pred_check_branch
      %224 = sbr.rel (0) target = $region93
    $region92: #{tpu_custom_call.1} parent=1 // pred_region
      %226 = dma.done [#allocation20], 256
    $region93: #{tpu_custom_call.1} parent=1 // pred_fallthru
      _
    // Predicated region
    $region94: #{tpu_custom_call.1} parent=1 // pred_check
      _
    $region95: #{tpu_custom_call.1} parent=1 // pred_check_branch
      %228 = sbr.rel (0) target = $region97
    $region96: #{tpu_custom_call.1} parent=1 // pred_region
      %230 = dma.done [#allocation20], 256
    $region97: #{tpu_custom_call.1} parent=1 // pred_fallthru
      _
    // Predicated region
    $region98: #{tpu_custom_call.1} parent=1 // pred_check
      _
    $region99: #{tpu_custom_call.1} parent=1 // pred_check_branch
      %232 = sbr.rel (0) target = $region101
    $region100: #{tpu_custom_call.1} parent=1 // pred_region
      %234 = dma.done [#allocation23], 16384
    $region101: #{tpu_custom_call.1} parent=1 // pred_fallthru
      _
    // Predicated region
    $region102: #{tpu_custom_call.1} parent=1 // pred_check
      _
    $region103: #{tpu_custom_call.1} parent=1 // pred_check_branch
      %236 = sbr.rel (0) target = $region105
    $region104: #{tpu_custom_call.1} parent=1 // pred_region
      %238 = dma.done [#allocation23], 16
    $region105: #{tpu_custom_call.1} parent=1 // pred_fallthru
      _
    %v240 = vld [vmem:[#allocation4] sm:$0xf]
    %v241 = vld [vmem:[#allocation4 + $0x4] sm:$0xf]
    %v242 = vld [vmem:[#allocation4 + $0x8] sm:$0xf]
    %v243 = vld [vmem:[#allocation4 + $0xc] sm:$0xf]
    %v244 = vld [vmem:[#allocation4 + $0x10] sm:$0xf]
    %v245 = vld [vmem:[#allocation4 + $0x14] sm:$0xf]
    %v246 = vld [vmem:[#allocation4 + $0x18] sm:$0xf]
    %v247 = vld [vmem:[#allocation4 + $0x1c] sm:$0xf]
    %v248 = vld [vmem:[#allocation4 + $0x20] sm:$0xf]
    %v249 = vld [vmem:[#allocation4 + $0x24] sm:$0xf]
    %v250 = vld [vmem:[#allocation4 + $0x28] sm:$0xf]
    %v251 = vld [vmem:[#allocation4 + $0x2c] sm:$0xf]
    %v252 = vld [vmem:[#allocation4 + $0x30] sm:$0xf]
    %v253 = vld [vmem:[#allocation4 + $0x34] sm:$0xf]
    %v254 = vld [vmem:[#allocation4 + $0x38] sm:$0xf]
    %v255 = vld [vmem:[#allocation4 + $0x3c] sm:$0xf]
    %v273 = vunpack.c.l.b16 0
    %v274 = vunpack.c.l.b16 %v240
    %v275 = vunpack.c.l.b16 %v241
    %v276 = vunpack.c.l.b16 %v242
    %v277 = vunpack.c.l.b16 %v243
    %v278 = vunpack.c.l.b16 %v244
    %v279 = vunpack.c.l.b16 %v245
    %v280 = vunpack.c.l.b16 %v246
    %v281 = vunpack.c.l.b16 %v247
    %v282 = vunpack.c.l.b16 %v248
    %v283 = vunpack.c.l.b16 %v249
    %v284 = vunpack.c.l.b16 %v250
    %v285 = vunpack.c.l.b16 %v251
    %v286 = vunpack.c.l.b16 %v252
    %v287 = vunpack.c.l.b16 %v253
    %v288 = vunpack.c.l.b16 %v254
    %v289 = vunpack.c.l.b16 %v255
    %v290 = vld [vmem:[#allocation7] sm:$0xff]
    %v291 = vld [vmem:[#allocation7 + $0x8] sm:$0xff]
    %v292 = vld [vmem:[#allocation7 + $0x10] sm:$0xff]
    %v293 = vld [vmem:[#allocation7 + $0x18] sm:$0xff]
    %v294 = vld [vmem:[#allocation7 + $0x20] sm:$0xff]
    %v295 = vld [vmem:[#allocation7 + $0x28] sm:$0xff]
    %v296 = vld [vmem:[#allocation7 + $0x30] sm:$0xff]
    %v297 = vld [vmem:[#allocation7 + $0x38] sm:$0xff]
    %v298 = vld [vmem:[#allocation7 + $0x40] sm:$0xff]
    %v299 = vld [vmem:[#allocation7 + $0x48] sm:$0xff]
    %v300 = vld [vmem:[#allocation7 + $0x50] sm:$0xff]
    %v301 = vld [vmem:[#allocation7 + $0x58] sm:$0xff]
    %v302 = vld [vmem:[#allocation7 + $0x60] sm:$0xff]
    %v303 = vld [vmem:[#allocation7 + $0x68] sm:$0xff]
    %v304 = vld [vmem:[#allocation7 + $0x70] sm:$0xff]
    %v305 = vld [vmem:[#allocation7 + $0x78] sm:$0xff]
    %v306 = vld [vmem:[#allocation7 + $0x80] sm:$0xff]
    %v307 = vld [vmem:[#allocation7 + $0x88] sm:$0xff]
    %v308 = vld [vmem:[#allocation7 + $0x90] sm:$0xff]
    %v309 = vld [vmem:[#allocation7 + $0x98] sm:$0xff]
    %v310 = vld [vmem:[#allocation7 + $0xa0] sm:$0xff]
    %v311 = vld [vmem:[#allocation7 + $0xa8] sm:$0xff]
    %v312 = vld [vmem:[#allocation7 + $0xb0] sm:$0xff]
    %v313 = vld [vmem:[#allocation7 + $0xb8] sm:$0xff]
    %v314 = vld [vmem:[#allocation7 + $0xc0] sm:$0xff]
    %v315 = vld [vmem:[#allocation7 + $0xc8] sm:$0xff]
    %v316 = vld [vmem:[#allocation7 + $0xd0] sm:$0xff]
    %v317 = vld [vmem:[#allocation7 + $0xd8] sm:$0xff]
    %v318 = vld [vmem:[#allocation7 + $0xe0] sm:$0xff]
    %v319 = vld [vmem:[#allocation7 + $0xe8] sm:$0xff]
    %v320 = vld [vmem:[#allocation7 + $0xf0] sm:$0xff]
    %v321 = vld [vmem:[#allocation7 + $0xf8] sm:$0xff]
    %v322 = vld [vmem:[#allocation7 + $0x100] sm:$0xff]
    %v323 = vld [vmem:[#allocation7 + $0x108] sm:$0xff]
    %v324 = vld [vmem:[#allocation7 + $0x110] sm:$0xff]
    %v325 = vld [vmem:[#allocation7 + $0x118] sm:$0xff]
    %v326 = vld [vmem:[#allocation7 + $0x120] sm:$0xff]
    %v327 = vld [vmem:[#allocation7 + $0x128] sm:$0xff]
    %v328 = vld [vmem:[#allocation7 + $0x130] sm:$0xff]
    %v329 = vld [vmem:[#allocation7 + $0x138] sm:$0xff]
    %v330 = vld [vmem:[#allocation7 + $0x140] sm:$0xff]
    %v331 = vld [vmem:[#allocation7 + $0x148] sm:$0xff]
    %v332 = vld [vmem:[#allocation7 + $0x150] sm:$0xff]
    %v333 = vld [vmem:[#allocation7 + $0x158] sm:$0xff]
    %v334 = vld [vmem:[#allocation7 + $0x160] sm:$0xff]
    %v335 = vld [vmem:[#allocation7 + $0x168] sm:$0xff]
    %v336 = vld [vmem:[#allocation7 + $0x170] sm:$0xff]
    %v337 = vld [vmem:[#allocation7 + $0x178] sm:$0xff]
    %v338 = vld [vmem:[#allocation7 + $0x180] sm:$0xff]
    %v339 = vld [vmem:[#allocation7 + $0x188] sm:$0xff]
    %v340 = vld [vmem:[#allocation7 + $0x190] sm:$0xff]
    %v341 = vld [vmem:[#allocation7 + $0x198] sm:$0xff]
    %v342 = vld [vmem:[#allocation7 + $0x1a0] sm:$0xff]
    %v343 = vld [vmem:[#allocation7 + $0x1a8] sm:$0xff]
    %v344 = vld [vmem:[#allocation7 + $0x1b0] sm:$0xff]
    %v345 = vld [vmem:[#allocation7 + $0x1b8] sm:$0xff]
    %v346 = vld [vmem:[#allocation7 + $0x1c0] sm:$0xff]
    %v347 = vld [vmem:[#allocation7 + $0x1c8] sm:$0xff]
    %v348 = vld [vmem:[#allocation7 + $0x1d0] sm:$0xff]
    %v349 = vld [vmem:[#allocation7 + $0x1d8] sm:$0xff]
    %v350 = vld [vmem:[#allocation7 + $0x1e0] sm:$0xff]
    %v351 = vld [vmem:[#allocation7 + $0x1e8] sm:$0xff]
    %v352 = vld [vmem:[#allocation7 + $0x1f0] sm:$0xff]
    %v353 = vld [vmem:[#allocation7 + $0x1f8] sm:$0xff]
    %v354 = vld [vmem:[#allocation7 + $0x200] sm:$0xff]
    %v355 = vld [vmem:[#allocation7 + $0x208] sm:$0xff]
    %v356 = vld [vmem:[#allocation7 + $0x210] sm:$0xff]
    %v357 = vld [vmem:[#allocation7 + $0x218] sm:$0xff]
    %v358 = vld [vmem:[#allocation7 + $0x220] sm:$0xff]
    %v359 = vld [vmem:[#allocation7 + $0x228] sm:$0xff]
    %v360 = vld [vmem:[#allocation7 + $0x230] sm:$0xff]
    %v361 = vld [vmem:[#allocation7 + $0x238] sm:$0xff]
    %v362 = vld [vmem:[#allocation7 + $0x240] sm:$0xff]
    %v363 = vld [vmem:[#allocation7 + $0x248] sm:$0xff]
    %v364 = vld [vmem:[#allocation7 + $0x250] sm:$0xff]
    %v365 = vld [vmem:[#allocation7 + $0x258] sm:$0xff]
    %v366 = vld [vmem:[#allocation7 + $0x260] sm:$0xff]
    %v367 = vld [vmem:[#allocation7 + $0x268] sm:$0xff]
    %v368 = vld [vmem:[#allocation7 + $0x270] sm:$0xff]
    %v369 = vld [vmem:[#allocation7 + $0x278] sm:$0xff]
    %v370 = vld [vmem:[#allocation7 + $0x280] sm:$0xff]
    %v371 = vld [vmem:[#allocation7 + $0x288] sm:$0xff]
    %v372 = vld [vmem:[#allocation7 + $0x290] sm:$0xff]
    %v373 = vld [vmem:[#allocation7 + $0x298] sm:$0xff]
    %v374 = vld [vmem:[#allocation7 + $0x2a0] sm:$0xff]
    %v375 = vld [vmem:[#allocation7 + $0x2a8] sm:$0xff]
    %v376 = vld [vmem:[#allocation7 + $0x2b0] sm:$0xff]
    %v377 = vld [vmem:[#allocation7 + $0x2b8] sm:$0xff]
    %v378 = vld [vmem:[#allocation7 + $0x2c0] sm:$0xff]
    %v379 = vld [vmem:[#allocation7 + $0x2c8] sm:$0xff]
    %v380 = vld [vmem:[#allocation7 + $0x2d0] sm:$0xff]
    %v381 = vld [vmem:[#allocation7 + $0x2d8] sm:$0xff]
    %v382 = vld [vmem:[#allocation7 + $0x2e0] sm:$0xff]
    %v383 = vld [vmem:[#allocation7 + $0x2e8] sm:$0xff]
    %v384 = vld [vmem:[#allocation7 + $0x2f0] sm:$0xff]
    %v385 = vld [vmem:[#allocation7 + $0x2f8] sm:$0xff]
    %v386 = vld [vmem:[#allocation7 + $0x300] sm:$0xff]
    %v387 = vld [vmem:[#allocation7 + $0x308] sm:$0xff]
    %v388 = vld [vmem:[#allocation7 + $0x310] sm:$0xff]
    %v389 = vld [vmem:[#allocation7 + $0x318] sm:$0xff]
    %v390 = vld [vmem:[#allocation7 + $0x320] sm:$0xff]
    %v391 = vld [vmem:[#allocation7 + $0x328] sm:$0xff]
    %v392 = vld [vmem:[#allocation7 + $0x330] sm:$0xff]
    %v393 = vld [vmem:[#allocation7 + $0x338] sm:$0xff]
    %v394 = vld [vmem:[#allocation7 + $0x340] sm:$0xff]
    %v395 = vld [vmem:[#allocation7 + $0x348] sm:$0xff]
    %v396 = vld [vmem:[#allocation7 + $0x350] sm:$0xff]
    %v397 = vld [vmem:[#allocation7 + $0x358] sm:$0xff]
    %v398 = vld [vmem:[#allocation7 + $0x360] sm:$0xff]
    %v399 = vld [vmem:[#allocation7 + $0x368] sm:$0xff]
    %v400 = vld [vmem:[#allocation7 + $0x370] sm:$0xff]
    %v401 = vld [vmem:[#allocation7 + $0x378] sm:$0xff]
    %v402 = vld [vmem:[#allocation7 + $0x380] sm:$0xff]
    %v403 = vld [vmem:[#allocation7 + $0x388] sm:$0xff]
    %v404 = vld [vmem:[#allocation7 + $0x390] sm:$0xff]
    %v405 = vld [vmem:[#allocation7 + $0x398] sm:$0xff]
    %v406 = vld [vmem:[#allocation7 + $0x3a0] sm:$0xff]
    %v407 = vld [vmem:[#allocation7 + $0x3a8] sm:$0xff]
    %v408 = vld [vmem:[#allocation7 + $0x3b0] sm:$0xff]
    %v409 = vld [vmem:[#allocation7 + $0x3b8] sm:$0xff]
    %v410 = vld [vmem:[#allocation7 + $0x3c0] sm:$0xff]
    %v411 = vld [vmem:[#allocation7 + $0x3c8] sm:$0xff]
    %v412 = vld [vmem:[#allocation7 + $0x3d0] sm:$0xff]
    %v413 = vld [vmem:[#allocation7 + $0x3d8] sm:$0xff]
    %v414 = vld [vmem:[#allocation7 + $0x3e0] sm:$0xff]
    %v415 = vld [vmem:[#allocation7 + $0x3e8] sm:$0xff]
    %v416 = vld [vmem:[#allocation7 + $0x3f0] sm:$0xff]
    %v417 = vld [vmem:[#allocation7 + $0x3f8] sm:$0xff]
    %v418 = vld [vmem:[#allocation7 + $0x400] sm:$0xff]
    %v419 = vld [vmem:[#allocation7 + $0x408] sm:$0xff]
    %v420 = vld [vmem:[#allocation7 + $0x410] sm:$0xff]
    %v421 = vld [vmem:[#allocation7 + $0x418] sm:$0xff]
    %v422 = vld [vmem:[#allocation7 + $0x420] sm:$0xff]
    %v423 = vld [vmem:[#allocation7 + $0x428] sm:$0xff]
    %v424 = vld [vmem:[#allocation7 + $0x430] sm:$0xff]
    %v425 = vld [vmem:[#allocation7 + $0x438] sm:$0xff]
    %v426 = vld [vmem:[#allocation7 + $0x440] sm:$0xff]
    %v427 = vld [vmem:[#allocation7 + $0x448] sm:$0xff]
    %v428 = vld [vmem:[#allocation7 + $0x450] sm:$0xff]
    %v429 = vld [vmem:[#allocation7 + $0x458] sm:$0xff]
    %v430 = vld [vmem:[#allocation7 + $0x460] sm:$0xff]
    %v431 = vld [vmem:[#allocation7 + $0x468] sm:$0xff]
    %v432 = vld [vmem:[#allocation7 + $0x470] sm:$0xff]
    %v433 = vld [vmem:[#allocation7 + $0x478] sm:$0xff]
    %v434 = vld [vmem:[#allocation7 + $0x480] sm:$0xff]
    %v435 = vld [vmem:[#allocation7 + $0x488] sm:$0xff]
    %v436 = vld [vmem:[#allocation7 + $0x490] sm:$0xff]
    %v437 = vld [vmem:[#allocation7 + $0x498] sm:$0xff]
    %v438 = vld [vmem:[#allocation7 + $0x4a0] sm:$0xff]
    %v439 = vld [vmem:[#allocation7 + $0x4a8] sm:$0xff]
    %v440 = vld [vmem:[#allocation7 + $0x4b0] sm:$0xff]
    %v441 = vld [vmem:[#allocation7 + $0x4b8] sm:$0xff]
    %v442 = vld [vmem:[#allocation7 + $0x4c0] sm:$0xff]
    %v443 = vld [vmem:[#allocation7 + $0x4c8] sm:$0xff]
    %v444 = vld [vmem:[#allocation7 + $0x4d0] sm:$0xff]
    %v445 = vld [vmem:[#allocation7 + $0x4d8] sm:$0xff]
    %v446 = vld [vmem:[#allocation7 + $0x4e0] sm:$0xff]
    %v447 = vld [vmem:[#allocation7 + $0x4e8] sm:$0xff]
    %v448 = vld [vmem:[#allocation7 + $0x4f0] sm:$0xff]
    %v449 = vld [vmem:[#allocation7 + $0x4f8] sm:$0xff]
    %v450 = vld [vmem:[#allocation9] sm:$0xf]
    %v452 = vperm.slane %v450, 0
    %v453 = vperm.slane %v450, 1
    %v454 = vperm.slane %v450, 2
    %v455 = vperm.slane %v450, 3
    %v460 = vpack.c.b16 %v273, %v273
    %v461 = vpack.c.b16 %v274, %v273
    %v462 = vpack.c.b16 %v275, %v274
    %v463 = vpack.c.b16 %v276, %v275
    %v464 = vpack.c.b16 %v277, %v276
    %v465 = vpack.c.b16 %v278, %v277
    %v466 = vpack.c.b16 %v279, %v278
    %v467 = vpack.c.b16 %v280, %v279
    %v468 = vpack.c.b16 %v281, %v280
    %v469 = vpack.c.b16 %v282, %v281
    %v470 = vpack.c.b16 %v283, %v282
    %v471 = vpack.c.b16 %v284, %v283
    %v472 = vpack.c.b16 %v285, %v284
    %v473 = vpack.c.b16 %v286, %v285
    %v474 = vpack.c.b16 %v287, %v286
    %v475 = vpack.c.b16 %v288, %v287
    %v476 = vpack.c.b16 %v289, %v288
    %v477 = vpack.c.b16 %v273, %v289
    %v656 = vunpack.c.l.b16 %v290
    %v657 = vunpack.c.h.b16 %v290
    %v658 = vunpack.c.l.b16 %v291
    %v659 = vunpack.c.h.b16 %v291
    %v660 = vunpack.c.l.b16 %v292
    %v661 = vunpack.c.h.b16 %v292
    %v662 = vunpack.c.l.b16 %v293
    %v663 = vunpack.c.h.b16 %v293
    %v664 = vunpack.c.l.b16 %v294
    %v665 = vunpack.c.h.b16 %v294
    %v666 = vunpack.c.l.b16 %v295
    %v667 = vunpack.c.h.b16 %v295
    %v668 = vunpack.c.l.b16 %v296
    %v669 = vunpack.c.h.b16 %v296
    %v670 = vunpack.c.l.b16 %v297
    %v671 = vunpack.c.h.b16 %v297
    %v672 = vunpack.c.l.b16 %v298
    %v673 = vunpack.c.h.b16 %v298
    %v674 = vunpack.c.l.b16 %v299
    %v675 = vunpack.c.h.b16 %v299
    %v676 = vunpack.c.l.b16 %v300
    %v677 = vunpack.c.h.b16 %v300
    %v678 = vunpack.c.l.b16 %v301
    %v679 = vunpack.c.h.b16 %v301
    %v680 = vunpack.c.l.b16 %v302
    %v681 = vunpack.c.h.b16 %v302
    %v682 = vunpack.c.l.b16 %v303
    %v683 = vunpack.c.h.b16 %v303
    %v684 = vunpack.c.l.b16 %v304
    %v685 = vunpack.c.h.b16 %v304
    %v686 = vunpack.c.l.b16 %v305
    %v687 = vunpack.c.h.b16 %v305
    %v688 = vunpack.c.l.b16 %v306
    %v689 = vunpack.c.h.b16 %v306
    %v690 = vunpack.c.l.b16 %v307
    %v691 = vunpack.c.h.b16 %v307
    %v692 = vunpack.c.l.b16 %v308
    %v693 = vunpack.c.h.b16 %v308
    %v694 = vunpack.c.l.b16 %v309
    %v695 = vunpack.c.h.b16 %v309
    %v696 = vunpack.c.l.b16 %v310
    %v697 = vunpack.c.h.b16 %v310
    %v698 = vunpack.c.l.b16 %v311
    %v699 = vunpack.c.h.b16 %v311
    %v700 = vunpack.c.l.b16 %v312
    %v701 = vunpack.c.h.b16 %v312
    %v702 = vunpack.c.l.b16 %v313
    %v703 = vunpack.c.h.b16 %v313
    %v704 = vunpack.c.l.b16 %v314
    %v705 = vunpack.c.h.b16 %v314
    %v706 = vunpack.c.l.b16 %v315
    %v707 = vunpack.c.h.b16 %v315
    %v708 = vunpack.c.l.b16 %v316
    %v709 = vunpack.c.h.b16 %v316
    %v710 = vunpack.c.l.b16 %v317
    %v711 = vunpack.c.h.b16 %v317
    %v712 = vunpack.c.l.b16 %v318
    %v713 = vunpack.c.h.b16 %v318
    %v714 = vunpack.c.l.b16 %v319
    %v715 = vunpack.c.h.b16 %v319
    %v716 = vunpack.c.l.b16 %v320
    %v717 = vunpack.c.h.b16 %v320
    %v718 = vunpack.c.l.b16 %v321
    %v719 = vunpack.c.h.b16 %v321
    %v720 = vunpack.c.l.b16 %v322
    %v721 = vunpack.c.h.b16 %v322
    %v722 = vunpack.c.l.b16 %v323
    %v723 = vunpack.c.h.b16 %v323
    %v724 = vunpack.c.l.b16 %v324
    %v725 = vunpack.c.h.b16 %v324
    %v726 = vunpack.c.l.b16 %v325
    %v727 = vunpack.c.h.b16 %v325
    %v728 = vunpack.c.l.b16 %v326
    %v729 = vunpack.c.h.b16 %v326
    %v730 = vunpack.c.l.b16 %v327
    %v731 = vunpack.c.h.b16 %v327
    %v732 = vunpack.c.l.b16 %v328
    %v733 = vunpack.c.h.b16 %v328
    %v734 = vunpack.c.l.b16 %v329
    %v735 = vunpack.c.h.b16 %v329
    %v736 = vunpack.c.l.b16 %v330
    %v737 = vunpack.c.h.b16 %v330
    %v738 = vunpack.c.l.b16 %v331
    %v739 = vunpack.c.h.b16 %v331
    %v740 = vunpack.c.l.b16 %v332
    %v741 = vunpack.c.h.b16 %v332
    %v742 = vunpack.c.l.b16 %v333
    %v743 = vunpack.c.h.b16 %v333
    %v744 = vunpack.c.l.b16 %v334
    %v745 = vunpack.c.h.b16 %v334
    %v746 = vunpack.c.l.b16 %v335
    %v747 = vunpack.c.h.b16 %v335
    %v748 = vunpack.c.l.b16 %v336
    %v749 = vunpack.c.h.b16 %v336
    %v750 = vunpack.c.l.b16 %v337
    %v751 = vunpack.c.h.b16 %v337
    %v752 = vunpack.c.l.b16 %v338
    %v753 = vunpack.c.h.b16 %v338
    %v754 = vunpack.c.l.b16 %v339
    %v755 = vunpack.c.h.b16 %v339
    %v756 = vunpack.c.l.b16 %v340
    %v757 = vunpack.c.h.b16 %v340
    %v758 = vunpack.c.l.b16 %v341
    %v759 = vunpack.c.h.b16 %v341
    %v760 = vunpack.c.l.b16 %v342
    %v761 = vunpack.c.h.b16 %v342
    %v762 = vunpack.c.l.b16 %v343
    %v763 = vunpack.c.h.b16 %v343
    %v764 = vunpack.c.l.b16 %v344
    %v765 = vunpack.c.h.b16 %v344
    %v766 = vunpack.c.l.b16 %v345
    %v767 = vunpack.c.h.b16 %v345
    %v768 = vunpack.c.l.b16 %v346
    %v769 = vunpack.c.h.b16 %v346
    %v770 = vunpack.c.l.b16 %v347
    %v771 = vunpack.c.h.b16 %v347
    %v772 = vunpack.c.l.b16 %v348
    %v773 = vunpack.c.h.b16 %v348
    %v774 = vunpack.c.l.b16 %v349
    %v775 = vunpack.c.h.b16 %v349
    %v776 = vunpack.c.l.b16 %v350
    %v777 = vunpack.c.h.b16 %v350
    %v778 = vunpack.c.l.b16 %v351
    %v779 = vunpack.c.h.b16 %v351
    %v780 = vunpack.c.l.b16 %v352
    %v781 = vunpack.c.h.b16 %v352
    %v782 = vunpack.c.l.b16 %v353
    %v783 = vunpack.c.h.b16 %v353
    %v784 = vunpack.c.l.b16 %v354
    %v785 = vunpack.c.h.b16 %v354
    %v786 = vunpack.c.l.b16 %v355
    %v787 = vunpack.c.h.b16 %v355
    %v788 = vunpack.c.l.b16 %v356
    %v789 = vunpack.c.h.b16 %v356
    %v790 = vunpack.c.l.b16 %v357
    %v791 = vunpack.c.h.b16 %v357
    %v792 = vunpack.c.l.b16 %v358
    %v793 = vunpack.c.h.b16 %v358
    %v794 = vunpack.c.l.b16 %v359
    %v795 = vunpack.c.h.b16 %v359
    %v796 = vunpack.c.l.b16 %v360
    %v797 = vunpack.c.h.b16 %v360
    %v798 = vunpack.c.l.b16 %v361
    %v799 = vunpack.c.h.b16 %v361
    %v800 = vunpack.c.l.b16 %v362
    %v801 = vunpack.c.h.b16 %v362
    %v802 = vunpack.c.l.b16 %v363
    %v803 = vunpack.c.h.b16 %v363
    %v804 = vunpack.c.l.b16 %v364
    %v805 = vunpack.c.h.b16 %v364
    %v806 = vunpack.c.l.b16 %v365
    %v807 = vunpack.c.h.b16 %v365
    %v808 = vunpack.c.l.b16 %v366
    %v809 = vunpack.c.h.b16 %v366
    %v810 = vunpack.c.l.b16 %v367
    %v811 = vunpack.c.h.b16 %v367
    %v812 = vunpack.c.l.b16 %v368
    %v813 = vunpack.c.h.b16 %v368
    %v814 = vunpack.c.l.b16 %v369
    %v815 = vunpack.c.h.b16 %v369
    %v816 = vunpack.c.l.b16 %v370
    %v817 = vunpack.c.h.b16 %v370
    %v818 = vunpack.c.l.b16 %v371
    %v819 = vunpack.c.h.b16 %v371
    %v820 = vunpack.c.l.b16 %v372
    %v821 = vunpack.c.h.b16 %v372
    %v822 = vunpack.c.l.b16 %v373
    %v823 = vunpack.c.h.b16 %v373
    %v824 = vunpack.c.l.b16 %v374
    %v825 = vunpack.c.h.b16 %v374
    %v826 = vunpack.c.l.b16 %v375
    %v827 = vunpack.c.h.b16 %v375
    %v828 = vunpack.c.l.b16 %v376
    %v829 = vunpack.c.h.b16 %v376
    %v830 = vunpack.c.l.b16 %v377
    %v831 = vunpack.c.h.b16 %v377
    %v832 = vunpack.c.l.b16 %v378
    %v833 = vunpack.c.h.b16 %v378
    %v834 = vunpack.c.l.b16 %v379
    %v835 = vunpack.c.h.b16 %v379
    %v836 = vunpack.c.l.b16 %v380
    %v837 = vunpack.c.h.b16 %v380
    %v838 = vunpack.c.l.b16 %v381
    %v839 = vunpack.c.h.b16 %v381
    %v840 = vunpack.c.l.b16 %v382
    %v841 = vunpack.c.h.b16 %v382
    %v842 = vunpack.c.l.b16 %v383
    %v843 = vunpack.c.h.b16 %v383
    %v844 = vunpack.c.l.b16 %v384
    %v845 = vunpack.c.h.b16 %v384
    %v846 = vunpack.c.l.b16 %v385
    %v847 = vunpack.c.h.b16 %v385
    %v848 = vunpack.c.l.b16 %v386
    %v849 = vunpack.c.h.b16 %v386
    %v850 = vunpack.c.l.b16 %v387
    %v851 = vunpack.c.h.b16 %v387
    %v852 = vunpack.c.l.b16 %v388
    %v853 = vunpack.c.h.b16 %v388
    %v854 = vunpack.c.l.b16 %v389
    %v855 = vunpack.c.h.b16 %v389
    %v856 = vunpack.c.l.b16 %v390
    %v857 = vunpack.c.h.b16 %v390
    %v858 = vunpack.c.l.b16 %v391
    %v859 = vunpack.c.h.b16 %v391
    %v860 = vunpack.c.l.b16 %v392
    %v861 = vunpack.c.h.b16 %v392
    %v862 = vunpack.c.l.b16 %v393
    %v863 = vunpack.c.h.b16 %v393
    %v864 = vunpack.c.l.b16 %v394
    %v865 = vunpack.c.h.b16 %v394
    %v866 = vunpack.c.l.b16 %v395
    %v867 = vunpack.c.h.b16 %v395
    %v868 = vunpack.c.l.b16 %v396
    %v869 = vunpack.c.h.b16 %v396
    %v870 = vunpack.c.l.b16 %v397
    %v871 = vunpack.c.h.b16 %v397
    %v872 = vunpack.c.l.b16 %v398
    %v873 = vunpack.c.h.b16 %v398
    %v874 = vunpack.c.l.b16 %v399
    %v875 = vunpack.c.h.b16 %v399
    %v876 = vunpack.c.l.b16 %v400
    %v877 = vunpack.c.h.b16 %v400
    %v878 = vunpack.c.l.b16 %v401
    %v879 = vunpack.c.h.b16 %v401
    %v880 = vunpack.c.l.b16 %v402
    %v881 = vunpack.c.h.b16 %v402
    %v882 = vunpack.c.l.b16 %v403
    %v883 = vunpack.c.h.b16 %v403
    %v884 = vunpack.c.l.b16 %v404
    %v885 = vunpack.c.h.b16 %v404
    %v886 = vunpack.c.l.b16 %v405
    %v887 = vunpack.c.h.b16 %v405
    %v888 = vunpack.c.l.b16 %v406
    %v889 = vunpack.c.h.b16 %v406
    %v890 = vunpack.c.l.b16 %v407
    %v891 = vunpack.c.h.b16 %v407
    %v892 = vunpack.c.l.b16 %v408
    %v893 = vunpack.c.h.b16 %v408
    %v894 = vunpack.c.l.b16 %v409
    %v895 = vunpack.c.h.b16 %v409
    %v896 = vunpack.c.l.b16 %v410
    %v897 = vunpack.c.h.b16 %v410
    %v898 = vunpack.c.l.b16 %v411
    %v899 = vunpack.c.h.b16 %v411
    %v900 = vunpack.c.l.b16 %v412
    %v901 = vunpack.c.h.b16 %v412
    %v902 = vunpack.c.l.b16 %v413
    %v903 = vunpack.c.h.b16 %v413
    %v904 = vunpack.c.l.b16 %v414
    %v905 = vunpack.c.h.b16 %v414
    %v906 = vunpack.c.l.b16 %v415
    %v907 = vunpack.c.h.b16 %v415
    %v908 = vunpack.c.l.b16 %v416
    %v909 = vunpack.c.h.b16 %v416
    %v910 = vunpack.c.l.b16 %v417
    %v911 = vunpack.c.h.b16 %v417
    %v912 = vunpack.c.l.b16 %v418
    %v913 = vunpack.c.h.b16 %v418
    %v914 = vunpack.c.l.b16 %v419
    %v915 = vunpack.c.h.b16 %v419
    %v916 = vunpack.c.l.b16 %v420
    %v917 = vunpack.c.h.b16 %v420
    %v918 = vunpack.c.l.b16 %v421
    %v919 = vunpack.c.h.b16 %v421
    %v920 = vunpack.c.l.b16 %v422
    %v921 = vunpack.c.h.b16 %v422
    %v922 = vunpack.c.l.b16 %v423
    %v923 = vunpack.c.h.b16 %v423
    %v924 = vunpack.c.l.b16 %v424
    %v925 = vunpack.c.h.b16 %v424
    %v926 = vunpack.c.l.b16 %v425
    %v927 = vunpack.c.h.b16 %v425
    %v928 = vunpack.c.l.b16 %v426
    %v929 = vunpack.c.h.b16 %v426
    %v930 = vunpack.c.l.b16 %v427
    %v931 = vunpack.c.h.b16 %v427
    %v932 = vunpack.c.l.b16 %v428
    %v933 = vunpack.c.h.b16 %v428
    %v934 = vunpack.c.l.b16 %v429
    %v935 = vunpack.c.h.b16 %v429
    %v936 = vunpack.c.l.b16 %v430
    %v937 = vunpack.c.h.b16 %v430
    %v938 = vunpack.c.l.b16 %v431
    %v939 = vunpack.c.h.b16 %v431
    %v940 = vunpack.c.l.b16 %v432
    %v941 = vunpack.c.h.b16 %v432
    %v942 = vunpack.c.l.b16 %v433
    %v943 = vunpack.c.h.b16 %v433
    %v944 = vunpack.c.l.b16 %v434
    %v945 = vunpack.c.h.b16 %v434
    %v946 = vunpack.c.l.b16 %v435
    %v947 = vunpack.c.h.b16 %v435
    %v948 = vunpack.c.l.b16 %v436
    %v949 = vunpack.c.h.b16 %v436
    %v950 = vunpack.c.l.b16 %v437
    %v951 = vunpack.c.h.b16 %v437
    %v952 = vunpack.c.l.b16 %v438
    %v953 = vunpack.c.h.b16 %v438
    %v954 = vunpack.c.l.b16 %v439
    %v955 = vunpack.c.h.b16 %v439
    %v956 = vunpack.c.l.b16 %v440
    %v957 = vunpack.c.h.b16 %v440
    %v958 = vunpack.c.l.b16 %v441
    %v959 = vunpack.c.h.b16 %v441
    %v960 = vunpack.c.l.b16 %v442
    %v961 = vunpack.c.h.b16 %v442
    %v962 = vunpack.c.l.b16 %v443
    %v963 = vunpack.c.h.b16 %v443
    %v964 = vunpack.c.l.b16 %v444
    %v965 = vunpack.c.h.b16 %v444
    %v966 = vunpack.c.l.b16 %v445
    %v967 = vunpack.c.h.b16 %v445
    %v968 = vunpack.c.l.b16 %v446
    %v969 = vunpack.c.h.b16 %v446
    %v970 = vunpack.c.l.b16 %v447
    %v971 = vunpack.c.h.b16 %v447
    %v972 = vunpack.c.l.b16 %v448
    %v973 = vunpack.c.h.b16 %v448
    %v974 = vunpack.c.l.b16 %v449
    %v975 = vunpack.c.h.b16 %v449
    %v976 = vpack.c.b16 %v660, %v656
    %v977 = vpack.c.b16 %v661, %v657
    %v978 = vpack.c.b16 %v662, %v658
    %v979 = vpack.c.b16 %v663, %v659
    %v980 = vpack.c.b16 %v668, %v664
    %v981 = vpack.c.b16 %v669, %v665
    %v982 = vpack.c.b16 %v670, %v666
    %v983 = vpack.c.b16 %v671, %v667
    %v984 = vpack.c.b16 %v676, %v672
    %v985 = vpack.c.b16 %v677, %v673
    %v986 = vpack.c.b16 %v678, %v674
    %v987 = vpack.c.b16 %v679, %v675
    %v988 = vpack.c.b16 %v684, %v680
    %v989 = vpack.c.b16 %v685, %v681
    %v990 = vpack.c.b16 %v686, %v682
    %v991 = vpack.c.b16 %v687, %v683
    %v992 = vpack.c.b16 %v692, %v688
    %v993 = vpack.c.b16 %v693, %v689
    %v994 = vpack.c.b16 %v694, %v690
    %v995 = vpack.c.b16 %v695, %v691
    %v996 = vpack.c.b16 %v700, %v696
    %v997 = vpack.c.b16 %v701, %v697
    %v998 = vpack.c.b16 %v702, %v698
    %v999 = vpack.c.b16 %v703, %v699
    %v1000 = vpack.c.b16 %v708, %v704
    %v1001 = vpack.c.b16 %v709, %v705
    %v1002 = vpack.c.b16 %v710, %v706
    %v1003 = vpack.c.b16 %v711, %v707
    %v1004 = vpack.c.b16 %v716, %v712
    %v1005 = vpack.c.b16 %v717, %v713
    %v1006 = vpack.c.b16 %v718, %v714
    %v1007 = vpack.c.b16 %v719, %v715
    %v1008 = vpack.c.b16 %v724, %v720
    %v1009 = vpack.c.b16 %v725, %v721
    %v1010 = vpack.c.b16 %v726, %v722
    %v1011 = vpack.c.b16 %v727, %v723
    %v1012 = vpack.c.b16 %v732, %v728
    %v1013 = vpack.c.b16 %v733, %v729
    %v1014 = vpack.c.b16 %v734, %v730
    %v1015 = vpack.c.b16 %v735, %v731
    %v1016 = vpack.c.b16 %v740, %v736
    %v1017 = vpack.c.b16 %v741, %v737
    %v1018 = vpack.c.b16 %v742, %v738
    %v1019 = vpack.c.b16 %v743, %v739
    %v1020 = vpack.c.b16 %v748, %v744
    %v1021 = vpack.c.b16 %v749, %v745
    %v1022 = vpack.c.b16 %v750, %v746
    %v1023 = vpack.c.b16 %v751, %v747
    %v1024 = vpack.c.b16 %v756, %v752
    %v1025 = vpack.c.b16 %v757, %v753
    %v1026 = vpack.c.b16 %v758, %v754
    %v1027 = vpack.c.b16 %v759, %v755
    %v1028 = vpack.c.b16 %v764, %v760
    %v1029 = vpack.c.b16 %v765, %v761
    %v1030 = vpack.c.b16 %v766, %v762
    %v1031 = vpack.c.b16 %v767, %v763
    %v1032 = vpack.c.b16 %v772, %v768
    %v1033 = vpack.c.b16 %v773, %v769
    %v1034 = vpack.c.b16 %v774, %v770
    %v1035 = vpack.c.b16 %v775, %v771
    %v1036 = vpack.c.b16 %v780, %v776
    %v1037 = vpack.c.b16 %v781, %v777
    %v1038 = vpack.c.b16 %v782, %v778
    %v1039 = vpack.c.b16 %v783, %v779
    %v1040 = vpack.c.b16 %v788, %v784
    %v1041 = vpack.c.b16 %v789, %v785
    %v1042 = vpack.c.b16 %v790, %v786
    %v1043 = vpack.c.b16 %v791, %v787
    %v1044 = vpack.c.b16 %v796, %v792
    %v1045 = vpack.c.b16 %v797, %v793
    %v1046 = vpack.c.b16 %v798, %v794
    %v1047 = vpack.c.b16 %v799, %v795
    %v1048 = vpack.c.b16 %v804, %v800
    %v1049 = vpack.c.b16 %v805, %v801
    %v1050 = vpack.c.b16 %v806, %v802
    %v1051 = vpack.c.b16 %v807, %v803
    %v1052 = vpack.c.b16 %v812, %v808
    %v1053 = vpack.c.b16 %v813, %v809
    %v1054 = vpack.c.b16 %v814, %v810
    %v1055 = vpack.c.b16 %v815, %v811
    %v1056 = vpack.c.b16 %v820, %v816
    %v1057 = vpack.c.b16 %v821, %v817
    %v1058 = vpack.c.b16 %v822, %v818
    %v1059 = vpack.c.b16 %v823, %v819
    %v1060 = vpack.c.b16 %v828, %v824
    %v1061 = vpack.c.b16 %v829, %v825
    %v1062 = vpack.c.b16 %v830, %v826
    %v1063 = vpack.c.b16 %v831, %v827
    %v1064 = vpack.c.b16 %v836, %v832
    %v1065 = vpack.c.b16 %v837, %v833
    %v1066 = vpack.c.b16 %v838, %v834
    %v1067 = vpack.c.b16 %v839, %v835
    %v1068 = vpack.c.b16 %v844, %v840
    %v1069 = vpack.c.b16 %v845, %v841
    %v1070 = vpack.c.b16 %v846, %v842
    %v1071 = vpack.c.b16 %v847, %v843
    %v1072 = vpack.c.b16 %v852, %v848
    %v1073 = vpack.c.b16 %v853, %v849
    %v1074 = vpack.c.b16 %v854, %v850
    %v1075 = vpack.c.b16 %v855, %v851
    %v1076 = vpack.c.b16 %v860, %v856
    %v1077 = vpack.c.b16 %v861, %v857
    %v1078 = vpack.c.b16 %v862, %v858
    %v1079 = vpack.c.b16 %v863, %v859
    %v1080 = vpack.c.b16 %v868, %v864
    %v1081 = vpack.c.b16 %v869, %v865
    %v1082 = vpack.c.b16 %v870, %v866
    %v1083 = vpack.c.b16 %v871, %v867
    %v1084 = vpack.c.b16 %v876, %v872
    %v1085 = vpack.c.b16 %v877, %v873
    %v1086 = vpack.c.b16 %v878, %v874
    %v1087 = vpack.c.b16 %v879, %v875
    %v1088 = vpack.c.b16 %v884, %v880
    %v1089 = vpack.c.b16 %v885, %v881
    %v1090 = vpack.c.b16 %v886, %v882
    %v1091 = vpack.c.b16 %v887, %v883
    %v1092 = vpack.c.b16 %v892, %v888
    %v1093 = vpack.c.b16 %v893, %v889
    %v1094 = vpack.c.b16 %v894, %v890
    %v1095 = vpack.c.b16 %v895, %v891
    %v1096 = vpack.c.b16 %v900, %v896
    %v1097 = vpack.c.b16 %v901, %v897
    %v1098 = vpack.c.b16 %v902, %v898
    %v1099 = vpack.c.b16 %v903, %v899
    %v1100 = vpack.c.b16 %v908, %v904
    %v1101 = vpack.c.b16 %v909, %v905
    %v1102 = vpack.c.b16 %v910, %v906
    %v1103 = vpack.c.b16 %v911, %v907
    %v1104 = vpack.c.b16 %v916, %v912
    %v1105 = vpack.c.b16 %v917, %v913
    %v1106 = vpack.c.b16 %v918, %v914
    %v1107 = vpack.c.b16 %v919, %v915
    %v1108 = vpack.c.b16 %v924, %v920
    %v1109 = vpack.c.b16 %v925, %v921
    %v1110 = vpack.c.b16 %v926, %v922
    %v1111 = vpack.c.b16 %v927, %v923
    %v1112 = vpack.c.b16 %v932, %v928
    %v1113 = vpack.c.b16 %v933, %v929
    %v1114 = vpack.c.b16 %v934, %v930
    %v1115 = vpack.c.b16 %v935, %v931
    %v1116 = vpack.c.b16 %v940, %v936
    %v1117 = vpack.c.b16 %v941, %v937
    %v1118 = vpack.c.b16 %v942, %v938
    %v1119 = vpack.c.b16 %v943, %v939
    %v1120 = vpack.c.b16 %v948, %v944
    %v1121 = vpack.c.b16 %v949, %v945
    %v1122 = vpack.c.b16 %v950, %v946
    %v1123 = vpack.c.b16 %v951, %v947
    %v1124 = vpack.c.b16 %v956, %v952
    %v1125 = vpack.c.b16 %v957, %v953
    %v1126 = vpack.c.b16 %v958, %v954
    %v1127 = vpack.c.b16 %v959, %v955
    %v1128 = vpack.c.b16 %v964, %v960
    %v1129 = vpack.c.b16 %v965, %v961
    %v1130 = vpack.c.b16 %v966, %v962
    %v1131 = vpack.c.b16 %v967, %v963
    %v1132 = vpack.c.b16 %v972, %v968
    %v1133 = vpack.c.b16 %v973, %v969
    %v1134 = vpack.c.b16 %v974, %v970
    %v1135 = vpack.c.b16 %v975, %v971
    %1296 = vmatpush.bf16.msra.mxu0 %v1004
    %1297 = vmatpush.bf16.msra.mxu0 %v1000
    %1298 = vmatpush.bf16.msra.mxu0 %v996
    %1299 = vmatpush.bf16.msra.mxu0 %v992
    %1300 = vmatpush.bf16.msra.mxu0 %v988
    %1301 = vmatpush.bf16.msra.mxu0 %v984
    %1302 = vmatpush.bf16.msra.mxu0 %v980
    %1303 = vmatpush.bf16.msra.mxu0 %v976
    %1304 = vmatmul.bf16.gmra.mxu0 %v460
    %v1305 = vpop.f32.mrf.mxu0
    %v1306 = vadd.f32 %v452, %v1305
    %v1307 = vpop.f32.mrf.mxu0
    %v1308 = vadd.f32 %v452, %v1307
    %1309 = vmatmul.bf16.gmra.mxu0 %v462
    %v1310 = vpop.f32.mrf.mxu0
    %v1311 = vadd.f32 %v452, %v1310
    %v1312 = vpop.f32.mrf.mxu0
    %v1313 = vadd.f32 %v452, %v1312
    %1314 = vmatmul.bf16.gmra.mxu0 %v464
    %v1315 = vpop.f32.mrf.mxu0
    %v1316 = vadd.f32 %v452, %v1315
    %v1317 = vpop.f32.mrf.mxu0
    %v1318 = vadd.f32 %v452, %v1317
    %1319 = vmatmul.bf16.gmra.mxu0 %v466
    %v1320 = vpop.f32.mrf.mxu0
    %v1321 = vadd.f32 %v452, %v1320
    %v1322 = vpop.f32.mrf.mxu0
    %v1323 = vadd.f32 %v452, %v1322
    %1324 = vmatmul.bf16.gmra.mxu0 %v468
    %v1325 = vpop.f32.mrf.mxu0
    %v1326 = vadd.f32 %v452, %v1325
    %v1327 = vpop.f32.mrf.mxu0
    %v1328 = vadd.f32 %v452, %v1327
    %1329 = vmatmul.bf16.gmra.mxu0 %v470
    %v1330 = vpop.f32.mrf.mxu0
    %v1331 = vadd.f32 %v452, %v1330
    %v1332 = vpop.f32.mrf.mxu0
    %v1333 = vadd.f32 %v452, %v1332
    %1334 = vmatmul.bf16.gmra.mxu0 %v472
    %v1335 = vpop.f32.mrf.mxu0
    %v1336 = vadd.f32 %v452, %v1335
    %v1337 = vpop.f32.mrf.mxu0
    %v1338 = vadd.f32 %v452, %v1337
    %1339 = vmatmul.bf16.gmra.mxu0 %v474
    %v1340 = vpop.f32.mrf.mxu0
    %v1341 = vadd.f32 %v452, %v1340
    %v1342 = vpop.f32.mrf.mxu0
    %v1343 = vadd.f32 %v452, %v1342
    %1344 = vdwg.mxu0
    %1345 = vmatpush.bf16.msra.mxu0 %v1036
    %1346 = vmatpush.bf16.msra.mxu0 %v1032
    %1347 = vmatpush.bf16.msra.mxu0 %v1028
    %1348 = vmatpush.bf16.msra.mxu0 %v1024
    %1349 = vmatpush.bf16.msra.mxu0 %v1020
    %1350 = vmatpush.bf16.msra.mxu0 %v1016
    %1351 = vmatpush.bf16.msra.mxu0 %v1012
    %1352 = vmatpush.bf16.msra.mxu0 %v1008
    %1353 = vmatmul.bf16.gmra.mxu0 %v461
    %v1354 = vpop.f32.mrf.mxu0
    %v1355 = vadd.f32 %v1306, %v1354
    %v1356 = vpop.f32.mrf.mxu0
    %v1357 = vadd.f32 %v1308, %v1356
    %1358 = vmatmul.bf16.gmra.mxu0 %v463
    %v1359 = vpop.f32.mrf.mxu0
    %v1360 = vadd.f32 %v1311, %v1359
    %v1361 = vpop.f32.mrf.mxu0
    %v1362 = vadd.f32 %v1313, %v1361
    %1363 = vmatmul.bf16.gmra.mxu0 %v465
    %v1364 = vpop.f32.mrf.mxu0
    %v1365 = vadd.f32 %v1316, %v1364
    %v1366 = vpop.f32.mrf.mxu0
    %v1367 = vadd.f32 %v1318, %v1366
    %1368 = vmatmul.bf16.gmra.mxu0 %v467
    %v1369 = vpop.f32.mrf.mxu0
    %v1370 = vadd.f32 %v1321, %v1369
    %v1371 = vpop.f32.mrf.mxu0
    %v1372 = vadd.f32 %v1323, %v1371
    %1373 = vmatmul.bf16.gmra.mxu0 %v469
    %v1374 = vpop.f32.mrf.mxu0
    %v1375 = vadd.f32 %v1326, %v1374
    %v1376 = vpop.f32.mrf.mxu0
    %v1377 = vadd.f32 %v1328, %v1376
    %1378 = vmatmul.bf16.gmra.mxu0 %v471
    %v1379 = vpop.f32.mrf.mxu0
    %v1380 = vadd.f32 %v1331, %v1379
    %v1381 = vpop.f32.mrf.mxu0
    %v1382 = vadd.f32 %v1333, %v1381
    %1383 = vmatmul.bf16.gmra.mxu0 %v473
    %v1384 = vpop.f32.mrf.mxu0
    %v1385 = vadd.f32 %v1336, %v1384
    %v1386 = vpop.f32.mrf.mxu0
    %v1387 = vadd.f32 %v1338, %v1386
    %1388 = vmatmul.bf16.gmra.mxu0 %v475
    %v1389 = vpop.f32.mrf.mxu0
    %v1390 = vadd.f32 %v1341, %v1389
    %v1391 = vpop.f32.mrf.mxu0
    %v1392 = vadd.f32 %v1343, %v1391
    %1393 = vdwg.mxu0
    %1394 = vmatpush.bf16.msra.mxu0 %v1068
    %1395 = vmatpush.bf16.msra.mxu0 %v1064
    %1396 = vmatpush.bf16.msra.mxu0 %v1060
    %1397 = vmatpush.bf16.msra.mxu0 %v1056
    %1398 = vmatpush.bf16.msra.mxu0 %v1052
    %1399 = vmatpush.bf16.msra.mxu0 %v1048
    %1400 = vmatpush.bf16.msra.mxu0 %v1044
    %1401 = vmatpush.bf16.msra.mxu0 %v1040
    %1402 = vmatmul.bf16.gmra.mxu0 %v462
    %v1403 = vpop.f32.mrf.mxu0
    %v1404 = vadd.f32 %v1355, %v1403
    %v1405 = vpop.f32.mrf.mxu0
    %v1406 = vadd.f32 %v1357, %v1405
    %1407 = vmatmul.bf16.gmra.mxu0 %v464
    %v1408 = vpop.f32.mrf.mxu0
    %v1409 = vadd.f32 %v1360, %v1408
    %v1410 = vpop.f32.mrf.mxu0
    %v1411 = vadd.f32 %v1362, %v1410
    %1412 = vmatmul.bf16.gmra.mxu0 %v466
    %v1413 = vpop.f32.mrf.mxu0
    %v1414 = vadd.f32 %v1365, %v1413
    %v1415 = vpop.f32.mrf.mxu0
    %v1416 = vadd.f32 %v1367, %v1415
    %1417 = vmatmul.bf16.gmra.mxu0 %v468
    %v1418 = vpop.f32.mrf.mxu0
    %v1419 = vadd.f32 %v1370, %v1418
    %v1420 = vpop.f32.mrf.mxu0
    %v1421 = vadd.f32 %v1372, %v1420
    %1422 = vmatmul.bf16.gmra.mxu0 %v470
    %v1423 = vpop.f32.mrf.mxu0
    %v1424 = vadd.f32 %v1375, %v1423
    %v1425 = vpop.f32.mrf.mxu0
    %v1426 = vadd.f32 %v1377, %v1425
    %1427 = vmatmul.bf16.gmra.mxu0 %v472
    %v1428 = vpop.f32.mrf.mxu0
    %v1429 = vadd.f32 %v1380, %v1428
    %v1430 = vpop.f32.mrf.mxu0
    %v1431 = vadd.f32 %v1382, %v1430
    %1432 = vmatmul.bf16.gmra.mxu0 %v474
    %v1433 = vpop.f32.mrf.mxu0
    %v1434 = vadd.f32 %v1385, %v1433
    %v1435 = vpop.f32.mrf.mxu0
    %v1436 = vadd.f32 %v1387, %v1435
    %1437 = vmatmul.bf16.gmra.mxu0 %v476
    %v1438 = vpop.f32.mrf.mxu0
    %v1439 = vadd.f32 %v1390, %v1438
    %v1440 = vpop.f32.mrf.mxu0
    %v1441 = vadd.f32 %v1392, %v1440
    %1442 = vdwg.mxu0
    %1443 = vmatpush.bf16.msra.mxu0 %v1100
    %1444 = vmatpush.bf16.msra.mxu0 %v1096
    %1445 = vmatpush.bf16.msra.mxu0 %v1092
    %1446 = vmatpush.bf16.msra.mxu0 %v1088
    %1447 = vmatpush.bf16.msra.mxu0 %v1084
    %1448 = vmatpush.bf16.msra.mxu0 %v1080
    %1449 = vmatpush.bf16.msra.mxu0 %v1076
    %1450 = vmatpush.bf16.msra.mxu0 %v1072
    %1451 = vmatmul.bf16.gmra.mxu0 %v463
    %v1452 = vpop.f32.mrf.mxu0
    %v1453 = vadd.f32 %v1404, %v1452
    %v1454 = vpop.f32.mrf.mxu0
    %v1455 = vadd.f32 %v1406, %v1454
    %1456 = vmatmul.bf16.gmra.mxu0 %v465
    %v1457 = vpop.f32.mrf.mxu0
    %v1458 = vadd.f32 %v1409, %v1457
    %v1459 = vpop.f32.mrf.mxu0
    %v1460 = vadd.f32 %v1411, %v1459
    %1461 = vmatmul.bf16.gmra.mxu0 %v467
    %v1462 = vpop.f32.mrf.mxu0
    %v1463 = vadd.f32 %v1414, %v1462
    %v1464 = vpop.f32.mrf.mxu0
    %v1465 = vadd.f32 %v1416, %v1464
    %1466 = vmatmul.bf16.gmra.mxu0 %v469
    %v1467 = vpop.f32.mrf.mxu0
    %v1468 = vadd.f32 %v1419, %v1467
    %v1469 = vpop.f32.mrf.mxu0
    %v1470 = vadd.f32 %v1421, %v1469
    %1471 = vmatmul.bf16.gmra.mxu0 %v471
    %v1472 = vpop.f32.mrf.mxu0
    %v1473 = vadd.f32 %v1424, %v1472
    %v1474 = vpop.f32.mrf.mxu0
    %v1475 = vadd.f32 %v1426, %v1474
    %1476 = vmatmul.bf16.gmra.mxu0 %v473
    %v1477 = vpop.f32.mrf.mxu0
    %v1478 = vadd.f32 %v1429, %v1477
    %v1479 = vpop.f32.mrf.mxu0
    %v1480 = vadd.f32 %v1431, %v1479
    %1481 = vmatmul.bf16.gmra.mxu0 %v475
    %v1482 = vpop.f32.mrf.mxu0
    %v1483 = vadd.f32 %v1434, %v1482
    %v1484 = vpop.f32.mrf.mxu0
    %v1485 = vadd.f32 %v1436, %v1484
    %1486 = vmatmul.bf16.gmra.mxu0 %v477
    %v1487 = vpop.f32.mrf.mxu0
    %v1488 = vadd.f32 %v1439, %v1487
    %v1489 = vpop.f32.mrf.mxu0
    %v1490 = vadd.f32 %v1441, %v1489
    %1491 = vdwg.mxu0
    %1492 = vmatpush.bf16.msra.mxu0 %v1132
    %1493 = vmatpush.bf16.msra.mxu0 %v1128
    %1494 = vmatpush.bf16.msra.mxu0 %v1124
    %1495 = vmatpush.bf16.msra.mxu0 %v1120
    %1496 = vmatpush.bf16.msra.mxu0 %v1116
    %1497 = vmatpush.bf16.msra.mxu0 %v1112
    %1498 = vmatpush.bf16.msra.mxu0 %v1108
    %1499 = vmatpush.bf16.msra.mxu0 %v1104
    %1500 = vmatmul.bf16.gmra.mxu0 %v464
    %v1501 = vpop.f32.mrf.mxu0
    %v1502 = vadd.f32 %v1453, %v1501
    %v1503 = vpop.f32.mrf.mxu0
    %v1504 = vadd.f32 %v1455, %v1503
    %1505 = vmatmul.bf16.gmra.mxu0 %v466
    %v1506 = vpop.f32.mrf.mxu0
    %v1507 = vadd.f32 %v1458, %v1506
    %v1508 = vpop.f32.mrf.mxu0
    %v1509 = vadd.f32 %v1460, %v1508
    %1510 = vmatmul.bf16.gmra.mxu0 %v468
    %v1511 = vpop.f32.mrf.mxu0
    %v1512 = vadd.f32 %v1463, %v1511
    %v1513 = vpop.f32.mrf.mxu0
    %v1514 = vadd.f32 %v1465, %v1513
    %1515 = vmatmul.bf16.gmra.mxu0 %v470
    %v1516 = vpop.f32.mrf.mxu0
    %v1517 = vadd.f32 %v1468, %v1516
    %v1518 = vpop.f32.mrf.mxu0
    %v1519 = vadd.f32 %v1470, %v1518
    %1520 = vmatmul.bf16.gmra.mxu0 %v472
    %v1521 = vpop.f32.mrf.mxu0
    %v1522 = vadd.f32 %v1473, %v1521
    %v1523 = vpop.f32.mrf.mxu0
    %v1524 = vadd.f32 %v1475, %v1523
    %1525 = vmatmul.bf16.gmra.mxu0 %v474
    %v1526 = vpop.f32.mrf.mxu0
    %v1527 = vadd.f32 %v1478, %v1526
    %v1528 = vpop.f32.mrf.mxu0
    %v1529 = vadd.f32 %v1480, %v1528
    %1530 = vmatmul.bf16.gmra.mxu0 %v476
    %v1531 = vpop.f32.mrf.mxu0
    %v1532 = vadd.f32 %v1483, %v1531
    %v1533 = vpop.f32.mrf.mxu0
    %v1534 = vadd.f32 %v1485, %v1533
    %1535 = vmatmul.bf16.gmra.mxu0 %v460
    %v1536 = vpop.f32.mrf.mxu0
    %v1537 = vadd.f32 %v1488, %v1536
    %v1538 = vpop.f32.mrf.mxu0
    %v1539 = vadd.f32 %v1490, %v1538
    %1540 = vdwg.mxu0
    %1541 = vmatpush.bf16.msra.mxu0 %v1005
    %1542 = vmatpush.bf16.msra.mxu0 %v1001
    %1543 = vmatpush.bf16.msra.mxu0 %v997
    %1544 = vmatpush.bf16.msra.mxu0 %v993
    %1545 = vmatpush.bf16.msra.mxu0 %v989
    %1546 = vmatpush.bf16.msra.mxu0 %v985
    %1547 = vmatpush.bf16.msra.mxu0 %v981
    %1548 = vmatpush.bf16.msra.mxu0 %v977
    %1549 = vmatmul.bf16.gmra.mxu0 %v460
    %v1550 = vpop.f32.mrf.mxu0
    %v1551 = vadd.f32 %v453, %v1550
    %v1552 = vpop.f32.mrf.mxu0
    %v1553 = vadd.f32 %v453, %v1552
    %1554 = vmatmul.bf16.gmra.mxu0 %v462
    %v1555 = vpop.f32.mrf.mxu0
    %v1556 = vadd.f32 %v453, %v1555
    %v1557 = vpop.f32.mrf.mxu0
    %v1558 = vadd.f32 %v453, %v1557
    %1559 = vmatmul.bf16.gmra.mxu0 %v464
    %v1560 = vpop.f32.mrf.mxu0
    %v1561 = vadd.f32 %v453, %v1560
    %v1562 = vpop.f32.mrf.mxu0
    %v1563 = vadd.f32 %v453, %v1562
    %1564 = vmatmul.bf16.gmra.mxu0 %v466
    %v1565 = vpop.f32.mrf.mxu0
    %v1566 = vadd.f32 %v453, %v1565
    %v1567 = vpop.f32.mrf.mxu0
    %v1568 = vadd.f32 %v453, %v1567
    %1569 = vmatmul.bf16.gmra.mxu0 %v468
    %v1570 = vpop.f32.mrf.mxu0
    %v1571 = vadd.f32 %v453, %v1570
    %v1572 = vpop.f32.mrf.mxu0
    %v1573 = vadd.f32 %v453, %v1572
    %1574 = vmatmul.bf16.gmra.mxu0 %v470
    %v1575 = vpop.f32.mrf.mxu0
    %v1576 = vadd.f32 %v453, %v1575
    %v1577 = vpop.f32.mrf.mxu0
    %v1578 = vadd.f32 %v453, %v1577
    %1579 = vmatmul.bf16.gmra.mxu0 %v472
    %v1580 = vpop.f32.mrf.mxu0
    %v1581 = vadd.f32 %v453, %v1580
    %v1582 = vpop.f32.mrf.mxu0
    %v1583 = vadd.f32 %v453, %v1582
    %1584 = vmatmul.bf16.gmra.mxu0 %v474
    %v1585 = vpop.f32.mrf.mxu0
    %v1586 = vadd.f32 %v453, %v1585
    %v1587 = vpop.f32.mrf.mxu0
    %v1588 = vadd.f32 %v453, %v1587
    %1589 = vdwg.mxu0
    %1590 = vmatpush.bf16.msra.mxu0 %v1037
    %1591 = vmatpush.bf16.msra.mxu0 %v1033
    %1592 = vmatpush.bf16.msra.mxu0 %v1029
    %1593 = vmatpush.bf16.msra.mxu0 %v1025
    %1594 = vmatpush.bf16.msra.mxu0 %v1021
    %1595 = vmatpush.bf16.msra.mxu0 %v1017
    %1596 = vmatpush.bf16.msra.mxu0 %v1013
    %1597 = vmatpush.bf16.msra.mxu0 %v1009
    %1598 = vmatmul.bf16.gmra.mxu0 %v461
    %v1599 = vpop.f32.mrf.mxu0
    %v1600 = vadd.f32 %v1551, %v1599
    %v1601 = vpop.f32.mrf.mxu0
    %v1602 = vadd.f32 %v1553, %v1601
    %1603 = vmatmul.bf16.gmra.mxu0 %v463
    %v1604 = vpop.f32.mrf.mxu0
    %v1605 = vadd.f32 %v1556, %v1604
    %v1606 = vpop.f32.mrf.mxu0
    %v1607 = vadd.f32 %v1558, %v1606
    %1608 = vmatmul.bf16.gmra.mxu0 %v465
    %v1609 = vpop.f32.mrf.mxu0
    %v1610 = vadd.f32 %v1561, %v1609
    %v1611 = vpop.f32.mrf.mxu0
    %v1612 = vadd.f32 %v1563, %v1611
    %1613 = vmatmul.bf16.gmra.mxu0 %v467
    %v1614 = vpop.f32.mrf.mxu0
    %v1615 = vadd.f32 %v1566, %v1614
    %v1616 = vpop.f32.mrf.mxu0
    %v1617 = vadd.f32 %v1568, %v1616
    %1618 = vmatmul.bf16.gmra.mxu0 %v469
    %v1619 = vpop.f32.mrf.mxu0
    %v1620 = vadd.f32 %v1571, %v1619
    %v1621 = vpop.f32.mrf.mxu0
    %v1622 = vadd.f32 %v1573, %v1621
    %1623 = vmatmul.bf16.gmra.mxu0 %v471
    %v1624 = vpop.f32.mrf.mxu0
    %v1625 = vadd.f32 %v1576, %v1624
    %v1626 = vpop.f32.mrf.mxu0
    %v1627 = vadd.f32 %v1578, %v1626
    %1628 = vmatmul.bf16.gmra.mxu0 %v473
    %v1629 = vpop.f32.mrf.mxu0
    %v1630 = vadd.f32 %v1581, %v1629
    %v1631 = vpop.f32.mrf.mxu0
    %v1632 = vadd.f32 %v1583, %v1631
    %1633 = vmatmul.bf16.gmra.mxu0 %v475
    %v1634 = vpop.f32.mrf.mxu0
    %v1635 = vadd.f32 %v1586, %v1634
    %v1636 = vpop.f32.mrf.mxu0
    %v1637 = vadd.f32 %v1588, %v1636
    %1638 = vdwg.mxu0
    %1639 = vmatpush.bf16.msra.mxu0 %v1069
    %1640 = vmatpush.bf16.msra.mxu0 %v1065
    %1641 = vmatpush.bf16.msra.mxu0 %v1061
    %1642 = vmatpush.bf16.msra.mxu0 %v1057
    %1643 = vmatpush.bf16.msra.mxu0 %v1053
    %1644 = vmatpush.bf16.msra.mxu0 %v1049
    %1645 = vmatpush.bf16.msra.mxu0 %v1045
    %1646 = vmatpush.bf16.msra.mxu0 %v1041
    %1647 = vmatmul.bf16.gmra.mxu0 %v462
    %v1648 = vpop.f32.mrf.mxu0
    %v1649 = vadd.f32 %v1600, %v1648
    %v1650 = vpop.f32.mrf.mxu0
    %v1651 = vadd.f32 %v1602, %v1650
    %1652 = vmatmul.bf16.gmra.mxu0 %v464
    %v1653 = vpop.f32.mrf.mxu0
    %v1654 = vadd.f32 %v1605, %v1653
    %v1655 = vpop.f32.mrf.mxu0
    %v1656 = vadd.f32 %v1607, %v1655
    %1657 = vmatmul.bf16.gmra.mxu0 %v466
    %v1658 = vpop.f32.mrf.mxu0
    %v1659 = vadd.f32 %v1610, %v1658
    %v1660 = vpop.f32.mrf.mxu0
    %v1661 = vadd.f32 %v1612, %v1660
    %1662 = vmatmul.bf16.gmra.mxu0 %v468
    %v1663 = vpop.f32.mrf.mxu0
    %v1664 = vadd.f32 %v1615, %v1663
    %v1665 = vpop.f32.mrf.mxu0
    %v1666 = vadd.f32 %v1617, %v1665
    %1667 = vmatmul.bf16.gmra.mxu0 %v470
    %v1668 = vpop.f32.mrf.mxu0
    %v1669 = vadd.f32 %v1620, %v1668
    %v1670 = vpop.f32.mrf.mxu0
    %v1671 = vadd.f32 %v1622, %v1670
    %1672 = vmatmul.bf16.gmra.mxu0 %v472
    %v1673 = vpop.f32.mrf.mxu0
    %v1674 = vadd.f32 %v1625, %v1673
    %v1675 = vpop.f32.mrf.mxu0
    %v1676 = vadd.f32 %v1627, %v1675
    %1677 = vmatmul.bf16.gmra.mxu0 %v474
    %v1678 = vpop.f32.mrf.mxu0
    %v1679 = vadd.f32 %v1630, %v1678
    %v1680 = vpop.f32.mrf.mxu0
    %v1681 = vadd.f32 %v1632, %v1680
    %1682 = vmatmul.bf16.gmra.mxu0 %v476
    %v1683 = vpop.f32.mrf.mxu0
    %v1684 = vadd.f32 %v1635, %v1683
    %v1685 = vpop.f32.mrf.mxu0
    %v1686 = vadd.f32 %v1637, %v1685
    %1687 = vdwg.mxu0
    %1688 = vmatpush.bf16.msra.mxu0 %v1101
    %1689 = vmatpush.bf16.msra.mxu0 %v1097
    %1690 = vmatpush.bf16.msra.mxu0 %v1093
    %1691 = vmatpush.bf16.msra.mxu0 %v1089
    %1692 = vmatpush.bf16.msra.mxu0 %v1085
    %1693 = vmatpush.bf16.msra.mxu0 %v1081
    %1694 = vmatpush.bf16.msra.mxu0 %v1077
    %1695 = vmatpush.bf16.msra.mxu0 %v1073
    %1696 = vmatmul.bf16.gmra.mxu0 %v463
    %v1697 = vpop.f32.mrf.mxu0
    %v1698 = vadd.f32 %v1649, %v1697
    %v1699 = vpop.f32.mrf.mxu0
    %v1700 = vadd.f32 %v1651, %v1699
    %1701 = vmatmul.bf16.gmra.mxu0 %v465
    %v1702 = vpop.f32.mrf.mxu0
    %v1703 = vadd.f32 %v1654, %v1702
    %v1704 = vpop.f32.mrf.mxu0
    %v1705 = vadd.f32 %v1656, %v1704
    %1706 = vmatmul.bf16.gmra.mxu0 %v467
    %v1707 = vpop.f32.mrf.mxu0
    %v1708 = vadd.f32 %v1659, %v1707
    %v1709 = vpop.f32.mrf.mxu0
    %v1710 = vadd.f32 %v1661, %v1709
    %1711 = vmatmul.bf16.gmra.mxu0 %v469
    %v1712 = vpop.f32.mrf.mxu0
    %v1713 = vadd.f32 %v1664, %v1712
    %v1714 = vpop.f32.mrf.mxu0
    %v1715 = vadd.f32 %v1666, %v1714
    %1716 = vmatmul.bf16.gmra.mxu0 %v471
    %v1717 = vpop.f32.mrf.mxu0
    %v1718 = vadd.f32 %v1669, %v1717
    %v1719 = vpop.f32.mrf.mxu0
    %v1720 = vadd.f32 %v1671, %v1719
    %1721 = vmatmul.bf16.gmra.mxu0 %v473
    %v1722 = vpop.f32.mrf.mxu0
    %v1723 = vadd.f32 %v1674, %v1722
    %v1724 = vpop.f32.mrf.mxu0
    %v1725 = vadd.f32 %v1676, %v1724
    %1726 = vmatmul.bf16.gmra.mxu0 %v475
    %v1727 = vpop.f32.mrf.mxu0
    %v1728 = vadd.f32 %v1679, %v1727
    %v1729 = vpop.f32.mrf.mxu0
    %v1730 = vadd.f32 %v1681, %v1729
    %1731 = vmatmul.bf16.gmra.mxu0 %v477
    %v1732 = vpop.f32.mrf.mxu0
    %v1733 = vadd.f32 %v1684, %v1732
    %v1734 = vpop.f32.mrf.mxu0
    %v1735 = vadd.f32 %v1686, %v1734
    %1736 = vdwg.mxu0
    %1737 = vmatpush.bf16.msra.mxu0 %v1133
    %1738 = vmatpush.bf16.msra.mxu0 %v1129
    %1739 = vmatpush.bf16.msra.mxu0 %v1125
    %1740 = vmatpush.bf16.msra.mxu0 %v1121
    %1741 = vmatpush.bf16.msra.mxu0 %v1117
    %1742 = vmatpush.bf16.msra.mxu0 %v1113
    %1743 = vmatpush.bf16.msra.mxu0 %v1109
    %1744 = vmatpush.bf16.msra.mxu0 %v1105
    %1745 = vmatmul.bf16.gmra.mxu0 %v464
    %v1746 = vpop.f32.mrf.mxu0
    %v1747 = vadd.f32 %v1698, %v1746
    %v1748 = vpop.f32.mrf.mxu0
    %v1749 = vadd.f32 %v1700, %v1748
    %1750 = vmatmul.bf16.gmra.mxu0 %v466
    %v1751 = vpop.f32.mrf.mxu0
    %v1752 = vadd.f32 %v1703, %v1751
    %v1753 = vpop.f32.mrf.mxu0
    %v1754 = vadd.f32 %v1705, %v1753
    %1755 = vmatmul.bf16.gmra.mxu0 %v468
    %v1756 = vpop.f32.mrf.mxu0
    %v1757 = vadd.f32 %v1708, %v1756
    %v1758 = vpop.f32.mrf.mxu0
    %v1759 = vadd.f32 %v1710, %v1758
    %1760 = vmatmul.bf16.gmra.mxu0 %v470
    %v1761 = vpop.f32.mrf.mxu0
    %v1762 = vadd.f32 %v1713, %v1761
    %v1763 = vpop.f32.mrf.mxu0
    %v1764 = vadd.f32 %v1715, %v1763
    %1765 = vmatmul.bf16.gmra.mxu0 %v472
    %v1766 = vpop.f32.mrf.mxu0
    %v1767 = vadd.f32 %v1718, %v1766
    %v1768 = vpop.f32.mrf.mxu0
    %v1769 = vadd.f32 %v1720, %v1768
    %1770 = vmatmul.bf16.gmra.mxu0 %v474
    %v1771 = vpop.f32.mrf.mxu0
    %v1772 = vadd.f32 %v1723, %v1771
    %v1773 = vpop.f32.mrf.mxu0
    %v1774 = vadd.f32 %v1725, %v1773
    %1775 = vmatmul.bf16.gmra.mxu0 %v476
    %v1776 = vpop.f32.mrf.mxu0
    %v1777 = vadd.f32 %v1728, %v1776
    %v1778 = vpop.f32.mrf.mxu0
    %v1779 = vadd.f32 %v1730, %v1778
    %1780 = vmatmul.bf16.gmra.mxu0 %v460
    %v1781 = vpop.f32.mrf.mxu0
    %v1782 = vadd.f32 %v1733, %v1781
    %v1783 = vpop.f32.mrf.mxu0
    %v1784 = vadd.f32 %v1735, %v1783
    %1785 = vdwg.mxu0
    %1786 = vmatpush.bf16.msra.mxu0 %v1006
    %1787 = vmatpush.bf16.msra.mxu0 %v1002
    %1788 = vmatpush.bf16.msra.mxu0 %v998
    %1789 = vmatpush.bf16.msra.mxu0 %v994
    %1790 = vmatpush.bf16.msra.mxu0 %v990
    %1791 = vmatpush.bf16.msra.mxu0 %v986
    %1792 = vmatpush.bf16.msra.mxu0 %v982
    %1793 = vmatpush.bf16.msra.mxu0 %v978
    %1794 = vmatmul.bf16.gmra.mxu0 %v460
    %v1795 = vpop.f32.mrf.mxu0
    %v1796 = vadd.f32 %v454, %v1795
    %v1797 = vpop.f32.mrf.mxu0
    %v1798 = vadd.f32 %v454, %v1797
    %1799 = vmatmul.bf16.gmra.mxu0 %v462
    %v1800 = vpop.f32.mrf.mxu0
    %v1801 = vadd.f32 %v454, %v1800
    %v1802 = vpop.f32.mrf.mxu0
    %v1803 = vadd.f32 %v454, %v1802
    %1804 = vmatmul.bf16.gmra.mxu0 %v464
    %v1805 = vpop.f32.mrf.mxu0
    %v1806 = vadd.f32 %v454, %v1805
    %v1807 = vpop.f32.mrf.mxu0
    %v1808 = vadd.f32 %v454, %v1807
    %1809 = vmatmul.bf16.gmra.mxu0 %v466
    %v1810 = vpop.f32.mrf.mxu0
    %v1811 = vadd.f32 %v454, %v1810
    %v1812 = vpop.f32.mrf.mxu0
    %v1813 = vadd.f32 %v454, %v1812
    %1814 = vmatmul.bf16.gmra.mxu0 %v468
    %v1815 = vpop.f32.mrf.mxu0
    %v1816 = vadd.f32 %v454, %v1815
    %v1817 = vpop.f32.mrf.mxu0
    %v1818 = vadd.f32 %v454, %v1817
    %1819 = vmatmul.bf16.gmra.mxu0 %v470
    %v1820 = vpop.f32.mrf.mxu0
    %v1821 = vadd.f32 %v454, %v1820
    %v1822 = vpop.f32.mrf.mxu0
    %v1823 = vadd.f32 %v454, %v1822
    %1824 = vmatmul.bf16.gmra.mxu0 %v472
    %v1825 = vpop.f32.mrf.mxu0
    %v1826 = vadd.f32 %v454, %v1825
    %v1827 = vpop.f32.mrf.mxu0
    %v1828 = vadd.f32 %v454, %v1827
    %1829 = vmatmul.bf16.gmra.mxu0 %v474
    %v1830 = vpop.f32.mrf.mxu0
    %v1831 = vadd.f32 %v454, %v1830
    %v1832 = vpop.f32.mrf.mxu0
    %v1833 = vadd.f32 %v454, %v1832
    %1834 = vdwg.mxu0
    %1835 = vmatpush.bf16.msra.mxu0 %v1038
    %1836 = vmatpush.bf16.msra.mxu0 %v1034
    %1837 = vmatpush.bf16.msra.mxu0 %v1030
    %1838 = vmatpush.bf16.msra.mxu0 %v1026
    %1839 = vmatpush.bf16.msra.mxu0 %v1022
    %1840 = vmatpush.bf16.msra.mxu0 %v1018
    %1841 = vmatpush.bf16.msra.mxu0 %v1014
    %1842 = vmatpush.bf16.msra.mxu0 %v1010
    %1843 = vmatmul.bf16.gmra.mxu0 %v461
    %v1844 = vpop.f32.mrf.mxu0
    %v1845 = vadd.f32 %v1796, %v1844
    %v1846 = vpop.f32.mrf.mxu0
    %v1847 = vadd.f32 %v1798, %v1846
    %1848 = vmatmul.bf16.gmra.mxu0 %v463
    %v1849 = vpop.f32.mrf.mxu0
    %v1850 = vadd.f32 %v1801, %v1849
    %v1851 = vpop.f32.mrf.mxu0
    %v1852 = vadd.f32 %v1803, %v1851
    %1853 = vmatmul.bf16.gmra.mxu0 %v465
    %v1854 = vpop.f32.mrf.mxu0
    %v1855 = vadd.f32 %v1806, %v1854
    %v1856 = vpop.f32.mrf.mxu0
    %v1857 = vadd.f32 %v1808, %v1856
    %1858 = vmatmul.bf16.gmra.mxu0 %v467
    %v1859 = vpop.f32.mrf.mxu0
    %v1860 = vadd.f32 %v1811, %v1859
    %v1861 = vpop.f32.mrf.mxu0
    %v1862 = vadd.f32 %v1813, %v1861
    %1863 = vmatmul.bf16.gmra.mxu0 %v469
    %v1864 = vpop.f32.mrf.mxu0
    %v1865 = vadd.f32 %v1816, %v1864
    %v1866 = vpop.f32.mrf.mxu0
    %v1867 = vadd.f32 %v1818, %v1866
    %1868 = vmatmul.bf16.gmra.mxu0 %v471
    %v1869 = vpop.f32.mrf.mxu0
    %v1870 = vadd.f32 %v1821, %v1869
    %v1871 = vpop.f32.mrf.mxu0
    %v1872 = vadd.f32 %v1823, %v1871
    %1873 = vmatmul.bf16.gmra.mxu0 %v473
    %v1874 = vpop.f32.mrf.mxu0
    %v1875 = vadd.f32 %v1826, %v1874
    %v1876 = vpop.f32.mrf.mxu0
    %v1877 = vadd.f32 %v1828, %v1876
    %1878 = vmatmul.bf16.gmra.mxu0 %v475
    %v1879 = vpop.f32.mrf.mxu0
    %v1880 = vadd.f32 %v1831, %v1879
    %v1881 = vpop.f32.mrf.mxu0
    %v1882 = vadd.f32 %v1833, %v1881
    %1883 = vdwg.mxu0
    %1884 = vmatpush.bf16.msra.mxu0 %v1070
    %1885 = vmatpush.bf16.msra.mxu0 %v1066
    %1886 = vmatpush.bf16.msra.mxu0 %v1062
    %1887 = vmatpush.bf16.msra.mxu0 %v1058
    %1888 = vmatpush.bf16.msra.mxu0 %v1054
    %1889 = vmatpush.bf16.msra.mxu0 %v1050
    %1890 = vmatpush.bf16.msra.mxu0 %v1046
    %1891 = vmatpush.bf16.msra.mxu0 %v1042
    %1892 = vmatmul.bf16.gmra.mxu0 %v462
    %v1893 = vpop.f32.mrf.mxu0
    %v1894 = vadd.f32 %v1845, %v1893
    %v1895 = vpop.f32.mrf.mxu0
    %v1896 = vadd.f32 %v1847, %v1895
    %1897 = vmatmul.bf16.gmra.mxu0 %v464
    %v1898 = vpop.f32.mrf.mxu0
    %v1899 = vadd.f32 %v1850, %v1898
    %v1900 = vpop.f32.mrf.mxu0
    %v1901 = vadd.f32 %v1852, %v1900
    %1902 = vmatmul.bf16.gmra.mxu0 %v466
    %v1903 = vpop.f32.mrf.mxu0
    %v1904 = vadd.f32 %v1855, %v1903
    %v1905 = vpop.f32.mrf.mxu0
    %v1906 = vadd.f32 %v1857, %v1905
    %1907 = vmatmul.bf16.gmra.mxu0 %v468
    %v1908 = vpop.f32.mrf.mxu0
    %v1909 = vadd.f32 %v1860, %v1908
    %v1910 = vpop.f32.mrf.mxu0
    %v1911 = vadd.f32 %v1862, %v1910
    %1912 = vmatmul.bf16.gmra.mxu0 %v470
    %v1913 = vpop.f32.mrf.mxu0
    %v1914 = vadd.f32 %v1865, %v1913
    %v1915 = vpop.f32.mrf.mxu0
    %v1916 = vadd.f32 %v1867, %v1915
    %1917 = vmatmul.bf16.gmra.mxu0 %v472
    %v1918 = vpop.f32.mrf.mxu0
    %v1919 = vadd.f32 %v1870, %v1918
    %v1920 = vpop.f32.mrf.mxu0
    %v1921 = vadd.f32 %v1872, %v1920
    %1922 = vmatmul.bf16.gmra.mxu0 %v474
    %v1923 = vpop.f32.mrf.mxu0
    %v1924 = vadd.f32 %v1875, %v1923
    %v1925 = vpop.f32.mrf.mxu0
    %v1926 = vadd.f32 %v1877, %v1925
    %1927 = vmatmul.bf16.gmra.mxu0 %v476
    %v1928 = vpop.f32.mrf.mxu0
    %v1929 = vadd.f32 %v1880, %v1928
    %v1930 = vpop.f32.mrf.mxu0
    %v1931 = vadd.f32 %v1882, %v1930
    %1932 = vdwg.mxu0
    %1933 = vmatpush.bf16.msra.mxu0 %v1102
    %1934 = vmatpush.bf16.msra.mxu0 %v1098
    %1935 = vmatpush.bf16.msra.mxu0 %v1094
    %1936 = vmatpush.bf16.msra.mxu0 %v1090
    %1937 = vmatpush.bf16.msra.mxu0 %v1086
    %1938 = vmatpush.bf16.msra.mxu0 %v1082
    %1939 = vmatpush.bf16.msra.mxu0 %v1078
    %1940 = vmatpush.bf16.msra.mxu0 %v1074
    %1941 = vmatmul.bf16.gmra.mxu0 %v463
    %v1942 = vpop.f32.mrf.mxu0
    %v1943 = vadd.f32 %v1894, %v1942
    %v1944 = vpop.f32.mrf.mxu0
    %v1945 = vadd.f32 %v1896, %v1944
    %1946 = vmatmul.bf16.gmra.mxu0 %v465
    %v1947 = vpop.f32.mrf.mxu0
    %v1948 = vadd.f32 %v1899, %v1947
    %v1949 = vpop.f32.mrf.mxu0
    %v1950 = vadd.f32 %v1901, %v1949
    %1951 = vmatmul.bf16.gmra.mxu0 %v467
    %v1952 = vpop.f32.mrf.mxu0
    %v1953 = vadd.f32 %v1904, %v1952
    %v1954 = vpop.f32.mrf.mxu0
    %v1955 = vadd.f32 %v1906, %v1954
    %1956 = vmatmul.bf16.gmra.mxu0 %v469
    %v1957 = vpop.f32.mrf.mxu0
    %v1958 = vadd.f32 %v1909, %v1957
    %v1959 = vpop.f32.mrf.mxu0
    %v1960 = vadd.f32 %v1911, %v1959
    %1961 = vmatmul.bf16.gmra.mxu0 %v471
    %v1962 = vpop.f32.mrf.mxu0
    %v1963 = vadd.f32 %v1914, %v1962
    %v1964 = vpop.f32.mrf.mxu0
    %v1965 = vadd.f32 %v1916, %v1964
    %1966 = vmatmul.bf16.gmra.mxu0 %v473
    %v1967 = vpop.f32.mrf.mxu0
    %v1968 = vadd.f32 %v1919, %v1967
    %v1969 = vpop.f32.mrf.mxu0
    %v1970 = vadd.f32 %v1921, %v1969
    %1971 = vmatmul.bf16.gmra.mxu0 %v475
    %v1972 = vpop.f32.mrf.mxu0
    %v1973 = vadd.f32 %v1924, %v1972
    %v1974 = vpop.f32.mrf.mxu0
    %v1975 = vadd.f32 %v1926, %v1974
    %1976 = vmatmul.bf16.gmra.mxu0 %v477
    %v1977 = vpop.f32.mrf.mxu0
    %v1978 = vadd.f32 %v1929, %v1977
    %v1979 = vpop.f32.mrf.mxu0
    %v1980 = vadd.f32 %v1931, %v1979
    %1981 = vdwg.mxu0
    %1982 = vmatpush.bf16.msra.mxu0 %v1134
    %1983 = vmatpush.bf16.msra.mxu0 %v1130
    %1984 = vmatpush.bf16.msra.mxu0 %v1126
    %1985 = vmatpush.bf16.msra.mxu0 %v1122
    %1986 = vmatpush.bf16.msra.mxu0 %v1118
    %1987 = vmatpush.bf16.msra.mxu0 %v1114
    %1988 = vmatpush.bf16.msra.mxu0 %v1110
    %1989 = vmatpush.bf16.msra.mxu0 %v1106
    %1990 = vmatmul.bf16.gmra.mxu0 %v464
    %v1991 = vpop.f32.mrf.mxu0
    %v1992 = vadd.f32 %v1943, %v1991
    %v1993 = vpop.f32.mrf.mxu0
    %v1994 = vadd.f32 %v1945, %v1993
    %1995 = vmatmul.bf16.gmra.mxu0 %v466
    %v1996 = vpop.f32.mrf.mxu0
    %v1997 = vadd.f32 %v1948, %v1996
    %v1998 = vpop.f32.mrf.mxu0
    %v1999 = vadd.f32 %v1950, %v1998
    %2000 = vmatmul.bf16.gmra.mxu0 %v468
    %v2001 = vpop.f32.mrf.mxu0
    %v2002 = vadd.f32 %v1953, %v2001
    %v2003 = vpop.f32.mrf.mxu0
    %v2004 = vadd.f32 %v1955, %v2003
    %2005 = vmatmul.bf16.gmra.mxu0 %v470
    %v2006 = vpop.f32.mrf.mxu0
    %v2007 = vadd.f32 %v1958, %v2006
    %v2008 = vpop.f32.mrf.mxu0
    %v2009 = vadd.f32 %v1960, %v2008
    %2010 = vmatmul.bf16.gmra.mxu0 %v472
    %v2011 = vpop.f32.mrf.mxu0
    %v2012 = vadd.f32 %v1963, %v2011
    %v2013 = vpop.f32.mrf.mxu0
    %v2014 = vadd.f32 %v1965, %v2013
    %2015 = vmatmul.bf16.gmra.mxu0 %v474
    %v2016 = vpop.f32.mrf.mxu0
    %v2017 = vadd.f32 %v1968, %v2016
    %v2018 = vpop.f32.mrf.mxu0
    %v2019 = vadd.f32 %v1970, %v2018
    %2020 = vmatmul.bf16.gmra.mxu0 %v476
    %v2021 = vpop.f32.mrf.mxu0
    %v2022 = vadd.f32 %v1973, %v2021
    %v2023 = vpop.f32.mrf.mxu0
    %v2024 = vadd.f32 %v1975, %v2023
    %2025 = vmatmul.bf16.gmra.mxu0 %v460
    %v2026 = vpop.f32.mrf.mxu0
    %v2027 = vadd.f32 %v1978, %v2026
    %v2028 = vpop.f32.mrf.mxu0
    %v2029 = vadd.f32 %v1980, %v2028
    %2030 = vdwg.mxu0
    %2031 = vmatpush.bf16.msra.mxu0 %v1007
    %2032 = vmatpush.bf16.msra.mxu0 %v1003
    %2033 = vmatpush.bf16.msra.mxu0 %v999
    %2034 = vmatpush.bf16.msra.mxu0 %v995
    %2035 = vmatpush.bf16.msra.mxu0 %v991
    %2036 = vmatpush.bf16.msra.mxu0 %v987
    %2037 = vmatpush.bf16.msra.mxu0 %v983
    %2038 = vmatpush.bf16.msra.mxu0 %v979
    %2039 = vmatmul.bf16.gmra.mxu0 %v460
    %v2040 = vpop.f32.mrf.mxu0
    %v2041 = vadd.f32 %v455, %v2040
    %v2042 = vpop.f32.mrf.mxu0
    %v2043 = vadd.f32 %v455, %v2042
    %2044 = vmatmul.bf16.gmra.mxu0 %v462
    %v2045 = vpop.f32.mrf.mxu0
    %v2046 = vadd.f32 %v455, %v2045
    %v2047 = vpop.f32.mrf.mxu0
    %v2048 = vadd.f32 %v455, %v2047
    %2049 = vmatmul.bf16.gmra.mxu0 %v464
    %v2050 = vpop.f32.mrf.mxu0
    %v2051 = vadd.f32 %v455, %v2050
    %v2052 = vpop.f32.mrf.mxu0
    %v2053 = vadd.f32 %v455, %v2052
    %2054 = vmatmul.bf16.gmra.mxu0 %v466
    %v2055 = vpop.f32.mrf.mxu0
    %v2056 = vadd.f32 %v455, %v2055
    %v2057 = vpop.f32.mrf.mxu0
    %v2058 = vadd.f32 %v455, %v2057
    %2059 = vmatmul.bf16.gmra.mxu0 %v468
    %v2060 = vpop.f32.mrf.mxu0
    %v2061 = vadd.f32 %v455, %v2060
    %v2062 = vpop.f32.mrf.mxu0
    %v2063 = vadd.f32 %v455, %v2062
    %2064 = vmatmul.bf16.gmra.mxu0 %v470
    %v2065 = vpop.f32.mrf.mxu0
    %v2066 = vadd.f32 %v455, %v2065
    %v2067 = vpop.f32.mrf.mxu0
    %v2068 = vadd.f32 %v455, %v2067
    %2069 = vmatmul.bf16.gmra.mxu0 %v472
    %v2070 = vpop.f32.mrf.mxu0
    %v2071 = vadd.f32 %v455, %v2070
    %v2072 = vpop.f32.mrf.mxu0
    %v2073 = vadd.f32 %v455, %v2072
    %2074 = vmatmul.bf16.gmra.mxu0 %v474
    %v2075 = vpop.f32.mrf.mxu0
    %v2076 = vadd.f32 %v455, %v2075
    %v2077 = vpop.f32.mrf.mxu0
    %v2078 = vadd.f32 %v455, %v2077
    %2079 = vdwg.mxu0
    %2080 = vmatpush.bf16.msra.mxu0 %v1039
    %2081 = vmatpush.bf16.msra.mxu0 %v1035
    %2082 = vmatpush.bf16.msra.mxu0 %v1031
    %2083 = vmatpush.bf16.msra.mxu0 %v1027
    %2084 = vmatpush.bf16.msra.mxu0 %v1023
    %2085 = vmatpush.bf16.msra.mxu0 %v1019
    %2086 = vmatpush.bf16.msra.mxu0 %v1015
    %2087 = vmatpush.bf16.msra.mxu0 %v1011
    %2088 = vmatmul.bf16.gmra.mxu0 %v461
    %v2089 = vpop.f32.mrf.mxu0
    %v2090 = vadd.f32 %v2041, %v2089
    %v2091 = vpop.f32.mrf.mxu0
    %v2092 = vadd.f32 %v2043, %v2091
    %2093 = vmatmul.bf16.gmra.mxu0 %v463
    %v2094 = vpop.f32.mrf.mxu0
    %v2095 = vadd.f32 %v2046, %v2094
    %v2096 = vpop.f32.mrf.mxu0
    %v2097 = vadd.f32 %v2048, %v2096
    %2098 = vmatmul.bf16.gmra.mxu0 %v465
    %v2099 = vpop.f32.mrf.mxu0
    %v2100 = vadd.f32 %v2051, %v2099
    %v2101 = vpop.f32.mrf.mxu0
    %v2102 = vadd.f32 %v2053, %v2101
    %2103 = vmatmul.bf16.gmra.mxu0 %v467
    %v2104 = vpop.f32.mrf.mxu0
    %v2105 = vadd.f32 %v2056, %v2104
    %v2106 = vpop.f32.mrf.mxu0
    %v2107 = vadd.f32 %v2058, %v2106
    %2108 = vmatmul.bf16.gmra.mxu0 %v469
    %v2109 = vpop.f32.mrf.mxu0
    %v2110 = vadd.f32 %v2061, %v2109
    %v2111 = vpop.f32.mrf.mxu0
    %v2112 = vadd.f32 %v2063, %v2111
    %2113 = vmatmul.bf16.gmra.mxu0 %v471
    %v2114 = vpop.f32.mrf.mxu0
    %v2115 = vadd.f32 %v2066, %v2114
    %v2116 = vpop.f32.mrf.mxu0
    %v2117 = vadd.f32 %v2068, %v2116
    %2118 = vmatmul.bf16.gmra.mxu0 %v473
    %v2119 = vpop.f32.mrf.mxu0
    %v2120 = vadd.f32 %v2071, %v2119
    %v2121 = vpop.f32.mrf.mxu0
    %v2122 = vadd.f32 %v2073, %v2121
    %2123 = vmatmul.bf16.gmra.mxu0 %v475
    %v2124 = vpop.f32.mrf.mxu0
    %v2125 = vadd.f32 %v2076, %v2124
    %v2126 = vpop.f32.mrf.mxu0
    %v2127 = vadd.f32 %v2078, %v2126
    %2128 = vdwg.mxu0
    %2129 = vmatpush.bf16.msra.mxu0 %v1071
    %2130 = vmatpush.bf16.msra.mxu0 %v1067
    %2131 = vmatpush.bf16.msra.mxu0 %v1063
    %2132 = vmatpush.bf16.msra.mxu0 %v1059
    %2133 = vmatpush.bf16.msra.mxu0 %v1055
    %2134 = vmatpush.bf16.msra.mxu0 %v1051
    %2135 = vmatpush.bf16.msra.mxu0 %v1047
    %2136 = vmatpush.bf16.msra.mxu0 %v1043
    %2137 = vmatmul.bf16.gmra.mxu0 %v462
    %v2138 = vpop.f32.mrf.mxu0
    %v2139 = vadd.f32 %v2090, %v2138
    %v2140 = vpop.f32.mrf.mxu0
    %v2141 = vadd.f32 %v2092, %v2140
    %2142 = vmatmul.bf16.gmra.mxu0 %v464
    %v2143 = vpop.f32.mrf.mxu0
    %v2144 = vadd.f32 %v2095, %v2143
    %v2145 = vpop.f32.mrf.mxu0
    %v2146 = vadd.f32 %v2097, %v2145
    %2147 = vmatmul.bf16.gmra.mxu0 %v466
    %v2148 = vpop.f32.mrf.mxu0
    %v2149 = vadd.f32 %v2100, %v2148
    %v2150 = vpop.f32.mrf.mxu0
    %v2151 = vadd.f32 %v2102, %v2150
    %2152 = vmatmul.bf16.gmra.mxu0 %v468
    %v2153 = vpop.f32.mrf.mxu0
    %v2154 = vadd.f32 %v2105, %v2153
    %v2155 = vpop.f32.mrf.mxu0
    %v2156 = vadd.f32 %v2107, %v2155
    %2157 = vmatmul.bf16.gmra.mxu0 %v470
    %v2158 = vpop.f32.mrf.mxu0
    %v2159 = vadd.f32 %v2110, %v2158
    %v2160 = vpop.f32.mrf.mxu0
    %v2161 = vadd.f32 %v2112, %v2160
    %2162 = vmatmul.bf16.gmra.mxu0 %v472
    %v2163 = vpop.f32.mrf.mxu0
    %v2164 = vadd.f32 %v2115, %v2163
    %v2165 = vpop.f32.mrf.mxu0
    %v2166 = vadd.f32 %v2117, %v2165
    %2167 = vmatmul.bf16.gmra.mxu0 %v474
    %v2168 = vpop.f32.mrf.mxu0
    %v2169 = vadd.f32 %v2120, %v2168
    %v2170 = vpop.f32.mrf.mxu0
    %v2171 = vadd.f32 %v2122, %v2170
    %2172 = vmatmul.bf16.gmra.mxu0 %v476
    %v2173 = vpop.f32.mrf.mxu0
    %v2174 = vadd.f32 %v2125, %v2173
    %v2175 = vpop.f32.mrf.mxu0
    %v2176 = vadd.f32 %v2127, %v2175
    %2177 = vdwg.mxu0
    %2178 = vmatpush.bf16.msra.mxu0 %v1103
    %2179 = vmatpush.bf16.msra.mxu0 %v1099
    %2180 = vmatpush.bf16.msra.mxu0 %v1095
    %2181 = vmatpush.bf16.msra.mxu0 %v1091
    %2182 = vmatpush.bf16.msra.mxu0 %v1087
    %2183 = vmatpush.bf16.msra.mxu0 %v1083
    %2184 = vmatpush.bf16.msra.mxu0 %v1079
    %2185 = vmatpush.bf16.msra.mxu0 %v1075
    %2186 = vmatmul.bf16.gmra.mxu0 %v463
    %v2187 = vpop.f32.mrf.mxu0
    %v2188 = vadd.f32 %v2139, %v2187
    %v2189 = vpop.f32.mrf.mxu0
    %v2190 = vadd.f32 %v2141, %v2189
    %2191 = vmatmul.bf16.gmra.mxu0 %v465
    %v2192 = vpop.f32.mrf.mxu0
    %v2193 = vadd.f32 %v2144, %v2192
    %v2194 = vpop.f32.mrf.mxu0
    %v2195 = vadd.f32 %v2146, %v2194
    %2196 = vmatmul.bf16.gmra.mxu0 %v467
    %v2197 = vpop.f32.mrf.mxu0
    %v2198 = vadd.f32 %v2149, %v2197
    %v2199 = vpop.f32.mrf.mxu0
    %v2200 = vadd.f32 %v2151, %v2199
    %2201 = vmatmul.bf16.gmra.mxu0 %v469
    %v2202 = vpop.f32.mrf.mxu0
    %v2203 = vadd.f32 %v2154, %v2202
    %v2204 = vpop.f32.mrf.mxu0
    %v2205 = vadd.f32 %v2156, %v2204
    %2206 = vmatmul.bf16.gmra.mxu0 %v471
    %v2207 = vpop.f32.mrf.mxu0
    %v2208 = vadd.f32 %v2159, %v2207
    %v2209 = vpop.f32.mrf.mxu0
    %v2210 = vadd.f32 %v2161, %v2209
    %2211 = vmatmul.bf16.gmra.mxu0 %v473
    %v2212 = vpop.f32.mrf.mxu0
    %v2213 = vadd.f32 %v2164, %v2212
    %v2214 = vpop.f32.mrf.mxu0
    %v2215 = vadd.f32 %v2166, %v2214
    %2216 = vmatmul.bf16.gmra.mxu0 %v475
    %v2217 = vpop.f32.mrf.mxu0
    %v2218 = vadd.f32 %v2169, %v2217
    %v2219 = vpop.f32.mrf.mxu0
    %v2220 = vadd.f32 %v2171, %v2219
    %2221 = vmatmul.bf16.gmra.mxu0 %v477
    %v2222 = vpop.f32.mrf.mxu0
    %v2223 = vadd.f32 %v2174, %v2222
    %v2224 = vpop.f32.mrf.mxu0
    %v2225 = vadd.f32 %v2176, %v2224
    %2226 = vdwg.mxu0
    %2227 = vmatpush.bf16.msra.mxu0 %v1135
    %2228 = vmatpush.bf16.msra.mxu0 %v1131
    %2229 = vmatpush.bf16.msra.mxu0 %v1127
    %2230 = vmatpush.bf16.msra.mxu0 %v1123
    %2231 = vmatpush.bf16.msra.mxu0 %v1119
    %2232 = vmatpush.bf16.msra.mxu0 %v1115
    %2233 = vmatpush.bf16.msra.mxu0 %v1111
    %2234 = vmatpush.bf16.msra.mxu0 %v1107
    %2235 = vmatmul.bf16.gmra.mxu0 %v464
    %v2236 = vpop.f32.mrf.mxu0
    %v2237 = vadd.f32 %v2188, %v2236
    %v2238 = vpop.f32.mrf.mxu0
    %v2239 = vadd.f32 %v2190, %v2238
    %2240 = vmatmul.bf16.gmra.mxu0 %v466
    %v2241 = vpop.f32.mrf.mxu0
    %v2242 = vadd.f32 %v2193, %v2241
    %v2243 = vpop.f32.mrf.mxu0
    %v2244 = vadd.f32 %v2195, %v2243
    %2245 = vmatmul.bf16.gmra.mxu0 %v468
    %v2246 = vpop.f32.mrf.mxu0
    %v2247 = vadd.f32 %v2198, %v2246
    %v2248 = vpop.f32.mrf.mxu0
    %v2249 = vadd.f32 %v2200, %v2248
    %2250 = vmatmul.bf16.gmra.mxu0 %v470
    %v2251 = vpop.f32.mrf.mxu0
    %v2252 = vadd.f32 %v2203, %v2251
    %v2253 = vpop.f32.mrf.mxu0
    %v2254 = vadd.f32 %v2205, %v2253
    %2255 = vmatmul.bf16.gmra.mxu0 %v472
    %v2256 = vpop.f32.mrf.mxu0
    %v2257 = vadd.f32 %v2208, %v2256
    %v2258 = vpop.f32.mrf.mxu0
    %v2259 = vadd.f32 %v2210, %v2258
    %2260 = vmatmul.bf16.gmra.mxu0 %v474
    %v2261 = vpop.f32.mrf.mxu0
    %v2262 = vadd.f32 %v2213, %v2261
    %v2263 = vpop.f32.mrf.mxu0
    %v2264 = vadd.f32 %v2215, %v2263
    %2265 = vmatmul.bf16.gmra.mxu0 %v476
    %v2266 = vpop.f32.mrf.mxu0
    %v2267 = vadd.f32 %v2218, %v2266
    %v2268 = vpop.f32.mrf.mxu0
    %v2269 = vadd.f32 %v2220, %v2268
    %2270 = vmatmul.bf16.gmra.mxu0 %v460
    %v2271 = vpop.f32.mrf.mxu0
    %v2272 = vadd.f32 %v2223, %v2271
    %v2273 = vpop.f32.mrf.mxu0
    %v2274 = vadd.f32 %v2225, %v2273
    %2275 = vdwg.mxu0
    %v2276 = vmax.f32 %v1502, 0.0
    %v2277 = vmax.f32 %v1747, 0.0
    %v2278 = vmax.f32 %v1992, 0.0
    %v2279 = vmax.f32 %v2237, 0.0
    %v2280 = vmax.f32 %v1504, 0.0
    %v2281 = vmax.f32 %v1749, 0.0
    %v2282 = vmax.f32 %v1994, 0.0
    %v2283 = vmax.f32 %v2239, 0.0
    %v2284 = vmax.f32 %v1507, 0.0
    %v2285 = vmax.f32 %v1752, 0.0
    %v2286 = vmax.f32 %v1997, 0.0
    %v2287 = vmax.f32 %v2242, 0.0
    %v2288 = vmax.f32 %v1509, 0.0
    %v2289 = vmax.f32 %v1754, 0.0
    %v2290 = vmax.f32 %v1999, 0.0
    %v2291 = vmax.f32 %v2244, 0.0
    %v2292 = vmax.f32 %v1512, 0.0
    %v2293 = vmax.f32 %v1757, 0.0
    %v2294 = vmax.f32 %v2002, 0.0
    %v2295 = vmax.f32 %v2247, 0.0
    %v2296 = vmax.f32 %v1514, 0.0
    %v2297 = vmax.f32 %v1759, 0.0
    %v2298 = vmax.f32 %v2004, 0.0
    %v2299 = vmax.f32 %v2249, 0.0
    %v2300 = vmax.f32 %v1517, 0.0
    %v2301 = vmax.f32 %v1762, 0.0
    %v2302 = vmax.f32 %v2007, 0.0
    %v2303 = vmax.f32 %v2252, 0.0
    %v2304 = vmax.f32 %v1519, 0.0
    %v2305 = vmax.f32 %v1764, 0.0
    %v2306 = vmax.f32 %v2009, 0.0
    %v2307 = vmax.f32 %v2254, 0.0
    %v2308 = vmax.f32 %v1522, 0.0
    %v2309 = vmax.f32 %v1767, 0.0
    %v2310 = vmax.f32 %v2012, 0.0
    %v2311 = vmax.f32 %v2257, 0.0
    %v2312 = vmax.f32 %v1524, 0.0
    %v2313 = vmax.f32 %v1769, 0.0
    %v2314 = vmax.f32 %v2014, 0.0
    %v2315 = vmax.f32 %v2259, 0.0
    %v2316 = vmax.f32 %v1527, 0.0
    %v2317 = vmax.f32 %v1772, 0.0
    %v2318 = vmax.f32 %v2017, 0.0
    %v2319 = vmax.f32 %v2262, 0.0
    %v2320 = vmax.f32 %v1529, 0.0
    %v2321 = vmax.f32 %v1774, 0.0
    %v2322 = vmax.f32 %v2019, 0.0
    %v2323 = vmax.f32 %v2264, 0.0
    %v2324 = vmax.f32 %v1532, 0.0
    %v2325 = vmax.f32 %v1777, 0.0
    %v2326 = vmax.f32 %v2022, 0.0
    %v2327 = vmax.f32 %v2267, 0.0
    %v2328 = vmax.f32 %v1534, 0.0
    %v2329 = vmax.f32 %v1779, 0.0
    %v2330 = vmax.f32 %v2024, 0.0
    %v2331 = vmax.f32 %v2269, 0.0
    %v2332 = vmax.f32 %v1537, 0.0
    %v2333 = vmax.f32 %v1782, 0.0
    %v2334 = vmax.f32 %v2027, 0.0
    %v2335 = vmax.f32 %v2272, 0.0
    %v2336 = vmax.f32 %v1539, 0.0
    %v2337 = vmax.f32 %v1784, 0.0
    %v2338 = vmax.f32 %v2029, 0.0
    %v2339 = vmax.f32 %v2274, 0.0
    %v2340 = vadd.f32 %v2276, %v2277
    %v2341 = vadd.f32 %v2340, %v2278
    %v2342 = vadd.f32 %v2341, %v2279
    %2343 = vadd.xlane.f32.xlu0 %v2342
    %v2344 = vpop.xlane.xlu0 %2343
    %v2345 = vadd.f32 %v2280, %v2281
    %v2346 = vadd.f32 %v2345, %v2282
    %v2347 = vadd.f32 %v2346, %v2283
    %2348 = vadd.xlane.f32.xlu0 %v2347
    %v2349 = vpop.xlane.xlu0 %2348
    %v2350 = vadd.f32 %v2284, %v2285
    %v2351 = vadd.f32 %v2350, %v2286
    %v2352 = vadd.f32 %v2351, %v2287
    %2353 = vadd.xlane.f32.xlu0 %v2352
    %v2354 = vpop.xlane.xlu0 %2353
    %v2355 = vadd.f32 %v2288, %v2289
    %v2356 = vadd.f32 %v2355, %v2290
    %v2357 = vadd.f32 %v2356, %v2291
    %2358 = vadd.xlane.f32.xlu0 %v2357
    %v2359 = vpop.xlane.xlu0 %2358
    %v2360 = vadd.f32 %v2292, %v2293
    %v2361 = vadd.f32 %v2360, %v2294
    %v2362 = vadd.f32 %v2361, %v2295
    %2363 = vadd.xlane.f32.xlu0 %v2362
    %v2364 = vpop.xlane.xlu0 %2363
    %v2365 = vadd.f32 %v2296, %v2297
    %v2366 = vadd.f32 %v2365, %v2298
    %v2367 = vadd.f32 %v2366, %v2299
    %2368 = vadd.xlane.f32.xlu0 %v2367
    %v2369 = vpop.xlane.xlu0 %2368
    %v2370 = vadd.f32 %v2300, %v2301
    %v2371 = vadd.f32 %v2370, %v2302
    %v2372 = vadd.f32 %v2371, %v2303
    %2373 = vadd.xlane.f32.xlu0 %v2372
    %v2374 = vpop.xlane.xlu0 %2373
    %v2375 = vadd.f32 %v2304, %v2305
    %v2376 = vadd.f32 %v2375, %v2306
    %v2377 = vadd.f32 %v2376, %v2307
    %2378 = vadd.xlane.f32.xlu0 %v2377
    %v2379 = vpop.xlane.xlu0 %2378
    %v2380 = vadd.f32 %v2308, %v2309
    %v2381 = vadd.f32 %v2380, %v2310
    %v2382 = vadd.f32 %v2381, %v2311
    %2383 = vadd.xlane.f32.xlu0 %v2382
    %v2384 = vpop.xlane.xlu0 %2383
    %v2385 = vadd.f32 %v2312, %v2313
    %v2386 = vadd.f32 %v2385, %v2314
    %v2387 = vadd.f32 %v2386, %v2315
    %2388 = vadd.xlane.f32.xlu0 %v2387
    %v2389 = vpop.xlane.xlu0 %2388
    %v2390 = vadd.f32 %v2316, %v2317
    %v2391 = vadd.f32 %v2390, %v2318
    %v2392 = vadd.f32 %v2391, %v2319
    %2393 = vadd.xlane.f32.xlu0 %v2392
    %v2394 = vpop.xlane.xlu0 %2393
    %v2395 = vadd.f32 %v2320, %v2321
    %v2396 = vadd.f32 %v2395, %v2322
    %v2397 = vadd.f32 %v2396, %v2323
    %2398 = vadd.xlane.f32.xlu0 %v2397
    %v2399 = vpop.xlane.xlu0 %2398
    %v2400 = vadd.f32 %v2324, %v2325
    %v2401 = vadd.f32 %v2400, %v2326
    %v2402 = vadd.f32 %v2401, %v2327
    %2403 = vadd.xlane.f32.xlu0 %v2402
    %v2404 = vpop.xlane.xlu0 %2403
    %v2405 = vadd.f32 %v2328, %v2329
    %v2406 = vadd.f32 %v2405, %v2330
    %v2407 = vadd.f32 %v2406, %v2331
    %2408 = vadd.xlane.f32.xlu0 %v2407
    %v2409 = vpop.xlane.xlu0 %2408
    %v2410 = vadd.f32 %v2332, %v2333
    %v2411 = vadd.f32 %v2410, %v2334
    %v2412 = vadd.f32 %v2411, %v2335
    %2413 = vadd.xlane.f32.xlu0 %v2412
    %v2414 = vpop.xlane.xlu0 %2413
    %v2415 = vadd.f32 %v2336, %v2337
    %v2416 = vadd.f32 %v2415, %v2338
    %v2417 = vadd.f32 %v2416, %v2339
    %2418 = vadd.xlane.f32.xlu0 %v2417
    %v2419 = vpop.xlane.xlu0 %2418
    %v2420 = vadd.f32 %v2344, %v2349
    %v2421 = vadd.f32 %v2420, %v2354
    %v2422 = vadd.f32 %v2421, %v2359
    %v2423 = vadd.f32 %v2422, %v2364
    %v2424 = vadd.f32 %v2423, %v2369
    %v2425 = vadd.f32 %v2424, %v2374
    %v2426 = vadd.f32 %v2425, %v2379
    %v2427 = vadd.f32 %v2426, %v2384
    %v2428 = vadd.f32 %v2427, %v2389
    %v2429 = vadd.f32 %v2428, %v2394
    %v2430 = vadd.f32 %v2429, %v2399
    %v2431 = vadd.f32 %v2430, %v2404
    %v2432 = vadd.f32 %v2431, %v2409
    %v2433 = vadd.f32 %v2432, %v2414
    %v2434 = vadd.f32 %v2433, %v2419
    %v2435 = vrcp.pop 8192.0
    %v2436 = vmul.f32 8192.0, %v2435
    %v2437 = vsub.f32 1.0, %v2436
    %v2438 = vmul.f32 %v2435, %v2437
    %v2439 = vadd.f32 %v2435, %v2438
    %vm2440 = vweird.f32 %v2435
    %v2441 = vsel %vm2440, %v2435, %v2439
    %v2442 = vmul.f32 %v2434, %v2441
    %v2443 = vsub.f32 %v2276, %v2442
    %v2444 = vsub.f32 %v2277, %v2442
    %v2445 = vsub.f32 %v2278, %v2442
    %v2446 = vsub.f32 %v2279, %v2442
    %v2447 = vsub.f32 %v2280, %v2442
    %v2448 = vsub.f32 %v2281, %v2442
    %v2449 = vsub.f32 %v2282, %v2442
    %v2450 = vsub.f32 %v2283, %v2442
    %v2451 = vsub.f32 %v2284, %v2442
    %v2452 = vsub.f32 %v2285, %v2442
    %v2453 = vsub.f32 %v2286, %v2442
    %v2454 = vsub.f32 %v2287, %v2442
    %v2455 = vsub.f32 %v2288, %v2442
    %v2456 = vsub.f32 %v2289, %v2442
    %v2457 = vsub.f32 %v2290, %v2442
    %v2458 = vsub.f32 %v2291, %v2442
    %v2459 = vsub.f32 %v2292, %v2442
    %v2460 = vsub.f32 %v2293, %v2442
    %v2461 = vsub.f32 %v2294, %v2442
    %v2462 = vsub.f32 %v2295, %v2442
    %v2463 = vsub.f32 %v2296, %v2442
    %v2464 = vsub.f32 %v2297, %v2442
    %v2465 = vsub.f32 %v2298, %v2442
    %v2466 = vsub.f32 %v2299, %v2442
    %v2467 = vsub.f32 %v2300, %v2442
    %v2468 = vsub.f32 %v2301, %v2442
    %v2469 = vsub.f32 %v2302, %v2442
    %v2470 = vsub.f32 %v2303, %v2442
    %v2471 = vsub.f32 %v2304, %v2442
    %v2472 = vsub.f32 %v2305, %v2442
    %v2473 = vsub.f32 %v2306, %v2442
    %v2474 = vsub.f32 %v2307, %v2442
    %v2475 = vsub.f32 %v2308, %v2442
    %v2476 = vsub.f32 %v2309, %v2442
    %v2477 = vsub.f32 %v2310, %v2442
    %v2478 = vsub.f32 %v2311, %v2442
    %v2479 = vsub.f32 %v2312, %v2442
    %v2480 = vsub.f32 %v2313, %v2442
    %v2481 = vsub.f32 %v2314, %v2442
    %v2482 = vsub.f32 %v2315, %v2442
    %v2483 = vsub.f32 %v2316, %v2442
    %v2484 = vsub.f32 %v2317, %v2442
    %v2485 = vsub.f32 %v2318, %v2442
    %v2486 = vsub.f32 %v2319, %v2442
    %v2487 = vsub.f32 %v2320, %v2442
    %v2488 = vsub.f32 %v2321, %v2442
    %v2489 = vsub.f32 %v2322, %v2442
    %v2490 = vsub.f32 %v2323, %v2442
    %v2491 = vsub.f32 %v2324, %v2442
    %v2492 = vsub.f32 %v2325, %v2442
    %v2493 = vsub.f32 %v2326, %v2442
    %v2494 = vsub.f32 %v2327, %v2442
    %v2495 = vsub.f32 %v2328, %v2442
    %v2496 = vsub.f32 %v2329, %v2442
    %v2497 = vsub.f32 %v2330, %v2442
    %v2498 = vsub.f32 %v2331, %v2442
    %v2499 = vsub.f32 %v2332, %v2442
    %v2500 = vsub.f32 %v2333, %v2442
    %v2501 = vsub.f32 %v2334, %v2442
    %v2502 = vsub.f32 %v2335, %v2442
    %v2503 = vsub.f32 %v2336, %v2442
    %v2504 = vsub.f32 %v2337, %v2442
    %v2505 = vsub.f32 %v2338, %v2442
    %v2506 = vsub.f32 %v2339, %v2442
    %v2507 = vmul.f32 %v2443, %v2443
    %v2508 = vmul.f32 %v2444, %v2444
    %v2509 = vmul.f32 %v2445, %v2445
    %v2510 = vmul.f32 %v2446, %v2446
    %v2511 = vmul.f32 %v2447, %v2447
    %v2512 = vmul.f32 %v2448, %v2448
    %v2513 = vmul.f32 %v2449, %v2449
    %v2514 = vmul.f32 %v2450, %v2450
    %v2515 = vmul.f32 %v2451, %v2451
    %v2516 = vmul.f32 %v2452, %v2452
    %v2517 = vmul.f32 %v2453, %v2453
    %v2518 = vmul.f32 %v2454, %v2454
    %v2519 = vmul.f32 %v2455, %v2455
    %v2520 = vmul.f32 %v2456, %v2456
    %v2521 = vmul.f32 %v2457, %v2457
    %v2522 = vmul.f32 %v2458, %v2458
    %v2523 = vmul.f32 %v2459, %v2459
    %v2524 = vmul.f32 %v2460, %v2460
    %v2525 = vmul.f32 %v2461, %v2461
    %v2526 = vmul.f32 %v2462, %v2462
    %v2527 = vmul.f32 %v2463, %v2463
    %v2528 = vmul.f32 %v2464, %v2464
    %v2529 = vmul.f32 %v2465, %v2465
    %v2530 = vmul.f32 %v2466, %v2466
    %v2531 = vmul.f32 %v2467, %v2467
    %v2532 = vmul.f32 %v2468, %v2468
    %v2533 = vmul.f32 %v2469, %v2469
    %v2534 = vmul.f32 %v2470, %v2470
    %v2535 = vmul.f32 %v2471, %v2471
    %v2536 = vmul.f32 %v2472, %v2472
    %v2537 = vmul.f32 %v2473, %v2473
    %v2538 = vmul.f32 %v2474, %v2474
    %v2539 = vmul.f32 %v2475, %v2475
    %v2540 = vmul.f32 %v2476, %v2476
    %v2541 = vmul.f32 %v2477, %v2477
    %v2542 = vmul.f32 %v2478, %v2478
    %v2543 = vmul.f32 %v2479, %v2479
    %v2544 = vmul.f32 %v2480, %v2480
    %v2545 = vmul.f32 %v2481, %v2481
    %v2546 = vmul.f32 %v2482, %v2482
    %v2547 = vmul.f32 %v2483, %v2483
    %v2548 = vmul.f32 %v2484, %v2484
    %v2549 = vmul.f32 %v2485, %v2485
    %v2550 = vmul.f32 %v2486, %v2486
    %v2551 = vmul.f32 %v2487, %v2487
    %v2552 = vmul.f32 %v2488, %v2488
    %v2553 = vmul.f32 %v2489, %v2489
    %v2554 = vmul.f32 %v2490, %v2490
    %v2555 = vmul.f32 %v2491, %v2491
    %v2556 = vmul.f32 %v2492, %v2492
    %v2557 = vmul.f32 %v2493, %v2493
    %v2558 = vmul.f32 %v2494, %v2494
    %v2559 = vmul.f32 %v2495, %v2495
    %v2560 = vmul.f32 %v2496, %v2496
    %v2561 = vmul.f32 %v2497, %v2497
    %v2562 = vmul.f32 %v2498, %v2498
    %v2563 = vmul.f32 %v2499, %v2499
    %v2564 = vmul.f32 %v2500, %v2500
    %v2565 = vmul.f32 %v2501, %v2501
    %v2566 = vmul.f32 %v2502, %v2502
    %v2567 = vmul.f32 %v2503, %v2503
    %v2568 = vmul.f32 %v2504, %v2504
    %v2569 = vmul.f32 %v2505, %v2505
    %v2570 = vmul.f32 %v2506, %v2506
    %v2571 = vadd.f32 %v2507, %v2508
    %v2572 = vadd.f32 %v2571, %v2509
    %v2573 = vadd.f32 %v2572, %v2510
    %2574 = vadd.xlane.f32.xlu0 %v2573
    %v2575 = vpop.xlane.xlu0 %2574
    %v2576 = vadd.f32 %v2511, %v2512
    %v2577 = vadd.f32 %v2576, %v2513
    %v2578 = vadd.f32 %v2577, %v2514
    %2579 = vadd.xlane.f32.xlu0 %v2578
    %v2580 = vpop.xlane.xlu0 %2579
    %v2581 = vadd.f32 %v2515, %v2516
    %v2582 = vadd.f32 %v2581, %v2517
    %v2583 = vadd.f32 %v2582, %v2518
    %2584 = vadd.xlane.f32.xlu0 %v2583
    %v2585 = vpop.xlane.xlu0 %2584
    %v2586 = vadd.f32 %v2519, %v2520
    %v2587 = vadd.f32 %v2586, %v2521
    %v2588 = vadd.f32 %v2587, %v2522
    %2589 = vadd.xlane.f32.xlu0 %v2588
    %v2590 = vpop.xlane.xlu0 %2589
    %v2591 = vadd.f32 %v2523, %v2524
    %v2592 = vadd.f32 %v2591, %v2525
    %v2593 = vadd.f32 %v2592, %v2526
    %2594 = vadd.xlane.f32.xlu0 %v2593
    %v2595 = vpop.xlane.xlu0 %2594
    %v2596 = vadd.f32 %v2527, %v2528
    %v2597 = vadd.f32 %v2596, %v2529
    %v2598 = vadd.f32 %v2597, %v2530
    %2599 = vadd.xlane.f32.xlu0 %v2598
    %v2600 = vpop.xlane.xlu0 %2599
    %v2601 = vadd.f32 %v2531, %v2532
    %v2602 = vadd.f32 %v2601, %v2533
    %v2603 = vadd.f32 %v2602, %v2534
    %2604 = vadd.xlane.f32.xlu0 %v2603
    %v2605 = vpop.xlane.xlu0 %2604
    %v2606 = vadd.f32 %v2535, %v2536
    %v2607 = vadd.f32 %v2606, %v2537
    %v2608 = vadd.f32 %v2607, %v2538
    %2609 = vadd.xlane.f32.xlu0 %v2608
    %v2610 = vpop.xlane.xlu0 %2609
    %v2611 = vadd.f32 %v2539, %v2540
    %v2612 = vadd.f32 %v2611, %v2541
    %v2613 = vadd.f32 %v2612, %v2542
    %2614 = vadd.xlane.f32.xlu0 %v2613
    %v2615 = vpop.xlane.xlu0 %2614
    %v2616 = vadd.f32 %v2543, %v2544
    %v2617 = vadd.f32 %v2616, %v2545
    %v2618 = vadd.f32 %v2617, %v2546
    %2619 = vadd.xlane.f32.xlu0 %v2618
    %v2620 = vpop.xlane.xlu0 %2619
    %v2621 = vadd.f32 %v2547, %v2548
    %v2622 = vadd.f32 %v2621, %v2549
    %v2623 = vadd.f32 %v2622, %v2550
    %2624 = vadd.xlane.f32.xlu0 %v2623
    %v2625 = vpop.xlane.xlu0 %2624
    %v2626 = vadd.f32 %v2551, %v2552
    %v2627 = vadd.f32 %v2626, %v2553
    %v2628 = vadd.f32 %v2627, %v2554
    %2629 = vadd.xlane.f32.xlu0 %v2628
    %v2630 = vpop.xlane.xlu0 %2629
    %v2631 = vadd.f32 %v2555, %v2556
    %v2632 = vadd.f32 %v2631, %v2557
    %v2633 = vadd.f32 %v2632, %v2558
    %2634 = vadd.xlane.f32.xlu0 %v2633
    %v2635 = vpop.xlane.xlu0 %2634
    %v2636 = vadd.f32 %v2559, %v2560
    %v2637 = vadd.f32 %v2636, %v2561
    %v2638 = vadd.f32 %v2637, %v2562
    %2639 = vadd.xlane.f32.xlu0 %v2638
    %v2640 = vpop.xlane.xlu0 %2639
    %v2641 = vadd.f32 %v2563, %v2564
    %v2642 = vadd.f32 %v2641, %v2565
    %v2643 = vadd.f32 %v2642, %v2566
    %2644 = vadd.xlane.f32.xlu0 %v2643
    %v2645 = vpop.xlane.xlu0 %2644
    %v2646 = vadd.f32 %v2567, %v2568
    %v2647 = vadd.f32 %v2646, %v2569
    %v2648 = vadd.f32 %v2647, %v2570
    %2649 = vadd.xlane.f32.xlu0 %v2648
    %v2650 = vpop.xlane.xlu0 %2649
    %v2651 = vadd.f32 %v2575, %v2580
    %v2652 = vadd.f32 %v2651, %v2585
    %v2653 = vadd.f32 %v2652, %v2590
    %v2654 = vadd.f32 %v2653, %v2595
    %v2655 = vadd.f32 %v2654, %v2600
    %v2656 = vadd.f32 %v2655, %v2605
    %v2657 = vadd.f32 %v2656, %v2610
    %v2658 = vadd.f32 %v2657, %v2615
    %v2659 = vadd.f32 %v2658, %v2620
    %v2660 = vadd.f32 %v2659, %v2625
    %v2661 = vadd.f32 %v2660, %v2630
    %v2662 = vadd.f32 %v2661, %v2635
    %v2663 = vadd.f32 %v2662, %v2640
    %v2664 = vadd.f32 %v2663, %v2645
    %v2665 = vadd.f32 %v2664, %v2650
    %v2666 = vmul.f32 %v2665, %v2441
    %v2667 = vadd.f32 %v2666, 1e-05
    %v2668 = vrsqrt.pop %v2667
    %v2669 = vmul.f32 %v2668, %v2667
    %v2670 = vmul.f32 %v2669, %v2668
    %v2671 = vmul.f32 0.5, %v2670
    %v2672 = vsub.f32 1.5, %v2671
    %v2673 = vmul.f32 %v2668, %v2672
    %vm2674 = vweird.f32 %v2667
    %vm2675 = vweird.f32 %v2668
    %vm2676 = vmor %vm2674, %vm2675
    %v2677 = vsel %vm2676, %v2668, %v2673
    %v2678 = vmul.f32 %v2443, %v2677
    %v2679 = vmul.f32 %v2444, %v2677
    %v2680 = vmul.f32 %v2445, %v2677
    %v2681 = vmul.f32 %v2446, %v2677
    %v2682 = vmul.f32 %v2447, %v2677
    %v2683 = vmul.f32 %v2448, %v2677
    %v2684 = vmul.f32 %v2449, %v2677
    %v2685 = vmul.f32 %v2450, %v2677
    %v2686 = vmul.f32 %v2451, %v2677
    %v2687 = vmul.f32 %v2452, %v2677
    %v2688 = vmul.f32 %v2453, %v2677
    %v2689 = vmul.f32 %v2454, %v2677
    %v2690 = vmul.f32 %v2455, %v2677
    %v2691 = vmul.f32 %v2456, %v2677
    %v2692 = vmul.f32 %v2457, %v2677
    %v2693 = vmul.f32 %v2458, %v2677
    %v2694 = vmul.f32 %v2459, %v2677
    %v2695 = vmul.f32 %v2460, %v2677
    %v2696 = vmul.f32 %v2461, %v2677
    %v2697 = vmul.f32 %v2462, %v2677
    %v2698 = vmul.f32 %v2463, %v2677
    %v2699 = vmul.f32 %v2464, %v2677
    %v2700 = vmul.f32 %v2465, %v2677
    %v2701 = vmul.f32 %v2466, %v2677
    %v2702 = vmul.f32 %v2467, %v2677
    %v2703 = vmul.f32 %v2468, %v2677
    %v2704 = vmul.f32 %v2469, %v2677
    %v2705 = vmul.f32 %v2470, %v2677
    %v2706 = vmul.f32 %v2471, %v2677
    %v2707 = vmul.f32 %v2472, %v2677
    %v2708 = vmul.f32 %v2473, %v2677
    %v2709 = vmul.f32 %v2474, %v2677
    %v2710 = vmul.f32 %v2475, %v2677
    %v2711 = vmul.f32 %v2476, %v2677
    %v2712 = vmul.f32 %v2477, %v2677
    %v2713 = vmul.f32 %v2478, %v2677
    %v2714 = vmul.f32 %v2479, %v2677
    %v2715 = vmul.f32 %v2480, %v2677
    %v2716 = vmul.f32 %v2481, %v2677
    %v2717 = vmul.f32 %v2482, %v2677
    %v2718 = vmul.f32 %v2483, %v2677
    %v2719 = vmul.f32 %v2484, %v2677
    %v2720 = vmul.f32 %v2485, %v2677
    %v2721 = vmul.f32 %v2486, %v2677
    %v2722 = vmul.f32 %v2487, %v2677
    %v2723 = vmul.f32 %v2488, %v2677
    %v2724 = vmul.f32 %v2489, %v2677
    %v2725 = vmul.f32 %v2490, %v2677
    %v2726 = vmul.f32 %v2491, %v2677
    %v2727 = vmul.f32 %v2492, %v2677
    %v2728 = vmul.f32 %v2493, %v2677
    %v2729 = vmul.f32 %v2494, %v2677
    %v2730 = vmul.f32 %v2495, %v2677
    %v2731 = vmul.f32 %v2496, %v2677
    %v2732 = vmul.f32 %v2497, %v2677
    %v2733 = vmul.f32 %v2498, %v2677
    %v2734 = vmul.f32 %v2499, %v2677
    %v2735 = vmul.f32 %v2500, %v2677
    %v2736 = vmul.f32 %v2501, %v2677
    %v2737 = vmul.f32 %v2502, %v2677
    %v2738 = vmul.f32 %v2503, %v2677
    %v2739 = vmul.f32 %v2504, %v2677
    %v2740 = vmul.f32 %v2505, %v2677
    %v2741 = vmul.f32 %v2506, %v2677
    %v2742 = vld [vmem:[#allocation10] sm:$0xf]
    %v2743 = vld [vmem:[#allocation10 + $0x4] sm:$0xf]
    %v2744 = vld [vmem:[#allocation10 + $0x8] sm:$0xf]
    %v2745 = vld [vmem:[#allocation10 + $0xc] sm:$0xf]
    %v2746 = vld [vmem:[#allocation10 + $0x10] sm:$0xf]
    %v2747 = vld [vmem:[#allocation10 + $0x14] sm:$0xf]
    %v2748 = vld [vmem:[#allocation10 + $0x18] sm:$0xf]
    %v2749 = vld [vmem:[#allocation10 + $0x1c] sm:$0xf]
    %v2750 = vld [vmem:[#allocation10 + $0x20] sm:$0xf]
    %v2751 = vld [vmem:[#allocation10 + $0x24] sm:$0xf]
    %v2752 = vld [vmem:[#allocation10 + $0x28] sm:$0xf]
    %v2753 = vld [vmem:[#allocation10 + $0x2c] sm:$0xf]
    %v2754 = vld [vmem:[#allocation10 + $0x30] sm:$0xf]
    %v2755 = vld [vmem:[#allocation10 + $0x34] sm:$0xf]
    %v2756 = vld [vmem:[#allocation10 + $0x38] sm:$0xf]
    %v2757 = vld [vmem:[#allocation10 + $0x3c] sm:$0xf]
    %v2774 = vperm.slane %v2742, 0
    %v2775 = vperm.slane %v2742, 1
    %v2776 = vperm.slane %v2742, 2
    %v2777 = vperm.slane %v2742, 3
    %v2778 = vperm.slane %v2743, 0
    %v2779 = vperm.slane %v2743, 1
    %v2780 = vperm.slane %v2743, 2
    %v2781 = vperm.slane %v2743, 3
    %v2782 = vperm.slane %v2744, 0
    %v2783 = vperm.slane %v2744, 1
    %v2784 = vperm.slane %v2744, 2
    %v2785 = vperm.slane %v2744, 3
    %v2786 = vperm.slane %v2745, 0
    %v2787 = vperm.slane %v2745, 1
    %v2788 = vperm.slane %v2745, 2
    %v2789 = vperm.slane %v2745, 3
    %v2790 = vperm.slane %v2746, 0
    %v2791 = vperm.slane %v2746, 1
    %v2792 = vperm.slane %v2746, 2
    %v2793 = vperm.slane %v2746, 3
    %v2794 = vperm.slane %v2747, 0
    %v2795 = vperm.slane %v2747, 1
    %v2796 = vperm.slane %v2747, 2
    %v2797 = vperm.slane %v2747, 3
    %v2798 = vperm.slane %v2748, 0
    %v2799 = vperm.slane %v2748, 1
    %v2800 = vperm.slane %v2748, 2
    %v2801 = vperm.slane %v2748, 3
    %v2802 = vperm.slane %v2749, 0
    %v2803 = vperm.slane %v2749, 1
    %v2804 = vperm.slane %v2749, 2
    %v2805 = vperm.slane %v2749, 3
    %v2806 = vperm.slane %v2750, 0
    %v2807 = vperm.slane %v2750, 1
    %v2808 = vperm.slane %v2750, 2
    %v2809 = vperm.slane %v2750, 3
    %v2810 = vperm.slane %v2751, 0
    %v2811 = vperm.slane %v2751, 1
    %v2812 = vperm.slane %v2751, 2
    %v2813 = vperm.slane %v2751, 3
    %v2814 = vperm.slane %v2752, 0
    %v2815 = vperm.slane %v2752, 1
    %v2816 = vperm.slane %v2752, 2
    %v2817 = vperm.slane %v2752, 3
    %v2818 = vperm.slane %v2753, 0
    %v2819 = vperm.slane %v2753, 1
    %v2820 = vperm.slane %v2753, 2
    %v2821 = vperm.slane %v2753, 3
    %v2822 = vperm.slane %v2754, 0
    %v2823 = vperm.slane %v2754, 1
    %v2824 = vperm.slane %v2754, 2
    %v2825 = vperm.slane %v2754, 3
    %v2826 = vperm.slane %v2755, 0
    %v2827 = vperm.slane %v2755, 1
    %v2828 = vperm.slane %v2755, 2
    %v2829 = vperm.slane %v2755, 3
    %v2830 = vperm.slane %v2756, 0
    %v2831 = vperm.slane %v2756, 1
    %v2832 = vperm.slane %v2756, 2
    %v2833 = vperm.slane %v2756, 3
    %v2834 = vperm.slane %v2757, 0
    %v2835 = vperm.slane %v2757, 1
    %v2836 = vperm.slane %v2757, 2
    %v2837 = vperm.slane %v2757, 3
    %v2902 = vmul.f32 %v2678, %v2774
    %v2903 = vmul.f32 %v2679, %v2775
    %v2904 = vmul.f32 %v2680, %v2776
    %v2905 = vmul.f32 %v2681, %v2777
    %v2906 = vmul.f32 %v2682, %v2778
    %v2907 = vmul.f32 %v2683, %v2779
    %v2908 = vmul.f32 %v2684, %v2780
    %v2909 = vmul.f32 %v2685, %v2781
    %v2910 = vmul.f32 %v2686, %v2782
    %v2911 = vmul.f32 %v2687, %v2783
    %v2912 = vmul.f32 %v2688, %v2784
    %v2913 = vmul.f32 %v2689, %v2785
    %v2914 = vmul.f32 %v2690, %v2786
    %v2915 = vmul.f32 %v2691, %v2787
    %v2916 = vmul.f32 %v2692, %v2788
    %v2917 = vmul.f32 %v2693, %v2789
    %v2918 = vmul.f32 %v2694, %v2790
    %v2919 = vmul.f32 %v2695, %v2791
    %v2920 = vmul.f32 %v2696, %v2792
    %v2921 = vmul.f32 %v2697, %v2793
    %v2922 = vmul.f32 %v2698, %v2794
    %v2923 = vmul.f32 %v2699, %v2795
    %v2924 = vmul.f32 %v2700, %v2796
    %v2925 = vmul.f32 %v2701, %v2797
    %v2926 = vmul.f32 %v2702, %v2798
    %v2927 = vmul.f32 %v2703, %v2799
    %v2928 = vmul.f32 %v2704, %v2800
    %v2929 = vmul.f32 %v2705, %v2801
    %v2930 = vmul.f32 %v2706, %v2802
    %v2931 = vmul.f32 %v2707, %v2803
    %v2932 = vmul.f32 %v2708, %v2804
    %v2933 = vmul.f32 %v2709, %v2805
    %v2934 = vmul.f32 %v2710, %v2806
    %v2935 = vmul.f32 %v2711, %v2807
    %v2936 = vmul.f32 %v2712, %v2808
    %v2937 = vmul.f32 %v2713, %v2809
    %v2938 = vmul.f32 %v2714, %v2810
    %v2939 = vmul.f32 %v2715, %v2811
    %v2940 = vmul.f32 %v2716, %v2812
    %v2941 = vmul.f32 %v2717, %v2813
    %v2942 = vmul.f32 %v2718, %v2814
    %v2943 = vmul.f32 %v2719, %v2815
    %v2944 = vmul.f32 %v2720, %v2816
    %v2945 = vmul.f32 %v2721, %v2817
    %v2946 = vmul.f32 %v2722, %v2818
    %v2947 = vmul.f32 %v2723, %v2819
    %v2948 = vmul.f32 %v2724, %v2820
    %v2949 = vmul.f32 %v2725, %v2821
    %v2950 = vmul.f32 %v2726, %v2822
    %v2951 = vmul.f32 %v2727, %v2823
    %v2952 = vmul.f32 %v2728, %v2824
    %v2953 = vmul.f32 %v2729, %v2825
    %v2954 = vmul.f32 %v2730, %v2826
    %v2955 = vmul.f32 %v2731, %v2827
    %v2956 = vmul.f32 %v2732, %v2828
    %v2957 = vmul.f32 %v2733, %v2829
    %v2958 = vmul.f32 %v2734, %v2830
    %v2959 = vmul.f32 %v2735, %v2831
    %v2960 = vmul.f32 %v2736, %v2832
    %v2961 = vmul.f32 %v2737, %v2833
    %v2962 = vmul.f32 %v2738, %v2834
    %v2963 = vmul.f32 %v2739, %v2835
    %v2964 = vmul.f32 %v2740, %v2836
    %v2965 = vmul.f32 %v2741, %v2837
    %v2966 = vld [vmem:[#allocation12] sm:$0xf]
    %v2967 = vld [vmem:[#allocation12 + $0x4] sm:$0xf]
    %v2968 = vld [vmem:[#allocation12 + $0x8] sm:$0xf]
    %v2969 = vld [vmem:[#allocation12 + $0xc] sm:$0xf]
    %v2970 = vld [vmem:[#allocation12 + $0x10] sm:$0xf]
    %v2971 = vld [vmem:[#allocation12 + $0x14] sm:$0xf]
    %v2972 = vld [vmem:[#allocation12 + $0x18] sm:$0xf]
    %v2973 = vld [vmem:[#allocation12 + $0x1c] sm:$0xf]
    %v2974 = vld [vmem:[#allocation12 + $0x20] sm:$0xf]
    %v2975 = vld [vmem:[#allocation12 + $0x24] sm:$0xf]
    %v2976 = vld [vmem:[#allocation12 + $0x28] sm:$0xf]
    %v2977 = vld [vmem:[#allocation12 + $0x2c] sm:$0xf]
    %v2978 = vld [vmem:[#allocation12 + $0x30] sm:$0xf]
    %v2979 = vld [vmem:[#allocation12 + $0x34] sm:$0xf]
    %v2980 = vld [vmem:[#allocation12 + $0x38] sm:$0xf]
    %v2981 = vld [vmem:[#allocation12 + $0x3c] sm:$0xf]
    %v2998 = vperm.slane %v2966, 0
    %v2999 = vperm.slane %v2966, 1
    %v3000 = vperm.slane %v2966, 2
    %v3001 = vperm.slane %v2966, 3
    %v3002 = vperm.slane %v2967, 0
    %v3003 = vperm.slane %v2967, 1
    %v3004 = vperm.slane %v2967, 2
    %v3005 = vperm.slane %v2967, 3
    %v3006 = vperm.slane %v2968, 0
    %v3007 = vperm.slane %v2968, 1
    %v3008 = vperm.slane %v2968, 2
    %v3009 = vperm.slane %v2968, 3
    %v3010 = vperm.slane %v2969, 0
    %v3011 = vperm.slane %v2969, 1
    %v3012 = vperm.slane %v2969, 2
    %v3013 = vperm.slane %v2969, 3
    %v3014 = vperm.slane %v2970, 0
    %v3015 = vperm.slane %v2970, 1
    %v3016 = vperm.slane %v2970, 2
    %v3017 = vperm.slane %v2970, 3
    %v3018 = vperm.slane %v2971, 0
    %v3019 = vperm.slane %v2971, 1
    %v3020 = vperm.slane %v2971, 2
    %v3021 = vperm.slane %v2971, 3
    %v3022 = vperm.slane %v2972, 0
    %v3023 = vperm.slane %v2972, 1
    %v3024 = vperm.slane %v2972, 2
    %v3025 = vperm.slane %v2972, 3
    %v3026 = vperm.slane %v2973, 0
    %v3027 = vperm.slane %v2973, 1
    %v3028 = vperm.slane %v2973, 2
    %v3029 = vperm.slane %v2973, 3
    %v3030 = vperm.slane %v2974, 0
    %v3031 = vperm.slane %v2974, 1
    %v3032 = vperm.slane %v2974, 2
    %v3033 = vperm.slane %v2974, 3
    %v3034 = vperm.slane %v2975, 0
    %v3035 = vperm.slane %v2975, 1
    %v3036 = vperm.slane %v2975, 2
    %v3037 = vperm.slane %v2975, 3
    %v3038 = vperm.slane %v2976, 0
    %v3039 = vperm.slane %v2976, 1
    %v3040 = vperm.slane %v2976, 2
    %v3041 = vperm.slane %v2976, 3
    %v3042 = vperm.slane %v2977, 0
    %v3043 = vperm.slane %v2977, 1
    %v3044 = vperm.slane %v2977, 2
    %v3045 = vperm.slane %v2977, 3
    %v3046 = vperm.slane %v2978, 0
    %v3047 = vperm.slane %v2978, 1
    %v3048 = vperm.slane %v2978, 2
    %v3049 = vperm.slane %v2978, 3
    %v3050 = vperm.slane %v2979, 0
    %v3051 = vperm.slane %v2979, 1
    %v3052 = vperm.slane %v2979, 2
    %v3053 = vperm.slane %v2979, 3
    %v3054 = vperm.slane %v2980, 0
    %v3055 = vperm.slane %v2980, 1
    %v3056 = vperm.slane %v2980, 2
    %v3057 = vperm.slane %v2980, 3
    %v3058 = vperm.slane %v2981, 0
    %v3059 = vperm.slane %v2981, 1
    %v3060 = vperm.slane %v2981, 2
    %v3061 = vperm.slane %v2981, 3
    %v3126 = vadd.f32 %v2902, %v2998
    %v3127 = vadd.f32 %v2903, %v2999
    %v3128 = vadd.f32 %v2904, %v3000
    %v3129 = vadd.f32 %v2905, %v3001
    %v3130 = vadd.f32 %v2906, %v3002
    %v3131 = vadd.f32 %v2907, %v3003
    %v3132 = vadd.f32 %v2908, %v3004
    %v3133 = vadd.f32 %v2909, %v3005
    %v3134 = vadd.f32 %v2910, %v3006
    %v3135 = vadd.f32 %v2911, %v3007
    %v3136 = vadd.f32 %v2912, %v3008
    %v3137 = vadd.f32 %v2913, %v3009
    %v3138 = vadd.f32 %v2914, %v3010
    %v3139 = vadd.f32 %v2915, %v3011
    %v3140 = vadd.f32 %v2916, %v3012
    %v3141 = vadd.f32 %v2917, %v3013
    %v3142 = vadd.f32 %v2918, %v3014
    %v3143 = vadd.f32 %v2919, %v3015
    %v3144 = vadd.f32 %v2920, %v3016
    %v3145 = vadd.f32 %v2921, %v3017
    %v3146 = vadd.f32 %v2922, %v3018
    %v3147 = vadd.f32 %v2923, %v3019
    %v3148 = vadd.f32 %v2924, %v3020
    %v3149 = vadd.f32 %v2925, %v3021
    %v3150 = vadd.f32 %v2926, %v3022
    %v3151 = vadd.f32 %v2927, %v3023
    %v3152 = vadd.f32 %v2928, %v3024
    %v3153 = vadd.f32 %v2929, %v3025
    %v3154 = vadd.f32 %v2930, %v3026
    %v3155 = vadd.f32 %v2931, %v3027
    %v3156 = vadd.f32 %v2932, %v3028
    %v3157 = vadd.f32 %v2933, %v3029
    %v3158 = vadd.f32 %v2934, %v3030
    %v3159 = vadd.f32 %v2935, %v3031
    %v3160 = vadd.f32 %v2936, %v3032
    %v3161 = vadd.f32 %v2937, %v3033
    %v3162 = vadd.f32 %v2938, %v3034
    %v3163 = vadd.f32 %v2939, %v3035
    %v3164 = vadd.f32 %v2940, %v3036
    %v3165 = vadd.f32 %v2941, %v3037
    %v3166 = vadd.f32 %v2942, %v3038
    %v3167 = vadd.f32 %v2943, %v3039
    %v3168 = vadd.f32 %v2944, %v3040
    %v3169 = vadd.f32 %v2945, %v3041
    %v3170 = vadd.f32 %v2946, %v3042
    %v3171 = vadd.f32 %v2947, %v3043
    %v3172 = vadd.f32 %v2948, %v3044
    %v3173 = vadd.f32 %v2949, %v3045
    %v3174 = vadd.f32 %v2950, %v3046
    %v3175 = vadd.f32 %v2951, %v3047
    %v3176 = vadd.f32 %v2952, %v3048
    %v3177 = vadd.f32 %v2953, %v3049
    %v3178 = vadd.f32 %v2954, %v3050
    %v3179 = vadd.f32 %v2955, %v3051
    %v3180 = vadd.f32 %v2956, %v3052
    %v3181 = vadd.f32 %v2957, %v3053
    %v3182 = vadd.f32 %v2958, %v3054
    %v3183 = vadd.f32 %v2959, %v3055
    %v3184 = vadd.f32 %v2960, %v3056
    %v3185 = vadd.f32 %v2961, %v3057
    %v3186 = vadd.f32 %v2962, %v3058
    %v3187 = vadd.f32 %v2963, %v3059
    %v3188 = vadd.f32 %v2964, %v3060
    %v3189 = vadd.f32 %v2965, %v3061
    %3190 = vst [vmem:[#allocation2] sm:$0xff] 0
    %3191 = vst [vmem:[#allocation2 + $0x8] sm:$0xff] 0
    %3192 = vst [vmem:[#allocation2 + $0x10] sm:$0xff] 0
    %3193 = vst [vmem:[#allocation2 + $0x18] sm:$0xff] 0
    %s3194 = scalar_lea.vmem [#allocation2], 288
    %3195 = vst [vmem:[%s3194] sm:$0xff] 0
    %3196 = vst [vmem:[%s3194 + $0x8] sm:$0xff] 0
    %3197 = vst [vmem:[%s3194 + $0x10] sm:$0xff] 0
    %3198 = vst [vmem:[%s3194 + $0x18] sm:$0xff] 0
    %v3199 = vpack.c.bf16 %v3127, %v3126
    %v3200 = vpack.c.bf16 %v3129, %v3128
    %v3201 = vpack.c.bf16 %v3131, %v3130
    %v3202 = vpack.c.bf16 %v3133, %v3132
    %v3203 = vpack.c.bf16 %v3135, %v3134
    %v3204 = vpack.c.bf16 %v3137, %v3136
    %v3205 = vpack.c.bf16 %v3139, %v3138
    %v3206 = vpack.c.bf16 %v3141, %v3140
    %v3207 = vpack.c.bf16 %v3143, %v3142
    %v3208 = vpack.c.bf16 %v3145, %v3144
    %v3209 = vpack.c.bf16 %v3147, %v3146
    %v3210 = vpack.c.bf16 %v3149, %v3148
    %v3211 = vpack.c.bf16 %v3151, %v3150
    %v3212 = vpack.c.bf16 %v3153, %v3152
    %v3213 = vpack.c.bf16 %v3155, %v3154
    %v3214 = vpack.c.bf16 %v3157, %v3156
    %v3215 = vpack.c.bf16 %v3159, %v3158
    %v3216 = vpack.c.bf16 %v3161, %v3160
    %v3217 = vpack.c.bf16 %v3163, %v3162
    %v3218 = vpack.c.bf16 %v3165, %v3164
    %v3219 = vpack.c.bf16 %v3167, %v3166
    %v3220 = vpack.c.bf16 %v3169, %v3168
    %v3221 = vpack.c.bf16 %v3171, %v3170
    %v3222 = vpack.c.bf16 %v3173, %v3172
    %v3223 = vpack.c.bf16 %v3175, %v3174
    %v3224 = vpack.c.bf16 %v3177, %v3176
    %v3225 = vpack.c.bf16 %v3179, %v3178
    %v3226 = vpack.c.bf16 %v3181, %v3180
    %v3227 = vpack.c.bf16 %v3183, %v3182
    %v3228 = vpack.c.bf16 %v3185, %v3184
    %v3229 = vpack.c.bf16 %v3187, %v3186
    %v3230 = vpack.c.bf16 %v3189, %v3188
    %s3231 = scalar_lea.vmem [#allocation2], 32
    %3232 = vst [vmem:[%s3231] sm:$0xff] %v3199
    %3233 = vst [vmem:[%s3231 + $0x8] sm:$0xff] %v3200
    %3234 = vst [vmem:[%s3231 + $0x10] sm:$0xff] %v3201
    %3235 = vst [vmem:[%s3231 + $0x18] sm:$0xff] %v3202
    %3236 = vst [vmem:[%s3231 + $0x20] sm:$0xff] %v3203
    %3237 = vst [vmem:[%s3231 + $0x28] sm:$0xff] %v3204
    %3238 = vst [vmem:[%s3231 + $0x30] sm:$0xff] %v3205
    %3239 = vst [vmem:[%s3231 + $0x38] sm:$0xff] %v3206
    %3240 = vst [vmem:[%s3231 + $0x40] sm:$0xff] %v3207
    %3241 = vst [vmem:[%s3231 + $0x48] sm:$0xff] %v3208
    %3242 = vst [vmem:[%s3231 + $0x50] sm:$0xff] %v3209
    %3243 = vst [vmem:[%s3231 + $0x58] sm:$0xff] %v3210
    %3244 = vst [vmem:[%s3231 + $0x60] sm:$0xff] %v3211
    %3245 = vst [vmem:[%s3231 + $0x68] sm:$0xff] %v3212
    %3246 = vst [vmem:[%s3231 + $0x70] sm:$0xff] %v3213
    %3247 = vst [vmem:[%s3231 + $0x78] sm:$0xff] %v3214
    %3248 = vst [vmem:[%s3231 + $0x80] sm:$0xff] %v3215
    %3249 = vst [vmem:[%s3231 + $0x88] sm:$0xff] %v3216
    %3250 = vst [vmem:[%s3231 + $0x90] sm:$0xff] %v3217
    %3251 = vst [vmem:[%s3231 + $0x98] sm:$0xff] %v3218
    %3252 = vst [vmem:[%s3231 + $0xa0] sm:$0xff] %v3219
    %3253 = vst [vmem:[%s3231 + $0xa8] sm:$0xff] %v3220
    %3254 = vst [vmem:[%s3231 + $0xb0] sm:$0xff] %v3221
    %3255 = vst [vmem:[%s3231 + $0xb8] sm:$0xff] %v3222
    %3256 = vst [vmem:[%s3231 + $0xc0] sm:$0xff] %v3223
    %3257 = vst [vmem:[%s3231 + $0xc8] sm:$0xff] %v3224
    %3258 = vst [vmem:[%s3231 + $0xd0] sm:$0xff] %v3225
    %3259 = vst [vmem:[%s3231 + $0xd8] sm:$0xff] %v3226
    %3260 = vst [vmem:[%s3231 + $0xe0] sm:$0xff] %v3227
    %3261 = vst [vmem:[%s3231 + $0xe8] sm:$0xff] %v3228
    %3262 = vst [vmem:[%s3231 + $0xf0] sm:$0xff] %v3229
    %3263 = vst [vmem:[%s3231 + $0xf8] sm:$0xff] %v3230
    %v3264 = vld [vmem:[#allocation2] sm:$0xff]
    %v3265 = vld [vmem:[#allocation2 + $0x8] sm:$0xff]
    %v3266 = vld [vmem:[#allocation2 + $0x10] sm:$0xff]
    %v3267 = vld [vmem:[#allocation2 + $0x18] sm:$0xff]
    %v3268 = vld [vmem:[#allocation2 + $0x20] sm:$0xff]
    %v3269 = vld [vmem:[#allocation2 + $0x28] sm:$0xff]
    %v3270 = vld [vmem:[#allocation2 + $0x30] sm:$0xff]
    %v3271 = vld [vmem:[#allocation2 + $0x38] sm:$0xff]
    %v3272 = vld [vmem:[#allocation2 + $0x40] sm:$0xff]
    %v3273 = vld [vmem:[#allocation2 + $0x48] sm:$0xff]
    %v3274 = vld [vmem:[#allocation2 + $0x50] sm:$0xff]
    %v3275 = vld [vmem:[#allocation2 + $0x58] sm:$0xff]
    %v3276 = vld [vmem:[#allocation2 + $0x60] sm:$0xff]
    %v3277 = vld [vmem:[#allocation2 + $0x68] sm:$0xff]
    %v3278 = vld [vmem:[#allocation2 + $0x70] sm:$0xff]
    %v3279 = vld [vmem:[#allocation2 + $0x78] sm:$0xff]
    %v3280 = vld [vmem:[#allocation2 + $0x80] sm:$0xff]
    %v3281 = vld [vmem:[#allocation2 + $0x88] sm:$0xff]
    %v3282 = vld [vmem:[#allocation2 + $0x90] sm:$0xff]
    %v3283 = vld [vmem:[#allocation2 + $0x98] sm:$0xff]
    %v3284 = vld [vmem:[#allocation2 + $0xa0] sm:$0xff]
    %v3285 = vld [vmem:[#allocation2 + $0xa8] sm:$0xff]
    %v3286 = vld [vmem:[#allocation2 + $0xb0] sm:$0xff]
    %v3287 = vld [vmem:[#allocation2 + $0xb8] sm:$0xff]
    %v3288 = vld [vmem:[#allocation2 + $0xc0] sm:$0xff]
    %v3289 = vld [vmem:[#allocation2 + $0xc8] sm:$0xff]
    %v3290 = vld [vmem:[#allocation2 + $0xd0] sm:$0xff]
    %v3291 = vld [vmem:[#allocation2 + $0xd8] sm:$0xff]
    %v3292 = vld [vmem:[#allocation2 + $0xe0] sm:$0xff]
    %v3293 = vld [vmem:[#allocation2 + $0xe8] sm:$0xff]
    %v3294 = vld [vmem:[#allocation2 + $0xf0] sm:$0xff]
    %v3295 = vld [vmem:[#allocation2 + $0xf8] sm:$0xff]
    %v3296 = vld [vmem:[#allocation13] sm:$0xff]
    %v3297 = vld [vmem:[#allocation13 + $0x8] sm:$0xff]
    %v3298 = vld [vmem:[#allocation13 + $0x10] sm:$0xff]
    %v3299 = vld [vmem:[#allocation13 + $0x18] sm:$0xff]
    %v3300 = vld [vmem:[#allocation13 + $0x20] sm:$0xff]
    %v3301 = vld [vmem:[#allocation13 + $0x28] sm:$0xff]
    %v3302 = vld [vmem:[#allocation13 + $0x30] sm:$0xff]
    %v3303 = vld [vmem:[#allocation13 + $0x38] sm:$0xff]
    %v3304 = vld [vmem:[#allocation13 + $0x40] sm:$0xff]
    %v3305 = vld [vmem:[#allocation13 + $0x48] sm:$0xff]
    %v3306 = vld [vmem:[#allocation13 + $0x50] sm:$0xff]
    %v3307 = vld [vmem:[#allocation13 + $0x58] sm:$0xff]
    %v3308 = vld [vmem:[#allocation13 + $0x60] sm:$0xff]
    %v3309 = vld [vmem:[#allocation13 + $0x68] sm:$0xff]
    %v3310 = vld [vmem:[#allocation13 + $0x70] sm:$0xff]
    %v3311 = vld [vmem:[#allocation13 + $0x78] sm:$0xff]
    %v3312 = vld [vmem:[#allocation13 + $0x80] sm:$0xff]
    %v3313 = vld [vmem:[#allocation13 + $0x88] sm:$0xff]
    %v3314 = vld [vmem:[#allocation13 + $0x90] sm:$0xff]
    %v3315 = vld [vmem:[#allocation13 + $0x98] sm:$0xff]
    %v3316 = vld [vmem:[#allocation13 + $0xa0] sm:$0xff]
    %v3317 = vld [vmem:[#allocation13 + $0xa8] sm:$0xff]
    %v3318 = vld [vmem:[#allocation13 + $0xb0] sm:$0xff]
    %v3319 = vld [vmem:[#allocation13 + $0xb8] sm:$0xff]
    %v3320 = vld [vmem:[#allocation13 + $0xc0] sm:$0xff]
    %v3321 = vld [vmem:[#allocation13 + $0xc8] sm:$0xff]
    %v3322 = vld [vmem:[#allocation13 + $0xd0] sm:$0xff]
    %v3323 = vld [vmem:[#allocation13 + $0xd8] sm:$0xff]
    %v3324 = vld [vmem:[#allocation13 + $0xe0] sm:$0xff]
    %v3325 = vld [vmem:[#allocation13 + $0xe8] sm:$0xff]
    %v3326 = vld [vmem:[#allocation13 + $0xf0] sm:$0xff]
    %v3327 = vld [vmem:[#allocation13 + $0xf8] sm:$0xff]
    %v3328 = vld [vmem:[#allocation13 + $0x100] sm:$0xff]
    %v3329 = vld [vmem:[#allocation13 + $0x108] sm:$0xff]
    %v3330 = vld [vmem:[#allocation13 + $0x110] sm:$0xff]
    %v3331 = vld [vmem:[#allocation13 + $0x118] sm:$0xff]
    %v3332 = vld [vmem:[#allocation13 + $0x120] sm:$0xff]
    %v3333 = vld [vmem:[#allocation13 + $0x128] sm:$0xff]
    %v3334 = vld [vmem:[#allocation13 + $0x130] sm:$0xff]
    %v3335 = vld [vmem:[#allocation13 + $0x138] sm:$0xff]
    %v3336 = vld [vmem:[#allocation13 + $0x140] sm:$0xff]
    %v3337 = vld [vmem:[#allocation13 + $0x148] sm:$0xff]
    %v3338 = vld [vmem:[#allocation13 + $0x150] sm:$0xff]
    %v3339 = vld [vmem:[#allocation13 + $0x158] sm:$0xff]
    %v3340 = vld [vmem:[#allocation13 + $0x160] sm:$0xff]
    %v3341 = vld [vmem:[#allocation13 + $0x168] sm:$0xff]
    %v3342 = vld [vmem:[#allocation13 + $0x170] sm:$0xff]
    %v3343 = vld [vmem:[#allocation13 + $0x178] sm:$0xff]
    %v3344 = vld [vmem:[#allocation13 + $0x180] sm:$0xff]
    %v3345 = vld [vmem:[#allocation13 + $0x188] sm:$0xff]
    %v3346 = vld [vmem:[#allocation13 + $0x190] sm:$0xff]
    %v3347 = vld [vmem:[#allocation13 + $0x198] sm:$0xff]
    %v3348 = vld [vmem:[#allocation13 + $0x1a0] sm:$0xff]
    %v3349 = vld [vmem:[#allocation13 + $0x1a8] sm:$0xff]
    %v3350 = vld [vmem:[#allocation13 + $0x1b0] sm:$0xff]
    %v3351 = vld [vmem:[#allocation13 + $0x1b8] sm:$0xff]
    %v3352 = vld [vmem:[#allocation13 + $0x1c0] sm:$0xff]
    %v3353 = vld [vmem:[#allocation13 + $0x1c8] sm:$0xff]
    %v3354 = vld [vmem:[#allocation13 + $0x1d0] sm:$0xff]
    %v3355 = vld [vmem:[#allocation13 + $0x1d8] sm:$0xff]
    %v3356 = vld [vmem:[#allocation13 + $0x1e0] sm:$0xff]
    %v3357 = vld [vmem:[#allocation13 + $0x1e8] sm:$0xff]
    %v3358 = vld [vmem:[#allocation13 + $0x1f0] sm:$0xff]
    %v3359 = vld [vmem:[#allocation13 + $0x1f8] sm:$0xff]
    %s3360 = scalar_lea.vmem [#allocation2], 16
    %v3361 = vld [vmem:[%s3360] sm:$0xff]
    %v3362 = vld [vmem:[%s3360 + $0x8] sm:$0xff]
    %v3363 = vld [vmem:[%s3360 + $0x10] sm:$0xff]
    %v3364 = vld [vmem:[%s3360 + $0x18] sm:$0xff]
    %v3365 = vld [vmem:[%s3360 + $0x20] sm:$0xff]
    %v3366 = vld [vmem:[%s3360 + $0x28] sm:$0xff]
    %v3367 = vld [vmem:[%s3360 + $0x30] sm:$0xff]
    %v3368 = vld [vmem:[%s3360 + $0x38] sm:$0xff]
    %v3369 = vld [vmem:[%s3360 + $0x40] sm:$0xff]
    %v3370 = vld [vmem:[%s3360 + $0x48] sm:$0xff]
    %v3371 = vld [vmem:[%s3360 + $0x50] sm:$0xff]
    %v3372 = vld [vmem:[%s3360 + $0x58] sm:$0xff]
    %v3373 = vld [vmem:[%s3360 + $0x60] sm:$0xff]
    %v3374 = vld [vmem:[%s3360 + $0x68] sm:$0xff]
    %v3375 = vld [vmem:[%s3360 + $0x70] sm:$0xff]
    %v3376 = vld [vmem:[%s3360 + $0x78] sm:$0xff]
    %v3377 = vld [vmem:[%s3360 + $0x80] sm:$0xff]
    %v3378 = vld [vmem:[%s3360 + $0x88] sm:$0xff]
    %v3379 = vld [vmem:[%s3360 + $0x90] sm:$0xff]
    %v3380 = vld [vmem:[%s3360 + $0x98] sm:$0xff]
    %v3381 = vld [vmem:[%s3360 + $0xa0] sm:$0xff]
    %v3382 = vld [vmem:[%s3360 + $0xa8] sm:$0xff]
    %v3383 = vld [vmem:[%s3360 + $0xb0] sm:$0xff]
    %v3384 = vld [vmem:[%s3360 + $0xb8] sm:$0xff]
    %v3385 = vld [vmem:[%s3360 + $0xc0] sm:$0xff]
    %v3386 = vld [vmem:[%s3360 + $0xc8] sm:$0xff]
    %v3387 = vld [vmem:[%s3360 + $0xd0] sm:$0xff]
    %v3388 = vld [vmem:[%s3360 + $0xd8] sm:$0xff]
    %v3389 = vld [vmem:[%s3360 + $0xe0] sm:$0xff]
    %v3390 = vld [vmem:[%s3360 + $0xe8] sm:$0xff]
    %v3391 = vld [vmem:[%s3360 + $0xf0] sm:$0xff]
    %v3392 = vld [vmem:[%s3360 + $0xf8] sm:$0xff]
    %s3393 = scalar_lea.vmem [#allocation13], 512
    %v3394 = vld [vmem:[%s3393] sm:$0xff]
    %v3395 = vld [vmem:[%s3393 + $0x8] sm:$0xff]
    %v3396 = vld [vmem:[%s3393 + $0x10] sm:$0xff]
    %v3397 = vld [vmem:[%s3393 + $0x18] sm:$0xff]
    %v3398 = vld [vmem:[%s3393 + $0x20] sm:$0xff]
    %v3399 = vld [vmem:[%s3393 + $0x28] sm:$0xff]
    %v3400 = vld [vmem:[%s3393 + $0x30] sm:$0xff]
    %v3401 = vld [vmem:[%s3393 + $0x38] sm:$0xff]
    %v3402 = vld [vmem:[%s3393 + $0x40] sm:$0xff]
    %v3403 = vld [vmem:[%s3393 + $0x48] sm:$0xff]
    %v3404 = vld [vmem:[%s3393 + $0x50] sm:$0xff]
    %v3405 = vld [vmem:[%s3393 + $0x58] sm:$0xff]
    %v3406 = vld [vmem:[%s3393 + $0x60] sm:$0xff]
    %v3407 = vld [vmem:[%s3393 + $0x68] sm:$0xff]
    %v3408 = vld [vmem:[%s3393 + $0x70] sm:$0xff]
    %v3409 = vld [vmem:[%s3393 + $0x78] sm:$0xff]
    %v3410 = vld [vmem:[%s3393 + $0x80] sm:$0xff]
    %v3411 = vld [vmem:[%s3393 + $0x88] sm:$0xff]
    %v3412 = vld [vmem:[%s3393 + $0x90] sm:$0xff]
    %v3413 = vld [vmem:[%s3393 + $0x98] sm:$0xff]
    %v3414 = vld [vmem:[%s3393 + $0xa0] sm:$0xff]
    %v3415 = vld [vmem:[%s3393 + $0xa8] sm:$0xff]
    %v3416 = vld [vmem:[%s3393 + $0xb0] sm:$0xff]
    %v3417 = vld [vmem:[%s3393 + $0xb8] sm:$0xff]
    %v3418 = vld [vmem:[%s3393 + $0xc0] sm:$0xff]
    %v3419 = vld [vmem:[%s3393 + $0xc8] sm:$0xff]
    %v3420 = vld [vmem:[%s3393 + $0xd0] sm:$0xff]
    %v3421 = vld [vmem:[%s3393 + $0xd8] sm:$0xff]
    %v3422 = vld [vmem:[%s3393 + $0xe0] sm:$0xff]
    %v3423 = vld [vmem:[%s3393 + $0xe8] sm:$0xff]
    %v3424 = vld [vmem:[%s3393 + $0xf0] sm:$0xff]
    %v3425 = vld [vmem:[%s3393 + $0xf8] sm:$0xff]
    %v3426 = vld [vmem:[%s3393 + $0x100] sm:$0xff]
    %v3427 = vld [vmem:[%s3393 + $0x108] sm:$0xff]
    %v3428 = vld [vmem:[%s3393 + $0x110] sm:$0xff]
    %v3429 = vld [vmem:[%s3393 + $0x118] sm:$0xff]
    %v3430 = vld [vmem:[%s3393 + $0x120] sm:$0xff]
    %v3431 = vld [vmem:[%s3393 + $0x128] sm:$0xff]
    %v3432 = vld [vmem:[%s3393 + $0x130] sm:$0xff]
    %v3433 = vld [vmem:[%s3393 + $0x138] sm:$0xff]
    %v3434 = vld [vmem:[%s3393 + $0x140] sm:$0xff]
    %v3435 = vld [vmem:[%s3393 + $0x148] sm:$0xff]
    %v3436 = vld [vmem:[%s3393 + $0x150] sm:$0xff]
    %v3437 = vld [vmem:[%s3393 + $0x158] sm:$0xff]
    %v3438 = vld [vmem:[%s3393 + $0x160] sm:$0xff]
    %v3439 = vld [vmem:[%s3393 + $0x168] sm:$0xff]
    %v3440 = vld [vmem:[%s3393 + $0x170] sm:$0xff]
    %v3441 = vld [vmem:[%s3393 + $0x178] sm:$0xff]
    %v3442 = vld [vmem:[%s3393 + $0x180] sm:$0xff]
    %v3443 = vld [vmem:[%s3393 + $0x188] sm:$0xff]
    %v3444 = vld [vmem:[%s3393 + $0x190] sm:$0xff]
    %v3445 = vld [vmem:[%s3393 + $0x198] sm:$0xff]
    %v3446 = vld [vmem:[%s3393 + $0x1a0] sm:$0xff]
    %v3447 = vld [vmem:[%s3393 + $0x1a8] sm:$0xff]
    %v3448 = vld [vmem:[%s3393 + $0x1b0] sm:$0xff]
    %v3449 = vld [vmem:[%s3393 + $0x1b8] sm:$0xff]
    %v3450 = vld [vmem:[%s3393 + $0x1c0] sm:$0xff]
    %v3451 = vld [vmem:[%s3393 + $0x1c8] sm:$0xff]
    %v3452 = vld [vmem:[%s3393 + $0x1d0] sm:$0xff]
    %v3453 = vld [vmem:[%s3393 + $0x1d8] sm:$0xff]
    %v3454 = vld [vmem:[%s3393 + $0x1e0] sm:$0xff]
    %v3455 = vld [vmem:[%s3393 + $0x1e8] sm:$0xff]
    %v3456 = vld [vmem:[%s3393 + $0x1f0] sm:$0xff]
    %v3457 = vld [vmem:[%s3393 + $0x1f8] sm:$0xff]
    %v3490 = vunpack.c.l.b16 %v3361
    %v3491 = vunpack.c.h.b16 %v3361
    %v3492 = vunpack.c.l.b16 %v3362
    %v3493 = vunpack.c.h.b16 %v3362
    %v3494 = vunpack.c.l.b16 %v3363
    %v3495 = vunpack.c.h.b16 %v3363
    %v3496 = vunpack.c.l.b16 %v3364
    %v3497 = vunpack.c.h.b16 %v3364
    %v3498 = vunpack.c.l.b16 %v3365
    %v3499 = vunpack.c.h.b16 %v3365
    %v3500 = vunpack.c.l.b16 %v3366
    %v3501 = vunpack.c.h.b16 %v3366
    %v3502 = vunpack.c.l.b16 %v3367
    %v3503 = vunpack.c.h.b16 %v3367
    %v3504 = vunpack.c.l.b16 %v3368
    %v3505 = vunpack.c.h.b16 %v3368
    %v3506 = vunpack.c.l.b16 %v3369
    %v3507 = vunpack.c.h.b16 %v3369
    %v3508 = vunpack.c.l.b16 %v3370
    %v3509 = vunpack.c.h.b16 %v3370
    %v3510 = vunpack.c.l.b16 %v3371
    %v3511 = vunpack.c.h.b16 %v3371
    %v3512 = vunpack.c.l.b16 %v3372
    %v3513 = vunpack.c.h.b16 %v3372
    %v3514 = vunpack.c.l.b16 %v3373
    %v3515 = vunpack.c.h.b16 %v3373
    %v3516 = vunpack.c.l.b16 %v3374
    %v3517 = vunpack.c.h.b16 %v3374
    %v3518 = vunpack.c.l.b16 %v3375
    %v3519 = vunpack.c.h.b16 %v3375
    %v3520 = vunpack.c.l.b16 %v3376
    %v3521 = vunpack.c.h.b16 %v3376
    %v3522 = vunpack.c.l.b16 %v3377
    %v3523 = vunpack.c.h.b16 %v3377
    %v3524 = vunpack.c.l.b16 %v3378
    %v3525 = vunpack.c.h.b16 %v3378
    %v3526 = vunpack.c.l.b16 %v3379
    %v3527 = vunpack.c.h.b16 %v3379
    %v3528 = vunpack.c.l.b16 %v3380
    %v3529 = vunpack.c.h.b16 %v3380
    %v3530 = vunpack.c.l.b16 %v3381
    %v3531 = vunpack.c.h.b16 %v3381
    %v3532 = vunpack.c.l.b16 %v3382
    %v3533 = vunpack.c.h.b16 %v3382
    %v3534 = vunpack.c.l.b16 %v3383
    %v3535 = vunpack.c.h.b16 %v3383
    %v3536 = vunpack.c.l.b16 %v3384
    %v3537 = vunpack.c.h.b16 %v3384
    %v3538 = vunpack.c.l.b16 %v3385
    %v3539 = vunpack.c.h.b16 %v3385
    %v3540 = vunpack.c.l.b16 %v3386
    %v3541 = vunpack.c.h.b16 %v3386
    %v3542 = vunpack.c.l.b16 %v3387
    %v3543 = vunpack.c.h.b16 %v3387
    %v3544 = vunpack.c.l.b16 %v3388
    %v3545 = vunpack.c.h.b16 %v3388
    %v3546 = vunpack.c.l.b16 %v3389
    %v3547 = vunpack.c.h.b16 %v3389
    %v3548 = vunpack.c.l.b16 %v3390
    %v3549 = vunpack.c.h.b16 %v3390
    %v3550 = vunpack.c.l.b16 %v3391
    %v3551 = vunpack.c.h.b16 %v3391
    %v3552 = vunpack.c.l.b16 %v3392
    %v3553 = vunpack.c.h.b16 %v3392
    %v3554 = vpack.c.b16 %v3494, %v3490
    %v3555 = vpack.c.b16 %v3495, %v3491
    %v3556 = vpack.c.b16 %v3496, %v3492
    %v3557 = vpack.c.b16 %v3497, %v3493
    %v3558 = vpack.c.b16 %v3502, %v3498
    %v3559 = vpack.c.b16 %v3503, %v3499
    %v3560 = vpack.c.b16 %v3504, %v3500
    %v3561 = vpack.c.b16 %v3505, %v3501
    %v3562 = vpack.c.b16 %v3510, %v3506
    %v3563 = vpack.c.b16 %v3511, %v3507
    %v3564 = vpack.c.b16 %v3512, %v3508
    %v3565 = vpack.c.b16 %v3513, %v3509
    %v3566 = vpack.c.b16 %v3518, %v3514
    %v3567 = vpack.c.b16 %v3519, %v3515
    %v3568 = vpack.c.b16 %v3520, %v3516
    %v3569 = vpack.c.b16 %v3521, %v3517
    %v3570 = vpack.c.b16 %v3526, %v3522
    %v3571 = vpack.c.b16 %v3527, %v3523
    %v3572 = vpack.c.b16 %v3528, %v3524
    %v3573 = vpack.c.b16 %v3529, %v3525
    %v3574 = vpack.c.b16 %v3534, %v3530
    %v3575 = vpack.c.b16 %v3535, %v3531
    %v3576 = vpack.c.b16 %v3536, %v3532
    %v3577 = vpack.c.b16 %v3537, %v3533
    %v3578 = vpack.c.b16 %v3542, %v3538
    %v3579 = vpack.c.b16 %v3543, %v3539
    %v3580 = vpack.c.b16 %v3544, %v3540
    %v3581 = vpack.c.b16 %v3545, %v3541
    %v3582 = vpack.c.b16 %v3550, %v3546
    %v3583 = vpack.c.b16 %v3551, %v3547
    %v3584 = vpack.c.b16 %v3552, %v3548
    %v3585 = vpack.c.b16 %v3553, %v3549
    %v3682 = vunpack.c.l.b16 %v3394
    %v3683 = vunpack.c.h.b16 %v3394
    %v3684 = vunpack.c.l.b16 %v3395
    %v3685 = vunpack.c.h.b16 %v3395
    %v3686 = vunpack.c.l.b16 %v3396
    %v3687 = vunpack.c.h.b16 %v3396
    %v3688 = vunpack.c.l.b16 %v3397
    %v3689 = vunpack.c.h.b16 %v3397
    %v3690 = vunpack.c.l.b16 %v3398
    %v3691 = vunpack.c.h.b16 %v3398
    %v3692 = vunpack.c.l.b16 %v3399
    %v3693 = vunpack.c.h.b16 %v3399
    %v3694 = vunpack.c.l.b16 %v3400
    %v3695 = vunpack.c.h.b16 %v3400
    %v3696 = vunpack.c.l.b16 %v3401
    %v3697 = vunpack.c.h.b16 %v3401
    %v3698 = vunpack.c.l.b16 %v3402
    %v3699 = vunpack.c.h.b16 %v3402
    %v3700 = vunpack.c.l.b16 %v3403
    %v3701 = vunpack.c.h.b16 %v3403
    %v3702 = vunpack.c.l.b16 %v3404
    %v3703 = vunpack.c.h.b16 %v3404
    %v3704 = vunpack.c.l.b16 %v3405
    %v3705 = vunpack.c.h.b16 %v3405
    %v3706 = vunpack.c.l.b16 %v3406
    %v3707 = vunpack.c.h.b16 %v3406
    %v3708 = vunpack.c.l.b16 %v3407
    %v3709 = vunpack.c.h.b16 %v3407
    %v3710 = vunpack.c.l.b16 %v3408
    %v3711 = vunpack.c.h.b16 %v3408
    %v3712 = vunpack.c.l.b16 %v3409
    %v3713 = vunpack.c.h.b16 %v3409
    %v3714 = vunpack.c.l.b16 %v3410
    %v3715 = vunpack.c.h.b16 %v3410
    %v3716 = vunpack.c.l.b16 %v3411
    %v3717 = vunpack.c.h.b16 %v3411
    %v3718 = vunpack.c.l.b16 %v3412
    %v3719 = vunpack.c.h.b16 %v3412
    %v3720 = vunpack.c.l.b16 %v3413
    %v3721 = vunpack.c.h.b16 %v3413
    %v3722 = vunpack.c.l.b16 %v3414
    %v3723 = vunpack.c.h.b16 %v3414
    %v3724 = vunpack.c.l.b16 %v3415
    %v3725 = vunpack.c.h.b16 %v3415
    %v3726 = vunpack.c.l.b16 %v3416
    %v3727 = vunpack.c.h.b16 %v3416
    %v3728 = vunpack.c.l.b16 %v3417
    %v3729 = vunpack.c.h.b16 %v3417
    %v3730 = vunpack.c.l.b16 %v3418
    %v3731 = vunpack.c.h.b16 %v3418
    %v3732 = vunpack.c.l.b16 %v3419
    %v3733 = vunpack.c.h.b16 %v3419
    %v3734 = vunpack.c.l.b16 %v3420
    %v3735 = vunpack.c.h.b16 %v3420
    %v3736 = vunpack.c.l.b16 %v3421
    %v3737 = vunpack.c.h.b16 %v3421
    %v3738 = vunpack.c.l.b16 %v3422
    %v3739 = vunpack.c.h.b16 %v3422
    %v3740 = vunpack.c.l.b16 %v3423
    %v3741 = vunpack.c.h.b16 %v3423
    %v3742 = vunpack.c.l.b16 %v3424
    %v3743 = vunpack.c.h.b16 %v3424
    %v3744 = vunpack.c.l.b16 %v3425
    %v3745 = vunpack.c.h.b16 %v3425
    %v3746 = vunpack.c.l.b16 %v3426
    %v3747 = vunpack.c.h.b16 %v3426
    %v3748 = vunpack.c.l.b16 %v3427
    %v3749 = vunpack.c.h.b16 %v3427
    %v3750 = vunpack.c.l.b16 %v3428
    %v3751 = vunpack.c.h.b16 %v3428
    %v3752 = vunpack.c.l.b16 %v3429
    %v3753 = vunpack.c.h.b16 %v3429
    %v3754 = vunpack.c.l.b16 %v3430
    %v3755 = vunpack.c.h.b16 %v3430
    %v3756 = vunpack.c.l.b16 %v3431
    %v3757 = vunpack.c.h.b16 %v3431
    %v3758 = vunpack.c.l.b16 %v3432
    %v3759 = vunpack.c.h.b16 %v3432
    %v3760 = vunpack.c.l.b16 %v3433
    %v3761 = vunpack.c.h.b16 %v3433
    %v3762 = vunpack.c.l.b16 %v3434
    %v3763 = vunpack.c.h.b16 %v3434
    %v3764 = vunpack.c.l.b16 %v3435
    %v3765 = vunpack.c.h.b16 %v3435
    %v3766 = vunpack.c.l.b16 %v3436
    %v3767 = vunpack.c.h.b16 %v3436
    %v3768 = vunpack.c.l.b16 %v3437
    %v3769 = vunpack.c.h.b16 %v3437
    %v3770 = vunpack.c.l.b16 %v3438
    %v3771 = vunpack.c.h.b16 %v3438
    %v3772 = vunpack.c.l.b16 %v3439
    %v3773 = vunpack.c.h.b16 %v3439
    %v3774 = vunpack.c.l.b16 %v3440
    %v3775 = vunpack.c.h.b16 %v3440
    %v3776 = vunpack.c.l.b16 %v3441
    %v3777 = vunpack.c.h.b16 %v3441
    %v3778 = vunpack.c.l.b16 %v3442
    %v3779 = vunpack.c.h.b16 %v3442
    %v3780 = vunpack.c.l.b16 %v3443
    %v3781 = vunpack.c.h.b16 %v3443
    %v3782 = vunpack.c.l.b16 %v3444
    %v3783 = vunpack.c.h.b16 %v3444
    %v3784 = vunpack.c.l.b16 %v3445
    %v3785 = vunpack.c.h.b16 %v3445
    %v3786 = vunpack.c.l.b16 %v3446
    %v3787 = vunpack.c.h.b16 %v3446
    %v3788 = vunpack.c.l.b16 %v3447
    %v3789 = vunpack.c.h.b16 %v3447
    %v3790 = vunpack.c.l.b16 %v3448
    %v3791 = vunpack.c.h.b16 %v3448
    %v3792 = vunpack.c.l.b16 %v3449
    %v3793 = vunpack.c.h.b16 %v3449
    %v3794 = vunpack.c.l.b16 %v3450
    %v3795 = vunpack.c.h.b16 %v3450
    %v3796 = vunpack.c.l.b16 %v3451
    %v3797 = vunpack.c.h.b16 %v3451
    %v3798 = vunpack.c.l.b16 %v3452
    %v3799 = vunpack.c.h.b16 %v3452
    %v3800 = vunpack.c.l.b16 %v3453
    %v3801 = vunpack.c.h.b16 %v3453
    %v3802 = vunpack.c.l.b16 %v3454
    %v3803 = vunpack.c.h.b16 %v3454
    %v3804 = vunpack.c.l.b16 %v3455
    %v3805 = vunpack.c.h.b16 %v3455
    %v3806 = vunpack.c.l.b16 %v3456
    %v3807 = vunpack.c.h.b16 %v3456
    %v3808 = vunpack.c.l.b16 %v3457
    %v3809 = vunpack.c.h.b16 %v3457
    %v3810 = vpack.c.b16 %v3684, %v3682
    %v3811 = vpack.c.b16 %v3685, %v3683
    %v3812 = vpack.c.b16 %v3688, %v3686
    %v3813 = vpack.c.b16 %v3689, %v3687
    %v3814 = vpack.c.b16 %v3692, %v3690
    %v3815 = vpack.c.b16 %v3693, %v3691
    %v3816 = vpack.c.b16 %v3696, %v3694
    %v3817 = vpack.c.b16 %v3697, %v3695
    %v3818 = vpack.c.b16 %v3700, %v3698
    %v3819 = vpack.c.b16 %v3701, %v3699
    %v3820 = vpack.c.b16 %v3704, %v3702
    %v3821 = vpack.c.b16 %v3705, %v3703
    %v3822 = vpack.c.b16 %v3708, %v3706
    %v3823 = vpack.c.b16 %v3709, %v3707
    %v3824 = vpack.c.b16 %v3712, %v3710
    %v3825 = vpack.c.b16 %v3713, %v3711
    %v3826 = vpack.c.b16 %v3716, %v3714
    %v3827 = vpack.c.b16 %v3717, %v3715
    %v3828 = vpack.c.b16 %v3720, %v3718
    %v3829 = vpack.c.b16 %v3721, %v3719
    %v3830 = vpack.c.b16 %v3724, %v3722
    %v3831 = vpack.c.b16 %v3725, %v3723
    %v3832 = vpack.c.b16 %v3728, %v3726
    %v3833 = vpack.c.b16 %v3729, %v3727
    %v3834 = vpack.c.b16 %v3732, %v3730
    %v3835 = vpack.c.b16 %v3733, %v3731
    %v3836 = vpack.c.b16 %v3736, %v3734
    %v3837 = vpack.c.b16 %v3737, %v3735
    %v3838 = vpack.c.b16 %v3740, %v3738
    %v3839 = vpack.c.b16 %v3741, %v3739
    %v3840 = vpack.c.b16 %v3744, %v3742
    %v3841 = vpack.c.b16 %v3745, %v3743
    %v3842 = vpack.c.b16 %v3748, %v3746
    %v3843 = vpack.c.b16 %v3749, %v3747
    %v3844 = vpack.c.b16 %v3752, %v3750
    %v3845 = vpack.c.b16 %v3753, %v3751
    %v3846 = vpack.c.b16 %v3756, %v3754
    %v3847 = vpack.c.b16 %v3757, %v3755
    %v3848 = vpack.c.b16 %v3760, %v3758
    %v3849 = vpack.c.b16 %v3761, %v3759
    %v3850 = vpack.c.b16 %v3764, %v3762
    %v3851 = vpack.c.b16 %v3765, %v3763
    %v3852 = vpack.c.b16 %v3768, %v3766
    %v3853 = vpack.c.b16 %v3769, %v3767
    %v3854 = vpack.c.b16 %v3772, %v3770
    %v3855 = vpack.c.b16 %v3773, %v3771
    %v3856 = vpack.c.b16 %v3776, %v3774
    %v3857 = vpack.c.b16 %v3777, %v3775
    %v3858 = vpack.c.b16 %v3780, %v3778
    %v3859 = vpack.c.b16 %v3781, %v3779
    %v3860 = vpack.c.b16 %v3784, %v3782
    %v3861 = vpack.c.b16 %v3785, %v3783
    %v3862 = vpack.c.b16 %v3788, %v3786
    %v3863 = vpack.c.b16 %v3789, %v3787
    %v3864 = vpack.c.b16 %v3792, %v3790
    %v3865 = vpack.c.b16 %v3793, %v3791
    %v3866 = vpack.c.b16 %v3796, %v3794
    %v3867 = vpack.c.b16 %v3797, %v3795
    %v3868 = vpack.c.b16 %v3800, %v3798
    %v3869 = vpack.c.b16 %v3801, %v3799
    %v3870 = vpack.c.b16 %v3804, %v3802
    %v3871 = vpack.c.b16 %v3805, %v3803
    %v3872 = vpack.c.b16 %v3808, %v3806
    %v3873 = vpack.c.b16 %v3809, %v3807
    %3938 = vmatpush.bf16.msra.mxu0 %v3824
    %3939 = vmatpush.bf16.msra.mxu0 %v3822
    %3940 = vmatpush.bf16.msra.mxu0 %v3820
    %3941 = vmatpush.bf16.msra.mxu0 %v3818
    %3942 = vmatpush.bf16.msra.mxu0 %v3816
    %3943 = vmatpush.bf16.msra.mxu0 %v3814
    %3944 = vmatpush.bf16.msra.mxu0 %v3812
    %3945 = vmatpush.bf16.msra.mxu0 %v3810
    %3946 = vmatmul.bf16.gmra.mxu0 %v3554
    %v3947 = vpop.f32.mrf.mxu0
    %v3948 = vadd.f32 0.0, %v3947
    %v3949 = vpop.f32.mrf.mxu0
    %v3950 = vadd.f32 0.0, %v3949
    %3951 = vmatmul.bf16.gmra.mxu0 %v3558
    %v3952 = vpop.f32.mrf.mxu0
    %v3953 = vadd.f32 0.0, %v3952
    %v3954 = vpop.f32.mrf.mxu0
    %v3955 = vadd.f32 0.0, %v3954
    %3956 = vmatmul.bf16.gmra.mxu0 %v3562
    %v3957 = vpop.f32.mrf.mxu0
    %v3958 = vadd.f32 0.0, %v3957
    %v3959 = vpop.f32.mrf.mxu0
    %v3960 = vadd.f32 0.0, %v3959
    %3961 = vmatmul.bf16.gmra.mxu0 %v3566
    %v3962 = vpop.f32.mrf.mxu0
    %v3963 = vadd.f32 0.0, %v3962
    %v3964 = vpop.f32.mrf.mxu0
    %v3965 = vadd.f32 0.0, %v3964
    %3966 = vmatmul.bf16.gmra.mxu0 %v3570
    %v3967 = vpop.f32.mrf.mxu0
    %v3968 = vadd.f32 0.0, %v3967
    %v3969 = vpop.f32.mrf.mxu0
    %v3970 = vadd.f32 0.0, %v3969
    %3971 = vmatmul.bf16.gmra.mxu0 %v3574
    %v3972 = vpop.f32.mrf.mxu0
    %v3973 = vadd.f32 0.0, %v3972
    %v3974 = vpop.f32.mrf.mxu0
    %v3975 = vadd.f32 0.0, %v3974
    %3976 = vmatmul.bf16.gmra.mxu0 %v3578
    %v3977 = vpop.f32.mrf.mxu0
    %v3978 = vadd.f32 0.0, %v3977
    %v3979 = vpop.f32.mrf.mxu0
    %v3980 = vadd.f32 0.0, %v3979
    %3981 = vmatmul.bf16.gmra.mxu0 %v3582
    %v3982 = vpop.f32.mrf.mxu0
    %v3983 = vadd.f32 0.0, %v3982
    %v3984 = vpop.f32.mrf.mxu0
    %v3985 = vadd.f32 0.0, %v3984
    %3986 = vdwg.mxu0
    %3987 = vmatpush.bf16.msra.mxu0 %v3840
    %3988 = vmatpush.bf16.msra.mxu0 %v3838
    %3989 = vmatpush.bf16.msra.mxu0 %v3836
    %3990 = vmatpush.bf16.msra.mxu0 %v3834
    %3991 = vmatpush.bf16.msra.mxu0 %v3832
    %3992 = vmatpush.bf16.msra.mxu0 %v3830
    %3993 = vmatpush.bf16.msra.mxu0 %v3828
    %3994 = vmatpush.bf16.msra.mxu0 %v3826
    %3995 = vmatmul.bf16.gmra.mxu0 %v3555
    %v3996 = vpop.f32.mrf.mxu0
    %v3997 = vadd.f32 %v3948, %v3996
    %v3998 = vpop.f32.mrf.mxu0
    %v3999 = vadd.f32 %v3950, %v3998
    %4000 = vmatmul.bf16.gmra.mxu0 %v3559
    %v4001 = vpop.f32.mrf.mxu0
    %v4002 = vadd.f32 %v3953, %v4001
    %v4003 = vpop.f32.mrf.mxu0
    %v4004 = vadd.f32 %v3955, %v4003
    %4005 = vmatmul.bf16.gmra.mxu0 %v3563
    %v4006 = vpop.f32.mrf.mxu0
    %v4007 = vadd.f32 %v3958, %v4006
    %v4008 = vpop.f32.mrf.mxu0
    %v4009 = vadd.f32 %v3960, %v4008
    %4010 = vmatmul.bf16.gmra.mxu0 %v3567
    %v4011 = vpop.f32.mrf.mxu0
    %v4012 = vadd.f32 %v3963, %v4011
    %v4013 = vpop.f32.mrf.mxu0
    %v4014 = vadd.f32 %v3965, %v4013
    %4015 = vmatmul.bf16.gmra.mxu0 %v3571
    %v4016 = vpop.f32.mrf.mxu0
    %v4017 = vadd.f32 %v3968, %v4016
    %v4018 = vpop.f32.mrf.mxu0
    %v4019 = vadd.f32 %v3970, %v4018
    %4020 = vmatmul.bf16.gmra.mxu0 %v3575
    %v4021 = vpop.f32.mrf.mxu0
    %v4022 = vadd.f32 %v3973, %v4021
    %v4023 = vpop.f32.mrf.mxu0
    %v4024 = vadd.f32 %v3975, %v4023
    %4025 = vmatmul.bf16.gmra.mxu0 %v3579
    %v4026 = vpop.f32.mrf.mxu0
    %v4027 = vadd.f32 %v3978, %v4026
    %v4028 = vpop.f32.mrf.mxu0
    %v4029 = vadd.f32 %v3980, %v4028
    %4030 = vmatmul.bf16.gmra.mxu0 %v3583
    %v4031 = vpop.f32.mrf.mxu0
    %v4032 = vadd.f32 %v3983, %v4031
    %v4033 = vpop.f32.mrf.mxu0
    %v4034 = vadd.f32 %v3985, %v4033
    %4035 = vdwg.mxu0
    %4036 = vmatpush.bf16.msra.mxu0 %v3856
    %4037 = vmatpush.bf16.msra.mxu0 %v3854
    %4038 = vmatpush.bf16.msra.mxu0 %v3852
    %4039 = vmatpush.bf16.msra.mxu0 %v3850
    %4040 = vmatpush.bf16.msra.mxu0 %v3848
    %4041 = vmatpush.bf16.msra.mxu0 %v3846
    %4042 = vmatpush.bf16.msra.mxu0 %v3844
    %4043 = vmatpush.bf16.msra.mxu0 %v3842
    %4044 = vmatmul.bf16.gmra.mxu0 %v3556
    %v4045 = vpop.f32.mrf.mxu0
    %v4046 = vadd.f32 %v3997, %v4045
    %v4047 = vpop.f32.mrf.mxu0
    %v4048 = vadd.f32 %v3999, %v4047
    %4049 = vmatmul.bf16.gmra.mxu0 %v3560
    %v4050 = vpop.f32.mrf.mxu0
    %v4051 = vadd.f32 %v4002, %v4050
    %v4052 = vpop.f32.mrf.mxu0
    %v4053 = vadd.f32 %v4004, %v4052
    %4054 = vmatmul.bf16.gmra.mxu0 %v3564
    %v4055 = vpop.f32.mrf.mxu0
    %v4056 = vadd.f32 %v4007, %v4055
    %v4057 = vpop.f32.mrf.mxu0
    %v4058 = vadd.f32 %v4009, %v4057
    %4059 = vmatmul.bf16.gmra.mxu0 %v3568
    %v4060 = vpop.f32.mrf.mxu0
    %v4061 = vadd.f32 %v4012, %v4060
    %v4062 = vpop.f32.mrf.mxu0
    %v4063 = vadd.f32 %v4014, %v4062
    %4064 = vmatmul.bf16.gmra.mxu0 %v3572
    %v4065 = vpop.f32.mrf.mxu0
    %v4066 = vadd.f32 %v4017, %v4065
    %v4067 = vpop.f32.mrf.mxu0
    %v4068 = vadd.f32 %v4019, %v4067
    %4069 = vmatmul.bf16.gmra.mxu0 %v3576
    %v4070 = vpop.f32.mrf.mxu0
    %v4071 = vadd.f32 %v4022, %v4070
    %v4072 = vpop.f32.mrf.mxu0
    %v4073 = vadd.f32 %v4024, %v4072
    %4074 = vmatmul.bf16.gmra.mxu0 %v3580
    %v4075 = vpop.f32.mrf.mxu0
    %v4076 = vadd.f32 %v4027, %v4075
    %v4077 = vpop.f32.mrf.mxu0
    %v4078 = vadd.f32 %v4029, %v4077
    %4079 = vmatmul.bf16.gmra.mxu0 %v3584
    %v4080 = vpop.f32.mrf.mxu0
    %v4081 = vadd.f32 %v4032, %v4080
    %v4082 = vpop.f32.mrf.mxu0
    %v4083 = vadd.f32 %v4034, %v4082
    %4084 = vdwg.mxu0
    %4085 = vmatpush.bf16.msra.mxu0 %v3872
    %4086 = vmatpush.bf16.msra.mxu0 %v3870
    %4087 = vmatpush.bf16.msra.mxu0 %v3868
    %4088 = vmatpush.bf16.msra.mxu0 %v3866
    %4089 = vmatpush.bf16.msra.mxu0 %v3864
    %4090 = vmatpush.bf16.msra.mxu0 %v3862
    %4091 = vmatpush.bf16.msra.mxu0 %v3860
    %4092 = vmatpush.bf16.msra.mxu0 %v3858
    %4093 = vmatmul.bf16.gmra.mxu0 %v3557
    %v4094 = vpop.f32.mrf.mxu0
    %v4095 = vadd.f32 %v4046, %v4094
    %v4096 = vpop.f32.mrf.mxu0
    %v4097 = vadd.f32 %v4048, %v4096
    %4098 = vmatmul.bf16.gmra.mxu0 %v3561
    %v4099 = vpop.f32.mrf.mxu0
    %v4100 = vadd.f32 %v4051, %v4099
    %v4101 = vpop.f32.mrf.mxu0
    %v4102 = vadd.f32 %v4053, %v4101
    %4103 = vmatmul.bf16.gmra.mxu0 %v3565
    %v4104 = vpop.f32.mrf.mxu0
    %v4105 = vadd.f32 %v4056, %v4104
    %v4106 = vpop.f32.mrf.mxu0
    %v4107 = vadd.f32 %v4058, %v4106
    %4108 = vmatmul.bf16.gmra.mxu0 %v3569
    %v4109 = vpop.f32.mrf.mxu0
    %v4110 = vadd.f32 %v4061, %v4109
    %v4111 = vpop.f32.mrf.mxu0
    %v4112 = vadd.f32 %v4063, %v4111
    %4113 = vmatmul.bf16.gmra.mxu0 %v3573
    %v4114 = vpop.f32.mrf.mxu0
    %v4115 = vadd.f32 %v4066, %v4114
    %v4116 = vpop.f32.mrf.mxu0
    %v4117 = vadd.f32 %v4068, %v4116
    %4118 = vmatmul.bf16.gmra.mxu0 %v3577
    %v4119 = vpop.f32.mrf.mxu0
    %v4120 = vadd.f32 %v4071, %v4119
    %v4121 = vpop.f32.mrf.mxu0
    %v4122 = vadd.f32 %v4073, %v4121
    %4123 = vmatmul.bf16.gmra.mxu0 %v3581
    %v4124 = vpop.f32.mrf.mxu0
    %v4125 = vadd.f32 %v4076, %v4124
    %v4126 = vpop.f32.mrf.mxu0
    %v4127 = vadd.f32 %v4078, %v4126
    %4128 = vmatmul.bf16.gmra.mxu0 %v3585
    %v4129 = vpop.f32.mrf.mxu0
    %v4130 = vadd.f32 %v4081, %v4129
    %v4131 = vpop.f32.mrf.mxu0
    %v4132 = vadd.f32 %v4083, %v4131
    %4133 = vdwg.mxu0
    %4134 = vmatpush.bf16.msra.mxu0 %v3825
    %4135 = vmatpush.bf16.msra.mxu0 %v3823
    %4136 = vmatpush.bf16.msra.mxu0 %v3821
    %4137 = vmatpush.bf16.msra.mxu0 %v3819
    %4138 = vmatpush.bf16.msra.mxu0 %v3817
    %4139 = vmatpush.bf16.msra.mxu0 %v3815
    %4140 = vmatpush.bf16.msra.mxu0 %v3813
    %4141 = vmatpush.bf16.msra.mxu0 %v3811
    %4142 = vmatmul.bf16.gmra.mxu0 %v3554
    %v4143 = vpop.f32.mrf.mxu0
    %v4144 = vadd.f32 0.0, %v4143
    %v4145 = vpop.f32.mrf.mxu0
    %v4146 = vadd.f32 0.0, %v4145
    %4147 = vmatmul.bf16.gmra.mxu0 %v3558
    %v4148 = vpop.f32.mrf.mxu0
    %v4149 = vadd.f32 0.0, %v4148
    %v4150 = vpop.f32.mrf.mxu0
    %v4151 = vadd.f32 0.0, %v4150
    %4152 = vmatmul.bf16.gmra.mxu0 %v3562
    %v4153 = vpop.f32.mrf.mxu0
    %v4154 = vadd.f32 0.0, %v4153
    %v4155 = vpop.f32.mrf.mxu0
    %v4156 = vadd.f32 0.0, %v4155
    %4157 = vmatmul.bf16.gmra.mxu0 %v3566
    %v4158 = vpop.f32.mrf.mxu0
    %v4159 = vadd.f32 0.0, %v4158
    %v4160 = vpop.f32.mrf.mxu0
    %v4161 = vadd.f32 0.0, %v4160
    %4162 = vmatmul.bf16.gmra.mxu0 %v3570
    %v4163 = vpop.f32.mrf.mxu0
    %v4164 = vadd.f32 0.0, %v4163
    %v4165 = vpop.f32.mrf.mxu0
    %v4166 = vadd.f32 0.0, %v4165
    %4167 = vmatmul.bf16.gmra.mxu0 %v3574
    %v4168 = vpop.f32.mrf.mxu0
    %v4169 = vadd.f32 0.0, %v4168
    %v4170 = vpop.f32.mrf.mxu0
    %v4171 = vadd.f32 0.0, %v4170
    %4172 = vmatmul.bf16.gmra.mxu0 %v3578
    %v4173 = vpop.f32.mrf.mxu0
    %v4174 = vadd.f32 0.0, %v4173
    %v4175 = vpop.f32.mrf.mxu0
    %v4176 = vadd.f32 0.0, %v4175
    %4177 = vmatmul.bf16.gmra.mxu0 %v3582
    %v4178 = vpop.f32.mrf.mxu0
    %v4179 = vadd.f32 0.0, %v4178
    %v4180 = vpop.f32.mrf.mxu0
    %v4181 = vadd.f32 0.0, %v4180
    %4182 = vdwg.mxu0
    %4183 = vmatpush.bf16.msra.mxu0 %v3841
    %4184 = vmatpush.bf16.msra.mxu0 %v3839
    %4185 = vmatpush.bf16.msra.mxu0 %v3837
    %4186 = vmatpush.bf16.msra.mxu0 %v3835
    %4187 = vmatpush.bf16.msra.mxu0 %v3833
    %4188 = vmatpush.bf16.msra.mxu0 %v3831
    %4189 = vmatpush.bf16.msra.mxu0 %v3829
    %4190 = vmatpush.bf16.msra.mxu0 %v3827
    %4191 = vmatmul.bf16.gmra.mxu0 %v3555
    %v4192 = vpop.f32.mrf.mxu0
    %v4193 = vadd.f32 %v4144, %v4192
    %v4194 = vpop.f32.mrf.mxu0
    %v4195 = vadd.f32 %v4146, %v4194
    %4196 = vmatmul.bf16.gmra.mxu0 %v3559
    %v4197 = vpop.f32.mrf.mxu0
    %v4198 = vadd.f32 %v4149, %v4197
    %v4199 = vpop.f32.mrf.mxu0
    %v4200 = vadd.f32 %v4151, %v4199
    %4201 = vmatmul.bf16.gmra.mxu0 %v3563
    %v4202 = vpop.f32.mrf.mxu0
    %v4203 = vadd.f32 %v4154, %v4202
    %v4204 = vpop.f32.mrf.mxu0
    %v4205 = vadd.f32 %v4156, %v4204
    %4206 = vmatmul.bf16.gmra.mxu0 %v3567
    %v4207 = vpop.f32.mrf.mxu0
    %v4208 = vadd.f32 %v4159, %v4207
    %v4209 = vpop.f32.mrf.mxu0
    %v4210 = vadd.f32 %v4161, %v4209
    %4211 = vmatmul.bf16.gmra.mxu0 %v3571
    %v4212 = vpop.f32.mrf.mxu0
    %v4213 = vadd.f32 %v4164, %v4212
    %v4214 = vpop.f32.mrf.mxu0
    %v4215 = vadd.f32 %v4166, %v4214
    %4216 = vmatmul.bf16.gmra.mxu0 %v3575
    %v4217 = vpop.f32.mrf.mxu0
    %v4218 = vadd.f32 %v4169, %v4217
    %v4219 = vpop.f32.mrf.mxu0
    %v4220 = vadd.f32 %v4171, %v4219
    %4221 = vmatmul.bf16.gmra.mxu0 %v3579
    %v4222 = vpop.f32.mrf.mxu0
    %v4223 = vadd.f32 %v4174, %v4222
    %v4224 = vpop.f32.mrf.mxu0
    %v4225 = vadd.f32 %v4176, %v4224
    %4226 = vmatmul.bf16.gmra.mxu0 %v3583
    %v4227 = vpop.f32.mrf.mxu0
    %v4228 = vadd.f32 %v4179, %v4227
    %v4229 = vpop.f32.mrf.mxu0
    %v4230 = vadd.f32 %v4181, %v4229
    %4231 = vdwg.mxu0
    %4232 = vmatpush.bf16.msra.mxu0 %v3857
    %4233 = vmatpush.bf16.msra.mxu0 %v3855
    %4234 = vmatpush.bf16.msra.mxu0 %v3853
    %4235 = vmatpush.bf16.msra.mxu0 %v3851
    %4236 = vmatpush.bf16.msra.mxu0 %v3849
    %4237 = vmatpush.bf16.msra.mxu0 %v3847
    %4238 = vmatpush.bf16.msra.mxu0 %v3845
    %4239 = vmatpush.bf16.msra.mxu0 %v3843
    %4240 = vmatmul.bf16.gmra.mxu0 %v3556
    %v4241 = vpop.f32.mrf.mxu0
    %v4242 = vadd.f32 %v4193, %v4241
    %v4243 = vpop.f32.mrf.mxu0
    %v4244 = vadd.f32 %v4195, %v4243
    %4245 = vmatmul.bf16.gmra.mxu0 %v3560
    %v4246 = vpop.f32.mrf.mxu0
    %v4247 = vadd.f32 %v4198, %v4246
    %v4248 = vpop.f32.mrf.mxu0
    %v4249 = vadd.f32 %v4200, %v4248
    %4250 = vmatmul.bf16.gmra.mxu0 %v3564
    %v4251 = vpop.f32.mrf.mxu0
    %v4252 = vadd.f32 %v4203, %v4251
    %v4253 = vpop.f32.mrf.mxu0
    %v4254 = vadd.f32 %v4205, %v4253
    %4255 = vmatmul.bf16.gmra.mxu0 %v3568
    %v4256 = vpop.f32.mrf.mxu0
    %v4257 = vadd.f32 %v4208, %v4256
    %v4258 = vpop.f32.mrf.mxu0
    %v4259 = vadd.f32 %v4210, %v4258
    %4260 = vmatmul.bf16.gmra.mxu0 %v3572
    %v4261 = vpop.f32.mrf.mxu0
    %v4262 = vadd.f32 %v4213, %v4261
    %v4263 = vpop.f32.mrf.mxu0
    %v4264 = vadd.f32 %v4215, %v4263
    %4265 = vmatmul.bf16.gmra.mxu0 %v3576
    %v4266 = vpop.f32.mrf.mxu0
    %v4267 = vadd.f32 %v4218, %v4266
    %v4268 = vpop.f32.mrf.mxu0
    %v4269 = vadd.f32 %v4220, %v4268
    %4270 = vmatmul.bf16.gmra.mxu0 %v3580
    %v4271 = vpop.f32.mrf.mxu0
    %v4272 = vadd.f32 %v4223, %v4271
    %v4273 = vpop.f32.mrf.mxu0
    %v4274 = vadd.f32 %v4225, %v4273
    %4275 = vmatmul.bf16.gmra.mxu0 %v3584
    %v4276 = vpop.f32.mrf.mxu0
    %v4277 = vadd.f32 %v4228, %v4276
    %v4278 = vpop.f32.mrf.mxu0
    %v4279 = vadd.f32 %v4230, %v4278
    %4280 = vdwg.mxu0
    %4281 = vmatpush.bf16.msra.mxu0 %v3873
    %4282 = vmatpush.bf16.msra.mxu0 %v3871
    %4283 = vmatpush.bf16.msra.mxu0 %v3869
    %4284 = vmatpush.bf16.msra.mxu0 %v3867
    %4285 = vmatpush.bf16.msra.mxu0 %v3865
    %4286 = vmatpush.bf16.msra.mxu0 %v3863
    %4287 = vmatpush.bf16.msra.mxu0 %v3861
    %4288 = vmatpush.bf16.msra.mxu0 %v3859
    %4289 = vmatmul.bf16.gmra.mxu0 %v3557
    %v4290 = vpop.f32.mrf.mxu0
    %v4291 = vadd.f32 %v4242, %v4290
    %v4292 = vpop.f32.mrf.mxu0
    %v4293 = vadd.f32 %v4244, %v4292
    %4294 = vmatmul.bf16.gmra.mxu0 %v3561
    %v4295 = vpop.f32.mrf.mxu0
    %v4296 = vadd.f32 %v4247, %v4295
    %v4297 = vpop.f32.mrf.mxu0
    %v4298 = vadd.f32 %v4249, %v4297
    %4299 = vmatmul.bf16.gmra.mxu0 %v3565
    %v4300 = vpop.f32.mrf.mxu0
    %v4301 = vadd.f32 %v4252, %v4300
    %v4302 = vpop.f32.mrf.mxu0
    %v4303 = vadd.f32 %v4254, %v4302
    %4304 = vmatmul.bf16.gmra.mxu0 %v3569
    %v4305 = vpop.f32.mrf.mxu0
    %v4306 = vadd.f32 %v4257, %v4305
    %v4307 = vpop.f32.mrf.mxu0
    %v4308 = vadd.f32 %v4259, %v4307
    %4309 = vmatmul.bf16.gmra.mxu0 %v3573
    %v4310 = vpop.f32.mrf.mxu0
    %v4311 = vadd.f32 %v4262, %v4310
    %v4312 = vpop.f32.mrf.mxu0
    %v4313 = vadd.f32 %v4264, %v4312
    %4314 = vmatmul.bf16.gmra.mxu0 %v3577
    %v4315 = vpop.f32.mrf.mxu0
    %v4316 = vadd.f32 %v4267, %v4315
    %v4317 = vpop.f32.mrf.mxu0
    %v4318 = vadd.f32 %v4269, %v4317
    %4319 = vmatmul.bf16.gmra.mxu0 %v3581
    %v4320 = vpop.f32.mrf.mxu0
    %v4321 = vadd.f32 %v4272, %v4320
    %v4322 = vpop.f32.mrf.mxu0
    %v4323 = vadd.f32 %v4274, %v4322
    %4324 = vmatmul.bf16.gmra.mxu0 %v3585
    %v4325 = vpop.f32.mrf.mxu0
    %v4326 = vadd.f32 %v4277, %v4325
    %v4327 = vpop.f32.mrf.mxu0
    %v4328 = vadd.f32 %v4279, %v4327
    %4329 = vdwg.mxu0
    %v4362 = vunpack.c.l.b16 %v3264
    %v4363 = vunpack.c.h.b16 %v3264
    %v4364 = vunpack.c.l.b16 %v3265
    %v4365 = vunpack.c.h.b16 %v3265
    %v4366 = vunpack.c.l.b16 %v3266
    %v4367 = vunpack.c.h.b16 %v3266
    %v4368 = vunpack.c.l.b16 %v3267
    %v4369 = vunpack.c.h.b16 %v3267
    %v4370 = vunpack.c.l.b16 %v3268
    %v4371 = vunpack.c.h.b16 %v3268
    %v4372 = vunpack.c.l.b16 %v3269
    %v4373 = vunpack.c.h.b16 %v3269
    %v4374 = vunpack.c.l.b16 %v3270
    %v4375 = vunpack.c.h.b16 %v3270
    %v4376 = vunpack.c.l.b16 %v3271
    %v4377 = vunpack.c.h.b16 %v3271
    %v4378 = vunpack.c.l.b16 %v3272
    %v4379 = vunpack.c.h.b16 %v3272
    %v4380 = vunpack.c.l.b16 %v3273
    %v4381 = vunpack.c.h.b16 %v3273
    %v4382 = vunpack.c.l.b16 %v3274
    %v4383 = vunpack.c.h.b16 %v3274
    %v4384 = vunpack.c.l.b16 %v3275
    %v4385 = vunpack.c.h.b16 %v3275
    %v4386 = vunpack.c.l.b16 %v3276
    %v4387 = vunpack.c.h.b16 %v3276
    %v4388 = vunpack.c.l.b16 %v3277
    %v4389 = vunpack.c.h.b16 %v3277
    %v4390 = vunpack.c.l.b16 %v3278
    %v4391 = vunpack.c.h.b16 %v3278
    %v4392 = vunpack.c.l.b16 %v3279
    %v4393 = vunpack.c.h.b16 %v3279
    %v4394 = vunpack.c.l.b16 %v3280
    %v4395 = vunpack.c.h.b16 %v3280
    %v4396 = vunpack.c.l.b16 %v3281
    %v4397 = vunpack.c.h.b16 %v3281
    %v4398 = vunpack.c.l.b16 %v3282
    %v4399 = vunpack.c.h.b16 %v3282
    %v4400 = vunpack.c.l.b16 %v3283
    %v4401 = vunpack.c.h.b16 %v3283
    %v4402 = vunpack.c.l.b16 %v3284
    %v4403 = vunpack.c.h.b16 %v3284
    %v4404 = vunpack.c.l.b16 %v3285
    %v4405 = vunpack.c.h.b16 %v3285
    %v4406 = vunpack.c.l.b16 %v3286
    %v4407 = vunpack.c.h.b16 %v3286
    %v4408 = vunpack.c.l.b16 %v3287
    %v4409 = vunpack.c.h.b16 %v3287
    %v4410 = vunpack.c.l.b16 %v3288
    %v4411 = vunpack.c.h.b16 %v3288
    %v4412 = vunpack.c.l.b16 %v3289
    %v4413 = vunpack.c.h.b16 %v3289
    %v4414 = vunpack.c.l.b16 %v3290
    %v4415 = vunpack.c.h.b16 %v3290
    %v4416 = vunpack.c.l.b16 %v3291
    %v4417 = vunpack.c.h.b16 %v3291
    %v4418 = vunpack.c.l.b16 %v3292
    %v4419 = vunpack.c.h.b16 %v3292
    %v4420 = vunpack.c.l.b16 %v3293
    %v4421 = vunpack.c.h.b16 %v3293
    %v4422 = vunpack.c.l.b16 %v3294
    %v4423 = vunpack.c.h.b16 %v3294
    %v4424 = vunpack.c.l.b16 %v3295
    %v4425 = vunpack.c.h.b16 %v3295
    %v4426 = vpack.c.b16 %v4366, %v4362
    %v4427 = vpack.c.b16 %v4367, %v4363
    %v4428 = vpack.c.b16 %v4368, %v4364
    %v4429 = vpack.c.b16 %v4369, %v4365
    %v4430 = vpack.c.b16 %v4374, %v4370
    %v4431 = vpack.c.b16 %v4375, %v4371
    %v4432 = vpack.c.b16 %v4376, %v4372
    %v4433 = vpack.c.b16 %v4377, %v4373
    %v4434 = vpack.c.b16 %v4382, %v4378
    %v4435 = vpack.c.b16 %v4383, %v4379
    %v4436 = vpack.c.b16 %v4384, %v4380
    %v4437 = vpack.c.b16 %v4385, %v4381
    %v4438 = vpack.c.b16 %v4390, %v4386
    %v4439 = vpack.c.b16 %v4391, %v4387
    %v4440 = vpack.c.b16 %v4392, %v4388
    %v4441 = vpack.c.b16 %v4393, %v4389
    %v4442 = vpack.c.b16 %v4398, %v4394
    %v4443 = vpack.c.b16 %v4399, %v4395
    %v4444 = vpack.c.b16 %v4400, %v4396
    %v4445 = vpack.c.b16 %v4401, %v4397
    %v4446 = vpack.c.b16 %v4406, %v4402
    %v4447 = vpack.c.b16 %v4407, %v4403
    %v4448 = vpack.c.b16 %v4408, %v4404
    %v4449 = vpack.c.b16 %v4409, %v4405
    %v4450 = vpack.c.b16 %v4414, %v4410
    %v4451 = vpack.c.b16 %v4415, %v4411
    %v4452 = vpack.c.b16 %v4416, %v4412
    %v4453 = vpack.c.b16 %v4417, %v4413
    %v4454 = vpack.c.b16 %v4422, %v4418
    %v4455 = vpack.c.b16 %v4423, %v4419
    %v4456 = vpack.c.b16 %v4424, %v4420
    %v4457 = vpack.c.b16 %v4425, %v4421
    %v4554 = vunpack.c.l.b16 %v3296
    %v4555 = vunpack.c.h.b16 %v3296
    %v4556 = vunpack.c.l.b16 %v3297
    %v4557 = vunpack.c.h.b16 %v3297
    %v4558 = vunpack.c.l.b16 %v3298
    %v4559 = vunpack.c.h.b16 %v3298
    %v4560 = vunpack.c.l.b16 %v3299
    %v4561 = vunpack.c.h.b16 %v3299
    %v4562 = vunpack.c.l.b16 %v3300
    %v4563 = vunpack.c.h.b16 %v3300
    %v4564 = vunpack.c.l.b16 %v3301
    %v4565 = vunpack.c.h.b16 %v3301
    %v4566 = vunpack.c.l.b16 %v3302
    %v4567 = vunpack.c.h.b16 %v3302
    %v4568 = vunpack.c.l.b16 %v3303
    %v4569 = vunpack.c.h.b16 %v3303
    %v4570 = vunpack.c.l.b16 %v3304
    %v4571 = vunpack.c.h.b16 %v3304
    %v4572 = vunpack.c.l.b16 %v3305
    %v4573 = vunpack.c.h.b16 %v3305
    %v4574 = vunpack.c.l.b16 %v3306
    %v4575 = vunpack.c.h.b16 %v3306
    %v4576 = vunpack.c.l.b16 %v3307
    %v4577 = vunpack.c.h.b16 %v3307
    %v4578 = vunpack.c.l.b16 %v3308
    %v4579 = vunpack.c.h.b16 %v3308
    %v4580 = vunpack.c.l.b16 %v3309
    %v4581 = vunpack.c.h.b16 %v3309
    %v4582 = vunpack.c.l.b16 %v3310
    %v4583 = vunpack.c.h.b16 %v3310
    %v4584 = vunpack.c.l.b16 %v3311
    %v4585 = vunpack.c.h.b16 %v3311
    %v4586 = vunpack.c.l.b16 %v3312
    %v4587 = vunpack.c.h.b16 %v3312
    %v4588 = vunpack.c.l.b16 %v3313
    %v4589 = vunpack.c.h.b16 %v3313
    %v4590 = vunpack.c.l.b16 %v3314
    %v4591 = vunpack.c.h.b16 %v3314
    %v4592 = vunpack.c.l.b16 %v3315
    %v4593 = vunpack.c.h.b16 %v3315
    %v4594 = vunpack.c.l.b16 %v3316
    %v4595 = vunpack.c.h.b16 %v3316
    %v4596 = vunpack.c.l.b16 %v3317
    %v4597 = vunpack.c.h.b16 %v3317
    %v4598 = vunpack.c.l.b16 %v3318
    %v4599 = vunpack.c.h.b16 %v3318
    %v4600 = vunpack.c.l.b16 %v3319
    %v4601 = vunpack.c.h.b16 %v3319
    %v4602 = vunpack.c.l.b16 %v3320
    %v4603 = vunpack.c.h.b16 %v3320
    %v4604 = vunpack.c.l.b16 %v3321
    %v4605 = vunpack.c.h.b16 %v3321
    %v4606 = vunpack.c.l.b16 %v3322
    %v4607 = vunpack.c.h.b16 %v3322
    %v4608 = vunpack.c.l.b16 %v3323
    %v4609 = vunpack.c.h.b16 %v3323
    %v4610 = vunpack.c.l.b16 %v3324
    %v4611 = vunpack.c.h.b16 %v3324
    %v4612 = vunpack.c.l.b16 %v3325
    %v4613 = vunpack.c.h.b16 %v3325
    %v4614 = vunpack.c.l.b16 %v3326
    %v4615 = vunpack.c.h.b16 %v3326
    %v4616 = vunpack.c.l.b16 %v3327
    %v4617 = vunpack.c.h.b16 %v3327
    %v4618 = vunpack.c.l.b16 %v3328
    %v4619 = vunpack.c.h.b16 %v3328
    %v4620 = vunpack.c.l.b16 %v3329
    %v4621 = vunpack.c.h.b16 %v3329
    %v4622 = vunpack.c.l.b16 %v3330
    %v4623 = vunpack.c.h.b16 %v3330
    %v4624 = vunpack.c.l.b16 %v3331
    %v4625 = vunpack.c.h.b16 %v3331
    %v4626 = vunpack.c.l.b16 %v3332
    %v4627 = vunpack.c.h.b16 %v3332
    %v4628 = vunpack.c.l.b16 %v3333
    %v4629 = vunpack.c.h.b16 %v3333
    %v4630 = vunpack.c.l.b16 %v3334
    %v4631 = vunpack.c.h.b16 %v3334
    %v4632 = vunpack.c.l.b16 %v3335
    %v4633 = vunpack.c.h.b16 %v3335
    %v4634 = vunpack.c.l.b16 %v3336
    %v4635 = vunpack.c.h.b16 %v3336
    %v4636 = vunpack.c.l.b16 %v3337
    %v4637 = vunpack.c.h.b16 %v3337
    %v4638 = vunpack.c.l.b16 %v3338
    %v4639 = vunpack.c.h.b16 %v3338
    %v4640 = vunpack.c.l.b16 %v3339
    %v4641 = vunpack.c.h.b16 %v3339
    %v4642 = vunpack.c.l.b16 %v3340
    %v4643 = vunpack.c.h.b16 %v3340
    %v4644 = vunpack.c.l.b16 %v3341
    %v4645 = vunpack.c.h.b16 %v3341
    %v4646 = vunpack.c.l.b16 %v3342
    %v4647 = vunpack.c.h.b16 %v3342
    %v4648 = vunpack.c.l.b16 %v3343
    %v4649 = vunpack.c.h.b16 %v3343
    %v4650 = vunpack.c.l.b16 %v3344
    %v4651 = vunpack.c.h.b16 %v3344
    %v4652 = vunpack.c.l.b16 %v3345
    %v4653 = vunpack.c.h.b16 %v3345
    %v4654 = vunpack.c.l.b16 %v3346
    %v4655 = vunpack.c.h.b16 %v3346
    %v4656 = vunpack.c.l.b16 %v3347
    %v4657 = vunpack.c.h.b16 %v3347
    %v4658 = vunpack.c.l.b16 %v3348
    %v4659 = vunpack.c.h.b16 %v3348
    %v4660 = vunpack.c.l.b16 %v3349
    %v4661 = vunpack.c.h.b16 %v3349
    %v4662 = vunpack.c.l.b16 %v3350
    %v4663 = vunpack.c.h.b16 %v3350
    %v4664 = vunpack.c.l.b16 %v3351
    %v4665 = vunpack.c.h.b16 %v3351
    %v4666 = vunpack.c.l.b16 %v3352
    %v4667 = vunpack.c.h.b16 %v3352
    %v4668 = vunpack.c.l.b16 %v3353
    %v4669 = vunpack.c.h.b16 %v3353
    %v4670 = vunpack.c.l.b16 %v3354
    %v4671 = vunpack.c.h.b16 %v3354
    %v4672 = vunpack.c.l.b16 %v3355
    %v4673 = vunpack.c.h.b16 %v3355
    %v4674 = vunpack.c.l.b16 %v3356
    %v4675 = vunpack.c.h.b16 %v3356
    %v4676 = vunpack.c.l.b16 %v3357
    %v4677 = vunpack.c.h.b16 %v3357
    %v4678 = vunpack.c.l.b16 %v3358
    %v4679 = vunpack.c.h.b16 %v3358
    %v4680 = vunpack.c.l.b16 %v3359
    %v4681 = vunpack.c.h.b16 %v3359
    %v4682 = vpack.c.b16 %v4556, %v4554
    %v4683 = vpack.c.b16 %v4557, %v4555
    %v4684 = vpack.c.b16 %v4560, %v4558
    %v4685 = vpack.c.b16 %v4561, %v4559
    %v4686 = vpack.c.b16 %v4564, %v4562
    %v4687 = vpack.c.b16 %v4565, %v4563
    %v4688 = vpack.c.b16 %v4568, %v4566
    %v4689 = vpack.c.b16 %v4569, %v4567
    %v4690 = vpack.c.b16 %v4572, %v4570
    %v4691 = vpack.c.b16 %v4573, %v4571
    %v4692 = vpack.c.b16 %v4576, %v4574
    %v4693 = vpack.c.b16 %v4577, %v4575
    %v4694 = vpack.c.b16 %v4580, %v4578
    %v4695 = vpack.c.b16 %v4581, %v4579
    %v4696 = vpack.c.b16 %v4584, %v4582
    %v4697 = vpack.c.b16 %v4585, %v4583
    %v4698 = vpack.c.b16 %v4588, %v4586
    %v4699 = vpack.c.b16 %v4589, %v4587
    %v4700 = vpack.c.b16 %v4592, %v4590
    %v4701 = vpack.c.b16 %v4593, %v4591
    %v4702 = vpack.c.b16 %v4596, %v4594
    %v4703 = vpack.c.b16 %v4597, %v4595
    %v4704 = vpack.c.b16 %v4600, %v4598
    %v4705 = vpack.c.b16 %v4601, %v4599
    %v4706 = vpack.c.b16 %v4604, %v4602
    %v4707 = vpack.c.b16 %v4605, %v4603
    %v4708 = vpack.c.b16 %v4608, %v4606
    %v4709 = vpack.c.b16 %v4609, %v4607
    %v4710 = vpack.c.b16 %v4612, %v4610
    %v4711 = vpack.c.b16 %v4613, %v4611
    %v4712 = vpack.c.b16 %v4616, %v4614
    %v4713 = vpack.c.b16 %v4617, %v4615
    %v4714 = vpack.c.b16 %v4620, %v4618
    %v4715 = vpack.c.b16 %v4621, %v4619
    %v4716 = vpack.c.b16 %v4624, %v4622
    %v4717 = vpack.c.b16 %v4625, %v4623
    %v4718 = vpack.c.b16 %v4628, %v4626
    %v4719 = vpack.c.b16 %v4629, %v4627
    %v4720 = vpack.c.b16 %v4632, %v4630
    %v4721 = vpack.c.b16 %v4633, %v4631
    %v4722 = vpack.c.b16 %v4636, %v4634
    %v4723 = vpack.c.b16 %v4637, %v4635
    %v4724 = vpack.c.b16 %v4640, %v4638
    %v4725 = vpack.c.b16 %v4641, %v4639
    %v4726 = vpack.c.b16 %v4644, %v4642
    %v4727 = vpack.c.b16 %v4645, %v4643
    %v4728 = vpack.c.b16 %v4648, %v4646
    %v4729 = vpack.c.b16 %v4649, %v4647
    %v4730 = vpack.c.b16 %v4652, %v4650
    %v4731 = vpack.c.b16 %v4653, %v4651
    %v4732 = vpack.c.b16 %v4656, %v4654
    %v4733 = vpack.c.b16 %v4657, %v4655
    %v4734 = vpack.c.b16 %v4660, %v4658
    %v4735 = vpack.c.b16 %v4661, %v4659
    %v4736 = vpack.c.b16 %v4664, %v4662
    %v4737 = vpack.c.b16 %v4665, %v4663
    %v4738 = vpack.c.b16 %v4668, %v4666
    %v4739 = vpack.c.b16 %v4669, %v4667
    %v4740 = vpack.c.b16 %v4672, %v4670
    %v4741 = vpack.c.b16 %v4673, %v4671
    %v4742 = vpack.c.b16 %v4676, %v4674
    %v4743 = vpack.c.b16 %v4677, %v4675
    %v4744 = vpack.c.b16 %v4680, %v4678
    %v4745 = vpack.c.b16 %v4681, %v4679
    %4810 = vmatpush.bf16.msra.mxu0 %v4696
    %4811 = vmatpush.bf16.msra.mxu0 %v4694
    %4812 = vmatpush.bf16.msra.mxu0 %v4692
    %4813 = vmatpush.bf16.msra.mxu0 %v4690
    %4814 = vmatpush.bf16.msra.mxu0 %v4688
    %4815 = vmatpush.bf16.msra.mxu0 %v4686
    %4816 = vmatpush.bf16.msra.mxu0 %v4684
    %4817 = vmatpush.bf16.msra.mxu0 %v4682
    %4818 = vmatmul.bf16.gmra.mxu0 %v4426
    %v4819 = vpop.f32.mrf.mxu0
    %v4820 = vadd.f32 %v4095, %v4819
    %v4821 = vpop.f32.mrf.mxu0
    %v4822 = vadd.f32 %v4097, %v4821
    %4823 = vmatmul.bf16.gmra.mxu0 %v4430
    %v4824 = vpop.f32.mrf.mxu0
    %v4825 = vadd.f32 %v4100, %v4824
    %v4826 = vpop.f32.mrf.mxu0
    %v4827 = vadd.f32 %v4102, %v4826
    %4828 = vmatmul.bf16.gmra.mxu0 %v4434
    %v4829 = vpop.f32.mrf.mxu0
    %v4830 = vadd.f32 %v4105, %v4829
    %v4831 = vpop.f32.mrf.mxu0
    %v4832 = vadd.f32 %v4107, %v4831
    %4833 = vmatmul.bf16.gmra.mxu0 %v4438
    %v4834 = vpop.f32.mrf.mxu0
    %v4835 = vadd.f32 %v4110, %v4834
    %v4836 = vpop.f32.mrf.mxu0
    %v4837 = vadd.f32 %v4112, %v4836
    %4838 = vmatmul.bf16.gmra.mxu0 %v4442
    %v4839 = vpop.f32.mrf.mxu0
    %v4840 = vadd.f32 %v4115, %v4839
    %v4841 = vpop.f32.mrf.mxu0
    %v4842 = vadd.f32 %v4117, %v4841
    %4843 = vmatmul.bf16.gmra.mxu0 %v4446
    %v4844 = vpop.f32.mrf.mxu0
    %v4845 = vadd.f32 %v4120, %v4844
    %v4846 = vpop.f32.mrf.mxu0
    %v4847 = vadd.f32 %v4122, %v4846
    %4848 = vmatmul.bf16.gmra.mxu0 %v4450
    %v4849 = vpop.f32.mrf.mxu0
    %v4850 = vadd.f32 %v4125, %v4849
    %v4851 = vpop.f32.mrf.mxu0
    %v4852 = vadd.f32 %v4127, %v4851
    %4853 = vmatmul.bf16.gmra.mxu0 %v4454
    %v4854 = vpop.f32.mrf.mxu0
    %v4855 = vadd.f32 %v4130, %v4854
    %v4856 = vpop.f32.mrf.mxu0
    %v4857 = vadd.f32 %v4132, %v4856
    %4858 = vdwg.mxu0
    %4859 = vmatpush.bf16.msra.mxu0 %v4712
    %4860 = vmatpush.bf16.msra.mxu0 %v4710
    %4861 = vmatpush.bf16.msra.mxu0 %v4708
    %4862 = vmatpush.bf16.msra.mxu0 %v4706
    %4863 = vmatpush.bf16.msra.mxu0 %v4704
    %4864 = vmatpush.bf16.msra.mxu0 %v4702
    %4865 = vmatpush.bf16.msra.mxu0 %v4700
    %4866 = vmatpush.bf16.msra.mxu0 %v4698
    %4867 = vmatmul.bf16.gmra.mxu0 %v4427
    %v4868 = vpop.f32.mrf.mxu0
    %v4869 = vadd.f32 %v4820, %v4868
    %v4870 = vpop.f32.mrf.mxu0
    %v4871 = vadd.f32 %v4822, %v4870
    %4872 = vmatmul.bf16.gmra.mxu0 %v4431
    %v4873 = vpop.f32.mrf.mxu0
    %v4874 = vadd.f32 %v4825, %v4873
    %v4875 = vpop.f32.mrf.mxu0
    %v4876 = vadd.f32 %v4827, %v4875
    %4877 = vmatmul.bf16.gmra.mxu0 %v4435
    %v4878 = vpop.f32.mrf.mxu0
    %v4879 = vadd.f32 %v4830, %v4878
    %v4880 = vpop.f32.mrf.mxu0
    %v4881 = vadd.f32 %v4832, %v4880
    %4882 = vmatmul.bf16.gmra.mxu0 %v4439
    %v4883 = vpop.f32.mrf.mxu0
    %v4884 = vadd.f32 %v4835, %v4883
    %v4885 = vpop.f32.mrf.mxu0
    %v4886 = vadd.f32 %v4837, %v4885
    %4887 = vmatmul.bf16.gmra.mxu0 %v4443
    %v4888 = vpop.f32.mrf.mxu0
    %v4889 = vadd.f32 %v4840, %v4888
    %v4890 = vpop.f32.mrf.mxu0
    %v4891 = vadd.f32 %v4842, %v4890
    %4892 = vmatmul.bf16.gmra.mxu0 %v4447
    %v4893 = vpop.f32.mrf.mxu0
    %v4894 = vadd.f32 %v4845, %v4893
    %v4895 = vpop.f32.mrf.mxu0
    %v4896 = vadd.f32 %v4847, %v4895
    %4897 = vmatmul.bf16.gmra.mxu0 %v4451
    %v4898 = vpop.f32.mrf.mxu0
    %v4899 = vadd.f32 %v4850, %v4898
    %v4900 = vpop.f32.mrf.mxu0
    %v4901 = vadd.f32 %v4852, %v4900
    %4902 = vmatmul.bf16.gmra.mxu0 %v4455
    %v4903 = vpop.f32.mrf.mxu0
    %v4904 = vadd.f32 %v4855, %v4903
    %v4905 = vpop.f32.mrf.mxu0
    %v4906 = vadd.f32 %v4857, %v4905
    %4907 = vdwg.mxu0
    %4908 = vmatpush.bf16.msra.mxu0 %v4728
    %4909 = vmatpush.bf16.msra.mxu0 %v4726
    %4910 = vmatpush.bf16.msra.mxu0 %v4724
    %4911 = vmatpush.bf16.msra.mxu0 %v4722
    %4912 = vmatpush.bf16.msra.mxu0 %v4720
    %4913 = vmatpush.bf16.msra.mxu0 %v4718
    %4914 = vmatpush.bf16.msra.mxu0 %v4716
    %4915 = vmatpush.bf16.msra.mxu0 %v4714
    %4916 = vmatmul.bf16.gmra.mxu0 %v4428
    %v4917 = vpop.f32.mrf.mxu0
    %v4918 = vadd.f32 %v4869, %v4917
    %v4919 = vpop.f32.mrf.mxu0
    %v4920 = vadd.f32 %v4871, %v4919
    %4921 = vmatmul.bf16.gmra.mxu0 %v4432
    %v4922 = vpop.f32.mrf.mxu0
    %v4923 = vadd.f32 %v4874, %v4922
    %v4924 = vpop.f32.mrf.mxu0
    %v4925 = vadd.f32 %v4876, %v4924
    %4926 = vmatmul.bf16.gmra.mxu0 %v4436
    %v4927 = vpop.f32.mrf.mxu0
    %v4928 = vadd.f32 %v4879, %v4927
    %v4929 = vpop.f32.mrf.mxu0
    %v4930 = vadd.f32 %v4881, %v4929
    %4931 = vmatmul.bf16.gmra.mxu0 %v4440
    %v4932 = vpop.f32.mrf.mxu0
    %v4933 = vadd.f32 %v4884, %v4932
    %v4934 = vpop.f32.mrf.mxu0
    %v4935 = vadd.f32 %v4886, %v4934
    %4936 = vmatmul.bf16.gmra.mxu0 %v4444
    %v4937 = vpop.f32.mrf.mxu0
    %v4938 = vadd.f32 %v4889, %v4937
    %v4939 = vpop.f32.mrf.mxu0
    %v4940 = vadd.f32 %v4891, %v4939
    %4941 = vmatmul.bf16.gmra.mxu0 %v4448
    %v4942 = vpop.f32.mrf.mxu0
    %v4943 = vadd.f32 %v4894, %v4942
    %v4944 = vpop.f32.mrf.mxu0
    %v4945 = vadd.f32 %v4896, %v4944
    %4946 = vmatmul.bf16.gmra.mxu0 %v4452
    %v4947 = vpop.f32.mrf.mxu0
    %v4948 = vadd.f32 %v4899, %v4947
    %v4949 = vpop.f32.mrf.mxu0
    %v4950 = vadd.f32 %v4901, %v4949
    %4951 = vmatmul.bf16.gmra.mxu0 %v4456
    %v4952 = vpop.f32.mrf.mxu0
    %v4953 = vadd.f32 %v4904, %v4952
    %v4954 = vpop.f32.mrf.mxu0
    %v4955 = vadd.f32 %v4906, %v4954
    %4956 = vdwg.mxu0
    %4957 = vmatpush.bf16.msra.mxu0 %v4744
    %4958 = vmatpush.bf16.msra.mxu0 %v4742
    %4959 = vmatpush.bf16.msra.mxu0 %v4740
    %4960 = vmatpush.bf16.msra.mxu0 %v4738
    %4961 = vmatpush.bf16.msra.mxu0 %v4736
    %4962 = vmatpush.bf16.msra.mxu0 %v4734
    %4963 = vmatpush.bf16.msra.mxu0 %v4732
    %4964 = vmatpush.bf16.msra.mxu0 %v4730
    %4965 = vmatmul.bf16.gmra.mxu0 %v4429
    %v4966 = vpop.f32.mrf.mxu0
    %v4967 = vadd.f32 %v4918, %v4966
    %v4968 = vpop.f32.mrf.mxu0
    %v4969 = vadd.f32 %v4920, %v4968
    %4970 = vmatmul.bf16.gmra.mxu0 %v4433
    %v4971 = vpop.f32.mrf.mxu0
    %v4972 = vadd.f32 %v4923, %v4971
    %v4973 = vpop.f32.mrf.mxu0
    %v4974 = vadd.f32 %v4925, %v4973
    %4975 = vmatmul.bf16.gmra.mxu0 %v4437
    %v4976 = vpop.f32.mrf.mxu0
    %v4977 = vadd.f32 %v4928, %v4976
    %v4978 = vpop.f32.mrf.mxu0
    %v4979 = vadd.f32 %v4930, %v4978
    %4980 = vmatmul.bf16.gmra.mxu0 %v4441
    %v4981 = vpop.f32.mrf.mxu0
    %v4982 = vadd.f32 %v4933, %v4981
    %v4983 = vpop.f32.mrf.mxu0
    %v4984 = vadd.f32 %v4935, %v4983
    %4985 = vmatmul.bf16.gmra.mxu0 %v4445
    %v4986 = vpop.f32.mrf.mxu0
    %v4987 = vadd.f32 %v4938, %v4986
    %v4988 = vpop.f32.mrf.mxu0
    %v4989 = vadd.f32 %v4940, %v4988
    %4990 = vmatmul.bf16.gmra.mxu0 %v4449
    %v4991 = vpop.f32.mrf.mxu0
    %v4992 = vadd.f32 %v4943, %v4991
    %v4993 = vpop.f32.mrf.mxu0
    %v4994 = vadd.f32 %v4945, %v4993
    %4995 = vmatmul.bf16.gmra.mxu0 %v4453
    %v4996 = vpop.f32.mrf.mxu0
    %v4997 = vadd.f32 %v4948, %v4996
    %v4998 = vpop.f32.mrf.mxu0
    %v4999 = vadd.f32 %v4950, %v4998
    %5000 = vmatmul.bf16.gmra.mxu0 %v4457
    %v5001 = vpop.f32.mrf.mxu0
    %v5002 = vadd.f32 %v4953, %v5001
    %v5003 = vpop.f32.mrf.mxu0
    %v5004 = vadd.f32 %v4955, %v5003
    %5005 = vdwg.mxu0
    %5006 = vmatpush.bf16.msra.mxu0 %v4697
    %5007 = vmatpush.bf16.msra.mxu0 %v4695
    %5008 = vmatpush.bf16.msra.mxu0 %v4693
    %5009 = vmatpush.bf16.msra.mxu0 %v4691
    %5010 = vmatpush.bf16.msra.mxu0 %v4689
    %5011 = vmatpush.bf16.msra.mxu0 %v4687
    %5012 = vmatpush.bf16.msra.mxu0 %v4685
    %5013 = vmatpush.bf16.msra.mxu0 %v4683
    %5014 = vmatmul.bf16.gmra.mxu0 %v4426
    %v5015 = vpop.f32.mrf.mxu0
    %v5016 = vadd.f32 %v4291, %v5015
    %v5017 = vpop.f32.mrf.mxu0
    %v5018 = vadd.f32 %v4293, %v5017
    %5019 = vmatmul.bf16.gmra.mxu0 %v4430
    %v5020 = vpop.f32.mrf.mxu0
    %v5021 = vadd.f32 %v4296, %v5020
    %v5022 = vpop.f32.mrf.mxu0
    %v5023 = vadd.f32 %v4298, %v5022
    %5024 = vmatmul.bf16.gmra.mxu0 %v4434
    %v5025 = vpop.f32.mrf.mxu0
    %v5026 = vadd.f32 %v4301, %v5025
    %v5027 = vpop.f32.mrf.mxu0
    %v5028 = vadd.f32 %v4303, %v5027
    %5029 = vmatmul.bf16.gmra.mxu0 %v4438
    %v5030 = vpop.f32.mrf.mxu0
    %v5031 = vadd.f32 %v4306, %v5030
    %v5032 = vpop.f32.mrf.mxu0
    %v5033 = vadd.f32 %v4308, %v5032
    %5034 = vmatmul.bf16.gmra.mxu0 %v4442
    %v5035 = vpop.f32.mrf.mxu0
    %v5036 = vadd.f32 %v4311, %v5035
    %v5037 = vpop.f32.mrf.mxu0
    %v5038 = vadd.f32 %v4313, %v5037
    %5039 = vmatmul.bf16.gmra.mxu0 %v4446
    %v5040 = vpop.f32.mrf.mxu0
    %v5041 = vadd.f32 %v4316, %v5040
    %v5042 = vpop.f32.mrf.mxu0
    %v5043 = vadd.f32 %v4318, %v5042
    %5044 = vmatmul.bf16.gmra.mxu0 %v4450
    %v5045 = vpop.f32.mrf.mxu0
    %v5046 = vadd.f32 %v4321, %v5045
    %v5047 = vpop.f32.mrf.mxu0
    %v5048 = vadd.f32 %v4323, %v5047
    %5049 = vmatmul.bf16.gmra.mxu0 %v4454
    %v5050 = vpop.f32.mrf.mxu0
    %v5051 = vadd.f32 %v4326, %v5050
    %v5052 = vpop.f32.mrf.mxu0
    %v5053 = vadd.f32 %v4328, %v5052
    %5054 = vdwg.mxu0
    %5055 = vmatpush.bf16.msra.mxu0 %v4713
    %5056 = vmatpush.bf16.msra.mxu0 %v4711
    %5057 = vmatpush.bf16.msra.mxu0 %v4709
    %5058 = vmatpush.bf16.msra.mxu0 %v4707
    %5059 = vmatpush.bf16.msra.mxu0 %v4705
    %5060 = vmatpush.bf16.msra.mxu0 %v4703
    %5061 = vmatpush.bf16.msra.mxu0 %v4701
    %5062 = vmatpush.bf16.msra.mxu0 %v4699
    %5063 = vmatmul.bf16.gmra.mxu0 %v4427
    %v5064 = vpop.f32.mrf.mxu0
    %v5065 = vadd.f32 %v5016, %v5064
    %v5066 = vpop.f32.mrf.mxu0
    %v5067 = vadd.f32 %v5018, %v5066
    %5068 = vmatmul.bf16.gmra.mxu0 %v4431
    %v5069 = vpop.f32.mrf.mxu0
    %v5070 = vadd.f32 %v5021, %v5069
    %v5071 = vpop.f32.mrf.mxu0
    %v5072 = vadd.f32 %v5023, %v5071
    %5073 = vmatmul.bf16.gmra.mxu0 %v4435
    %v5074 = vpop.f32.mrf.mxu0
    %v5075 = vadd.f32 %v5026, %v5074
    %v5076 = vpop.f32.mrf.mxu0
    %v5077 = vadd.f32 %v5028, %v5076
    %5078 = vmatmul.bf16.gmra.mxu0 %v4439
    %v5079 = vpop.f32.mrf.mxu0
    %v5080 = vadd.f32 %v5031, %v5079
    %v5081 = vpop.f32.mrf.mxu0
    %v5082 = vadd.f32 %v5033, %v5081
    %5083 = vmatmul.bf16.gmra.mxu0 %v4443
    %v5084 = vpop.f32.mrf.mxu0
    %v5085 = vadd.f32 %v5036, %v5084
    %v5086 = vpop.f32.mrf.mxu0
    %v5087 = vadd.f32 %v5038, %v5086
    %5088 = vmatmul.bf16.gmra.mxu0 %v4447
    %v5089 = vpop.f32.mrf.mxu0
    %v5090 = vadd.f32 %v5041, %v5089
    %v5091 = vpop.f32.mrf.mxu0
    %v5092 = vadd.f32 %v5043, %v5091
    %5093 = vmatmul.bf16.gmra.mxu0 %v4451
    %v5094 = vpop.f32.mrf.mxu0
    %v5095 = vadd.f32 %v5046, %v5094
    %v5096 = vpop.f32.mrf.mxu0
    %v5097 = vadd.f32 %v5048, %v5096
    %5098 = vmatmul.bf16.gmra.mxu0 %v4455
    %v5099 = vpop.f32.mrf.mxu0
    %v5100 = vadd.f32 %v5051, %v5099
    %v5101 = vpop.f32.mrf.mxu0
    %v5102 = vadd.f32 %v5053, %v5101
    %5103 = vdwg.mxu0
    %5104 = vmatpush.bf16.msra.mxu0 %v4729
    %5105 = vmatpush.bf16.msra.mxu0 %v4727
    %5106 = vmatpush.bf16.msra.mxu0 %v4725
    %5107 = vmatpush.bf16.msra.mxu0 %v4723
    %5108 = vmatpush.bf16.msra.mxu0 %v4721
    %5109 = vmatpush.bf16.msra.mxu0 %v4719
    %5110 = vmatpush.bf16.msra.mxu0 %v4717
    %5111 = vmatpush.bf16.msra.mxu0 %v4715
    %5112 = vmatmul.bf16.gmra.mxu0 %v4428
    %v5113 = vpop.f32.mrf.mxu0
    %v5114 = vadd.f32 %v5065, %v5113
    %v5115 = vpop.f32.mrf.mxu0
    %v5116 = vadd.f32 %v5067, %v5115
    %5117 = vmatmul.bf16.gmra.mxu0 %v4432
    %v5118 = vpop.f32.mrf.mxu0
    %v5119 = vadd.f32 %v5070, %v5118
    %v5120 = vpop.f32.mrf.mxu0
    %v5121 = vadd.f32 %v5072, %v5120
    %5122 = vmatmul.bf16.gmra.mxu0 %v4436
    %v5123 = vpop.f32.mrf.mxu0
    %v5124 = vadd.f32 %v5075, %v5123
    %v5125 = vpop.f32.mrf.mxu0
    %v5126 = vadd.f32 %v5077, %v5125
    %5127 = vmatmul.bf16.gmra.mxu0 %v4440
    %v5128 = vpop.f32.mrf.mxu0
    %v5129 = vadd.f32 %v5080, %v5128
    %v5130 = vpop.f32.mrf.mxu0
    %v5131 = vadd.f32 %v5082, %v5130
    %5132 = vmatmul.bf16.gmra.mxu0 %v4444
    %v5133 = vpop.f32.mrf.mxu0
    %v5134 = vadd.f32 %v5085, %v5133
    %v5135 = vpop.f32.mrf.mxu0
    %v5136 = vadd.f32 %v5087, %v5135
    %5137 = vmatmul.bf16.gmra.mxu0 %v4448
    %v5138 = vpop.f32.mrf.mxu0
    %v5139 = vadd.f32 %v5090, %v5138
    %v5140 = vpop.f32.mrf.mxu0
    %v5141 = vadd.f32 %v5092, %v5140
    %5142 = vmatmul.bf16.gmra.mxu0 %v4452
    %v5143 = vpop.f32.mrf.mxu0
    %v5144 = vadd.f32 %v5095, %v5143
    %v5145 = vpop.f32.mrf.mxu0
    %v5146 = vadd.f32 %v5097, %v5145
    %5147 = vmatmul.bf16.gmra.mxu0 %v4456
    %v5148 = vpop.f32.mrf.mxu0
    %v5149 = vadd.f32 %v5100, %v5148
    %v5150 = vpop.f32.mrf.mxu0
    %v5151 = vadd.f32 %v5102, %v5150
    %5152 = vdwg.mxu0
    %5153 = vmatpush.bf16.msra.mxu0 %v4745
    %5154 = vmatpush.bf16.msra.mxu0 %v4743
    %5155 = vmatpush.bf16.msra.mxu0 %v4741
    %5156 = vmatpush.bf16.msra.mxu0 %v4739
    %5157 = vmatpush.bf16.msra.mxu0 %v4737
    %5158 = vmatpush.bf16.msra.mxu0 %v4735
    %5159 = vmatpush.bf16.msra.mxu0 %v4733
    %5160 = vmatpush.bf16.msra.mxu0 %v4731
    %5161 = vmatmul.bf16.gmra.mxu0 %v4429
    %v5162 = vpop.f32.mrf.mxu0
    %v5163 = vadd.f32 %v5114, %v5162
    %v5164 = vpop.f32.mrf.mxu0
    %v5165 = vadd.f32 %v5116, %v5164
    %5166 = vmatmul.bf16.gmra.mxu0 %v4433
    %v5167 = vpop.f32.mrf.mxu0
    %v5168 = vadd.f32 %v5119, %v5167
    %v5169 = vpop.f32.mrf.mxu0
    %v5170 = vadd.f32 %v5121, %v5169
    %5171 = vmatmul.bf16.gmra.mxu0 %v4437
    %v5172 = vpop.f32.mrf.mxu0
    %v5173 = vadd.f32 %v5124, %v5172
    %v5174 = vpop.f32.mrf.mxu0
    %v5175 = vadd.f32 %v5126, %v5174
    %5176 = vmatmul.bf16.gmra.mxu0 %v4441
    %v5177 = vpop.f32.mrf.mxu0
    %v5178 = vadd.f32 %v5129, %v5177
    %v5179 = vpop.f32.mrf.mxu0
    %v5180 = vadd.f32 %v5131, %v5179
    %5181 = vmatmul.bf16.gmra.mxu0 %v4445
    %v5182 = vpop.f32.mrf.mxu0
    %v5183 = vadd.f32 %v5134, %v5182
    %v5184 = vpop.f32.mrf.mxu0
    %v5185 = vadd.f32 %v5136, %v5184
    %5186 = vmatmul.bf16.gmra.mxu0 %v4449
    %v5187 = vpop.f32.mrf.mxu0
    %v5188 = vadd.f32 %v5139, %v5187
    %v5189 = vpop.f32.mrf.mxu0
    %v5190 = vadd.f32 %v5141, %v5189
    %5191 = vmatmul.bf16.gmra.mxu0 %v4453
    %v5192 = vpop.f32.mrf.mxu0
    %v5193 = vadd.f32 %v5144, %v5192
    %v5194 = vpop.f32.mrf.mxu0
    %v5195 = vadd.f32 %v5146, %v5194
    %5196 = vmatmul.bf16.gmra.mxu0 %v4457
    %v5197 = vpop.f32.mrf.mxu0
    %v5198 = vadd.f32 %v5149, %v5197
    %v5199 = vpop.f32.mrf.mxu0
    %v5200 = vadd.f32 %v5151, %v5199
    %5201 = vdwg.mxu0
    %v5202 = vld [vmem:[%s3231] sm:$0xff]
    %v5203 = vld [vmem:[%s3231 + $0x8] sm:$0xff]
    %v5204 = vld [vmem:[%s3231 + $0x10] sm:$0xff]
    %v5205 = vld [vmem:[%s3231 + $0x18] sm:$0xff]
    %v5206 = vld [vmem:[%s3231 + $0x20] sm:$0xff]
    %v5207 = vld [vmem:[%s3231 + $0x28] sm:$0xff]
    %v5208 = vld [vmem:[%s3231 + $0x30] sm:$0xff]
    %v5209 = vld [vmem:[%s3231 + $0x38] sm:$0xff]
    %v5210 = vld [vmem:[%s3231 + $0x40] sm:$0xff]
    %v5211 = vld [vmem:[%s3231 + $0x48] sm:$0xff]
    %v5212 = vld [vmem:[%s3231 + $0x50] sm:$0xff]
    %v5213 = vld [vmem:[%s3231 + $0x58] sm:$0xff]
    %v5214 = vld [vmem:[%s3231 + $0x60] sm:$0xff]
    %v5215 = vld [vmem:[%s3231 + $0x68] sm:$0xff]
    %v5216 = vld [vmem:[%s3231 + $0x70] sm:$0xff]
    %v5217 = vld [vmem:[%s3231 + $0x78] sm:$0xff]
    %v5218 = vld [vmem:[%s3231 + $0x80] sm:$0xff]
    %v5219 = vld [vmem:[%s3231 + $0x88] sm:$0xff]
    %v5220 = vld [vmem:[%s3231 + $0x90] sm:$0xff]
    %v5221 = vld [vmem:[%s3231 + $0x98] sm:$0xff]
    %v5222 = vld [vmem:[%s3231 + $0xa0] sm:$0xff]
    %v5223 = vld [vmem:[%s3231 + $0xa8] sm:$0xff]
    %v5224 = vld [vmem:[%s3231 + $0xb0] sm:$0xff]
    %v5225 = vld [vmem:[%s3231 + $0xb8] sm:$0xff]
    %v5226 = vld [vmem:[%s3231 + $0xc0] sm:$0xff]
    %v5227 = vld [vmem:[%s3231 + $0xc8] sm:$0xff]
    %v5228 = vld [vmem:[%s3231 + $0xd0] sm:$0xff]
    %v5229 = vld [vmem:[%s3231 + $0xd8] sm:$0xff]
    %v5230 = vld [vmem:[%s3231 + $0xe0] sm:$0xff]
    %v5231 = vld [vmem:[%s3231 + $0xe8] sm:$0xff]
    %v5232 = vld [vmem:[%s3231 + $0xf0] sm:$0xff]
    %v5233 = vld [vmem:[%s3231 + $0xf8] sm:$0xff]
    %s5234 = scalar_lea.vmem [#allocation13], 1024
    %v5235 = vld [vmem:[%s5234] sm:$0xff]
    %v5236 = vld [vmem:[%s5234 + $0x8] sm:$0xff]
    %v5237 = vld [vmem:[%s5234 + $0x10] sm:$0xff]
    %v5238 = vld [vmem:[%s5234 + $0x18] sm:$0xff]
    %v5239 = vld [vmem:[%s5234 + $0x20] sm:$0xff]
    %v5240 = vld [vmem:[%s5234 + $0x28] sm:$0xff]
    %v5241 = vld [vmem:[%s5234 + $0x30] sm:$0xff]
    %v5242 = vld [vmem:[%s5234 + $0x38] sm:$0xff]
    %v5243 = vld [vmem:[%s5234 + $0x40] sm:$0xff]
    %v5244 = vld [vmem:[%s5234 + $0x48] sm:$0xff]
    %v5245 = vld [vmem:[%s5234 + $0x50] sm:$0xff]
    %v5246 = vld [vmem:[%s5234 + $0x58] sm:$0xff]
    %v5247 = vld [vmem:[%s5234 + $0x60] sm:$0xff]
    %v5248 = vld [vmem:[%s5234 + $0x68] sm:$0xff]
    %v5249 = vld [vmem:[%s5234 + $0x70] sm:$0xff]
    %v5250 = vld [vmem:[%s5234 + $0x78] sm:$0xff]
    %v5251 = vld [vmem:[%s5234 + $0x80] sm:$0xff]
    %v5252 = vld [vmem:[%s5234 + $0x88] sm:$0xff]
    %v5253 = vld [vmem:[%s5234 + $0x90] sm:$0xff]
    %v5254 = vld [vmem:[%s5234 + $0x98] sm:$0xff]
    %v5255 = vld [vmem:[%s5234 + $0xa0] sm:$0xff]
    %v5256 = vld [vmem:[%s5234 + $0xa8] sm:$0xff]
    %v5257 = vld [vmem:[%s5234 + $0xb0] sm:$0xff]
    %v5258 = vld [vmem:[%s5234 + $0xb8] sm:$0xff]
    %v5259 = vld [vmem:[%s5234 + $0xc0] sm:$0xff]
    %v5260 = vld [vmem:[%s5234 + $0xc8] sm:$0xff]
    %v5261 = vld [vmem:[%s5234 + $0xd0] sm:$0xff]
    %v5262 = vld [vmem:[%s5234 + $0xd8] sm:$0xff]
    %v5263 = vld [vmem:[%s5234 + $0xe0] sm:$0xff]
    %v5264 = vld [vmem:[%s5234 + $0xe8] sm:$0xff]
    %v5265 = vld [vmem:[%s5234 + $0xf0] sm:$0xff]
    %v5266 = vld [vmem:[%s5234 + $0xf8] sm:$0xff]
    %v5267 = vld [vmem:[%s5234 + $0x100] sm:$0xff]
    %v5268 = vld [vmem:[%s5234 + $0x108] sm:$0xff]
    %v5269 = vld [vmem:[%s5234 + $0x110] sm:$0xff]
    %v5270 = vld [vmem:[%s5234 + $0x118] sm:$0xff]
    %v5271 = vld [vmem:[%s5234 + $0x120] sm:$0xff]
    %v5272 = vld [vmem:[%s5234 + $0x128] sm:$0xff]
    %v5273 = vld [vmem:[%s5234 + $0x130] sm:$0xff]
    %v5274 = vld [vmem:[%s5234 + $0x138] sm:$0xff]
    %v5275 = vld [vmem:[%s5234 + $0x140] sm:$0xff]
    %v5276 = vld [vmem:[%s5234 + $0x148] sm:$0xff]
    %v5277 = vld [vmem:[%s5234 + $0x150] sm:$0xff]
    %v5278 = vld [vmem:[%s5234 + $0x158] sm:$0xff]
    %v5279 = vld [vmem:[%s5234 + $0x160] sm:$0xff]
    %v5280 = vld [vmem:[%s5234 + $0x168] sm:$0xff]
    %v5281 = vld [vmem:[%s5234 + $0x170] sm:$0xff]
    %v5282 = vld [vmem:[%s5234 + $0x178] sm:$0xff]
    %v5283 = vld [vmem:[%s5234 + $0x180] sm:$0xff]
    %v5284 = vld [vmem:[%s5234 + $0x188] sm:$0xff]
    %v5285 = vld [vmem:[%s5234 + $0x190] sm:$0xff]
    %v5286 = vld [vmem:[%s5234 + $0x198] sm:$0xff]
    %v5287 = vld [vmem:[%s5234 + $0x1a0] sm:$0xff]
    %v5288 = vld [vmem:[%s5234 + $0x1a8] sm:$0xff]
    %v5289 = vld [vmem:[%s5234 + $0x1b0] sm:$0xff]
    %v5290 = vld [vmem:[%s5234 + $0x1b8] sm:$0xff]
    %v5291 = vld [vmem:[%s5234 + $0x1c0] sm:$0xff]
    %v5292 = vld [vmem:[%s5234 + $0x1c8] sm:$0xff]
    %v5293 = vld [vmem:[%s5234 + $0x1d0] sm:$0xff]
    %v5294 = vld [vmem:[%s5234 + $0x1d8] sm:$0xff]
    %v5295 = vld [vmem:[%s5234 + $0x1e0] sm:$0xff]
    %v5296 = vld [vmem:[%s5234 + $0x1e8] sm:$0xff]
    %v5297 = vld [vmem:[%s5234 + $0x1f0] sm:$0xff]
    %v5298 = vld [vmem:[%s5234 + $0x1f8] sm:$0xff]
    %v5331 = vunpack.c.l.b16 %v5202
    %v5332 = vunpack.c.h.b16 %v5202
    %v5333 = vunpack.c.l.b16 %v5203
    %v5334 = vunpack.c.h.b16 %v5203
    %v5335 = vunpack.c.l.b16 %v5204
    %v5336 = vunpack.c.h.b16 %v5204
    %v5337 = vunpack.c.l.b16 %v5205
    %v5338 = vunpack.c.h.b16 %v5205
    %v5339 = vunpack.c.l.b16 %v5206
    %v5340 = vunpack.c.h.b16 %v5206
    %v5341 = vunpack.c.l.b16 %v5207
    %v5342 = vunpack.c.h.b16 %v5207
    %v5343 = vunpack.c.l.b16 %v5208
    %v5344 = vunpack.c.h.b16 %v5208
    %v5345 = vunpack.c.l.b16 %v5209
    %v5346 = vunpack.c.h.b16 %v5209
    %v5347 = vunpack.c.l.b16 %v5210
    %v5348 = vunpack.c.h.b16 %v5210
    %v5349 = vunpack.c.l.b16 %v5211
    %v5350 = vunpack.c.h.b16 %v5211
    %v5351 = vunpack.c.l.b16 %v5212
    %v5352 = vunpack.c.h.b16 %v5212
    %v5353 = vunpack.c.l.b16 %v5213
    %v5354 = vunpack.c.h.b16 %v5213
    %v5355 = vunpack.c.l.b16 %v5214
    %v5356 = vunpack.c.h.b16 %v5214
    %v5357 = vunpack.c.l.b16 %v5215
    %v5358 = vunpack.c.h.b16 %v5215
    %v5359 = vunpack.c.l.b16 %v5216
    %v5360 = vunpack.c.h.b16 %v5216
    %v5361 = vunpack.c.l.b16 %v5217
    %v5362 = vunpack.c.h.b16 %v5217
    %v5363 = vunpack.c.l.b16 %v5218
    %v5364 = vunpack.c.h.b16 %v5218
    %v5365 = vunpack.c.l.b16 %v5219
    %v5366 = vunpack.c.h.b16 %v5219
    %v5367 = vunpack.c.l.b16 %v5220
    %v5368 = vunpack.c.h.b16 %v5220
    %v5369 = vunpack.c.l.b16 %v5221
    %v5370 = vunpack.c.h.b16 %v5221
    %v5371 = vunpack.c.l.b16 %v5222
    %v5372 = vunpack.c.h.b16 %v5222
    %v5373 = vunpack.c.l.b16 %v5223
    %v5374 = vunpack.c.h.b16 %v5223
    %v5375 = vunpack.c.l.b16 %v5224
    %v5376 = vunpack.c.h.b16 %v5224
    %v5377 = vunpack.c.l.b16 %v5225
    %v5378 = vunpack.c.h.b16 %v5225
    %v5379 = vunpack.c.l.b16 %v5226
    %v5380 = vunpack.c.h.b16 %v5226
    %v5381 = vunpack.c.l.b16 %v5227
    %v5382 = vunpack.c.h.b16 %v5227
    %v5383 = vunpack.c.l.b16 %v5228
    %v5384 = vunpack.c.h.b16 %v5228
    %v5385 = vunpack.c.l.b16 %v5229
    %v5386 = vunpack.c.h.b16 %v5229
    %v5387 = vunpack.c.l.b16 %v5230
    %v5388 = vunpack.c.h.b16 %v5230
    %v5389 = vunpack.c.l.b16 %v5231
    %v5390 = vunpack.c.h.b16 %v5231
    %v5391 = vunpack.c.l.b16 %v5232
    %v5392 = vunpack.c.h.b16 %v5232
    %v5393 = vunpack.c.l.b16 %v5233
    %v5394 = vunpack.c.h.b16 %v5233
    %v5395 = vpack.c.b16 %v5335, %v5331
    %v5396 = vpack.c.b16 %v5336, %v5332
    %v5397 = vpack.c.b16 %v5337, %v5333
    %v5398 = vpack.c.b16 %v5338, %v5334
    %v5399 = vpack.c.b16 %v5343, %v5339
    %v5400 = vpack.c.b16 %v5344, %v5340
    %v5401 = vpack.c.b16 %v5345, %v5341
    %v5402 = vpack.c.b16 %v5346, %v5342
    %v5403 = vpack.c.b16 %v5351, %v5347
    %v5404 = vpack.c.b16 %v5352, %v5348
    %v5405 = vpack.c.b16 %v5353, %v5349
    %v5406 = vpack.c.b16 %v5354, %v5350
    %v5407 = vpack.c.b16 %v5359, %v5355
    %v5408 = vpack.c.b16 %v5360, %v5356
    %v5409 = vpack.c.b16 %v5361, %v5357
    %v5410 = vpack.c.b16 %v5362, %v5358
    %v5411 = vpack.c.b16 %v5367, %v5363
    %v5412 = vpack.c.b16 %v5368, %v5364
    %v5413 = vpack.c.b16 %v5369, %v5365
    %v5414 = vpack.c.b16 %v5370, %v5366
    %v5415 = vpack.c.b16 %v5375, %v5371
    %v5416 = vpack.c.b16 %v5376, %v5372
    %v5417 = vpack.c.b16 %v5377, %v5373
    %v5418 = vpack.c.b16 %v5378, %v5374
    %v5419 = vpack.c.b16 %v5383, %v5379
    %v5420 = vpack.c.b16 %v5384, %v5380
    %v5421 = vpack.c.b16 %v5385, %v5381
    %v5422 = vpack.c.b16 %v5386, %v5382
    %v5423 = vpack.c.b16 %v5391, %v5387
    %v5424 = vpack.c.b16 %v5392, %v5388
    %v5425 = vpack.c.b16 %v5393, %v5389
    %v5426 = vpack.c.b16 %v5394, %v5390
    %v5523 = vunpack.c.l.b16 %v5235
    %v5524 = vunpack.c.h.b16 %v5235
    %v5525 = vunpack.c.l.b16 %v5236
    %v5526 = vunpack.c.h.b16 %v5236
    %v5527 = vunpack.c.l.b16 %v5237
    %v5528 = vunpack.c.h.b16 %v5237
    %v5529 = vunpack.c.l.b16 %v5238
    %v5530 = vunpack.c.h.b16 %v5238
    %v5531 = vunpack.c.l.b16 %v5239
    %v5532 = vunpack.c.h.b16 %v5239
    %v5533 = vunpack.c.l.b16 %v5240
    %v5534 = vunpack.c.h.b16 %v5240
    %v5535 = vunpack.c.l.b16 %v5241
    %v5536 = vunpack.c.h.b16 %v5241
    %v5537 = vunpack.c.l.b16 %v5242
    %v5538 = vunpack.c.h.b16 %v5242
    %v5539 = vunpack.c.l.b16 %v5243
    %v5540 = vunpack.c.h.b16 %v5243
    %v5541 = vunpack.c.l.b16 %v5244
    %v5542 = vunpack.c.h.b16 %v5244
    %v5543 = vunpack.c.l.b16 %v5245
    %v5544 = vunpack.c.h.b16 %v5245
    %v5545 = vunpack.c.l.b16 %v5246
    %v5546 = vunpack.c.h.b16 %v5246
    %v5547 = vunpack.c.l.b16 %v5247
    %v5548 = vunpack.c.h.b16 %v5247
    %v5549 = vunpack.c.l.b16 %v5248
    %v5550 = vunpack.c.h.b16 %v5248
    %v5551 = vunpack.c.l.b16 %v5249
    %v5552 = vunpack.c.h.b16 %v5249
    %v5553 = vunpack.c.l.b16 %v5250
    %v5554 = vunpack.c.h.b16 %v5250
    %v5555 = vunpack.c.l.b16 %v5251
    %v5556 = vunpack.c.h.b16 %v5251
    %v5557 = vunpack.c.l.b16 %v5252
    %v5558 = vunpack.c.h.b16 %v5252
    %v5559 = vunpack.c.l.b16 %v5253
    %v5560 = vunpack.c.h.b16 %v5253
    %v5561 = vunpack.c.l.b16 %v5254
    %v5562 = vunpack.c.h.b16 %v5254
    %v5563 = vunpack.c.l.b16 %v5255
    %v5564 = vunpack.c.h.b16 %v5255
    %v5565 = vunpack.c.l.b16 %v5256
    %v5566 = vunpack.c.h.b16 %v5256
    %v5567 = vunpack.c.l.b16 %v5257
    %v5568 = vunpack.c.h.b16 %v5257
    %v5569 = vunpack.c.l.b16 %v5258
    %v5570 = vunpack.c.h.b16 %v5258
    %v5571 = vunpack.c.l.b16 %v5259
    %v5572 = vunpack.c.h.b16 %v5259
    %v5573 = vunpack.c.l.b16 %v5260
    %v5574 = vunpack.c.h.b16 %v5260
    %v5575 = vunpack.c.l.b16 %v5261
    %v5576 = vunpack.c.h.b16 %v5261
    %v5577 = vunpack.c.l.b16 %v5262
    %v5578 = vunpack.c.h.b16 %v5262
    %v5579 = vunpack.c.l.b16 %v5263
    %v5580 = vunpack.c.h.b16 %v5263
    %v5581 = vunpack.c.l.b16 %v5264
    %v5582 = vunpack.c.h.b16 %v5264
    %v5583 = vunpack.c.l.b16 %v5265
    %v5584 = vunpack.c.h.b16 %v5265
    %v5585 = vunpack.c.l.b16 %v5266
    %v5586 = vunpack.c.h.b16 %v5266
    %v5587 = vunpack.c.l.b16 %v5267
    %v5588 = vunpack.c.h.b16 %v5267
    %v5589 = vunpack.c.l.b16 %v5268
    %v5590 = vunpack.c.h.b16 %v5268
    %v5591 = vunpack.c.l.b16 %v5269
    %v5592 = vunpack.c.h.b16 %v5269
    %v5593 = vunpack.c.l.b16 %v5270
    %v5594 = vunpack.c.h.b16 %v5270
    %v5595 = vunpack.c.l.b16 %v5271
    %v5596 = vunpack.c.h.b16 %v5271
    %v5597 = vunpack.c.l.b16 %v5272
    %v5598 = vunpack.c.h.b16 %v5272
    %v5599 = vunpack.c.l.b16 %v5273
    %v5600 = vunpack.c.h.b16 %v5273
    %v5601 = vunpack.c.l.b16 %v5274
    %v5602 = vunpack.c.h.b16 %v5274
    %v5603 = vunpack.c.l.b16 %v5275
    %v5604 = vunpack.c.h.b16 %v5275
    %v5605 = vunpack.c.l.b16 %v5276
    %v5606 = vunpack.c.h.b16 %v5276
    %v5607 = vunpack.c.l.b16 %v5277
    %v5608 = vunpack.c.h.b16 %v5277
    %v5609 = vunpack.c.l.b16 %v5278
    %v5610 = vunpack.c.h.b16 %v5278
    %v5611 = vunpack.c.l.b16 %v5279
    %v5612 = vunpack.c.h.b16 %v5279
    %v5613 = vunpack.c.l.b16 %v5280
    %v5614 = vunpack.c.h.b16 %v5280
    %v5615 = vunpack.c.l.b16 %v5281
    %v5616 = vunpack.c.h.b16 %v5281
    %v5617 = vunpack.c.l.b16 %v5282
    %v5618 = vunpack.c.h.b16 %v5282
    %v5619 = vunpack.c.l.b16 %v5283
    %v5620 = vunpack.c.h.b16 %v5283
    %v5621 = vunpack.c.l.b16 %v5284
    %v5622 = vunpack.c.h.b16 %v5284
    %v5623 = vunpack.c.l.b16 %v5285
    %v5624 = vunpack.c.h.b16 %v5285
    %v5625 = vunpack.c.l.b16 %v5286
    %v5626 = vunpack.c.h.b16 %v5286
    %v5627 = vunpack.c.l.b16 %v5287
    %v5628 = vunpack.c.h.b16 %v5287
    %v5629 = vunpack.c.l.b16 %v5288
    %v5630 = vunpack.c.h.b16 %v5288
    %v5631 = vunpack.c.l.b16 %v5289
    %v5632 = vunpack.c.h.b16 %v5289
    %v5633 = vunpack.c.l.b16 %v5290
    %v5634 = vunpack.c.h.b16 %v5290
    %v5635 = vunpack.c.l.b16 %v5291
    %v5636 = vunpack.c.h.b16 %v5291
    %v5637 = vunpack.c.l.b16 %v5292
    %v5638 = vunpack.c.h.b16 %v5292
    %v5639 = vunpack.c.l.b16 %v5293
    %v5640 = vunpack.c.h.b16 %v5293
    %v5641 = vunpack.c.l.b16 %v5294
    %v5642 = vunpack.c.h.b16 %v5294
    %v5643 = vunpack.c.l.b16 %v5295
    %v5644 = vunpack.c.h.b16 %v5295
    %v5645 = vunpack.c.l.b16 %v5296
    %v5646 = vunpack.c.h.b16 %v5296
    %v5647 = vunpack.c.l.b16 %v5297
    %v5648 = vunpack.c.h.b16 %v5297
    %v5649 = vunpack.c.l.b16 %v5298
    %v5650 = vunpack.c.h.b16 %v5298
    %v5651 = vpack.c.b16 %v5525, %v5523
    %v5652 = vpack.c.b16 %v5526, %v5524
    %v5653 = vpack.c.b16 %v5529, %v5527
    %v5654 = vpack.c.b16 %v5530, %v5528
    %v5655 = vpack.c.b16 %v5533, %v5531
    %v5656 = vpack.c.b16 %v5534, %v5532
    %v5657 = vpack.c.b16 %v5537, %v5535
    %v5658 = vpack.c.b16 %v5538, %v5536
    %v5659 = vpack.c.b16 %v5541, %v5539
    %v5660 = vpack.c.b16 %v5542, %v5540
    %v5661 = vpack.c.b16 %v5545, %v5543
    %v5662 = vpack.c.b16 %v5546, %v5544
    %v5663 = vpack.c.b16 %v5549, %v5547
    %v5664 = vpack.c.b16 %v5550, %v5548
    %v5665 = vpack.c.b16 %v5553, %v5551
    %v5666 = vpack.c.b16 %v5554, %v5552
    %v5667 = vpack.c.b16 %v5557, %v5555
    %v5668 = vpack.c.b16 %v5558, %v5556
    %v5669 = vpack.c.b16 %v5561, %v5559
    %v5670 = vpack.c.b16 %v5562, %v5560
    %v5671 = vpack.c.b16 %v5565, %v5563
    %v5672 = vpack.c.b16 %v5566, %v5564
    %v5673 = vpack.c.b16 %v5569, %v5567
    %v5674 = vpack.c.b16 %v5570, %v5568
    %v5675 = vpack.c.b16 %v5573, %v5571
    %v5676 = vpack.c.b16 %v5574, %v5572
    %v5677 = vpack.c.b16 %v5577, %v5575
    %v5678 = vpack.c.b16 %v5578, %v5576
    %v5679 = vpack.c.b16 %v5581, %v5579
    %v5680 = vpack.c.b16 %v5582, %v5580
    %v5681 = vpack.c.b16 %v5585, %v5583
    %v5682 = vpack.c.b16 %v5586, %v5584
    %v5683 = vpack.c.b16 %v5589, %v5587
    %v5684 = vpack.c.b16 %v5590, %v5588
    %v5685 = vpack.c.b16 %v5593, %v5591
    %v5686 = vpack.c.b16 %v5594, %v5592
    %v5687 = vpack.c.b16 %v5597, %v5595
    %v5688 = vpack.c.b16 %v5598, %v5596
    %v5689 = vpack.c.b16 %v5601, %v5599
    %v5690 = vpack.c.b16 %v5602, %v5600
    %v5691 = vpack.c.b16 %v5605, %v5603
    %v5692 = vpack.c.b16 %v5606, %v5604
    %v5693 = vpack.c.b16 %v5609, %v5607
    %v5694 = vpack.c.b16 %v5610, %v5608
    %v5695 = vpack.c.b16 %v5613, %v5611
    %v5696 = vpack.c.b16 %v5614, %v5612
    %v5697 = vpack.c.b16 %v5617, %v5615
    %v5698 = vpack.c.b16 %v5618, %v5616
    %v5699 = vpack.c.b16 %v5621, %v5619
    %v5700 = vpack.c.b16 %v5622, %v5620
    %v5701 = vpack.c.b16 %v5625, %v5623
    %v5702 = vpack.c.b16 %v5626, %v5624
    %v5703 = vpack.c.b16 %v5629, %v5627
    %v5704 = vpack.c.b16 %v5630, %v5628
    %v5705 = vpack.c.b16 %v5633, %v5631
    %v5706 = vpack.c.b16 %v5634, %v5632
    %v5707 = vpack.c.b16 %v5637, %v5635
    %v5708 = vpack.c.b16 %v5638, %v5636
    %v5709 = vpack.c.b16 %v5641, %v5639
    %v5710 = vpack.c.b16 %v5642, %v5640
    %v5711 = vpack.c.b16 %v5645, %v5643
    %v5712 = vpack.c.b16 %v5646, %v5644
    %v5713 = vpack.c.b16 %v5649, %v5647
    %v5714 = vpack.c.b16 %v5650, %v5648
    %5779 = vmatpush.bf16.msra.mxu0 %v5665
    %5780 = vmatpush.bf16.msra.mxu0 %v5663
    %5781 = vmatpush.bf16.msra.mxu0 %v5661
    %5782 = vmatpush.bf16.msra.mxu0 %v5659
    %5783 = vmatpush.bf16.msra.mxu0 %v5657
    %5784 = vmatpush.bf16.msra.mxu0 %v5655
    %5785 = vmatpush.bf16.msra.mxu0 %v5653
    %5786 = vmatpush.bf16.msra.mxu0 %v5651
    %5787 = vmatmul.bf16.gmra.mxu0 %v5395
    %v5788 = vpop.f32.mrf.mxu0
    %v5789 = vadd.f32 0.0, %v5788
    %v5790 = vpop.f32.mrf.mxu0
    %v5791 = vadd.f32 0.0, %v5790
    %5792 = vmatmul.bf16.gmra.mxu0 %v5399
    %v5793 = vpop.f32.mrf.mxu0
    %v5794 = vadd.f32 0.0, %v5793
    %v5795 = vpop.f32.mrf.mxu0
    %v5796 = vadd.f32 0.0, %v5795
    %5797 = vmatmul.bf16.gmra.mxu0 %v5403
    %v5798 = vpop.f32.mrf.mxu0
    %v5799 = vadd.f32 0.0, %v5798
    %v5800 = vpop.f32.mrf.mxu0
    %v5801 = vadd.f32 0.0, %v5800
    %5802 = vmatmul.bf16.gmra.mxu0 %v5407
    %v5803 = vpop.f32.mrf.mxu0
    %v5804 = vadd.f32 0.0, %v5803
    %v5805 = vpop.f32.mrf.mxu0
    %v5806 = vadd.f32 0.0, %v5805
    %5807 = vmatmul.bf16.gmra.mxu0 %v5411
    %v5808 = vpop.f32.mrf.mxu0
    %v5809 = vadd.f32 0.0, %v5808
    %v5810 = vpop.f32.mrf.mxu0
    %v5811 = vadd.f32 0.0, %v5810
    %5812 = vmatmul.bf16.gmra.mxu0 %v5415
    %v5813 = vpop.f32.mrf.mxu0
    %v5814 = vadd.f32 0.0, %v5813
    %v5815 = vpop.f32.mrf.mxu0
    %v5816 = vadd.f32 0.0, %v5815
    %5817 = vmatmul.bf16.gmra.mxu0 %v5419
    %v5818 = vpop.f32.mrf.mxu0
    %v5819 = vadd.f32 0.0, %v5818
    %v5820 = vpop.f32.mrf.mxu0
    %v5821 = vadd.f32 0.0, %v5820
    %5822 = vmatmul.bf16.gmra.mxu0 %v5423
    %v5823 = vpop.f32.mrf.mxu0
    %v5824 = vadd.f32 0.0, %v5823
    %v5825 = vpop.f32.mrf.mxu0
    %v5826 = vadd.f32 0.0, %v5825
    %5827 = vdwg.mxu0
    %5828 = vmatpush.bf16.msra.mxu0 %v5681
    %5829 = vmatpush.bf16.msra.mxu0 %v5679
    %5830 = vmatpush.bf16.msra.mxu0 %v5677
    %5831 = vmatpush.bf16.msra.mxu0 %v5675
    %5832 = vmatpush.bf16.msra.mxu0 %v5673
    %5833 = vmatpush.bf16.msra.mxu0 %v5671
    %5834 = vmatpush.bf16.msra.mxu0 %v5669
    %5835 = vmatpush.bf16.msra.mxu0 %v5667
    %5836 = vmatmul.bf16.gmra.mxu0 %v5396
    %v5837 = vpop.f32.mrf.mxu0
    %v5838 = vadd.f32 %v5789, %v5837
    %v5839 = vpop.f32.mrf.mxu0
    %v5840 = vadd.f32 %v5791, %v5839
    %5841 = vmatmul.bf16.gmra.mxu0 %v5400
    %v5842 = vpop.f32.mrf.mxu0
    %v5843 = vadd.f32 %v5794, %v5842
    %v5844 = vpop.f32.mrf.mxu0
    %v5845 = vadd.f32 %v5796, %v5844
    %5846 = vmatmul.bf16.gmra.mxu0 %v5404
    %v5847 = vpop.f32.mrf.mxu0
    %v5848 = vadd.f32 %v5799, %v5847
    %v5849 = vpop.f32.mrf.mxu0
    %v5850 = vadd.f32 %v5801, %v5849
    %5851 = vmatmul.bf16.gmra.mxu0 %v5408
    %v5852 = vpop.f32.mrf.mxu0
    %v5853 = vadd.f32 %v5804, %v5852
    %v5854 = vpop.f32.mrf.mxu0
    %v5855 = vadd.f32 %v5806, %v5854
    %5856 = vmatmul.bf16.gmra.mxu0 %v5412
    %v5857 = vpop.f32.mrf.mxu0
    %v5858 = vadd.f32 %v5809, %v5857
    %v5859 = vpop.f32.mrf.mxu0
    %v5860 = vadd.f32 %v5811, %v5859
    %5861 = vmatmul.bf16.gmra.mxu0 %v5416
    %v5862 = vpop.f32.mrf.mxu0
    %v5863 = vadd.f32 %v5814, %v5862
    %v5864 = vpop.f32.mrf.mxu0
    %v5865 = vadd.f32 %v5816, %v5864
    %5866 = vmatmul.bf16.gmra.mxu0 %v5420
    %v5867 = vpop.f32.mrf.mxu0
    %v5868 = vadd.f32 %v5819, %v5867
    %v5869 = vpop.f32.mrf.mxu0
    %v5870 = vadd.f32 %v5821, %v5869
    %5871 = vmatmul.bf16.gmra.mxu0 %v5424
    %v5872 = vpop.f32.mrf.mxu0
    %v5873 = vadd.f32 %v5824, %v5872
    %v5874 = vpop.f32.mrf.mxu0
    %v5875 = vadd.f32 %v5826, %v5874
    %5876 = vdwg.mxu0
    %5877 = vmatpush.bf16.msra.mxu0 %v5697
    %5878 = vmatpush.bf16.msra.mxu0 %v5695
    %5879 = vmatpush.bf16.msra.mxu0 %v5693
    %5880 = vmatpush.bf16.msra.mxu0 %v5691
    %5881 = vmatpush.bf16.msra.mxu0 %v5689
    %5882 = vmatpush.bf16.msra.mxu0 %v5687
    %5883 = vmatpush.bf16.msra.mxu0 %v5685
    %5884 = vmatpush.bf16.msra.mxu0 %v5683
    %5885 = vmatmul.bf16.gmra.mxu0 %v5397
    %v5886 = vpop.f32.mrf.mxu0
    %v5887 = vadd.f32 %v5838, %v5886
    %v5888 = vpop.f32.mrf.mxu0
    %v5889 = vadd.f32 %v5840, %v5888
    %5890 = vmatmul.bf16.gmra.mxu0 %v5401
    %v5891 = vpop.f32.mrf.mxu0
    %v5892 = vadd.f32 %v5843, %v5891
    %v5893 = vpop.f32.mrf.mxu0
    %v5894 = vadd.f32 %v5845, %v5893
    %5895 = vmatmul.bf16.gmra.mxu0 %v5405
    %v5896 = vpop.f32.mrf.mxu0
    %v5897 = vadd.f32 %v5848, %v5896
    %v5898 = vpop.f32.mrf.mxu0
    %v5899 = vadd.f32 %v5850, %v5898
    %5900 = vmatmul.bf16.gmra.mxu0 %v5409
    %v5901 = vpop.f32.mrf.mxu0
    %v5902 = vadd.f32 %v5853, %v5901
    %v5903 = vpop.f32.mrf.mxu0
    %v5904 = vadd.f32 %v5855, %v5903
    %5905 = vmatmul.bf16.gmra.mxu0 %v5413
    %v5906 = vpop.f32.mrf.mxu0
    %v5907 = vadd.f32 %v5858, %v5906
    %v5908 = vpop.f32.mrf.mxu0
    %v5909 = vadd.f32 %v5860, %v5908
    %5910 = vmatmul.bf16.gmra.mxu0 %v5417
    %v5911 = vpop.f32.mrf.mxu0
    %v5912 = vadd.f32 %v5863, %v5911
    %v5913 = vpop.f32.mrf.mxu0
    %v5914 = vadd.f32 %v5865, %v5913
    %5915 = vmatmul.bf16.gmra.mxu0 %v5421
    %v5916 = vpop.f32.mrf.mxu0
    %v5917 = vadd.f32 %v5868, %v5916
    %v5918 = vpop.f32.mrf.mxu0
    %v5919 = vadd.f32 %v5870, %v5918
    %5920 = vmatmul.bf16.gmra.mxu0 %v5425
    %v5921 = vpop.f32.mrf.mxu0
    %v5922 = vadd.f32 %v5873, %v5921
    %v5923 = vpop.f32.mrf.mxu0
    %v5924 = vadd.f32 %v5875, %v5923
    %5925 = vdwg.mxu0
    %5926 = vmatpush.bf16.msra.mxu0 %v5713
    %5927 = vmatpush.bf16.msra.mxu0 %v5711
    %5928 = vmatpush.bf16.msra.mxu0 %v5709
    %5929 = vmatpush.bf16.msra.mxu0 %v5707
    %5930 = vmatpush.bf16.msra.mxu0 %v5705
    %5931 = vmatpush.bf16.msra.mxu0 %v5703
    %5932 = vmatpush.bf16.msra.mxu0 %v5701
    %5933 = vmatpush.bf16.msra.mxu0 %v5699
    %5934 = vmatmul.bf16.gmra.mxu0 %v5398
    %v5935 = vpop.f32.mrf.mxu0
    %v5936 = vadd.f32 %v5887, %v5935
    %v5937 = vpop.f32.mrf.mxu0
    %v5938 = vadd.f32 %v5889, %v5937
    %5939 = vmatmul.bf16.gmra.mxu0 %v5402
    %v5940 = vpop.f32.mrf.mxu0
    %v5941 = vadd.f32 %v5892, %v5940
    %v5942 = vpop.f32.mrf.mxu0
    %v5943 = vadd.f32 %v5894, %v5942
    %5944 = vmatmul.bf16.gmra.mxu0 %v5406
    %v5945 = vpop.f32.mrf.mxu0
    %v5946 = vadd.f32 %v5897, %v5945
    %v5947 = vpop.f32.mrf.mxu0
    %v5948 = vadd.f32 %v5899, %v5947
    %5949 = vmatmul.bf16.gmra.mxu0 %v5410
    %v5950 = vpop.f32.mrf.mxu0
    %v5951 = vadd.f32 %v5902, %v5950
    %v5952 = vpop.f32.mrf.mxu0
    %v5953 = vadd.f32 %v5904, %v5952
    %5954 = vmatmul.bf16.gmra.mxu0 %v5414
    %v5955 = vpop.f32.mrf.mxu0
    %v5956 = vadd.f32 %v5907, %v5955
    %v5957 = vpop.f32.mrf.mxu0
    %v5958 = vadd.f32 %v5909, %v5957
    %5959 = vmatmul.bf16.gmra.mxu0 %v5418
    %v5960 = vpop.f32.mrf.mxu0
    %v5961 = vadd.f32 %v5912, %v5960
    %v5962 = vpop.f32.mrf.mxu0
    %v5963 = vadd.f32 %v5914, %v5962
    %5964 = vmatmul.bf16.gmra.mxu0 %v5422
    %v5965 = vpop.f32.mrf.mxu0
    %v5966 = vadd.f32 %v5917, %v5965
    %v5967 = vpop.f32.mrf.mxu0
    %v5968 = vadd.f32 %v5919, %v5967
    %5969 = vmatmul.bf16.gmra.mxu0 %v5426
    %v5970 = vpop.f32.mrf.mxu0
    %v5971 = vadd.f32 %v5922, %v5970
    %v5972 = vpop.f32.mrf.mxu0
    %v5973 = vadd.f32 %v5924, %v5972
    %5974 = vdwg.mxu0
    %5975 = vmatpush.bf16.msra.mxu0 %v5666
    %5976 = vmatpush.bf16.msra.mxu0 %v5664
    %5977 = vmatpush.bf16.msra.mxu0 %v5662
    %5978 = vmatpush.bf16.msra.mxu0 %v5660
    %5979 = vmatpush.bf16.msra.mxu0 %v5658
    %5980 = vmatpush.bf16.msra.mxu0 %v5656
    %5981 = vmatpush.bf16.msra.mxu0 %v5654
    %5982 = vmatpush.bf16.msra.mxu0 %v5652
    %5983 = vmatmul.bf16.gmra.mxu0 %v5395
    %v5984 = vpop.f32.mrf.mxu0
    %v5985 = vadd.f32 0.0, %v5984
    %v5986 = vpop.f32.mrf.mxu0
    %v5987 = vadd.f32 0.0, %v5986
    %5988 = vmatmul.bf16.gmra.mxu0 %v5399
    %v5989 = vpop.f32.mrf.mxu0
    %v5990 = vadd.f32 0.0, %v5989
    %v5991 = vpop.f32.mrf.mxu0
    %v5992 = vadd.f32 0.0, %v5991
    %5993 = vmatmul.bf16.gmra.mxu0 %v5403
    %v5994 = vpop.f32.mrf.mxu0
    %v5995 = vadd.f32 0.0, %v5994
    %v5996 = vpop.f32.mrf.mxu0
    %v5997 = vadd.f32 0.0, %v5996
    %5998 = vmatmul.bf16.gmra.mxu0 %v5407
    %v5999 = vpop.f32.mrf.mxu0
    %v6000 = vadd.f32 0.0, %v5999
    %v6001 = vpop.f32.mrf.mxu0
    %v6002 = vadd.f32 0.0, %v6001
    %6003 = vmatmul.bf16.gmra.mxu0 %v5411
    %v6004 = vpop.f32.mrf.mxu0
    %v6005 = vadd.f32 0.0, %v6004
    %v6006 = vpop.f32.mrf.mxu0
    %v6007 = vadd.f32 0.0, %v6006
    %6008 = vmatmul.bf16.gmra.mxu0 %v5415
    %v6009 = vpop.f32.mrf.mxu0
    %v6010 = vadd.f32 0.0, %v6009
    %v6011 = vpop.f32.mrf.mxu0
    %v6012 = vadd.f32 0.0, %v6011
    %6013 = vmatmul.bf16.gmra.mxu0 %v5419
    %v6014 = vpop.f32.mrf.mxu0
    %v6015 = vadd.f32 0.0, %v6014
    %v6016 = vpop.f32.mrf.mxu0
    %v6017 = vadd.f32 0.0, %v6016
    %6018 = vmatmul.bf16.gmra.mxu0 %v5423
    %v6019 = vpop.f32.mrf.mxu0
    %v6020 = vadd.f32 0.0, %v6019
    %v6021 = vpop.f32.mrf.mxu0
    %v6022 = vadd.f32 0.0, %v6021
    %6023 = vdwg.mxu0
    %6024 = vmatpush.bf16.msra.mxu0 %v5682
    %6025 = vmatpush.bf16.msra.mxu0 %v5680
    %6026 = vmatpush.bf16.msra.mxu0 %v5678
    %6027 = vmatpush.bf16.msra.mxu0 %v5676
    %6028 = vmatpush.bf16.msra.mxu0 %v5674
    %6029 = vmatpush.bf16.msra.mxu0 %v5672
    %6030 = vmatpush.bf16.msra.mxu0 %v5670
    %6031 = vmatpush.bf16.msra.mxu0 %v5668
    %6032 = vmatmul.bf16.gmra.mxu0 %v5396
    %v6033 = vpop.f32.mrf.mxu0
    %v6034 = vadd.f32 %v5985, %v6033
    %v6035 = vpop.f32.mrf.mxu0
    %v6036 = vadd.f32 %v5987, %v6035
    %6037 = vmatmul.bf16.gmra.mxu0 %v5400
    %v6038 = vpop.f32.mrf.mxu0
    %v6039 = vadd.f32 %v5990, %v6038
    %v6040 = vpop.f32.mrf.mxu0
    %v6041 = vadd.f32 %v5992, %v6040
    %6042 = vmatmul.bf16.gmra.mxu0 %v5404
    %v6043 = vpop.f32.mrf.mxu0
    %v6044 = vadd.f32 %v5995, %v6043
    %v6045 = vpop.f32.mrf.mxu0
    %v6046 = vadd.f32 %v5997, %v6045
    %6047 = vmatmul.bf16.gmra.mxu0 %v5408
    %v6048 = vpop.f32.mrf.mxu0
    %v6049 = vadd.f32 %v6000, %v6048
    %v6050 = vpop.f32.mrf.mxu0
    %v6051 = vadd.f32 %v6002, %v6050
    %6052 = vmatmul.bf16.gmra.mxu0 %v5412
    %v6053 = vpop.f32.mrf.mxu0
    %v6054 = vadd.f32 %v6005, %v6053
    %v6055 = vpop.f32.mrf.mxu0
    %v6056 = vadd.f32 %v6007, %v6055
    %6057 = vmatmul.bf16.gmra.mxu0 %v5416
    %v6058 = vpop.f32.mrf.mxu0
    %v6059 = vadd.f32 %v6010, %v6058
    %v6060 = vpop.f32.mrf.mxu0
    %v6061 = vadd.f32 %v6012, %v6060
    %6062 = vmatmul.bf16.gmra.mxu0 %v5420
    %v6063 = vpop.f32.mrf.mxu0
    %v6064 = vadd.f32 %v6015, %v6063
    %v6065 = vpop.f32.mrf.mxu0
    %v6066 = vadd.f32 %v6017, %v6065
    %6067 = vmatmul.bf16.gmra.mxu0 %v5424
    %v6068 = vpop.f32.mrf.mxu0
    %v6069 = vadd.f32 %v6020, %v6068
    %v6070 = vpop.f32.mrf.mxu0
    %v6071 = vadd.f32 %v6022, %v6070
    %6072 = vdwg.mxu0
    %6073 = vmatpush.bf16.msra.mxu0 %v5698
    %6074 = vmatpush.bf16.msra.mxu0 %v5696
    %6075 = vmatpush.bf16.msra.mxu0 %v5694
    %6076 = vmatpush.bf16.msra.mxu0 %v5692
    %6077 = vmatpush.bf16.msra.mxu0 %v5690
    %6078 = vmatpush.bf16.msra.mxu0 %v5688
    %6079 = vmatpush.bf16.msra.mxu0 %v5686
    %6080 = vmatpush.bf16.msra.mxu0 %v5684
    %6081 = vmatmul.bf16.gmra.mxu0 %v5397
    %v6082 = vpop.f32.mrf.mxu0
    %v6083 = vadd.f32 %v6034, %v6082
    %v6084 = vpop.f32.mrf.mxu0
    %v6085 = vadd.f32 %v6036, %v6084
    %6086 = vmatmul.bf16.gmra.mxu0 %v5401
    %v6087 = vpop.f32.mrf.mxu0
    %v6088 = vadd.f32 %v6039, %v6087
    %v6089 = vpop.f32.mrf.mxu0
    %v6090 = vadd.f32 %v6041, %v6089
    %6091 = vmatmul.bf16.gmra.mxu0 %v5405
    %v6092 = vpop.f32.mrf.mxu0
    %v6093 = vadd.f32 %v6044, %v6092
    %v6094 = vpop.f32.mrf.mxu0
    %v6095 = vadd.f32 %v6046, %v6094
    %6096 = vmatmul.bf16.gmra.mxu0 %v5409
    %v6097 = vpop.f32.mrf.mxu0
    %v6098 = vadd.f32 %v6049, %v6097
    %v6099 = vpop.f32.mrf.mxu0
    %v6100 = vadd.f32 %v6051, %v6099
    %6101 = vmatmul.bf16.gmra.mxu0 %v5413
    %v6102 = vpop.f32.mrf.mxu0
    %v6103 = vadd.f32 %v6054, %v6102
    %v6104 = vpop.f32.mrf.mxu0
    %v6105 = vadd.f32 %v6056, %v6104
    %6106 = vmatmul.bf16.gmra.mxu0 %v5417
    %v6107 = vpop.f32.mrf.mxu0
    %v6108 = vadd.f32 %v6059, %v6107
    %v6109 = vpop.f32.mrf.mxu0
    %v6110 = vadd.f32 %v6061, %v6109
    %6111 = vmatmul.bf16.gmra.mxu0 %v5421
    %v6112 = vpop.f32.mrf.mxu0
    %v6113 = vadd.f32 %v6064, %v6112
    %v6114 = vpop.f32.mrf.mxu0
    %v6115 = vadd.f32 %v6066, %v6114
    %6116 = vmatmul.bf16.gmra.mxu0 %v5425
    %v6117 = vpop.f32.mrf.mxu0
    %v6118 = vadd.f32 %v6069, %v6117
    %v6119 = vpop.f32.mrf.mxu0
    %v6120 = vadd.f32 %v6071, %v6119
    %6121 = vdwg.mxu0
    %6122 = vmatpush.bf16.msra.mxu0 %v5714
    %6123 = vmatpush.bf16.msra.mxu0 %v5712
    %6124 = vmatpush.bf16.msra.mxu0 %v5710
    %6125 = vmatpush.bf16.msra.mxu0 %v5708
    %6126 = vmatpush.bf16.msra.mxu0 %v5706
    %6127 = vmatpush.bf16.msra.mxu0 %v5704
    %6128 = vmatpush.bf16.msra.mxu0 %v5702
    %6129 = vmatpush.bf16.msra.mxu0 %v5700
    %6130 = vmatmul.bf16.gmra.mxu0 %v5398
    %v6131 = vpop.f32.mrf.mxu0
    %v6132 = vadd.f32 %v6083, %v6131
    %v6133 = vpop.f32.mrf.mxu0
    %v6134 = vadd.f32 %v6085, %v6133
    %6135 = vmatmul.bf16.gmra.mxu0 %v5402
    %v6136 = vpop.f32.mrf.mxu0
    %v6137 = vadd.f32 %v6088, %v6136
    %v6138 = vpop.f32.mrf.mxu0
    %v6139 = vadd.f32 %v6090, %v6138
    %6140 = vmatmul.bf16.gmra.mxu0 %v5406
    %v6141 = vpop.f32.mrf.mxu0
    %v6142 = vadd.f32 %v6093, %v6141
    %v6143 = vpop.f32.mrf.mxu0
    %v6144 = vadd.f32 %v6095, %v6143
    %6145 = vmatmul.bf16.gmra.mxu0 %v5410
    %v6146 = vpop.f32.mrf.mxu0
    %v6147 = vadd.f32 %v6098, %v6146
    %v6148 = vpop.f32.mrf.mxu0
    %v6149 = vadd.f32 %v6100, %v6148
    %6150 = vmatmul.bf16.gmra.mxu0 %v5414
    %v6151 = vpop.f32.mrf.mxu0
    %v6152 = vadd.f32 %v6103, %v6151
    %v6153 = vpop.f32.mrf.mxu0
    %v6154 = vadd.f32 %v6105, %v6153
    %6155 = vmatmul.bf16.gmra.mxu0 %v5418
    %v6156 = vpop.f32.mrf.mxu0
    %v6157 = vadd.f32 %v6108, %v6156
    %v6158 = vpop.f32.mrf.mxu0
    %v6159 = vadd.f32 %v6110, %v6158
    %6160 = vmatmul.bf16.gmra.mxu0 %v5422
    %v6161 = vpop.f32.mrf.mxu0
    %v6162 = vadd.f32 %v6113, %v6161
    %v6163 = vpop.f32.mrf.mxu0
    %v6164 = vadd.f32 %v6115, %v6163
    %6165 = vmatmul.bf16.gmra.mxu0 %v5426
    %v6166 = vpop.f32.mrf.mxu0
    %v6167 = vadd.f32 %v6118, %v6166
    %v6168 = vpop.f32.mrf.mxu0
    %v6169 = vadd.f32 %v6120, %v6168
    %6170 = vdwg.mxu0
    %v6171 = vadd.f32 %v4967, %v5936
    %v6172 = vadd.f32 %v5163, %v6132
    %v6173 = vadd.f32 %v4969, %v5938
    %v6174 = vadd.f32 %v5165, %v6134
    %v6175 = vadd.f32 %v4972, %v5941
    %v6176 = vadd.f32 %v5168, %v6137
    %v6177 = vadd.f32 %v4974, %v5943
    %v6178 = vadd.f32 %v5170, %v6139
    %v6179 = vadd.f32 %v4977, %v5946
    %v6180 = vadd.f32 %v5173, %v6142
    %v6181 = vadd.f32 %v4979, %v5948
    %v6182 = vadd.f32 %v5175, %v6144
    %v6183 = vadd.f32 %v4982, %v5951
    %v6184 = vadd.f32 %v5178, %v6147
    %v6185 = vadd.f32 %v4984, %v5953
    %v6186 = vadd.f32 %v5180, %v6149
    %v6187 = vadd.f32 %v4987, %v5956
    %v6188 = vadd.f32 %v5183, %v6152
    %v6189 = vadd.f32 %v4989, %v5958
    %v6190 = vadd.f32 %v5185, %v6154
    %v6191 = vadd.f32 %v4992, %v5961
    %v6192 = vadd.f32 %v5188, %v6157
    %v6193 = vadd.f32 %v4994, %v5963
    %v6194 = vadd.f32 %v5190, %v6159
    %v6195 = vadd.f32 %v4997, %v5966
    %v6196 = vadd.f32 %v5193, %v6162
    %v6197 = vadd.f32 %v4999, %v5968
    %v6198 = vadd.f32 %v5195, %v6164
    %v6199 = vadd.f32 %v5002, %v5971
    %v6200 = vadd.f32 %v5198, %v6167
    %v6201 = vadd.f32 %v5004, %v5973
    %v6202 = vadd.f32 %v5200, %v6169
    %s6203 = scalar_lea.vmem [#allocation2], 48
    %v6204 = vld [vmem:[%s6203] sm:$0xff]
    %v6205 = vld [vmem:[%s6203 + $0x8] sm:$0xff]
    %v6206 = vld [vmem:[%s6203 + $0x10] sm:$0xff]
    %v6207 = vld [vmem:[%s6203 + $0x18] sm:$0xff]
    %v6208 = vld [vmem:[%s6203 + $0x20] sm:$0xff]
    %v6209 = vld [vmem:[%s6203 + $0x28] sm:$0xff]
    %v6210 = vld [vmem:[%s6203 + $0x30] sm:$0xff]
    %v6211 = vld [vmem:[%s6203 + $0x38] sm:$0xff]
    %v6212 = vld [vmem:[%s6203 + $0x40] sm:$0xff]
    %v6213 = vld [vmem:[%s6203 + $0x48] sm:$0xff]
    %v6214 = vld [vmem:[%s6203 + $0x50] sm:$0xff]
    %v6215 = vld [vmem:[%s6203 + $0x58] sm:$0xff]
    %v6216 = vld [vmem:[%s6203 + $0x60] sm:$0xff]
    %v6217 = vld [vmem:[%s6203 + $0x68] sm:$0xff]
    %v6218 = vld [vmem:[%s6203 + $0x70] sm:$0xff]
    %v6219 = vld [vmem:[%s6203 + $0x78] sm:$0xff]
    %v6220 = vld [vmem:[%s6203 + $0x80] sm:$0xff]
    %v6221 = vld [vmem:[%s6203 + $0x88] sm:$0xff]
    %v6222 = vld [vmem:[%s6203 + $0x90] sm:$0xff]
    %v6223 = vld [vmem:[%s6203 + $0x98] sm:$0xff]
    %v6224 = vld [vmem:[%s6203 + $0xa0] sm:$0xff]
    %v6225 = vld [vmem:[%s6203 + $0xa8] sm:$0xff]
    %v6226 = vld [vmem:[%s6203 + $0xb0] sm:$0xff]
    %v6227 = vld [vmem:[%s6203 + $0xb8] sm:$0xff]
    %v6228 = vld [vmem:[%s6203 + $0xc0] sm:$0xff]
    %v6229 = vld [vmem:[%s6203 + $0xc8] sm:$0xff]
    %v6230 = vld [vmem:[%s6203 + $0xd0] sm:$0xff]
    %v6231 = vld [vmem:[%s6203 + $0xd8] sm:$0xff]
    %v6232 = vld [vmem:[%s6203 + $0xe0] sm:$0xff]
    %v6233 = vld [vmem:[%s6203 + $0xe8] sm:$0xff]
    %v6234 = vld [vmem:[%s6203 + $0xf0] sm:$0xff]
    %v6235 = vld [vmem:[%s6203 + $0xf8] sm:$0xff]
    %s6236 = scalar_lea.vmem [#allocation13], 1536
    %v6237 = vld [vmem:[%s6236] sm:$0xff]
    %v6238 = vld [vmem:[%s6236 + $0x8] sm:$0xff]
    %v6239 = vld [vmem:[%s6236 + $0x10] sm:$0xff]
    %v6240 = vld [vmem:[%s6236 + $0x18] sm:$0xff]
    %v6241 = vld [vmem:[%s6236 + $0x20] sm:$0xff]
    %v6242 = vld [vmem:[%s6236 + $0x28] sm:$0xff]
    %v6243 = vld [vmem:[%s6236 + $0x30] sm:$0xff]
    %v6244 = vld [vmem:[%s6236 + $0x38] sm:$0xff]
    %v6245 = vld [vmem:[%s6236 + $0x40] sm:$0xff]
    %v6246 = vld [vmem:[%s6236 + $0x48] sm:$0xff]
    %v6247 = vld [vmem:[%s6236 + $0x50] sm:$0xff]
    %v6248 = vld [vmem:[%s6236 + $0x58] sm:$0xff]
    %v6249 = vld [vmem:[%s6236 + $0x60] sm:$0xff]
    %v6250 = vld [vmem:[%s6236 + $0x68] sm:$0xff]
    %v6251 = vld [vmem:[%s6236 + $0x70] sm:$0xff]
    %v6252 = vld [vmem:[%s6236 + $0x78] sm:$0xff]
    %v6253 = vld [vmem:[%s6236 + $0x80] sm:$0xff]
    %v6254 = vld [vmem:[%s6236 + $0x88] sm:$0xff]
    %v6255 = vld [vmem:[%s6236 + $0x90] sm:$0xff]
    %v6256 = vld [vmem:[%s6236 + $0x98] sm:$0xff]
    %v6257 = vld [vmem:[%s6236 + $0xa0] sm:$0xff]
    %v6258 = vld [vmem:[%s6236 + $0xa8] sm:$0xff]
    %v6259 = vld [vmem:[%s6236 + $0xb0] sm:$0xff]
    %v6260 = vld [vmem:[%s6236 + $0xb8] sm:$0xff]
    %v6261 = vld [vmem:[%s6236 + $0xc0] sm:$0xff]
    %v6262 = vld [vmem:[%s6236 + $0xc8] sm:$0xff]
    %v6263 = vld [vmem:[%s6236 + $0xd0] sm:$0xff]
    %v6264 = vld [vmem:[%s6236 + $0xd8] sm:$0xff]
    %v6265 = vld [vmem:[%s6236 + $0xe0] sm:$0xff]
    %v6266 = vld [vmem:[%s6236 + $0xe8] sm:$0xff]
    %v6267 = vld [vmem:[%s6236 + $0xf0] sm:$0xff]
    %v6268 = vld [vmem:[%s6236 + $0xf8] sm:$0xff]
    %v6269 = vld [vmem:[%s6236 + $0x100] sm:$0xff]
    %v6270 = vld [vmem:[%s6236 + $0x108] sm:$0xff]
    %v6271 = vld [vmem:[%s6236 + $0x110] sm:$0xff]
    %v6272 = vld [vmem:[%s6236 + $0x118] sm:$0xff]
    %v6273 = vld [vmem:[%s6236 + $0x120] sm:$0xff]
    %v6274 = vld [vmem:[%s6236 + $0x128] sm:$0xff]
    %v6275 = vld [vmem:[%s6236 + $0x130] sm:$0xff]
    %v6276 = vld [vmem:[%s6236 + $0x138] sm:$0xff]
    %v6277 = vld [vmem:[%s6236 + $0x140] sm:$0xff]
    %v6278 = vld [vmem:[%s6236 + $0x148] sm:$0xff]
    %v6279 = vld [vmem:[%s6236 + $0x150] sm:$0xff]
    %v6280 = vld [vmem:[%s6236 + $0x158] sm:$0xff]
    %v6281 = vld [vmem:[%s6236 + $0x160] sm:$0xff]
    %v6282 = vld [vmem:[%s6236 + $0x168] sm:$0xff]
    %v6283 = vld [vmem:[%s6236 + $0x170] sm:$0xff]
    %v6284 = vld [vmem:[%s6236 + $0x178] sm:$0xff]
    %v6285 = vld [vmem:[%s6236 + $0x180] sm:$0xff]
    %v6286 = vld [vmem:[%s6236 + $0x188] sm:$0xff]
    %v6287 = vld [vmem:[%s6236 + $0x190] sm:$0xff]
    %v6288 = vld [vmem:[%s6236 + $0x198] sm:$0xff]
    %v6289 = vld [vmem:[%s6236 + $0x1a0] sm:$0xff]
    %v6290 = vld [vmem:[%s6236 + $0x1a8] sm:$0xff]
    %v6291 = vld [vmem:[%s6236 + $0x1b0] sm:$0xff]
    %v6292 = vld [vmem:[%s6236 + $0x1b8] sm:$0xff]
    %v6293 = vld [vmem:[%s6236 + $0x1c0] sm:$0xff]
    %v6294 = vld [vmem:[%s6236 + $0x1c8] sm:$0xff]
    %v6295 = vld [vmem:[%s6236 + $0x1d0] sm:$0xff]
    %v6296 = vld [vmem:[%s6236 + $0x1d8] sm:$0xff]
    %v6297 = vld [vmem:[%s6236 + $0x1e0] sm:$0xff]
    %v6298 = vld [vmem:[%s6236 + $0x1e8] sm:$0xff]
    %v6299 = vld [vmem:[%s6236 + $0x1f0] sm:$0xff]
    %v6300 = vld [vmem:[%s6236 + $0x1f8] sm:$0xff]
    %v6333 = vunpack.c.l.b16 %v6204
    %v6334 = vunpack.c.h.b16 %v6204
    %v6335 = vunpack.c.l.b16 %v6205
    %v6336 = vunpack.c.h.b16 %v6205
    %v6337 = vunpack.c.l.b16 %v6206
    %v6338 = vunpack.c.h.b16 %v6206
    %v6339 = vunpack.c.l.b16 %v6207
    %v6340 = vunpack.c.h.b16 %v6207
    %v6341 = vunpack.c.l.b16 %v6208
    %v6342 = vunpack.c.h.b16 %v6208
    %v6343 = vunpack.c.l.b16 %v6209
    %v6344 = vunpack.c.h.b16 %v6209
    %v6345 = vunpack.c.l.b16 %v6210
    %v6346 = vunpack.c.h.b16 %v6210
    %v6347 = vunpack.c.l.b16 %v6211
    %v6348 = vunpack.c.h.b16 %v6211
    %v6349 = vunpack.c.l.b16 %v6212
    %v6350 = vunpack.c.h.b16 %v6212
    %v6351 = vunpack.c.l.b16 %v6213
    %v6352 = vunpack.c.h.b16 %v6213
    %v6353 = vunpack.c.l.b16 %v6214
    %v6354 = vunpack.c.h.b16 %v6214
    %v6355 = vunpack.c.l.b16 %v6215
    %v6356 = vunpack.c.h.b16 %v6215
    %v6357 = vunpack.c.l.b16 %v6216
    %v6358 = vunpack.c.h.b16 %v6216
    %v6359 = vunpack.c.l.b16 %v6217
    %v6360 = vunpack.c.h.b16 %v6217
    %v6361 = vunpack.c.l.b16 %v6218
    %v6362 = vunpack.c.h.b16 %v6218
    %v6363 = vunpack.c.l.b16 %v6219
    %v6364 = vunpack.c.h.b16 %v6219
    %v6365 = vunpack.c.l.b16 %v6220
    %v6366 = vunpack.c.h.b16 %v6220
    %v6367 = vunpack.c.l.b16 %v6221
    %v6368 = vunpack.c.h.b16 %v6221
    %v6369 = vunpack.c.l.b16 %v6222
    %v6370 = vunpack.c.h.b16 %v6222
    %v6371 = vunpack.c.l.b16 %v6223
    %v6372 = vunpack.c.h.b16 %v6223
    %v6373 = vunpack.c.l.b16 %v6224
    %v6374 = vunpack.c.h.b16 %v6224
    %v6375 = vunpack.c.l.b16 %v6225
    %v6376 = vunpack.c.h.b16 %v6225
    %v6377 = vunpack.c.l.b16 %v6226
    %v6378 = vunpack.c.h.b16 %v6226
    %v6379 = vunpack.c.l.b16 %v6227
    %v6380 = vunpack.c.h.b16 %v6227
    %v6381 = vunpack.c.l.b16 %v6228
    %v6382 = vunpack.c.h.b16 %v6228
    %v6383 = vunpack.c.l.b16 %v6229
    %v6384 = vunpack.c.h.b16 %v6229
    %v6385 = vunpack.c.l.b16 %v6230
    %v6386 = vunpack.c.h.b16 %v6230
    %v6387 = vunpack.c.l.b16 %v6231
    %v6388 = vunpack.c.h.b16 %v6231
    %v6389 = vunpack.c.l.b16 %v6232
    %v6390 = vunpack.c.h.b16 %v6232
    %v6391 = vunpack.c.l.b16 %v6233
    %v6392 = vunpack.c.h.b16 %v6233
    %v6393 = vunpack.c.l.b16 %v6234
    %v6394 = vunpack.c.h.b16 %v6234
    %v6395 = vunpack.c.l.b16 %v6235
    %v6396 = vunpack.c.h.b16 %v6235
    %v6397 = vpack.c.b16 %v6337, %v6333
    %v6398 = vpack.c.b16 %v6338, %v6334
    %v6399 = vpack.c.b16 %v6339, %v6335
    %v6400 = vpack.c.b16 %v6340, %v6336
    %v6401 = vpack.c.b16 %v6345, %v6341
    %v6402 = vpack.c.b16 %v6346, %v6342
    %v6403 = vpack.c.b16 %v6347, %v6343
    %v6404 = vpack.c.b16 %v6348, %v6344
    %v6405 = vpack.c.b16 %v6353, %v6349
    %v6406 = vpack.c.b16 %v6354, %v6350
    %v6407 = vpack.c.b16 %v6355, %v6351
    %v6408 = vpack.c.b16 %v6356, %v6352
    %v6409 = vpack.c.b16 %v6361, %v6357
    %v6410 = vpack.c.b16 %v6362, %v6358
    %v6411 = vpack.c.b16 %v6363, %v6359
    %v6412 = vpack.c.b16 %v6364, %v6360
    %v6413 = vpack.c.b16 %v6369, %v6365
    %v6414 = vpack.c.b16 %v6370, %v6366
    %v6415 = vpack.c.b16 %v6371, %v6367
    %v6416 = vpack.c.b16 %v6372, %v6368
    %v6417 = vpack.c.b16 %v6377, %v6373
    %v6418 = vpack.c.b16 %v6378, %v6374
    %v6419 = vpack.c.b16 %v6379, %v6375
    %v6420 = vpack.c.b16 %v6380, %v6376
    %v6421 = vpack.c.b16 %v6385, %v6381
    %v6422 = vpack.c.b16 %v6386, %v6382
    %v6423 = vpack.c.b16 %v6387, %v6383
    %v6424 = vpack.c.b16 %v6388, %v6384
    %v6425 = vpack.c.b16 %v6393, %v6389
    %v6426 = vpack.c.b16 %v6394, %v6390
    %v6427 = vpack.c.b16 %v6395, %v6391
    %v6428 = vpack.c.b16 %v6396, %v6392
    %v6525 = vunpack.c.l.b16 %v6237
    %v6526 = vunpack.c.h.b16 %v6237
    %v6527 = vunpack.c.l.b16 %v6238
    %v6528 = vunpack.c.h.b16 %v6238
    %v6529 = vunpack.c.l.b16 %v6239
    %v6530 = vunpack.c.h.b16 %v6239
    %v6531 = vunpack.c.l.b16 %v6240
    %v6532 = vunpack.c.h.b16 %v6240
    %v6533 = vunpack.c.l.b16 %v6241
    %v6534 = vunpack.c.h.b16 %v6241
    %v6535 = vunpack.c.l.b16 %v6242
    %v6536 = vunpack.c.h.b16 %v6242
    %v6537 = vunpack.c.l.b16 %v6243
    %v6538 = vunpack.c.h.b16 %v6243
    %v6539 = vunpack.c.l.b16 %v6244
    %v6540 = vunpack.c.h.b16 %v6244
    %v6541 = vunpack.c.l.b16 %v6245
    %v6542 = vunpack.c.h.b16 %v6245
    %v6543 = vunpack.c.l.b16 %v6246
    %v6544 = vunpack.c.h.b16 %v6246
    %v6545 = vunpack.c.l.b16 %v6247
    %v6546 = vunpack.c.h.b16 %v6247
    %v6547 = vunpack.c.l.b16 %v6248
    %v6548 = vunpack.c.h.b16 %v6248
    %v6549 = vunpack.c.l.b16 %v6249
    %v6550 = vunpack.c.h.b16 %v6249
    %v6551 = vunpack.c.l.b16 %v6250
    %v6552 = vunpack.c.h.b16 %v6250
    %v6553 = vunpack.c.l.b16 %v6251
    %v6554 = vunpack.c.h.b16 %v6251
    %v6555 = vunpack.c.l.b16 %v6252
    %v6556 = vunpack.c.h.b16 %v6252
    %v6557 = vunpack.c.l.b16 %v6253
    %v6558 = vunpack.c.h.b16 %v6253
    %v6559 = vunpack.c.l.b16 %v6254
    %v6560 = vunpack.c.h.b16 %v6254
    %v6561 = vunpack.c.l.b16 %v6255
    %v6562 = vunpack.c.h.b16 %v6255
    %v6563 = vunpack.c.l.b16 %v6256
    %v6564 = vunpack.c.h.b16 %v6256
    %v6565 = vunpack.c.l.b16 %v6257
    %v6566 = vunpack.c.h.b16 %v6257
    %v6567 = vunpack.c.l.b16 %v6258
    %v6568 = vunpack.c.h.b16 %v6258
    %v6569 = vunpack.c.l.b16 %v6259
    %v6570 = vunpack.c.h.b16 %v6259
    %v6571 = vunpack.c.l.b16 %v6260
    %v6572 = vunpack.c.h.b16 %v6260
    %v6573 = vunpack.c.l.b16 %v6261
    %v6574 = vunpack.c.h.b16 %v6261
    %v6575 = vunpack.c.l.b16 %v6262
    %v6576 = vunpack.c.h.b16 %v6262
    %v6577 = vunpack.c.l.b16 %v6263
    %v6578 = vunpack.c.h.b16 %v6263
    %v6579 = vunpack.c.l.b16 %v6264
    %v6580 = vunpack.c.h.b16 %v6264
    %v6581 = vunpack.c.l.b16 %v6265
    %v6582 = vunpack.c.h.b16 %v6265
    %v6583 = vunpack.c.l.b16 %v6266
    %v6584 = vunpack.c.h.b16 %v6266
    %v6585 = vunpack.c.l.b16 %v6267
    %v6586 = vunpack.c.h.b16 %v6267
    %v6587 = vunpack.c.l.b16 %v6268
    %v6588 = vunpack.c.h.b16 %v6268
    %v6589 = vunpack.c.l.b16 %v6269
    %v6590 = vunpack.c.h.b16 %v6269
    %v6591 = vunpack.c.l.b16 %v6270
    %v6592 = vunpack.c.h.b16 %v6270
    %v6593 = vunpack.c.l.b16 %v6271
    %v6594 = vunpack.c.h.b16 %v6271
    %v6595 = vunpack.c.l.b16 %v6272
    %v6596 = vunpack.c.h.b16 %v6272
    %v6597 = vunpack.c.l.b16 %v6273
    %v6598 = vunpack.c.h.b16 %v6273
    %v6599 = vunpack.c.l.b16 %v6274
    %v6600 = vunpack.c.h.b16 %v6274
    %v6601 = vunpack.c.l.b16 %v6275
    %v6602 = vunpack.c.h.b16 %v6275
    %v6603 = vunpack.c.l.b16 %v6276
    %v6604 = vunpack.c.h.b16 %v6276
    %v6605 = vunpack.c.l.b16 %v6277
    %v6606 = vunpack.c.h.b16 %v6277
    %v6607 = vunpack.c.l.b16 %v6278
    %v6608 = vunpack.c.h.b16 %v6278
    %v6609 = vunpack.c.l.b16 %v6279
    %v6610 = vunpack.c.h.b16 %v6279
    %v6611 = vunpack.c.l.b16 %v6280
    %v6612 = vunpack.c.h.b16 %v6280
    %v6613 = vunpack.c.l.b16 %v6281
    %v6614 = vunpack.c.h.b16 %v6281
    %v6615 = vunpack.c.l.b16 %v6282
    %v6616 = vunpack.c.h.b16 %v6282
    %v6617 = vunpack.c.l.b16 %v6283
    %v6618 = vunpack.c.h.b16 %v6283
    %v6619 = vunpack.c.l.b16 %v6284
    %v6620 = vunpack.c.h.b16 %v6284
    %v6621 = vunpack.c.l.b16 %v6285
    %v6622 = vunpack.c.h.b16 %v6285
    %v6623 = vunpack.c.l.b16 %v6286
    %v6624 = vunpack.c.h.b16 %v6286
    %v6625 = vunpack.c.l.b16 %v6287
    %v6626 = vunpack.c.h.b16 %v6287
    %v6627 = vunpack.c.l.b16 %v6288
    %v6628 = vunpack.c.h.b16 %v6288
    %v6629 = vunpack.c.l.b16 %v6289
    %v6630 = vunpack.c.h.b16 %v6289
    %v6631 = vunpack.c.l.b16 %v6290
    %v6632 = vunpack.c.h.b16 %v6290
    %v6633 = vunpack.c.l.b16 %v6291
    %v6634 = vunpack.c.h.b16 %v6291
    %v6635 = vunpack.c.l.b16 %v6292
    %v6636 = vunpack.c.h.b16 %v6292
    %v6637 = vunpack.c.l.b16 %v6293
    %v6638 = vunpack.c.h.b16 %v6293
    %v6639 = vunpack.c.l.b16 %v6294
    %v6640 = vunpack.c.h.b16 %v6294
    %v6641 = vunpack.c.l.b16 %v6295
    %v6642 = vunpack.c.h.b16 %v6295
    %v6643 = vunpack.c.l.b16 %v6296
    %v6644 = vunpack.c.h.b16 %v6296
    %v6645 = vunpack.c.l.b16 %v6297
    %v6646 = vunpack.c.h.b16 %v6297
    %v6647 = vunpack.c.l.b16 %v6298
    %v6648 = vunpack.c.h.b16 %v6298
    %v6649 = vunpack.c.l.b16 %v6299
    %v6650 = vunpack.c.h.b16 %v6299
    %v6651 = vunpack.c.l.b16 %v6300
    %v6652 = vunpack.c.h.b16 %v6300
    %v6653 = vpack.c.b16 %v6527, %v6525
    %v6654 = vpack.c.b16 %v6528, %v6526
    %v6655 = vpack.c.b16 %v6531, %v6529
    %v6656 = vpack.c.b16 %v6532, %v6530
    %v6657 = vpack.c.b16 %v6535, %v6533
    %v6658 = vpack.c.b16 %v6536, %v6534
    %v6659 = vpack.c.b16 %v6539, %v6537
    %v6660 = vpack.c.b16 %v6540, %v6538
    %v6661 = vpack.c.b16 %v6543, %v6541
    %v6662 = vpack.c.b16 %v6544, %v6542
    %v6663 = vpack.c.b16 %v6547, %v6545
    %v6664 = vpack.c.b16 %v6548, %v6546
    %v6665 = vpack.c.b16 %v6551, %v6549
    %v6666 = vpack.c.b16 %v6552, %v6550
    %v6667 = vpack.c.b16 %v6555, %v6553
    %v6668 = vpack.c.b16 %v6556, %v6554
    %v6669 = vpack.c.b16 %v6559, %v6557
    %v6670 = vpack.c.b16 %v6560, %v6558
    %v6671 = vpack.c.b16 %v6563, %v6561
    %v6672 = vpack.c.b16 %v6564, %v6562
    %v6673 = vpack.c.b16 %v6567, %v6565
    %v6674 = vpack.c.b16 %v6568, %v6566
    %v6675 = vpack.c.b16 %v6571, %v6569
    %v6676 = vpack.c.b16 %v6572, %v6570
    %v6677 = vpack.c.b16 %v6575, %v6573
    %v6678 = vpack.c.b16 %v6576, %v6574
    %v6679 = vpack.c.b16 %v6579, %v6577
    %v6680 = vpack.c.b16 %v6580, %v6578
    %v6681 = vpack.c.b16 %v6583, %v6581
    %v6682 = vpack.c.b16 %v6584, %v6582
    %v6683 = vpack.c.b16 %v6587, %v6585
    %v6684 = vpack.c.b16 %v6588, %v6586
    %v6685 = vpack.c.b16 %v6591, %v6589
    %v6686 = vpack.c.b16 %v6592, %v6590
    %v6687 = vpack.c.b16 %v6595, %v6593
    %v6688 = vpack.c.b16 %v6596, %v6594
    %v6689 = vpack.c.b16 %v6599, %v6597
    %v6690 = vpack.c.b16 %v6600, %v6598
    %v6691 = vpack.c.b16 %v6603, %v6601
    %v6692 = vpack.c.b16 %v6604, %v6602
    %v6693 = vpack.c.b16 %v6607, %v6605
    %v6694 = vpack.c.b16 %v6608, %v6606
    %v6695 = vpack.c.b16 %v6611, %v6609
    %v6696 = vpack.c.b16 %v6612, %v6610
    %v6697 = vpack.c.b16 %v6615, %v6613
    %v6698 = vpack.c.b16 %v6616, %v6614
    %v6699 = vpack.c.b16 %v6619, %v6617
    %v6700 = vpack.c.b16 %v6620, %v6618
    %v6701 = vpack.c.b16 %v6623, %v6621
    %v6702 = vpack.c.b16 %v6624, %v6622
    %v6703 = vpack.c.b16 %v6627, %v6625
    %v6704 = vpack.c.b16 %v6628, %v6626
    %v6705 = vpack.c.b16 %v6631, %v6629
    %v6706 = vpack.c.b16 %v6632, %v6630
    %v6707 = vpack.c.b16 %v6635, %v6633
    %v6708 = vpack.c.b16 %v6636, %v6634
    %v6709 = vpack.c.b16 %v6639, %v6637
    %v6710 = vpack.c.b16 %v6640, %v6638
    %v6711 = vpack.c.b16 %v6643, %v6641
    %v6712 = vpack.c.b16 %v6644, %v6642
    %v6713 = vpack.c.b16 %v6647, %v6645
    %v6714 = vpack.c.b16 %v6648, %v6646
    %v6715 = vpack.c.b16 %v6651, %v6649
    %v6716 = vpack.c.b16 %v6652, %v6650
    %6781 = vmatpush.bf16.msra.mxu0 %v6667
    %6782 = vmatpush.bf16.msra.mxu0 %v6665
    %6783 = vmatpush.bf16.msra.mxu0 %v6663
    %6784 = vmatpush.bf16.msra.mxu0 %v6661
    %6785 = vmatpush.bf16.msra.mxu0 %v6659
    %6786 = vmatpush.bf16.msra.mxu0 %v6657
    %6787 = vmatpush.bf16.msra.mxu0 %v6655
    %6788 = vmatpush.bf16.msra.mxu0 %v6653
    %6789 = vmatmul.bf16.gmra.mxu0 %v6397
    %v6790 = vpop.f32.mrf.mxu0
    %v6791 = vadd.f32 0.0, %v6790
    %v6792 = vpop.f32.mrf.mxu0
    %v6793 = vadd.f32 0.0, %v6792
    %6794 = vmatmul.bf16.gmra.mxu0 %v6401
    %v6795 = vpop.f32.mrf.mxu0
    %v6796 = vadd.f32 0.0, %v6795
    %v6797 = vpop.f32.mrf.mxu0
    %v6798 = vadd.f32 0.0, %v6797
    %6799 = vmatmul.bf16.gmra.mxu0 %v6405
    %v6800 = vpop.f32.mrf.mxu0
    %v6801 = vadd.f32 0.0, %v6800
    %v6802 = vpop.f32.mrf.mxu0
    %v6803 = vadd.f32 0.0, %v6802
    %6804 = vmatmul.bf16.gmra.mxu0 %v6409
    %v6805 = vpop.f32.mrf.mxu0
    %v6806 = vadd.f32 0.0, %v6805
    %v6807 = vpop.f32.mrf.mxu0
    %v6808 = vadd.f32 0.0, %v6807
    %6809 = vmatmul.bf16.gmra.mxu0 %v6413
    %v6810 = vpop.f32.mrf.mxu0
    %v6811 = vadd.f32 0.0, %v6810
    %v6812 = vpop.f32.mrf.mxu0
    %v6813 = vadd.f32 0.0, %v6812
    %6814 = vmatmul.bf16.gmra.mxu0 %v6417
    %v6815 = vpop.f32.mrf.mxu0
    %v6816 = vadd.f32 0.0, %v6815
    %v6817 = vpop.f32.mrf.mxu0
    %v6818 = vadd.f32 0.0, %v6817
    %6819 = vmatmul.bf16.gmra.mxu0 %v6421
    %v6820 = vpop.f32.mrf.mxu0
    %v6821 = vadd.f32 0.0, %v6820
    %v6822 = vpop.f32.mrf.mxu0
    %v6823 = vadd.f32 0.0, %v6822
    %6824 = vmatmul.bf16.gmra.mxu0 %v6425
    %v6825 = vpop.f32.mrf.mxu0
    %v6826 = vadd.f32 0.0, %v6825
    %v6827 = vpop.f32.mrf.mxu0
    %v6828 = vadd.f32 0.0, %v6827
    %6829 = vdwg.mxu0
    %6830 = vmatpush.bf16.msra.mxu0 %v6683
    %6831 = vmatpush.bf16.msra.mxu0 %v6681
    %6832 = vmatpush.bf16.msra.mxu0 %v6679
    %6833 = vmatpush.bf16.msra.mxu0 %v6677
    %6834 = vmatpush.bf16.msra.mxu0 %v6675
    %6835 = vmatpush.bf16.msra.mxu0 %v6673
    %6836 = vmatpush.bf16.msra.mxu0 %v6671
    %6837 = vmatpush.bf16.msra.mxu0 %v6669
    %6838 = vmatmul.bf16.gmra.mxu0 %v6398
    %v6839 = vpop.f32.mrf.mxu0
    %v6840 = vadd.f32 %v6791, %v6839
    %v6841 = vpop.f32.mrf.mxu0
    %v6842 = vadd.f32 %v6793, %v6841
    %6843 = vmatmul.bf16.gmra.mxu0 %v6402
    %v6844 = vpop.f32.mrf.mxu0
    %v6845 = vadd.f32 %v6796, %v6844
    %v6846 = vpop.f32.mrf.mxu0
    %v6847 = vadd.f32 %v6798, %v6846
    %6848 = vmatmul.bf16.gmra.mxu0 %v6406
    %v6849 = vpop.f32.mrf.mxu0
    %v6850 = vadd.f32 %v6801, %v6849
    %v6851 = vpop.f32.mrf.mxu0
    %v6852 = vadd.f32 %v6803, %v6851
    %6853 = vmatmul.bf16.gmra.mxu0 %v6410
    %v6854 = vpop.f32.mrf.mxu0
    %v6855 = vadd.f32 %v6806, %v6854
    %v6856 = vpop.f32.mrf.mxu0
    %v6857 = vadd.f32 %v6808, %v6856
    %6858 = vmatmul.bf16.gmra.mxu0 %v6414
    %v6859 = vpop.f32.mrf.mxu0
    %v6860 = vadd.f32 %v6811, %v6859
    %v6861 = vpop.f32.mrf.mxu0
    %v6862 = vadd.f32 %v6813, %v6861
    %6863 = vmatmul.bf16.gmra.mxu0 %v6418
    %v6864 = vpop.f32.mrf.mxu0
    %v6865 = vadd.f32 %v6816, %v6864
    %v6866 = vpop.f32.mrf.mxu0
    %v6867 = vadd.f32 %v6818, %v6866
    %6868 = vmatmul.bf16.gmra.mxu0 %v6422
    %v6869 = vpop.f32.mrf.mxu0
    %v6870 = vadd.f32 %v6821, %v6869
    %v6871 = vpop.f32.mrf.mxu0
    %v6872 = vadd.f32 %v6823, %v6871
    %6873 = vmatmul.bf16.gmra.mxu0 %v6426
    %v6874 = vpop.f32.mrf.mxu0
    %v6875 = vadd.f32 %v6826, %v6874
    %v6876 = vpop.f32.mrf.mxu0
    %v6877 = vadd.f32 %v6828, %v6876
    %6878 = vdwg.mxu0
    %6879 = vmatpush.bf16.msra.mxu0 %v6699
    %6880 = vmatpush.bf16.msra.mxu0 %v6697
    %6881 = vmatpush.bf16.msra.mxu0 %v6695
    %6882 = vmatpush.bf16.msra.mxu0 %v6693
    %6883 = vmatpush.bf16.msra.mxu0 %v6691
    %6884 = vmatpush.bf16.msra.mxu0 %v6689
    %6885 = vmatpush.bf16.msra.mxu0 %v6687
    %6886 = vmatpush.bf16.msra.mxu0 %v6685
    %6887 = vmatmul.bf16.gmra.mxu0 %v6399
    %v6888 = vpop.f32.mrf.mxu0
    %v6889 = vadd.f32 %v6840, %v6888
    %v6890 = vpop.f32.mrf.mxu0
    %v6891 = vadd.f32 %v6842, %v6890
    %6892 = vmatmul.bf16.gmra.mxu0 %v6403
    %v6893 = vpop.f32.mrf.mxu0
    %v6894 = vadd.f32 %v6845, %v6893
    %v6895 = vpop.f32.mrf.mxu0
    %v6896 = vadd.f32 %v6847, %v6895
    %6897 = vmatmul.bf16.gmra.mxu0 %v6407
    %v6898 = vpop.f32.mrf.mxu0
    %v6899 = vadd.f32 %v6850, %v6898
    %v6900 = vpop.f32.mrf.mxu0
    %v6901 = vadd.f32 %v6852, %v6900
    %6902 = vmatmul.bf16.gmra.mxu0 %v6411
    %v6903 = vpop.f32.mrf.mxu0
    %v6904 = vadd.f32 %v6855, %v6903
    %v6905 = vpop.f32.mrf.mxu0
    %v6906 = vadd.f32 %v6857, %v6905
    %6907 = vmatmul.bf16.gmra.mxu0 %v6415
    %v6908 = vpop.f32.mrf.mxu0
    %v6909 = vadd.f32 %v6860, %v6908
    %v6910 = vpop.f32.mrf.mxu0
    %v6911 = vadd.f32 %v6862, %v6910
    %6912 = vmatmul.bf16.gmra.mxu0 %v6419
    %v6913 = vpop.f32.mrf.mxu0
    %v6914 = vadd.f32 %v6865, %v6913
    %v6915 = vpop.f32.mrf.mxu0
    %v6916 = vadd.f32 %v6867, %v6915
    %6917 = vmatmul.bf16.gmra.mxu0 %v6423
    %v6918 = vpop.f32.mrf.mxu0
    %v6919 = vadd.f32 %v6870, %v6918
    %v6920 = vpop.f32.mrf.mxu0
    %v6921 = vadd.f32 %v6872, %v6920
    %6922 = vmatmul.bf16.gmra.mxu0 %v6427
    %v6923 = vpop.f32.mrf.mxu0
    %v6924 = vadd.f32 %v6875, %v6923
    %v6925 = vpop.f32.mrf.mxu0
    %v6926 = vadd.f32 %v6877, %v6925
    %6927 = vdwg.mxu0
    %6928 = vmatpush.bf16.msra.mxu0 %v6715
    %6929 = vmatpush.bf16.msra.mxu0 %v6713
    %6930 = vmatpush.bf16.msra.mxu0 %v6711
    %6931 = vmatpush.bf16.msra.mxu0 %v6709
    %6932 = vmatpush.bf16.msra.mxu0 %v6707
    %6933 = vmatpush.bf16.msra.mxu0 %v6705
    %6934 = vmatpush.bf16.msra.mxu0 %v6703
    %6935 = vmatpush.bf16.msra.mxu0 %v6701
    %6936 = vmatmul.bf16.gmra.mxu0 %v6400
    %v6937 = vpop.f32.mrf.mxu0
    %v6938 = vadd.f32 %v6889, %v6937
    %v6939 = vpop.f32.mrf.mxu0
    %v6940 = vadd.f32 %v6891, %v6939
    %6941 = vmatmul.bf16.gmra.mxu0 %v6404
    %v6942 = vpop.f32.mrf.mxu0
    %v6943 = vadd.f32 %v6894, %v6942
    %v6944 = vpop.f32.mrf.mxu0
    %v6945 = vadd.f32 %v6896, %v6944
    %6946 = vmatmul.bf16.gmra.mxu0 %v6408
    %v6947 = vpop.f32.mrf.mxu0
    %v6948 = vadd.f32 %v6899, %v6947
    %v6949 = vpop.f32.mrf.mxu0
    %v6950 = vadd.f32 %v6901, %v6949
    %6951 = vmatmul.bf16.gmra.mxu0 %v6412
    %v6952 = vpop.f32.mrf.mxu0
    %v6953 = vadd.f32 %v6904, %v6952
    %v6954 = vpop.f32.mrf.mxu0
    %v6955 = vadd.f32 %v6906, %v6954
    %6956 = vmatmul.bf16.gmra.mxu0 %v6416
    %v6957 = vpop.f32.mrf.mxu0
    %v6958 = vadd.f32 %v6909, %v6957
    %v6959 = vpop.f32.mrf.mxu0
    %v6960 = vadd.f32 %v6911, %v6959
    %6961 = vmatmul.bf16.gmra.mxu0 %v6420
    %v6962 = vpop.f32.mrf.mxu0
    %v6963 = vadd.f32 %v6914, %v6962
    %v6964 = vpop.f32.mrf.mxu0
    %v6965 = vadd.f32 %v6916, %v6964
    %6966 = vmatmul.bf16.gmra.mxu0 %v6424
    %v6967 = vpop.f32.mrf.mxu0
    %v6968 = vadd.f32 %v6919, %v6967
    %v6969 = vpop.f32.mrf.mxu0
    %v6970 = vadd.f32 %v6921, %v6969
    %6971 = vmatmul.bf16.gmra.mxu0 %v6428
    %v6972 = vpop.f32.mrf.mxu0
    %v6973 = vadd.f32 %v6924, %v6972
    %v6974 = vpop.f32.mrf.mxu0
    %v6975 = vadd.f32 %v6926, %v6974
    %6976 = vdwg.mxu0
    %6977 = vmatpush.bf16.msra.mxu0 %v6668
    %6978 = vmatpush.bf16.msra.mxu0 %v6666
    %6979 = vmatpush.bf16.msra.mxu0 %v6664
    %6980 = vmatpush.bf16.msra.mxu0 %v6662
    %6981 = vmatpush.bf16.msra.mxu0 %v6660
    %6982 = vmatpush.bf16.msra.mxu0 %v6658
    %6983 = vmatpush.bf16.msra.mxu0 %v6656
    %6984 = vmatpush.bf16.msra.mxu0 %v6654
    %6985 = vmatmul.bf16.gmra.mxu0 %v6397
    %v6986 = vpop.f32.mrf.mxu0
    %v6987 = vadd.f32 0.0, %v6986
    %v6988 = vpop.f32.mrf.mxu0
    %v6989 = vadd.f32 0.0, %v6988
    %6990 = vmatmul.bf16.gmra.mxu0 %v6401
    %v6991 = vpop.f32.mrf.mxu0
    %v6992 = vadd.f32 0.0, %v6991
    %v6993 = vpop.f32.mrf.mxu0
    %v6994 = vadd.f32 0.0, %v6993
    %6995 = vmatmul.bf16.gmra.mxu0 %v6405
    %v6996 = vpop.f32.mrf.mxu0
    %v6997 = vadd.f32 0.0, %v6996
    %v6998 = vpop.f32.mrf.mxu0
    %v6999 = vadd.f32 0.0, %v6998
    %7000 = vmatmul.bf16.gmra.mxu0 %v6409
    %v7001 = vpop.f32.mrf.mxu0
    %v7002 = vadd.f32 0.0, %v7001
    %v7003 = vpop.f32.mrf.mxu0
    %v7004 = vadd.f32 0.0, %v7003
    %7005 = vmatmul.bf16.gmra.mxu0 %v6413
    %v7006 = vpop.f32.mrf.mxu0
    %v7007 = vadd.f32 0.0, %v7006
    %v7008 = vpop.f32.mrf.mxu0
    %v7009 = vadd.f32 0.0, %v7008
    %7010 = vmatmul.bf16.gmra.mxu0 %v6417
    %v7011 = vpop.f32.mrf.mxu0
    %v7012 = vadd.f32 0.0, %v7011
    %v7013 = vpop.f32.mrf.mxu0
    %v7014 = vadd.f32 0.0, %v7013
    %7015 = vmatmul.bf16.gmra.mxu0 %v6421
    %v7016 = vpop.f32.mrf.mxu0
    %v7017 = vadd.f32 0.0, %v7016
    %v7018 = vpop.f32.mrf.mxu0
    %v7019 = vadd.f32 0.0, %v7018
    %7020 = vmatmul.bf16.gmra.mxu0 %v6425
    %v7021 = vpop.f32.mrf.mxu0
    %v7022 = vadd.f32 0.0, %v7021
    %v7023 = vpop.f32.mrf.mxu0
    %v7024 = vadd.f32 0.0, %v7023
    %7025 = vdwg.mxu0
    %7026 = vmatpush.bf16.msra.mxu0 %v6684
    %7027 = vmatpush.bf16.msra.mxu0 %v6682
    %7028 = vmatpush.bf16.msra.mxu0 %v6680
    %7029 = vmatpush.bf16.msra.mxu0 %v6678
    %7030 = vmatpush.bf16.msra.mxu0 %v6676
    %7031 = vmatpush.bf16.msra.mxu0 %v6674
    %7032 = vmatpush.bf16.msra.mxu0 %v6672
    %7033 = vmatpush.bf16.msra.mxu0 %v6670
    %7034 = vmatmul.bf16.gmra.mxu0 %v6398
    %v7035 = vpop.f32.mrf.mxu0
    %v7036 = vadd.f32 %v6987, %v7035
    %v7037 = vpop.f32.mrf.mxu0
    %v7038 = vadd.f32 %v6989, %v7037
    %7039 = vmatmul.bf16.gmra.mxu0 %v6402
    %v7040 = vpop.f32.mrf.mxu0
    %v7041 = vadd.f32 %v6992, %v7040
    %v7042 = vpop.f32.mrf.mxu0
    %v7043 = vadd.f32 %v6994, %v7042
    %7044 = vmatmul.bf16.gmra.mxu0 %v6406
    %v7045 = vpop.f32.mrf.mxu0
    %v7046 = vadd.f32 %v6997, %v7045
    %v7047 = vpop.f32.mrf.mxu0
    %v7048 = vadd.f32 %v6999, %v7047
    %7049 = vmatmul.bf16.gmra.mxu0 %v6410
    %v7050 = vpop.f32.mrf.mxu0
    %v7051 = vadd.f32 %v7002, %v7050
    %v7052 = vpop.f32.mrf.mxu0
    %v7053 = vadd.f32 %v7004, %v7052
    %7054 = vmatmul.bf16.gmra.mxu0 %v6414
    %v7055 = vpop.f32.mrf.mxu0
    %v7056 = vadd.f32 %v7007, %v7055
    %v7057 = vpop.f32.mrf.mxu0
    %v7058 = vadd.f32 %v7009, %v7057
    %7059 = vmatmul.bf16.gmra.mxu0 %v6418
    %v7060 = vpop.f32.mrf.mxu0
    %v7061 = vadd.f32 %v7012, %v7060
    %v7062 = vpop.f32.mrf.mxu0
    %v7063 = vadd.f32 %v7014, %v7062
    %7064 = vmatmul.bf16.gmra.mxu0 %v6422
    %v7065 = vpop.f32.mrf.mxu0
    %v7066 = vadd.f32 %v7017, %v7065
    %v7067 = vpop.f32.mrf.mxu0
    %v7068 = vadd.f32 %v7019, %v7067
    %7069 = vmatmul.bf16.gmra.mxu0 %v6426
    %v7070 = vpop.f32.mrf.mxu0
    %v7071 = vadd.f32 %v7022, %v7070
    %v7072 = vpop.f32.mrf.mxu0
    %v7073 = vadd.f32 %v7024, %v7072
    %7074 = vdwg.mxu0
    %7075 = vmatpush.bf16.msra.mxu0 %v6700
    %7076 = vmatpush.bf16.msra.mxu0 %v6698
    %7077 = vmatpush.bf16.msra.mxu0 %v6696
    %7078 = vmatpush.bf16.msra.mxu0 %v6694
    %7079 = vmatpush.bf16.msra.mxu0 %v6692
    %7080 = vmatpush.bf16.msra.mxu0 %v6690
    %7081 = vmatpush.bf16.msra.mxu0 %v6688
    %7082 = vmatpush.bf16.msra.mxu0 %v6686
    %7083 = vmatmul.bf16.gmra.mxu0 %v6399
    %v7084 = vpop.f32.mrf.mxu0
    %v7085 = vadd.f32 %v7036, %v7084
    %v7086 = vpop.f32.mrf.mxu0
    %v7087 = vadd.f32 %v7038, %v7086
    %7088 = vmatmul.bf16.gmra.mxu0 %v6403
    %v7089 = vpop.f32.mrf.mxu0
    %v7090 = vadd.f32 %v7041, %v7089
    %v7091 = vpop.f32.mrf.mxu0
    %v7092 = vadd.f32 %v7043, %v7091
    %7093 = vmatmul.bf16.gmra.mxu0 %v6407
    %v7094 = vpop.f32.mrf.mxu0
    %v7095 = vadd.f32 %v7046, %v7094
    %v7096 = vpop.f32.mrf.mxu0
    %v7097 = vadd.f32 %v7048, %v7096
    %7098 = vmatmul.bf16.gmra.mxu0 %v6411
    %v7099 = vpop.f32.mrf.mxu0
    %v7100 = vadd.f32 %v7051, %v7099
    %v7101 = vpop.f32.mrf.mxu0
    %v7102 = vadd.f32 %v7053, %v7101
    %7103 = vmatmul.bf16.gmra.mxu0 %v6415
    %v7104 = vpop.f32.mrf.mxu0
    %v7105 = vadd.f32 %v7056, %v7104
    %v7106 = vpop.f32.mrf.mxu0
    %v7107 = vadd.f32 %v7058, %v7106
    %7108 = vmatmul.bf16.gmra.mxu0 %v6419
    %v7109 = vpop.f32.mrf.mxu0
    %v7110 = vadd.f32 %v7061, %v7109
    %v7111 = vpop.f32.mrf.mxu0
    %v7112 = vadd.f32 %v7063, %v7111
    %7113 = vmatmul.bf16.gmra.mxu0 %v6423
    %v7114 = vpop.f32.mrf.mxu0
    %v7115 = vadd.f32 %v7066, %v7114
    %v7116 = vpop.f32.mrf.mxu0
    %v7117 = vadd.f32 %v7068, %v7116
    %7118 = vmatmul.bf16.gmra.mxu0 %v6427
    %v7119 = vpop.f32.mrf.mxu0
    %v7120 = vadd.f32 %v7071, %v7119
    %v7121 = vpop.f32.mrf.mxu0
    %v7122 = vadd.f32 %v7073, %v7121
    %7123 = vdwg.mxu0
    %7124 = vmatpush.bf16.msra.mxu0 %v6716
    %7125 = vmatpush.bf16.msra.mxu0 %v6714
    %7126 = vmatpush.bf16.msra.mxu0 %v6712
    %7127 = vmatpush.bf16.msra.mxu0 %v6710
    %7128 = vmatpush.bf16.msra.mxu0 %v6708
    %7129 = vmatpush.bf16.msra.mxu0 %v6706
    %7130 = vmatpush.bf16.msra.mxu0 %v6704
    %7131 = vmatpush.bf16.msra.mxu0 %v6702
    %7132 = vmatmul.bf16.gmra.mxu0 %v6400
    %v7133 = vpop.f32.mrf.mxu0
    %v7134 = vadd.f32 %v7085, %v7133
    %v7135 = vpop.f32.mrf.mxu0
    %v7136 = vadd.f32 %v7087, %v7135
    %7137 = vmatmul.bf16.gmra.mxu0 %v6404
    %v7138 = vpop.f32.mrf.mxu0
    %v7139 = vadd.f32 %v7090, %v7138
    %v7140 = vpop.f32.mrf.mxu0
    %v7141 = vadd.f32 %v7092, %v7140
    %7142 = vmatmul.bf16.gmra.mxu0 %v6408
    %v7143 = vpop.f32.mrf.mxu0
    %v7144 = vadd.f32 %v7095, %v7143
    %v7145 = vpop.f32.mrf.mxu0
    %v7146 = vadd.f32 %v7097, %v7145
    %7147 = vmatmul.bf16.gmra.mxu0 %v6412
    %v7148 = vpop.f32.mrf.mxu0
    %v7149 = vadd.f32 %v7100, %v7148
    %v7150 = vpop.f32.mrf.mxu0
    %v7151 = vadd.f32 %v7102, %v7150
    %7152 = vmatmul.bf16.gmra.mxu0 %v6416
    %v7153 = vpop.f32.mrf.mxu0
    %v7154 = vadd.f32 %v7105, %v7153
    %v7155 = vpop.f32.mrf.mxu0
    %v7156 = vadd.f32 %v7107, %v7155
    %7157 = vmatmul.bf16.gmra.mxu0 %v6420
    %v7158 = vpop.f32.mrf.mxu0
    %v7159 = vadd.f32 %v7110, %v7158
    %v7160 = vpop.f32.mrf.mxu0
    %v7161 = vadd.f32 %v7112, %v7160
    %7162 = vmatmul.bf16.gmra.mxu0 %v6424
    %v7163 = vpop.f32.mrf.mxu0
    %v7164 = vadd.f32 %v7115, %v7163
    %v7165 = vpop.f32.mrf.mxu0
    %v7166 = vadd.f32 %v7117, %v7165
    %7167 = vmatmul.bf16.gmra.mxu0 %v6428
    %v7168 = vpop.f32.mrf.mxu0
    %v7169 = vadd.f32 %v7120, %v7168
    %v7170 = vpop.f32.mrf.mxu0
    %v7171 = vadd.f32 %v7122, %v7170
    %7172 = vdwg.mxu0
    %v7173 = vadd.f32 %v6171, %v6938
    %v7174 = vadd.f32 %v6172, %v7134
    %v7175 = vadd.f32 %v6173, %v6940
    %v7176 = vadd.f32 %v6174, %v7136
    %v7177 = vadd.f32 %v6175, %v6943
    %v7178 = vadd.f32 %v6176, %v7139
    %v7179 = vadd.f32 %v6177, %v6945
    %v7180 = vadd.f32 %v6178, %v7141
    %v7181 = vadd.f32 %v6179, %v6948
    %v7182 = vadd.f32 %v6180, %v7144
    %v7183 = vadd.f32 %v6181, %v6950
    %v7184 = vadd.f32 %v6182, %v7146
    %v7185 = vadd.f32 %v6183, %v6953
    %v7186 = vadd.f32 %v6184, %v7149
    %v7187 = vadd.f32 %v6185, %v6955
    %v7188 = vadd.f32 %v6186, %v7151
    %v7189 = vadd.f32 %v6187, %v6958
    %v7190 = vadd.f32 %v6188, %v7154
    %v7191 = vadd.f32 %v6189, %v6960
    %v7192 = vadd.f32 %v6190, %v7156
    %v7193 = vadd.f32 %v6191, %v6963
    %v7194 = vadd.f32 %v6192, %v7159
    %v7195 = vadd.f32 %v6193, %v6965
    %v7196 = vadd.f32 %v6194, %v7161
    %v7197 = vadd.f32 %v6195, %v6968
    %v7198 = vadd.f32 %v6196, %v7164
    %v7199 = vadd.f32 %v6197, %v6970
    %v7200 = vadd.f32 %v6198, %v7166
    %v7201 = vadd.f32 %v6199, %v6973
    %v7202 = vadd.f32 %v6200, %v7169
    %v7203 = vadd.f32 %v6201, %v6975
    %v7204 = vadd.f32 %v6202, %v7171
    %s7205 = scalar_lea.vmem [#allocation2], 64
    %v7206 = vld [vmem:[%s7205] sm:$0xff]
    %v7207 = vld [vmem:[%s7205 + $0x8] sm:$0xff]
    %v7208 = vld [vmem:[%s7205 + $0x10] sm:$0xff]
    %v7209 = vld [vmem:[%s7205 + $0x18] sm:$0xff]
    %v7210 = vld [vmem:[%s7205 + $0x20] sm:$0xff]
    %v7211 = vld [vmem:[%s7205 + $0x28] sm:$0xff]
    %v7212 = vld [vmem:[%s7205 + $0x30] sm:$0xff]
    %v7213 = vld [vmem:[%s7205 + $0x38] sm:$0xff]
    %v7214 = vld [vmem:[%s7205 + $0x40] sm:$0xff]
    %v7215 = vld [vmem:[%s7205 + $0x48] sm:$0xff]
    %v7216 = vld [vmem:[%s7205 + $0x50] sm:$0xff]
    %v7217 = vld [vmem:[%s7205 + $0x58] sm:$0xff]
    %v7218 = vld [vmem:[%s7205 + $0x60] sm:$0xff]
    %v7219 = vld [vmem:[%s7205 + $0x68] sm:$0xff]
    %v7220 = vld [vmem:[%s7205 + $0x70] sm:$0xff]
    %v7221 = vld [vmem:[%s7205 + $0x78] sm:$0xff]
    %v7222 = vld [vmem:[%s7205 + $0x80] sm:$0xff]
    %v7223 = vld [vmem:[%s7205 + $0x88] sm:$0xff]
    %v7224 = vld [vmem:[%s7205 + $0x90] sm:$0xff]
    %v7225 = vld [vmem:[%s7205 + $0x98] sm:$0xff]
    %v7226 = vld [vmem:[%s7205 + $0xa0] sm:$0xff]
    %v7227 = vld [vmem:[%s7205 + $0xa8] sm:$0xff]
    %v7228 = vld [vmem:[%s7205 + $0xb0] sm:$0xff]
    %v7229 = vld [vmem:[%s7205 + $0xb8] sm:$0xff]
    %v7230 = vld [vmem:[%s7205 + $0xc0] sm:$0xff]
    %v7231 = vld [vmem:[%s7205 + $0xc8] sm:$0xff]
    %v7232 = vld [vmem:[%s7205 + $0xd0] sm:$0xff]
    %v7233 = vld [vmem:[%s7205 + $0xd8] sm:$0xff]
    %v7234 = vld [vmem:[%s7205 + $0xe0] sm:$0xff]
    %v7235 = vld [vmem:[%s7205 + $0xe8] sm:$0xff]
    %v7236 = vld [vmem:[%s7205 + $0xf0] sm:$0xff]
    %v7237 = vld [vmem:[%s7205 + $0xf8] sm:$0xff]
    %s7238 = scalar_lea.vmem [#allocation13], 2048
    %v7239 = vld [vmem:[%s7238] sm:$0xff]
    %v7240 = vld [vmem:[%s7238 + $0x8] sm:$0xff]
    %v7241 = vld [vmem:[%s7238 + $0x10] sm:$0xff]
    %v7242 = vld [vmem:[%s7238 + $0x18] sm:$0xff]
    %v7243 = vld [vmem:[%s7238 + $0x20] sm:$0xff]
    %v7244 = vld [vmem:[%s7238 + $0x28] sm:$0xff]
    %v7245 = vld [vmem:[%s7238 + $0x30] sm:$0xff]
    %v7246 = vld [vmem:[%s7238 + $0x38] sm:$0xff]
    %v7247 = vld [vmem:[%s7238 + $0x40] sm:$0xff]
    %v7248 = vld [vmem:[%s7238 + $0x48] sm:$0xff]
    %v7249 = vld [vmem:[%s7238 + $0x50] sm:$0xff]
    %v7250 = vld [vmem:[%s7238 + $0x58] sm:$0xff]
    %v7251 = vld [vmem:[%s7238 + $0x60] sm:$0xff]
    %v7252 = vld [vmem:[%s7238 + $0x68] sm:$0xff]
    %v7253 = vld [vmem:[%s7238 + $0x70] sm:$0xff]
    %v7254 = vld [vmem:[%s7238 + $0x78] sm:$0xff]
    %v7255 = vld [vmem:[%s7238 + $0x80] sm:$0xff]
    %v7256 = vld [vmem:[%s7238 + $0x88] sm:$0xff]
    %v7257 = vld [vmem:[%s7238 + $0x90] sm:$0xff]
    %v7258 = vld [vmem:[%s7238 + $0x98] sm:$0xff]
    %v7259 = vld [vmem:[%s7238 + $0xa0] sm:$0xff]
    %v7260 = vld [vmem:[%s7238 + $0xa8] sm:$0xff]
    %v7261 = vld [vmem:[%s7238 + $0xb0] sm:$0xff]
    %v7262 = vld [vmem:[%s7238 + $0xb8] sm:$0xff]
    %v7263 = vld [vmem:[%s7238 + $0xc0] sm:$0xff]
    %v7264 = vld [vmem:[%s7238 + $0xc8] sm:$0xff]
    %v7265 = vld [vmem:[%s7238 + $0xd0] sm:$0xff]
    %v7266 = vld [vmem:[%s7238 + $0xd8] sm:$0xff]
    %v7267 = vld [vmem:[%s7238 + $0xe0] sm:$0xff]
    %v7268 = vld [vmem:[%s7238 + $0xe8] sm:$0xff]
    %v7269 = vld [vmem:[%s7238 + $0xf0] sm:$0xff]
    %v7270 = vld [vmem:[%s7238 + $0xf8] sm:$0xff]
    %v7271 = vld [vmem:[%s7238 + $0x100] sm:$0xff]
    %v7272 = vld [vmem:[%s7238 + $0x108] sm:$0xff]
    %v7273 = vld [vmem:[%s7238 + $0x110] sm:$0xff]
    %v7274 = vld [vmem:[%s7238 + $0x118] sm:$0xff]
    %v7275 = vld [vmem:[%s7238 + $0x120] sm:$0xff]
    %v7276 = vld [vmem:[%s7238 + $0x128] sm:$0xff]
    %v7277 = vld [vmem:[%s7238 + $0x130] sm:$0xff]
    %v7278 = vld [vmem:[%s7238 + $0x138] sm:$0xff]
    %v7279 = vld [vmem:[%s7238 + $0x140] sm:$0xff]
    %v7280 = vld [vmem:[%s7238 + $0x148] sm:$0xff]
    %v7281 = vld [vmem:[%s7238 + $0x150] sm:$0xff]
    %v7282 = vld [vmem:[%s7238 + $0x158] sm:$0xff]
    %v7283 = vld [vmem:[%s7238 + $0x160] sm:$0xff]
    %v7284 = vld [vmem:[%s7238 + $0x168] sm:$0xff]
    %v7285 = vld [vmem:[%s7238 + $0x170] sm:$0xff]
    %v7286 = vld [vmem:[%s7238 + $0x178] sm:$0xff]
    %v7287 = vld [vmem:[%s7238 + $0x180] sm:$0xff]
    %v7288 = vld [vmem:[%s7238 + $0x188] sm:$0xff]
    %v7289 = vld [vmem:[%s7238 + $0x190] sm:$0xff]
    %v7290 = vld [vmem:[%s7238 + $0x198] sm:$0xff]
    %v7291 = vld [vmem:[%s7238 + $0x1a0] sm:$0xff]
    %v7292 = vld [vmem:[%s7238 + $0x1a8] sm:$0xff]
    %v7293 = vld [vmem:[%s7238 + $0x1b0] sm:$0xff]
    %v7294 = vld [vmem:[%s7238 + $0x1b8] sm:$0xff]
    %v7295 = vld [vmem:[%s7238 + $0x1c0] sm:$0xff]
    %v7296 = vld [vmem:[%s7238 + $0x1c8] sm:$0xff]
    %v7297 = vld [vmem:[%s7238 + $0x1d0] sm:$0xff]
    %v7298 = vld [vmem:[%s7238 + $0x1d8] sm:$0xff]
    %v7299 = vld [vmem:[%s7238 + $0x1e0] sm:$0xff]
    %v7300 = vld [vmem:[%s7238 + $0x1e8] sm:$0xff]
    %v7301 = vld [vmem:[%s7238 + $0x1f0] sm:$0xff]
    %v7302 = vld [vmem:[%s7238 + $0x1f8] sm:$0xff]
    %v7335 = vunpack.c.l.b16 %v7206
    %v7336 = vunpack.c.h.b16 %v7206
    %v7337 = vunpack.c.l.b16 %v7207
    %v7338 = vunpack.c.h.b16 %v7207
    %v7339 = vunpack.c.l.b16 %v7208
    %v7340 = vunpack.c.h.b16 %v7208
    %v7341 = vunpack.c.l.b16 %v7209
    %v7342 = vunpack.c.h.b16 %v7209
    %v7343 = vunpack.c.l.b16 %v7210
    %v7344 = vunpack.c.h.b16 %v7210
    %v7345 = vunpack.c.l.b16 %v7211
    %v7346 = vunpack.c.h.b16 %v7211
    %v7347 = vunpack.c.l.b16 %v7212
    %v7348 = vunpack.c.h.b16 %v7212
    %v7349 = vunpack.c.l.b16 %v7213
    %v7350 = vunpack.c.h.b16 %v7213
    %v7351 = vunpack.c.l.b16 %v7214
    %v7352 = vunpack.c.h.b16 %v7214
    %v7353 = vunpack.c.l.b16 %v7215
    %v7354 = vunpack.c.h.b16 %v7215
    %v7355 = vunpack.c.l.b16 %v7216
    %v7356 = vunpack.c.h.b16 %v7216
    %v7357 = vunpack.c.l.b16 %v7217
    %v7358 = vunpack.c.h.b16 %v7217
    %v7359 = vunpack.c.l.b16 %v7218
    %v7360 = vunpack.c.h.b16 %v7218
    %v7361 = vunpack.c.l.b16 %v7219
    %v7362 = vunpack.c.h.b16 %v7219
    %v7363 = vunpack.c.l.b16 %v7220
    %v7364 = vunpack.c.h.b16 %v7220
    %v7365 = vunpack.c.l.b16 %v7221
    %v7366 = vunpack.c.h.b16 %v7221
    %v7367 = vunpack.c.l.b16 %v7222
    %v7368 = vunpack.c.h.b16 %v7222
    %v7369 = vunpack.c.l.b16 %v7223
    %v7370 = vunpack.c.h.b16 %v7223
    %v7371 = vunpack.c.l.b16 %v7224
    %v7372 = vunpack.c.h.b16 %v7224
    %v7373 = vunpack.c.l.b16 %v7225
    %v7374 = vunpack.c.h.b16 %v7225
    %v7375 = vunpack.c.l.b16 %v7226
    %v7376 = vunpack.c.h.b16 %v7226
    %v7377 = vunpack.c.l.b16 %v7227
    %v7378 = vunpack.c.h.b16 %v7227
    %v7379 = vunpack.c.l.b16 %v7228
    %v7380 = vunpack.c.h.b16 %v7228
    %v7381 = vunpack.c.l.b16 %v7229
    %v7382 = vunpack.c.h.b16 %v7229
    %v7383 = vunpack.c.l.b16 %v7230
    %v7384 = vunpack.c.h.b16 %v7230
    %v7385 = vunpack.c.l.b16 %v7231
    %v7386 = vunpack.c.h.b16 %v7231
    %v7387 = vunpack.c.l.b16 %v7232
    %v7388 = vunpack.c.h.b16 %v7232
    %v7389 = vunpack.c.l.b16 %v7233
    %v7390 = vunpack.c.h.b16 %v7233
    %v7391 = vunpack.c.l.b16 %v7234
    %v7392 = vunpack.c.h.b16 %v7234
    %v7393 = vunpack.c.l.b16 %v7235
    %v7394 = vunpack.c.h.b16 %v7235
    %v7395 = vunpack.c.l.b16 %v7236
    %v7396 = vunpack.c.h.b16 %v7236
    %v7397 = vunpack.c.l.b16 %v7237
    %v7398 = vunpack.c.h.b16 %v7237
    %v7399 = vpack.c.b16 %v7339, %v7335
    %v7400 = vpack.c.b16 %v7340, %v7336
    %v7401 = vpack.c.b16 %v7341, %v7337
    %v7402 = vpack.c.b16 %v7342, %v7338
    %v7403 = vpack.c.b16 %v7347, %v7343
    %v7404 = vpack.c.b16 %v7348, %v7344
    %v7405 = vpack.c.b16 %v7349, %v7345
    %v7406 = vpack.c.b16 %v7350, %v7346
    %v7407 = vpack.c.b16 %v7355, %v7351
    %v7408 = vpack.c.b16 %v7356, %v7352
    %v7409 = vpack.c.b16 %v7357, %v7353
    %v7410 = vpack.c.b16 %v7358, %v7354
    %v7411 = vpack.c.b16 %v7363, %v7359
    %v7412 = vpack.c.b16 %v7364, %v7360
    %v7413 = vpack.c.b16 %v7365, %v7361
    %v7414 = vpack.c.b16 %v7366, %v7362
    %v7415 = vpack.c.b16 %v7371, %v7367
    %v7416 = vpack.c.b16 %v7372, %v7368
    %v7417 = vpack.c.b16 %v7373, %v7369
    %v7418 = vpack.c.b16 %v7374, %v7370
    %v7419 = vpack.c.b16 %v7379, %v7375
    %v7420 = vpack.c.b16 %v7380, %v7376
    %v7421 = vpack.c.b16 %v7381, %v7377
    %v7422 = vpack.c.b16 %v7382, %v7378
    %v7423 = vpack.c.b16 %v7387, %v7383
    %v7424 = vpack.c.b16 %v7388, %v7384
    %v7425 = vpack.c.b16 %v7389, %v7385
    %v7426 = vpack.c.b16 %v7390, %v7386
    %v7427 = vpack.c.b16 %v7395, %v7391
    %v7428 = vpack.c.b16 %v7396, %v7392
    %v7429 = vpack.c.b16 %v7397, %v7393
    %v7430 = vpack.c.b16 %v7398, %v7394
    %v7527 = vunpack.c.l.b16 %v7239
    %v7528 = vunpack.c.h.b16 %v7239
    %v7529 = vunpack.c.l.b16 %v7240
    %v7530 = vunpack.c.h.b16 %v7240
    %v7531 = vunpack.c.l.b16 %v7241
    %v7532 = vunpack.c.h.b16 %v7241
    %v7533 = vunpack.c.l.b16 %v7242
    %v7534 = vunpack.c.h.b16 %v7242
    %v7535 = vunpack.c.l.b16 %v7243
    %v7536 = vunpack.c.h.b16 %v7243
    %v7537 = vunpack.c.l.b16 %v7244
    %v7538 = vunpack.c.h.b16 %v7244
    %v7539 = vunpack.c.l.b16 %v7245
    %v7540 = vunpack.c.h.b16 %v7245
    %v7541 = vunpack.c.l.b16 %v7246
    %v7542 = vunpack.c.h.b16 %v7246
    %v7543 = vunpack.c.l.b16 %v7247
    %v7544 = vunpack.c.h.b16 %v7247
    %v7545 = vunpack.c.l.b16 %v7248
    %v7546 = vunpack.c.h.b16 %v7248
    %v7547 = vunpack.c.l.b16 %v7249
    %v7548 = vunpack.c.h.b16 %v7249
    %v7549 = vunpack.c.l.b16 %v7250
    %v7550 = vunpack.c.h.b16 %v7250
    %v7551 = vunpack.c.l.b16 %v7251
    %v7552 = vunpack.c.h.b16 %v7251
    %v7553 = vunpack.c.l.b16 %v7252
    %v7554 = vunpack.c.h.b16 %v7252
    %v7555 = vunpack.c.l.b16 %v7253
    %v7556 = vunpack.c.h.b16 %v7253
    %v7557 = vunpack.c.l.b16 %v7254
    %v7558 = vunpack.c.h.b16 %v7254
    %v7559 = vunpack.c.l.b16 %v7255
    %v7560 = vunpack.c.h.b16 %v7255
    %v7561 = vunpack.c.l.b16 %v7256
    %v7562 = vunpack.c.h.b16 %v7256
    %v7563 = vunpack.c.l.b16 %v7257
    %v7564 = vunpack.c.h.b16 %v7257
    %v7565 = vunpack.c.l.b16 %v7258
    %v7566 = vunpack.c.h.b16 %v7258
    %v7567 = vunpack.c.l.b16 %v7259
    %v7568 = vunpack.c.h.b16 %v7259
    %v7569 = vunpack.c.l.b16 %v7260
    %v7570 = vunpack.c.h.b16 %v7260
    %v7571 = vunpack.c.l.b16 %v7261
    %v7572 = vunpack.c.h.b16 %v7261
    %v7573 = vunpack.c.l.b16 %v7262
    %v7574 = vunpack.c.h.b16 %v7262
    %v7575 = vunpack.c.l.b16 %v7263
    %v7576 = vunpack.c.h.b16 %v7263
    %v7577 = vunpack.c.l.b16 %v7264
    %v7578 = vunpack.c.h.b16 %v7264
    %v7579 = vunpack.c.l.b16 %v7265
    %v7580 = vunpack.c.h.b16 %v7265
    %v7581 = vunpack.c.l.b16 %v7266
    %v7582 = vunpack.c.h.b16 %v7266
    %v7583 = vunpack.c.l.b16 %v7267
    %v7584 = vunpack.c.h.b16 %v7267
    %v7585 = vunpack.c.l.b16 %v7268
    %v7586 = vunpack.c.h.b16 %v7268
    %v7587 = vunpack.c.l.b16 %v7269
    %v7588 = vunpack.c.h.b16 %v7269
    %v7589 = vunpack.c.l.b16 %v7270
    %v7590 = vunpack.c.h.b16 %v7270
    %v7591 = vunpack.c.l.b16 %v7271
    %v7592 = vunpack.c.h.b16 %v7271
    %v7593 = vunpack.c.l.b16 %v7272
    %v7594 = vunpack.c.h.b16 %v7272
    %v7595 = vunpack.c.l.b16 %v7273
    %v7596 = vunpack.c.h.b16 %v7273
    %v7597 = vunpack.c.l.b16 %v7274
    %v7598 = vunpack.c.h.b16 %v7274
    %v7599 = vunpack.c.l.b16 %v7275
    %v7600 = vunpack.c.h.b16 %v7275
    %v7601 = vunpack.c.l.b16 %v7276
    %v7602 = vunpack.c.h.b16 %v7276
    %v7603 = vunpack.c.l.b16 %v7277
    %v7604 = vunpack.c.h.b16 %v7277
    %v7605 = vunpack.c.l.b16 %v7278
    %v7606 = vunpack.c.h.b16 %v7278
    %v7607 = vunpack.c.l.b16 %v7279
    %v7608 = vunpack.c.h.b16 %v7279
    %v7609 = vunpack.c.l.b16 %v7280
    %v7610 = vunpack.c.h.b16 %v7280
    %v7611 = vunpack.c.l.b16 %v7281
    %v7612 = vunpack.c.h.b16 %v7281
    %v7613 = vunpack.c.l.b16 %v7282
    %v7614 = vunpack.c.h.b16 %v7282
    %v7615 = vunpack.c.l.b16 %v7283
    %v7616 = vunpack.c.h.b16 %v7283
    %v7617 = vunpack.c.l.b16 %v7284
    %v7618 = vunpack.c.h.b16 %v7284
    %v7619 = vunpack.c.l.b16 %v7285
    %v7620 = vunpack.c.h.b16 %v7285
    %v7621 = vunpack.c.l.b16 %v7286
    %v7622 = vunpack.c.h.b16 %v7286
    %v7623 = vunpack.c.l.b16 %v7287
    %v7624 = vunpack.c.h.b16 %v7287
    %v7625 = vunpack.c.l.b16 %v7288
    %v7626 = vunpack.c.h.b16 %v7288
    %v7627 = vunpack.c.l.b16 %v7289
    %v7628 = vunpack.c.h.b16 %v7289
    %v7629 = vunpack.c.l.b16 %v7290
    %v7630 = vunpack.c.h.b16 %v7290
    %v7631 = vunpack.c.l.b16 %v7291
    %v7632 = vunpack.c.h.b16 %v7291
    %v7633 = vunpack.c.l.b16 %v7292
    %v7634 = vunpack.c.h.b16 %v7292
    %v7635 = vunpack.c.l.b16 %v7293
    %v7636 = vunpack.c.h.b16 %v7293
    %v7637 = vunpack.c.l.b16 %v7294
    %v7638 = vunpack.c.h.b16 %v7294
    %v7639 = vunpack.c.l.b16 %v7295
    %v7640 = vunpack.c.h.b16 %v7295
    %v7641 = vunpack.c.l.b16 %v7296
    %v7642 = vunpack.c.h.b16 %v7296
    %v7643 = vunpack.c.l.b16 %v7297
    %v7644 = vunpack.c.h.b16 %v7297
    %v7645 = vunpack.c.l.b16 %v7298
    %v7646 = vunpack.c.h.b16 %v7298
    %v7647 = vunpack.c.l.b16 %v7299
    %v7648 = vunpack.c.h.b16 %v7299
    %v7649 = vunpack.c.l.b16 %v7300
    %v7650 = vunpack.c.h.b16 %v7300
    %v7651 = vunpack.c.l.b16 %v7301
    %v7652 = vunpack.c.h.b16 %v7301
    %v7653 = vunpack.c.l.b16 %v7302
    %v7654 = vunpack.c.h.b16 %v7302
    %v7655 = vpack.c.b16 %v7529, %v7527
    %v7656 = vpack.c.b16 %v7530, %v7528
    %v7657 = vpack.c.b16 %v7533, %v7531
    %v7658 = vpack.c.b16 %v7534, %v7532
    %v7659 = vpack.c.b16 %v7537, %v7535
    %v7660 = vpack.c.b16 %v7538, %v7536
    %v7661 = vpack.c.b16 %v7541, %v7539
    %v7662 = vpack.c.b16 %v7542, %v7540
    %v7663 = vpack.c.b16 %v7545, %v7543
    %v7664 = vpack.c.b16 %v7546, %v7544
    %v7665 = vpack.c.b16 %v7549, %v7547
    %v7666 = vpack.c.b16 %v7550, %v7548
    %v7667 = vpack.c.b16 %v7553, %v7551
    %v7668 = vpack.c.b16 %v7554, %v7552
    %v7669 = vpack.c.b16 %v7557, %v7555
    %v7670 = vpack.c.b16 %v7558, %v7556
    %v7671 = vpack.c.b16 %v7561, %v7559
    %v7672 = vpack.c.b16 %v7562, %v7560
    %v7673 = vpack.c.b16 %v7565, %v7563
    %v7674 = vpack.c.b16 %v7566, %v7564
    %v7675 = vpack.c.b16 %v7569, %v7567
    %v7676 = vpack.c.b16 %v7570, %v7568
    %v7677 = vpack.c.b16 %v7573, %v7571
    %v7678 = vpack.c.b16 %v7574, %v7572
    %v7679 = vpack.c.b16 %v7577, %v7575
    %v7680 = vpack.c.b16 %v7578, %v7576
    %v7681 = vpack.c.b16 %v7581, %v7579
    %v7682 = vpack.c.b16 %v7582, %v7580
    %v7683 = vpack.c.b16 %v7585, %v7583
    %v7684 = vpack.c.b16 %v7586, %v7584
    %v7685 = vpack.c.b16 %v7589, %v7587
    %v7686 = vpack.c.b16 %v7590, %v7588
    %v7687 = vpack.c.b16 %v7593, %v7591
    %v7688 = vpack.c.b16 %v7594, %v7592
    %v7689 = vpack.c.b16 %v7597, %v7595
    %v7690 = vpack.c.b16 %v7598, %v7596
    %v7691 = vpack.c.b16 %v7601, %v7599
    %v7692 = vpack.c.b16 %v7602, %v7600
    %v7693 = vpack.c.b16 %v7605, %v7603
    %v7694 = vpack.c.b16 %v7606, %v7604
    %v7695 = vpack.c.b16 %v7609, %v7607
    %v7696 = vpack.c.b16 %v7610, %v7608
    %v7697 = vpack.c.b16 %v7613, %v7611
    %v7698 = vpack.c.b16 %v7614, %v7612
    %v7699 = vpack.c.b16 %v7617, %v7615
    %v7700 = vpack.c.b16 %v7618, %v7616
    %v7701 = vpack.c.b16 %v7621, %v7619
    %v7702 = vpack.c.b16 %v7622, %v7620
    %v7703 = vpack.c.b16 %v7625, %v7623
    %v7704 = vpack.c.b16 %v7626, %v7624
    %v7705 = vpack.c.b16 %v7629, %v7627
    %v7706 = vpack.c.b16 %v7630, %v7628
    %v7707 = vpack.c.b16 %v7633, %v7631
    %v7708 = vpack.c.b16 %v7634, %v7632
    %v7709 = vpack.c.b16 %v7637, %v7635
    %v7710 = vpack.c.b16 %v7638, %v7636
    %v7711 = vpack.c.b16 %v7641, %v7639
    %v7712 = vpack.c.b16 %v7642, %v7640
    %v7713 = vpack.c.b16 %v7645, %v7643
    %v7714 = vpack.c.b16 %v7646, %v7644
    %v7715 = vpack.c.b16 %v7649, %v7647
    %v7716 = vpack.c.b16 %v7650, %v7648
    %v7717 = vpack.c.b16 %v7653, %v7651
    %v7718 = vpack.c.b16 %v7654, %v7652
    %7783 = vmatpush.bf16.msra.mxu0 %v7669
    %7784 = vmatpush.bf16.msra.mxu0 %v7667
    %7785 = vmatpush.bf16.msra.mxu0 %v7665
    %7786 = vmatpush.bf16.msra.mxu0 %v7663
    %7787 = vmatpush.bf16.msra.mxu0 %v7661
    %7788 = vmatpush.bf16.msra.mxu0 %v7659
    %7789 = vmatpush.bf16.msra.mxu0 %v7657
    %7790 = vmatpush.bf16.msra.mxu0 %v7655
    %7791 = vmatmul.bf16.gmra.mxu0 %v7399
    %v7792 = vpop.f32.mrf.mxu0
    %v7793 = vadd.f32 0.0, %v7792
    %v7794 = vpop.f32.mrf.mxu0
    %v7795 = vadd.f32 0.0, %v7794
    %7796 = vmatmul.bf16.gmra.mxu0 %v7403
    %v7797 = vpop.f32.mrf.mxu0
    %v7798 = vadd.f32 0.0, %v7797
    %v7799 = vpop.f32.mrf.mxu0
    %v7800 = vadd.f32 0.0, %v7799
    %7801 = vmatmul.bf16.gmra.mxu0 %v7407
    %v7802 = vpop.f32.mrf.mxu0
    %v7803 = vadd.f32 0.0, %v7802
    %v7804 = vpop.f32.mrf.mxu0
    %v7805 = vadd.f32 0.0, %v7804
    %7806 = vmatmul.bf16.gmra.mxu0 %v7411
    %v7807 = vpop.f32.mrf.mxu0
    %v7808 = vadd.f32 0.0, %v7807
    %v7809 = vpop.f32.mrf.mxu0
    %v7810 = vadd.f32 0.0, %v7809
    %7811 = vmatmul.bf16.gmra.mxu0 %v7415
    %v7812 = vpop.f32.mrf.mxu0
    %v7813 = vadd.f32 0.0, %v7812
    %v7814 = vpop.f32.mrf.mxu0
    %v7815 = vadd.f32 0.0, %v7814
    %7816 = vmatmul.bf16.gmra.mxu0 %v7419
    %v7817 = vpop.f32.mrf.mxu0
    %v7818 = vadd.f32 0.0, %v7817
    %v7819 = vpop.f32.mrf.mxu0
    %v7820 = vadd.f32 0.0, %v7819
    %7821 = vmatmul.bf16.gmra.mxu0 %v7423
    %v7822 = vpop.f32.mrf.mxu0
    %v7823 = vadd.f32 0.0, %v7822
    %v7824 = vpop.f32.mrf.mxu0
    %v7825 = vadd.f32 0.0, %v7824
    %7826 = vmatmul.bf16.gmra.mxu0 %v7427
    %v7827 = vpop.f32.mrf.mxu0
    %v7828 = vadd.f32 0.0, %v7827
    %v7829 = vpop.f32.mrf.mxu0
    %v7830 = vadd.f32 0.0, %v7829
    %7831 = vdwg.mxu0
    %7832 = vmatpush.bf16.msra.mxu0 %v7685
    %7833 = vmatpush.bf16.msra.mxu0 %v7683
    %7834 = vmatpush.bf16.msra.mxu0 %v7681
    %7835 = vmatpush.bf16.msra.mxu0 %v7679
    %7836 = vmatpush.bf16.msra.mxu0 %v7677
    %7837 = vmatpush.bf16.msra.mxu0 %v7675
    %7838 = vmatpush.bf16.msra.mxu0 %v7673
    %7839 = vmatpush.bf16.msra.mxu0 %v7671
    %7840 = vmatmul.bf16.gmra.mxu0 %v7400
    %v7841 = vpop.f32.mrf.mxu0
    %v7842 = vadd.f32 %v7793, %v7841
    %v7843 = vpop.f32.mrf.mxu0
    %v7844 = vadd.f32 %v7795, %v7843
    %7845 = vmatmul.bf16.gmra.mxu0 %v7404
    %v7846 = vpop.f32.mrf.mxu0
    %v7847 = vadd.f32 %v7798, %v7846
    %v7848 = vpop.f32.mrf.mxu0
    %v7849 = vadd.f32 %v7800, %v7848
    %7850 = vmatmul.bf16.gmra.mxu0 %v7408
    %v7851 = vpop.f32.mrf.mxu0
    %v7852 = vadd.f32 %v7803, %v7851
    %v7853 = vpop.f32.mrf.mxu0
    %v7854 = vadd.f32 %v7805, %v7853
    %7855 = vmatmul.bf16.gmra.mxu0 %v7412
    %v7856 = vpop.f32.mrf.mxu0
    %v7857 = vadd.f32 %v7808, %v7856
    %v7858 = vpop.f32.mrf.mxu0
    %v7859 = vadd.f32 %v7810, %v7858
    %7860 = vmatmul.bf16.gmra.mxu0 %v7416
    %v7861 = vpop.f32.mrf.mxu0
    %v7862 = vadd.f32 %v7813, %v7861
    %v7863 = vpop.f32.mrf.mxu0
    %v7864 = vadd.f32 %v7815, %v7863
    %7865 = vmatmul.bf16.gmra.mxu0 %v7420
    %v7866 = vpop.f32.mrf.mxu0
    %v7867 = vadd.f32 %v7818, %v7866
    %v7868 = vpop.f32.mrf.mxu0
    %v7869 = vadd.f32 %v7820, %v7868
    %7870 = vmatmul.bf16.gmra.mxu0 %v7424
    %v7871 = vpop.f32.mrf.mxu0
    %v7872 = vadd.f32 %v7823, %v7871
    %v7873 = vpop.f32.mrf.mxu0
    %v7874 = vadd.f32 %v7825, %v7873
    %7875 = vmatmul.bf16.gmra.mxu0 %v7428
    %v7876 = vpop.f32.mrf.mxu0
    %v7877 = vadd.f32 %v7828, %v7876
    %v7878 = vpop.f32.mrf.mxu0
    %v7879 = vadd.f32 %v7830, %v7878
    %7880 = vdwg.mxu0
    %7881 = vmatpush.bf16.msra.mxu0 %v7701
    %7882 = vmatpush.bf16.msra.mxu0 %v7699
    %7883 = vmatpush.bf16.msra.mxu0 %v7697
    %7884 = vmatpush.bf16.msra.mxu0 %v7695
    %7885 = vmatpush.bf16.msra.mxu0 %v7693
    %7886 = vmatpush.bf16.msra.mxu0 %v7691
    %7887 = vmatpush.bf16.msra.mxu0 %v7689
    %7888 = vmatpush.bf16.msra.mxu0 %v7687
    %7889 = vmatmul.bf16.gmra.mxu0 %v7401
    %v7890 = vpop.f32.mrf.mxu0
    %v7891 = vadd.f32 %v7842, %v7890
    %v7892 = vpop.f32.mrf.mxu0
    %v7893 = vadd.f32 %v7844, %v7892
    %7894 = vmatmul.bf16.gmra.mxu0 %v7405
    %v7895 = vpop.f32.mrf.mxu0
    %v7896 = vadd.f32 %v7847, %v7895
    %v7897 = vpop.f32.mrf.mxu0
    %v7898 = vadd.f32 %v7849, %v7897
    %7899 = vmatmul.bf16.gmra.mxu0 %v7409
    %v7900 = vpop.f32.mrf.mxu0
    %v7901 = vadd.f32 %v7852, %v7900
    %v7902 = vpop.f32.mrf.mxu0
    %v7903 = vadd.f32 %v7854, %v7902
    %7904 = vmatmul.bf16.gmra.mxu0 %v7413
    %v7905 = vpop.f32.mrf.mxu0
    %v7906 = vadd.f32 %v7857, %v7905
    %v7907 = vpop.f32.mrf.mxu0
    %v7908 = vadd.f32 %v7859, %v7907
    %7909 = vmatmul.bf16.gmra.mxu0 %v7417
    %v7910 = vpop.f32.mrf.mxu0
    %v7911 = vadd.f32 %v7862, %v7910
    %v7912 = vpop.f32.mrf.mxu0
    %v7913 = vadd.f32 %v7864, %v7912
    %7914 = vmatmul.bf16.gmra.mxu0 %v7421
    %v7915 = vpop.f32.mrf.mxu0
    %v7916 = vadd.f32 %v7867, %v7915
    %v7917 = vpop.f32.mrf.mxu0
    %v7918 = vadd.f32 %v7869, %v7917
    %7919 = vmatmul.bf16.gmra.mxu0 %v7425
    %v7920 = vpop.f32.mrf.mxu0
    %v7921 = vadd.f32 %v7872, %v7920
    %v7922 = vpop.f32.mrf.mxu0
    %v7923 = vadd.f32 %v7874, %v7922
    %7924 = vmatmul.bf16.gmra.mxu0 %v7429
    %v7925 = vpop.f32.mrf.mxu0
    %v7926 = vadd.f32 %v7877, %v7925
    %v7927 = vpop.f32.mrf.mxu0
    %v7928 = vadd.f32 %v7879, %v7927
    %7929 = vdwg.mxu0
    %7930 = vmatpush.bf16.msra.mxu0 %v7717
    %7931 = vmatpush.bf16.msra.mxu0 %v7715
    %7932 = vmatpush.bf16.msra.mxu0 %v7713
    %7933 = vmatpush.bf16.msra.mxu0 %v7711
    %7934 = vmatpush.bf16.msra.mxu0 %v7709
    %7935 = vmatpush.bf16.msra.mxu0 %v7707
    %7936 = vmatpush.bf16.msra.mxu0 %v7705
    %7937 = vmatpush.bf16.msra.mxu0 %v7703
    %7938 = vmatmul.bf16.gmra.mxu0 %v7402
    %v7939 = vpop.f32.mrf.mxu0
    %v7940 = vadd.f32 %v7891, %v7939
    %v7941 = vpop.f32.mrf.mxu0
    %v7942 = vadd.f32 %v7893, %v7941
    %7943 = vmatmul.bf16.gmra.mxu0 %v7406
    %v7944 = vpop.f32.mrf.mxu0
    %v7945 = vadd.f32 %v7896, %v7944
    %v7946 = vpop.f32.mrf.mxu0
    %v7947 = vadd.f32 %v7898, %v7946
    %7948 = vmatmul.bf16.gmra.mxu0 %v7410
    %v7949 = vpop.f32.mrf.mxu0
    %v7950 = vadd.f32 %v7901, %v7949
    %v7951 = vpop.f32.mrf.mxu0
    %v7952 = vadd.f32 %v7903, %v7951
    %7953 = vmatmul.bf16.gmra.mxu0 %v7414
    %v7954 = vpop.f32.mrf.mxu0
    %v7955 = vadd.f32 %v7906, %v7954
    %v7956 = vpop.f32.mrf.mxu0
    %v7957 = vadd.f32 %v7908, %v7956
    %7958 = vmatmul.bf16.gmra.mxu0 %v7418
    %v7959 = vpop.f32.mrf.mxu0
    %v7960 = vadd.f32 %v7911, %v7959
    %v7961 = vpop.f32.mrf.mxu0
    %v7962 = vadd.f32 %v7913, %v7961
    %7963 = vmatmul.bf16.gmra.mxu0 %v7422
    %v7964 = vpop.f32.mrf.mxu0
    %v7965 = vadd.f32 %v7916, %v7964
    %v7966 = vpop.f32.mrf.mxu0
    %v7967 = vadd.f32 %v7918, %v7966
    %7968 = vmatmul.bf16.gmra.mxu0 %v7426
    %v7969 = vpop.f32.mrf.mxu0
    %v7970 = vadd.f32 %v7921, %v7969
    %v7971 = vpop.f32.mrf.mxu0
    %v7972 = vadd.f32 %v7923, %v7971
    %7973 = vmatmul.bf16.gmra.mxu0 %v7430
    %v7974 = vpop.f32.mrf.mxu0
    %v7975 = vadd.f32 %v7926, %v7974
    %v7976 = vpop.f32.mrf.mxu0
    %v7977 = vadd.f32 %v7928, %v7976
    %7978 = vdwg.mxu0
    %7979 = vmatpush.bf16.msra.mxu0 %v7670
    %7980 = vmatpush.bf16.msra.mxu0 %v7668
    %7981 = vmatpush.bf16.msra.mxu0 %v7666
    %7982 = vmatpush.bf16.msra.mxu0 %v7664
    %7983 = vmatpush.bf16.msra.mxu0 %v7662
    %7984 = vmatpush.bf16.msra.mxu0 %v7660
    %7985 = vmatpush.bf16.msra.mxu0 %v7658
    %7986 = vmatpush.bf16.msra.mxu0 %v7656
    %7987 = vmatmul.bf16.gmra.mxu0 %v7399
    %v7988 = vpop.f32.mrf.mxu0
    %v7989 = vadd.f32 0.0, %v7988
    %v7990 = vpop.f32.mrf.mxu0
    %v7991 = vadd.f32 0.0, %v7990
    %7992 = vmatmul.bf16.gmra.mxu0 %v7403
    %v7993 = vpop.f32.mrf.mxu0
    %v7994 = vadd.f32 0.0, %v7993
    %v7995 = vpop.f32.mrf.mxu0
    %v7996 = vadd.f32 0.0, %v7995
    %7997 = vmatmul.bf16.gmra.mxu0 %v7407
    %v7998 = vpop.f32.mrf.mxu0
    %v7999 = vadd.f32 0.0, %v7998
    %v8000 = vpop.f32.mrf.mxu0
    %v8001 = vadd.f32 0.0, %v8000
    %8002 = vmatmul.bf16.gmra.mxu0 %v7411
    %v8003 = vpop.f32.mrf.mxu0
    %v8004 = vadd.f32 0.0, %v8003
    %v8005 = vpop.f32.mrf.mxu0
    %v8006 = vadd.f32 0.0, %v8005
    %8007 = vmatmul.bf16.gmra.mxu0 %v7415
    %v8008 = vpop.f32.mrf.mxu0
    %v8009 = vadd.f32 0.0, %v8008
    %v8010 = vpop.f32.mrf.mxu0
    %v8011 = vadd.f32 0.0, %v8010
    %8012 = vmatmul.bf16.gmra.mxu0 %v7419
    %v8013 = vpop.f32.mrf.mxu0
    %v8014 = vadd.f32 0.0, %v8013
    %v8015 = vpop.f32.mrf.mxu0
    %v8016 = vadd.f32 0.0, %v8015
    %8017 = vmatmul.bf16.gmra.mxu0 %v7423
    %v8018 = vpop.f32.mrf.mxu0
    %v8019 = vadd.f32 0.0, %v8018
    %v8020 = vpop.f32.mrf.mxu0
    %v8021 = vadd.f32 0.0, %v8020
    %8022 = vmatmul.bf16.gmra.mxu0 %v7427
    %v8023 = vpop.f32.mrf.mxu0
    %v8024 = vadd.f32 0.0, %v8023
    %v8025 = vpop.f32.mrf.mxu0
    %v8026 = vadd.f32 0.0, %v8025
    %8027 = vdwg.mxu0
    %8028 = vmatpush.bf16.msra.mxu0 %v7686
    %8029 = vmatpush.bf16.msra.mxu0 %v7684
    %8030 = vmatpush.bf16.msra.mxu0 %v7682
    %8031 = vmatpush.bf16.msra.mxu0 %v7680
    %8032 = vmatpush.bf16.msra.mxu0 %v7678
    %8033 = vmatpush.bf16.msra.mxu0 %v7676
    %8034 = vmatpush.bf16.msra.mxu0 %v7674
    %8035 = vmatpush.bf16.msra.mxu0 %v7672
    %8036 = vmatmul.bf16.gmra.mxu0 %v7400
    %v8037 = vpop.f32.mrf.mxu0
    %v8038 = vadd.f32 %v7989, %v8037
    %v8039 = vpop.f32.mrf.mxu0
    %v8040 = vadd.f32 %v7991, %v8039
    %8041 = vmatmul.bf16.gmra.mxu0 %v7404
    %v8042 = vpop.f32.mrf.mxu0
    %v8043 = vadd.f32 %v7994, %v8042
    %v8044 = vpop.f32.mrf.mxu0
    %v8045 = vadd.f32 %v7996, %v8044
    %8046 = vmatmul.bf16.gmra.mxu0 %v7408
    %v8047 = vpop.f32.mrf.mxu0
    %v8048 = vadd.f32 %v7999, %v8047
    %v8049 = vpop.f32.mrf.mxu0
    %v8050 = vadd.f32 %v8001, %v8049
    %8051 = vmatmul.bf16.gmra.mxu0 %v7412
    %v8052 = vpop.f32.mrf.mxu0
    %v8053 = vadd.f32 %v8004, %v8052
    %v8054 = vpop.f32.mrf.mxu0
    %v8055 = vadd.f32 %v8006, %v8054
    %8056 = vmatmul.bf16.gmra.mxu0 %v7416
    %v8057 = vpop.f32.mrf.mxu0
    %v8058 = vadd.f32 %v8009, %v8057
    %v8059 = vpop.f32.mrf.mxu0
    %v8060 = vadd.f32 %v8011, %v8059
    %8061 = vmatmul.bf16.gmra.mxu0 %v7420
    %v8062 = vpop.f32.mrf.mxu0
    %v8063 = vadd.f32 %v8014, %v8062
    %v8064 = vpop.f32.mrf.mxu0
    %v8065 = vadd.f32 %v8016, %v8064
    %8066 = vmatmul.bf16.gmra.mxu0 %v7424
    %v8067 = vpop.f32.mrf.mxu0
    %v8068 = vadd.f32 %v8019, %v8067
    %v8069 = vpop.f32.mrf.mxu0
    %v8070 = vadd.f32 %v8021, %v8069
    %8071 = vmatmul.bf16.gmra.mxu0 %v7428
    %v8072 = vpop.f32.mrf.mxu0
    %v8073 = vadd.f32 %v8024, %v8072
    %v8074 = vpop.f32.mrf.mxu0
    %v8075 = vadd.f32 %v8026, %v8074
    %8076 = vdwg.mxu0
    %8077 = vmatpush.bf16.msra.mxu0 %v7702
    %8078 = vmatpush.bf16.msra.mxu0 %v7700
    %8079 = vmatpush.bf16.msra.mxu0 %v7698
    %8080 = vmatpush.bf16.msra.mxu0 %v7696
    %8081 = vmatpush.bf16.msra.mxu0 %v7694
    %8082 = vmatpush.bf16.msra.mxu0 %v7692
    %8083 = vmatpush.bf16.msra.mxu0 %v7690
    %8084 = vmatpush.bf16.msra.mxu0 %v7688
    %8085 = vmatmul.bf16.gmra.mxu0 %v7401
    %v8086 = vpop.f32.mrf.mxu0
    %v8087 = vadd.f32 %v8038, %v8086
    %v8088 = vpop.f32.mrf.mxu0
    %v8089 = vadd.f32 %v8040, %v8088
    %8090 = vmatmul.bf16.gmra.mxu0 %v7405
    %v8091 = vpop.f32.mrf.mxu0
    %v8092 = vadd.f32 %v8043, %v8091
    %v8093 = vpop.f32.mrf.mxu0
    %v8094 = vadd.f32 %v8045, %v8093
    %8095 = vmatmul.bf16.gmra.mxu0 %v7409
    %v8096 = vpop.f32.mrf.mxu0
    %v8097 = vadd.f32 %v8048, %v8096
    %v8098 = vpop.f32.mrf.mxu0
    %v8099 = vadd.f32 %v8050, %v8098
    %8100 = vmatmul.bf16.gmra.mxu0 %v7413
    %v8101 = vpop.f32.mrf.mxu0
    %v8102 = vadd.f32 %v8053, %v8101
    %v8103 = vpop.f32.mrf.mxu0
    %v8104 = vadd.f32 %v8055, %v8103
    %8105 = vmatmul.bf16.gmra.mxu0 %v7417
    %v8106 = vpop.f32.mrf.mxu0
    %v8107 = vadd.f32 %v8058, %v8106
    %v8108 = vpop.f32.mrf.mxu0
    %v8109 = vadd.f32 %v8060, %v8108
    %8110 = vmatmul.bf16.gmra.mxu0 %v7421
    %v8111 = vpop.f32.mrf.mxu0
    %v8112 = vadd.f32 %v8063, %v8111
    %v8113 = vpop.f32.mrf.mxu0
    %v8114 = vadd.f32 %v8065, %v8113
    %8115 = vmatmul.bf16.gmra.mxu0 %v7425
    %v8116 = vpop.f32.mrf.mxu0
    %v8117 = vadd.f32 %v8068, %v8116
    %v8118 = vpop.f32.mrf.mxu0
    %v8119 = vadd.f32 %v8070, %v8118
    %8120 = vmatmul.bf16.gmra.mxu0 %v7429
    %v8121 = vpop.f32.mrf.mxu0
    %v8122 = vadd.f32 %v8073, %v8121
    %v8123 = vpop.f32.mrf.mxu0
    %v8124 = vadd.f32 %v8075, %v8123
    %8125 = vdwg.mxu0
    %8126 = vmatpush.bf16.msra.mxu0 %v7718
    %8127 = vmatpush.bf16.msra.mxu0 %v7716
    %8128 = vmatpush.bf16.msra.mxu0 %v7714
    %8129 = vmatpush.bf16.msra.mxu0 %v7712
    %8130 = vmatpush.bf16.msra.mxu0 %v7710
    %8131 = vmatpush.bf16.msra.mxu0 %v7708
    %8132 = vmatpush.bf16.msra.mxu0 %v7706
    %8133 = vmatpush.bf16.msra.mxu0 %v7704
    %8134 = vmatmul.bf16.gmra.mxu0 %v7402
    %v8135 = vpop.f32.mrf.mxu0
    %v8136 = vadd.f32 %v8087, %v8135
    %v8137 = vpop.f32.mrf.mxu0
    %v8138 = vadd.f32 %v8089, %v8137
    %8139 = vmatmul.bf16.gmra.mxu0 %v7406
    %v8140 = vpop.f32.mrf.mxu0
    %v8141 = vadd.f32 %v8092, %v8140
    %v8142 = vpop.f32.mrf.mxu0
    %v8143 = vadd.f32 %v8094, %v8142
    %8144 = vmatmul.bf16.gmra.mxu0 %v7410
    %v8145 = vpop.f32.mrf.mxu0
    %v8146 = vadd.f32 %v8097, %v8145
    %v8147 = vpop.f32.mrf.mxu0
    %v8148 = vadd.f32 %v8099, %v8147
    %8149 = vmatmul.bf16.gmra.mxu0 %v7414
    %v8150 = vpop.f32.mrf.mxu0
    %v8151 = vadd.f32 %v8102, %v8150
    %v8152 = vpop.f32.mrf.mxu0
    %v8153 = vadd.f32 %v8104, %v8152
    %8154 = vmatmul.bf16.gmra.mxu0 %v7418
    %v8155 = vpop.f32.mrf.mxu0
    %v8156 = vadd.f32 %v8107, %v8155
    %v8157 = vpop.f32.mrf.mxu0
    %v8158 = vadd.f32 %v8109, %v8157
    %8159 = vmatmul.bf16.gmra.mxu0 %v7422
    %v8160 = vpop.f32.mrf.mxu0
    %v8161 = vadd.f32 %v8112, %v8160
    %v8162 = vpop.f32.mrf.mxu0
    %v8163 = vadd.f32 %v8114, %v8162
    %8164 = vmatmul.bf16.gmra.mxu0 %v7426
    %v8165 = vpop.f32.mrf.mxu0
    %v8166 = vadd.f32 %v8117, %v8165
    %v8167 = vpop.f32.mrf.mxu0
    %v8168 = vadd.f32 %v8119, %v8167
    %8169 = vmatmul.bf16.gmra.mxu0 %v7430
    %v8170 = vpop.f32.mrf.mxu0
    %v8171 = vadd.f32 %v8122, %v8170
    %v8172 = vpop.f32.mrf.mxu0
    %v8173 = vadd.f32 %v8124, %v8172
    %8174 = vdwg.mxu0
    %v8175 = vadd.f32 %v7173, %v7940
    %v8176 = vadd.f32 %v7174, %v8136
    %v8177 = vadd.f32 %v7175, %v7942
    %v8178 = vadd.f32 %v7176, %v8138
    %v8179 = vadd.f32 %v7177, %v7945
    %v8180 = vadd.f32 %v7178, %v8141
    %v8181 = vadd.f32 %v7179, %v7947
    %v8182 = vadd.f32 %v7180, %v8143
    %v8183 = vadd.f32 %v7181, %v7950
    %v8184 = vadd.f32 %v7182, %v8146
    %v8185 = vadd.f32 %v7183, %v7952
    %v8186 = vadd.f32 %v7184, %v8148
    %v8187 = vadd.f32 %v7185, %v7955
    %v8188 = vadd.f32 %v7186, %v8151
    %v8189 = vadd.f32 %v7187, %v7957
    %v8190 = vadd.f32 %v7188, %v8153
    %v8191 = vadd.f32 %v7189, %v7960
    %v8192 = vadd.f32 %v7190, %v8156
    %v8193 = vadd.f32 %v7191, %v7962
    %v8194 = vadd.f32 %v7192, %v8158
    %v8195 = vadd.f32 %v7193, %v7965
    %v8196 = vadd.f32 %v7194, %v8161
    %v8197 = vadd.f32 %v7195, %v7967
    %v8198 = vadd.f32 %v7196, %v8163
    %v8199 = vadd.f32 %v7197, %v7970
    %v8200 = vadd.f32 %v7198, %v8166
    %v8201 = vadd.f32 %v7199, %v7972
    %v8202 = vadd.f32 %v7200, %v8168
    %v8203 = vadd.f32 %v7201, %v7975
    %v8204 = vadd.f32 %v7202, %v8171
    %v8205 = vadd.f32 %v7203, %v7977
    %v8206 = vadd.f32 %v7204, %v8173
    %v8207 = vld [vmem:[#allocation15] sm:$0x3]
    %v8209 = vperm.slane %v8207, 0
    %v8210 = vperm.slane %v8207, 1
    %v8213 = vadd.f32 %v8175, %v8209
    %v8214 = vadd.f32 %v8176, %v8210
    %v8215 = vadd.f32 %v8177, %v8209
    %v8216 = vadd.f32 %v8178, %v8210
    %v8217 = vadd.f32 %v8179, %v8209
    %v8218 = vadd.f32 %v8180, %v8210
    %v8219 = vadd.f32 %v8181, %v8209
    %v8220 = vadd.f32 %v8182, %v8210
    %v8221 = vadd.f32 %v8183, %v8209
    %v8222 = vadd.f32 %v8184, %v8210
    %v8223 = vadd.f32 %v8185, %v8209
    %v8224 = vadd.f32 %v8186, %v8210
    %v8225 = vadd.f32 %v8187, %v8209
    %v8226 = vadd.f32 %v8188, %v8210
    %v8227 = vadd.f32 %v8189, %v8209
    %v8228 = vadd.f32 %v8190, %v8210
    %v8229 = vadd.f32 %v8191, %v8209
    %v8230 = vadd.f32 %v8192, %v8210
    %v8231 = vadd.f32 %v8193, %v8209
    %v8232 = vadd.f32 %v8194, %v8210
    %v8233 = vadd.f32 %v8195, %v8209
    %v8234 = vadd.f32 %v8196, %v8210
    %v8235 = vadd.f32 %v8197, %v8209
    %v8236 = vadd.f32 %v8198, %v8210
    %v8237 = vadd.f32 %v8199, %v8209
    %v8238 = vadd.f32 %v8200, %v8210
    %v8239 = vadd.f32 %v8201, %v8209
    %v8240 = vadd.f32 %v8202, %v8210
    %v8241 = vadd.f32 %v8203, %v8209
    %v8242 = vadd.f32 %v8204, %v8210
    %v8243 = vadd.f32 %v8205, %v8209
    %v8244 = vadd.f32 %v8206, %v8210
    %v8245 = vmax.f32 %v8213, 0.0
    %v8246 = vmax.f32 %v8214, 0.0
    %v8247 = vmax.f32 %v8215, 0.0
    %v8248 = vmax.f32 %v8216, 0.0
    %v8249 = vmax.f32 %v8217, 0.0
    %v8250 = vmax.f32 %v8218, 0.0
    %v8251 = vmax.f32 %v8219, 0.0
    %v8252 = vmax.f32 %v8220, 0.0
    %v8253 = vmax.f32 %v8221, 0.0
    %v8254 = vmax.f32 %v8222, 0.0
    %v8255 = vmax.f32 %v8223, 0.0
    %v8256 = vmax.f32 %v8224, 0.0
    %v8257 = vmax.f32 %v8225, 0.0
    %v8258 = vmax.f32 %v8226, 0.0
    %v8259 = vmax.f32 %v8227, 0.0
    %v8260 = vmax.f32 %v8228, 0.0
    %v8261 = vmax.f32 %v8229, 0.0
    %v8262 = vmax.f32 %v8230, 0.0
    %v8263 = vmax.f32 %v8231, 0.0
    %v8264 = vmax.f32 %v8232, 0.0
    %v8265 = vmax.f32 %v8233, 0.0
    %v8266 = vmax.f32 %v8234, 0.0
    %v8267 = vmax.f32 %v8235, 0.0
    %v8268 = vmax.f32 %v8236, 0.0
    %v8269 = vmax.f32 %v8237, 0.0
    %v8270 = vmax.f32 %v8238, 0.0
    %v8271 = vmax.f32 %v8239, 0.0
    %v8272 = vmax.f32 %v8240, 0.0
    %v8273 = vmax.f32 %v8241, 0.0
    %v8274 = vmax.f32 %v8242, 0.0
    %v8275 = vmax.f32 %v8243, 0.0
    %v8276 = vmax.f32 %v8244, 0.0
    %8277 = vst [vmem:[#allocation3] sm:$0xff] 0
    %s8278 = scalar_lea.vmem [#allocation3], 136
    %8279 = vst [vmem:[%s8278] sm:$0xff] 0
    %v8280 = vpack.c.bf16 %v8246, %v8245
    %v8281 = vpack.c.bf16 %v8248, %v8247
    %v8282 = vpack.c.bf16 %v8250, %v8249
    %v8283 = vpack.c.bf16 %v8252, %v8251
    %v8284 = vpack.c.bf16 %v8254, %v8253
    %v8285 = vpack.c.bf16 %v8256, %v8255
    %v8286 = vpack.c.bf16 %v8258, %v8257
    %v8287 = vpack.c.bf16 %v8260, %v8259
    %v8288 = vpack.c.bf16 %v8262, %v8261
    %v8289 = vpack.c.bf16 %v8264, %v8263
    %v8290 = vpack.c.bf16 %v8266, %v8265
    %v8291 = vpack.c.bf16 %v8268, %v8267
    %v8292 = vpack.c.bf16 %v8270, %v8269
    %v8293 = vpack.c.bf16 %v8272, %v8271
    %v8294 = vpack.c.bf16 %v8274, %v8273
    %v8295 = vpack.c.bf16 %v8276, %v8275
    %s8296 = scalar_lea.vmem [#allocation3], 8
    %8297 = vst [vmem:[%s8296] sm:$0xff] %v8280
    %8298 = vst [vmem:[%s8296 + $0x8] sm:$0xff] %v8281
    %8299 = vst [vmem:[%s8296 + $0x10] sm:$0xff] %v8282
    %8300 = vst [vmem:[%s8296 + $0x18] sm:$0xff] %v8283
    %8301 = vst [vmem:[%s8296 + $0x20] sm:$0xff] %v8284
    %8302 = vst [vmem:[%s8296 + $0x28] sm:$0xff] %v8285
    %8303 = vst [vmem:[%s8296 + $0x30] sm:$0xff] %v8286
    %8304 = vst [vmem:[%s8296 + $0x38] sm:$0xff] %v8287
    %8305 = vst [vmem:[%s8296 + $0x40] sm:$0xff] %v8288
    %8306 = vst [vmem:[%s8296 + $0x48] sm:$0xff] %v8289
    %8307 = vst [vmem:[%s8296 + $0x50] sm:$0xff] %v8290
    %8308 = vst [vmem:[%s8296 + $0x58] sm:$0xff] %v8291
    %8309 = vst [vmem:[%s8296 + $0x60] sm:$0xff] %v8292
    %8310 = vst [vmem:[%s8296 + $0x68] sm:$0xff] %v8293
    %8311 = vst [vmem:[%s8296 + $0x70] sm:$0xff] %v8294
    %8312 = vst [vmem:[%s8296 + $0x78] sm:$0xff] %v8295
    %v8313 = vld [vmem:[#allocation3] sm:$0xff]
    %v8314 = vld [vmem:[#allocation3 + $0x8] sm:$0xff]
    %v8315 = vld [vmem:[#allocation3 + $0x10] sm:$0xff]
    %v8316 = vld [vmem:[#allocation3 + $0x18] sm:$0xff]
    %v8317 = vld [vmem:[#allocation3 + $0x20] sm:$0xff]
    %v8318 = vld [vmem:[#allocation3 + $0x28] sm:$0xff]
    %v8319 = vld [vmem:[#allocation3 + $0x30] sm:$0xff]
    %v8320 = vld [vmem:[#allocation3 + $0x38] sm:$0xff]
    %v8321 = vld [vmem:[#allocation3 + $0x40] sm:$0xff]
    %v8322 = vld [vmem:[#allocation3 + $0x48] sm:$0xff]
    %v8323 = vld [vmem:[#allocation3 + $0x50] sm:$0xff]
    %v8324 = vld [vmem:[#allocation3 + $0x58] sm:$0xff]
    %v8325 = vld [vmem:[#allocation3 + $0x60] sm:$0xff]
    %v8326 = vld [vmem:[#allocation3 + $0x68] sm:$0xff]
    %v8327 = vld [vmem:[#allocation3 + $0x70] sm:$0xff]
    %v8328 = vld [vmem:[#allocation3 + $0x78] sm:$0xff]
    %v8329 = vld [vmem:[#allocation16] sm:$0xf]
    %v8330 = vld [vmem:[#allocation16 + $0x4] sm:$0xf]
    %v8331 = vld [vmem:[#allocation16 + $0x8] sm:$0xf]
    %v8332 = vld [vmem:[#allocation16 + $0xc] sm:$0xf]
    %v8333 = vld [vmem:[#allocation16 + $0x10] sm:$0xf]
    %v8334 = vld [vmem:[#allocation16 + $0x14] sm:$0xf]
    %v8335 = vld [vmem:[#allocation16 + $0x18] sm:$0xf]
    %v8336 = vld [vmem:[#allocation16 + $0x1c] sm:$0xf]
    %v8337 = vld [vmem:[#allocation16 + $0x20] sm:$0xf]
    %v8338 = vld [vmem:[#allocation16 + $0x24] sm:$0xf]
    %v8339 = vld [vmem:[#allocation16 + $0x28] sm:$0xf]
    %v8340 = vld [vmem:[#allocation16 + $0x2c] sm:$0xf]
    %v8341 = vld [vmem:[#allocation16 + $0x30] sm:$0xf]
    %v8342 = vld [vmem:[#allocation16 + $0x34] sm:$0xf]
    %v8343 = vld [vmem:[#allocation16 + $0x38] sm:$0xf]
    %v8344 = vld [vmem:[#allocation16 + $0x3c] sm:$0xf]
    %v8345 = vld [vmem:[#allocation16 + $0x40] sm:$0xf]
    %v8346 = vld [vmem:[#allocation16 + $0x44] sm:$0xf]
    %v8347 = vld [vmem:[#allocation16 + $0x48] sm:$0xf]
    %v8348 = vld [vmem:[#allocation16 + $0x4c] sm:$0xf]
    %v8349 = vld [vmem:[#allocation16 + $0x50] sm:$0xf]
    %v8350 = vld [vmem:[#allocation16 + $0x54] sm:$0xf]
    %v8351 = vld [vmem:[#allocation16 + $0x58] sm:$0xf]
    %v8352 = vld [vmem:[#allocation16 + $0x5c] sm:$0xf]
    %v8353 = vld [vmem:[#allocation16 + $0x60] sm:$0xf]
    %v8354 = vld [vmem:[#allocation16 + $0x64] sm:$0xf]
    %v8355 = vld [vmem:[#allocation16 + $0x68] sm:$0xf]
    %v8356 = vld [vmem:[#allocation16 + $0x6c] sm:$0xf]
    %v8357 = vld [vmem:[#allocation16 + $0x70] sm:$0xf]
    %v8358 = vld [vmem:[#allocation16 + $0x74] sm:$0xf]
    %v8359 = vld [vmem:[#allocation16 + $0x78] sm:$0xf]
    %v8360 = vld [vmem:[#allocation16 + $0x7c] sm:$0xf]
    %v8361 = vld [vmem:[%s8296] sm:$0xff]
    %v8362 = vld [vmem:[%s8296 + $0x8] sm:$0xff]
    %v8363 = vld [vmem:[%s8296 + $0x10] sm:$0xff]
    %v8364 = vld [vmem:[%s8296 + $0x18] sm:$0xff]
    %v8365 = vld [vmem:[%s8296 + $0x20] sm:$0xff]
    %v8366 = vld [vmem:[%s8296 + $0x28] sm:$0xff]
    %v8367 = vld [vmem:[%s8296 + $0x30] sm:$0xff]
    %v8368 = vld [vmem:[%s8296 + $0x38] sm:$0xff]
    %v8369 = vld [vmem:[%s8296 + $0x40] sm:$0xff]
    %v8370 = vld [vmem:[%s8296 + $0x48] sm:$0xff]
    %v8371 = vld [vmem:[%s8296 + $0x50] sm:$0xff]
    %v8372 = vld [vmem:[%s8296 + $0x58] sm:$0xff]
    %v8373 = vld [vmem:[%s8296 + $0x60] sm:$0xff]
    %v8374 = vld [vmem:[%s8296 + $0x68] sm:$0xff]
    %v8375 = vld [vmem:[%s8296 + $0x70] sm:$0xff]
    %v8376 = vld [vmem:[%s8296 + $0x78] sm:$0xff]
    %s8377 = scalar_lea.vmem [#allocation16], 128
    %v8378 = vld [vmem:[%s8377] sm:$0xf]
    %v8379 = vld [vmem:[%s8377 + $0x4] sm:$0xf]
    %v8380 = vld [vmem:[%s8377 + $0x8] sm:$0xf]
    %v8381 = vld [vmem:[%s8377 + $0xc] sm:$0xf]
    %v8382 = vld [vmem:[%s8377 + $0x10] sm:$0xf]
    %v8383 = vld [vmem:[%s8377 + $0x14] sm:$0xf]
    %v8384 = vld [vmem:[%s8377 + $0x18] sm:$0xf]
    %v8385 = vld [vmem:[%s8377 + $0x1c] sm:$0xf]
    %v8386 = vld [vmem:[%s8377 + $0x20] sm:$0xf]
    %v8387 = vld [vmem:[%s8377 + $0x24] sm:$0xf]
    %v8388 = vld [vmem:[%s8377 + $0x28] sm:$0xf]
    %v8389 = vld [vmem:[%s8377 + $0x2c] sm:$0xf]
    %v8390 = vld [vmem:[%s8377 + $0x30] sm:$0xf]
    %v8391 = vld [vmem:[%s8377 + $0x34] sm:$0xf]
    %v8392 = vld [vmem:[%s8377 + $0x38] sm:$0xf]
    %v8393 = vld [vmem:[%s8377 + $0x3c] sm:$0xf]
    %v8394 = vld [vmem:[%s8377 + $0x40] sm:$0xf]
    %v8395 = vld [vmem:[%s8377 + $0x44] sm:$0xf]
    %v8396 = vld [vmem:[%s8377 + $0x48] sm:$0xf]
    %v8397 = vld [vmem:[%s8377 + $0x4c] sm:$0xf]
    %v8398 = vld [vmem:[%s8377 + $0x50] sm:$0xf]
    %v8399 = vld [vmem:[%s8377 + $0x54] sm:$0xf]
    %v8400 = vld [vmem:[%s8377 + $0x58] sm:$0xf]
    %v8401 = vld [vmem:[%s8377 + $0x5c] sm:$0xf]
    %v8402 = vld [vmem:[%s8377 + $0x60] sm:$0xf]
    %v8403 = vld [vmem:[%s8377 + $0x64] sm:$0xf]
    %v8404 = vld [vmem:[%s8377 + $0x68] sm:$0xf]
    %v8405 = vld [vmem:[%s8377 + $0x6c] sm:$0xf]
    %v8406 = vld [vmem:[%s8377 + $0x70] sm:$0xf]
    %v8407 = vld [vmem:[%s8377 + $0x74] sm:$0xf]
    %v8408 = vld [vmem:[%s8377 + $0x78] sm:$0xf]
    %v8409 = vld [vmem:[%s8377 + $0x7c] sm:$0xf]
    %v8426 = vunpack.c.l.b16 %v8361
    %v8427 = vunpack.c.h.b16 %v8361
    %v8428 = vunpack.c.l.b16 %v8362
    %v8429 = vunpack.c.h.b16 %v8362
    %v8430 = vunpack.c.l.b16 %v8363
    %v8431 = vunpack.c.h.b16 %v8363
    %v8432 = vunpack.c.l.b16 %v8364
    %v8433 = vunpack.c.h.b16 %v8364
    %v8434 = vunpack.c.l.b16 %v8365
    %v8435 = vunpack.c.h.b16 %v8365
    %v8436 = vunpack.c.l.b16 %v8366
    %v8437 = vunpack.c.h.b16 %v8366
    %v8438 = vunpack.c.l.b16 %v8367
    %v8439 = vunpack.c.h.b16 %v8367
    %v8440 = vunpack.c.l.b16 %v8368
    %v8441 = vunpack.c.h.b16 %v8368
    %v8442 = vunpack.c.l.b16 %v8369
    %v8443 = vunpack.c.h.b16 %v8369
    %v8444 = vunpack.c.l.b16 %v8370
    %v8445 = vunpack.c.h.b16 %v8370
    %v8446 = vunpack.c.l.b16 %v8371
    %v8447 = vunpack.c.h.b16 %v8371
    %v8448 = vunpack.c.l.b16 %v8372
    %v8449 = vunpack.c.h.b16 %v8372
    %v8450 = vunpack.c.l.b16 %v8373
    %v8451 = vunpack.c.h.b16 %v8373
    %v8452 = vunpack.c.l.b16 %v8374
    %v8453 = vunpack.c.h.b16 %v8374
    %v8454 = vunpack.c.l.b16 %v8375
    %v8455 = vunpack.c.h.b16 %v8375
    %v8456 = vunpack.c.l.b16 %v8376
    %v8457 = vunpack.c.h.b16 %v8376
    %v8458 = vpack.c.b16 %v8428, %v8426
    %v8459 = vpack.c.b16 %v8429, %v8427
    %v8460 = vpack.c.b16 %v8432, %v8430
    %v8461 = vpack.c.b16 %v8433, %v8431
    %v8462 = vpack.c.b16 %v8436, %v8434
    %v8463 = vpack.c.b16 %v8437, %v8435
    %v8464 = vpack.c.b16 %v8440, %v8438
    %v8465 = vpack.c.b16 %v8441, %v8439
    %v8466 = vpack.c.b16 %v8444, %v8442
    %v8467 = vpack.c.b16 %v8445, %v8443
    %v8468 = vpack.c.b16 %v8448, %v8446
    %v8469 = vpack.c.b16 %v8449, %v8447
    %v8470 = vpack.c.b16 %v8452, %v8450
    %v8471 = vpack.c.b16 %v8453, %v8451
    %v8472 = vpack.c.b16 %v8456, %v8454
    %v8473 = vpack.c.b16 %v8457, %v8455
    %v8522 = vunpack.c.l.b16 %v8378
    %v8523 = vunpack.c.l.b16 %v8379
    %v8524 = vunpack.c.l.b16 %v8380
    %v8525 = vunpack.c.l.b16 %v8381
    %v8526 = vunpack.c.l.b16 %v8382
    %v8527 = vunpack.c.l.b16 %v8383
    %v8528 = vunpack.c.l.b16 %v8384
    %v8529 = vunpack.c.l.b16 %v8385
    %v8530 = vunpack.c.l.b16 %v8386
    %v8531 = vunpack.c.l.b16 %v8387
    %v8532 = vunpack.c.l.b16 %v8388
    %v8533 = vunpack.c.l.b16 %v8389
    %v8534 = vunpack.c.l.b16 %v8390
    %v8535 = vunpack.c.l.b16 %v8391
    %v8536 = vunpack.c.l.b16 %v8392
    %v8537 = vunpack.c.l.b16 %v8393
    %v8538 = vunpack.c.l.b16 %v8394
    %v8539 = vunpack.c.l.b16 %v8395
    %v8540 = vunpack.c.l.b16 %v8396
    %v8541 = vunpack.c.l.b16 %v8397
    %v8542 = vunpack.c.l.b16 %v8398
    %v8543 = vunpack.c.l.b16 %v8399
    %v8544 = vunpack.c.l.b16 %v8400
    %v8545 = vunpack.c.l.b16 %v8401
    %v8546 = vunpack.c.l.b16 %v8402
    %v8547 = vunpack.c.l.b16 %v8403
    %v8548 = vunpack.c.l.b16 %v8404
    %v8549 = vunpack.c.l.b16 %v8405
    %v8550 = vunpack.c.l.b16 %v8406
    %v8551 = vunpack.c.l.b16 %v8407
    %v8552 = vunpack.c.l.b16 %v8408
    %v8553 = vunpack.c.l.b16 %v8409
    %v8554 = vpack.c.b16 %v8523, %v8522
    %v8555 = vpack.c.b16 %v8525, %v8524
    %v8556 = vpack.c.b16 %v8527, %v8526
    %v8557 = vpack.c.b16 %v8529, %v8528
    %v8558 = vpack.c.b16 %v8531, %v8530
    %v8559 = vpack.c.b16 %v8533, %v8532
    %v8560 = vpack.c.b16 %v8535, %v8534
    %v8561 = vpack.c.b16 %v8537, %v8536
    %v8562 = vpack.c.b16 %v8539, %v8538
    %v8563 = vpack.c.b16 %v8541, %v8540
    %v8564 = vpack.c.b16 %v8543, %v8542
    %v8565 = vpack.c.b16 %v8545, %v8544
    %v8566 = vpack.c.b16 %v8547, %v8546
    %v8567 = vpack.c.b16 %v8549, %v8548
    %v8568 = vpack.c.b16 %v8551, %v8550
    %v8569 = vpack.c.b16 %v8553, %v8552
    %8586 = vmatpush.bf16.msra.mxu0 %v8561
    %8587 = vmatpush.bf16.msra.mxu0 %v8560
    %8588 = vmatpush.bf16.msra.mxu0 %v8559
    %8589 = vmatpush.bf16.msra.mxu0 %v8558
    %8590 = vmatpush.bf16.msra.mxu0 %v8557
    %8591 = vmatpush.bf16.msra.mxu0 %v8556
    %8592 = vmatpush.bf16.msra.mxu0 %v8555
    %8593 = vmatpush.bf16.msra.mxu0 %v8554
    %8594 = vmatmul.bf16.gmra.mxu0 %v8458
    %v8595 = vpop.f32.mrf.mxu0
    %v8596 = vadd.f32 0.0, %v8595
    %v8597 = vpop.f32.mrf.mxu0
    %v8598 = vadd.f32 0.0, %v8597
    %8599 = vmatmul.bf16.gmra.mxu0 %v8460
    %v8600 = vpop.f32.mrf.mxu0
    %v8601 = vadd.f32 0.0, %v8600
    %v8602 = vpop.f32.mrf.mxu0
    %v8603 = vadd.f32 0.0, %v8602
    %8604 = vmatmul.bf16.gmra.mxu0 %v8462
    %v8605 = vpop.f32.mrf.mxu0
    %v8606 = vadd.f32 0.0, %v8605
    %v8607 = vpop.f32.mrf.mxu0
    %v8608 = vadd.f32 0.0, %v8607
    %8609 = vmatmul.bf16.gmra.mxu0 %v8464
    %v8610 = vpop.f32.mrf.mxu0
    %v8611 = vadd.f32 0.0, %v8610
    %v8612 = vpop.f32.mrf.mxu0
    %v8613 = vadd.f32 0.0, %v8612
    %8614 = vmatmul.bf16.gmra.mxu0 %v8466
    %v8615 = vpop.f32.mrf.mxu0
    %v8616 = vadd.f32 0.0, %v8615
    %v8617 = vpop.f32.mrf.mxu0
    %v8618 = vadd.f32 0.0, %v8617
    %8619 = vmatmul.bf16.gmra.mxu0 %v8468
    %v8620 = vpop.f32.mrf.mxu0
    %v8621 = vadd.f32 0.0, %v8620
    %v8622 = vpop.f32.mrf.mxu0
    %v8623 = vadd.f32 0.0, %v8622
    %8624 = vmatmul.bf16.gmra.mxu0 %v8470
    %v8625 = vpop.f32.mrf.mxu0
    %v8626 = vadd.f32 0.0, %v8625
    %v8627 = vpop.f32.mrf.mxu0
    %v8628 = vadd.f32 0.0, %v8627
    %8629 = vmatmul.bf16.gmra.mxu0 %v8472
    %v8630 = vpop.f32.mrf.mxu0
    %v8631 = vadd.f32 0.0, %v8630
    %v8632 = vpop.f32.mrf.mxu0
    %v8633 = vadd.f32 0.0, %v8632
    %8634 = vdwg.mxu0
    %8635 = vmatpush.bf16.msra.mxu0 %v8569
    %8636 = vmatpush.bf16.msra.mxu0 %v8568
    %8637 = vmatpush.bf16.msra.mxu0 %v8567
    %8638 = vmatpush.bf16.msra.mxu0 %v8566
    %8639 = vmatpush.bf16.msra.mxu0 %v8565
    %8640 = vmatpush.bf16.msra.mxu0 %v8564
    %8641 = vmatpush.bf16.msra.mxu0 %v8563
    %8642 = vmatpush.bf16.msra.mxu0 %v8562
    %8643 = vmatmul.bf16.gmra.mxu0 %v8459
    %v8644 = vpop.f32.mrf.mxu0
    %v8645 = vadd.f32 %v8596, %v8644
    %v8646 = vpop.f32.mrf.mxu0
    %v8647 = vadd.f32 %v8598, %v8646
    %8648 = vmatmul.bf16.gmra.mxu0 %v8461
    %v8649 = vpop.f32.mrf.mxu0
    %v8650 = vadd.f32 %v8601, %v8649
    %v8651 = vpop.f32.mrf.mxu0
    %v8652 = vadd.f32 %v8603, %v8651
    %8653 = vmatmul.bf16.gmra.mxu0 %v8463
    %v8654 = vpop.f32.mrf.mxu0
    %v8655 = vadd.f32 %v8606, %v8654
    %v8656 = vpop.f32.mrf.mxu0
    %v8657 = vadd.f32 %v8608, %v8656
    %8658 = vmatmul.bf16.gmra.mxu0 %v8465
    %v8659 = vpop.f32.mrf.mxu0
    %v8660 = vadd.f32 %v8611, %v8659
    %v8661 = vpop.f32.mrf.mxu0
    %v8662 = vadd.f32 %v8613, %v8661
    %8663 = vmatmul.bf16.gmra.mxu0 %v8467
    %v8664 = vpop.f32.mrf.mxu0
    %v8665 = vadd.f32 %v8616, %v8664
    %v8666 = vpop.f32.mrf.mxu0
    %v8667 = vadd.f32 %v8618, %v8666
    %8668 = vmatmul.bf16.gmra.mxu0 %v8469
    %v8669 = vpop.f32.mrf.mxu0
    %v8670 = vadd.f32 %v8621, %v8669
    %v8671 = vpop.f32.mrf.mxu0
    %v8672 = vadd.f32 %v8623, %v8671
    %8673 = vmatmul.bf16.gmra.mxu0 %v8471
    %v8674 = vpop.f32.mrf.mxu0
    %v8675 = vadd.f32 %v8626, %v8674
    %v8676 = vpop.f32.mrf.mxu0
    %v8677 = vadd.f32 %v8628, %v8676
    %8678 = vmatmul.bf16.gmra.mxu0 %v8473
    %v8679 = vpop.f32.mrf.mxu0
    %v8680 = vadd.f32 %v8631, %v8679
    %v8681 = vpop.f32.mrf.mxu0
    %v8682 = vadd.f32 %v8633, %v8681
    %8683 = vdwg.mxu0
    %v8700 = vunpack.c.l.b16 %v8313
    %v8701 = vunpack.c.h.b16 %v8313
    %v8702 = vunpack.c.l.b16 %v8314
    %v8703 = vunpack.c.h.b16 %v8314
    %v8704 = vunpack.c.l.b16 %v8315
    %v8705 = vunpack.c.h.b16 %v8315
    %v8706 = vunpack.c.l.b16 %v8316
    %v8707 = vunpack.c.h.b16 %v8316
    %v8708 = vunpack.c.l.b16 %v8317
    %v8709 = vunpack.c.h.b16 %v8317
    %v8710 = vunpack.c.l.b16 %v8318
    %v8711 = vunpack.c.h.b16 %v8318
    %v8712 = vunpack.c.l.b16 %v8319
    %v8713 = vunpack.c.h.b16 %v8319
    %v8714 = vunpack.c.l.b16 %v8320
    %v8715 = vunpack.c.h.b16 %v8320
    %v8716 = vunpack.c.l.b16 %v8321
    %v8717 = vunpack.c.h.b16 %v8321
    %v8718 = vunpack.c.l.b16 %v8322
    %v8719 = vunpack.c.h.b16 %v8322
    %v8720 = vunpack.c.l.b16 %v8323
    %v8721 = vunpack.c.h.b16 %v8323
    %v8722 = vunpack.c.l.b16 %v8324
    %v8723 = vunpack.c.h.b16 %v8324
    %v8724 = vunpack.c.l.b16 %v8325
    %v8725 = vunpack.c.h.b16 %v8325
    %v8726 = vunpack.c.l.b16 %v8326
    %v8727 = vunpack.c.h.b16 %v8326
    %v8728 = vunpack.c.l.b16 %v8327
    %v8729 = vunpack.c.h.b16 %v8327
    %v8730 = vunpack.c.l.b16 %v8328
    %v8731 = vunpack.c.h.b16 %v8328
    %v8732 = vpack.c.b16 %v8702, %v8700
    %v8733 = vpack.c.b16 %v8703, %v8701
    %v8734 = vpack.c.b16 %v8706, %v8704
    %v8735 = vpack.c.b16 %v8707, %v8705
    %v8736 = vpack.c.b16 %v8710, %v8708
    %v8737 = vpack.c.b16 %v8711, %v8709
    %v8738 = vpack.c.b16 %v8714, %v8712
    %v8739 = vpack.c.b16 %v8715, %v8713
    %v8740 = vpack.c.b16 %v8718, %v8716
    %v8741 = vpack.c.b16 %v8719, %v8717
    %v8742 = vpack.c.b16 %v8722, %v8720
    %v8743 = vpack.c.b16 %v8723, %v8721
    %v8744 = vpack.c.b16 %v8726, %v8724
    %v8745 = vpack.c.b16 %v8727, %v8725
    %v8746 = vpack.c.b16 %v8730, %v8728
    %v8747 = vpack.c.b16 %v8731, %v8729
    %v8796 = vunpack.c.l.b16 %v8329
    %v8797 = vunpack.c.l.b16 %v8330
    %v8798 = vunpack.c.l.b16 %v8331
    %v8799 = vunpack.c.l.b16 %v8332
    %v8800 = vunpack.c.l.b16 %v8333
    %v8801 = vunpack.c.l.b16 %v8334
    %v8802 = vunpack.c.l.b16 %v8335
    %v8803 = vunpack.c.l.b16 %v8336
    %v8804 = vunpack.c.l.b16 %v8337
    %v8805 = vunpack.c.l.b16 %v8338
    %v8806 = vunpack.c.l.b16 %v8339
    %v8807 = vunpack.c.l.b16 %v8340
    %v8808 = vunpack.c.l.b16 %v8341
    %v8809 = vunpack.c.l.b16 %v8342
    %v8810 = vunpack.c.l.b16 %v8343
    %v8811 = vunpack.c.l.b16 %v8344
    %v8812 = vunpack.c.l.b16 %v8345
    %v8813 = vunpack.c.l.b16 %v8346
    %v8814 = vunpack.c.l.b16 %v8347
    %v8815 = vunpack.c.l.b16 %v8348
    %v8816 = vunpack.c.l.b16 %v8349
    %v8817 = vunpack.c.l.b16 %v8350
    %v8818 = vunpack.c.l.b16 %v8351
    %v8819 = vunpack.c.l.b16 %v8352
    %v8820 = vunpack.c.l.b16 %v8353
    %v8821 = vunpack.c.l.b16 %v8354
    %v8822 = vunpack.c.l.b16 %v8355
    %v8823 = vunpack.c.l.b16 %v8356
    %v8824 = vunpack.c.l.b16 %v8357
    %v8825 = vunpack.c.l.b16 %v8358
    %v8826 = vunpack.c.l.b16 %v8359
    %v8827 = vunpack.c.l.b16 %v8360
    %v8828 = vpack.c.b16 %v8797, %v8796
    %v8829 = vpack.c.b16 %v8799, %v8798
    %v8830 = vpack.c.b16 %v8801, %v8800
    %v8831 = vpack.c.b16 %v8803, %v8802
    %v8832 = vpack.c.b16 %v8805, %v8804
    %v8833 = vpack.c.b16 %v8807, %v8806
    %v8834 = vpack.c.b16 %v8809, %v8808
    %v8835 = vpack.c.b16 %v8811, %v8810
    %v8836 = vpack.c.b16 %v8813, %v8812
    %v8837 = vpack.c.b16 %v8815, %v8814
    %v8838 = vpack.c.b16 %v8817, %v8816
    %v8839 = vpack.c.b16 %v8819, %v8818
    %v8840 = vpack.c.b16 %v8821, %v8820
    %v8841 = vpack.c.b16 %v8823, %v8822
    %v8842 = vpack.c.b16 %v8825, %v8824
    %v8843 = vpack.c.b16 %v8827, %v8826
    %8860 = vmatpush.bf16.msra.mxu0 %v8835
    %8861 = vmatpush.bf16.msra.mxu0 %v8834
    %8862 = vmatpush.bf16.msra.mxu0 %v8833
    %8863 = vmatpush.bf16.msra.mxu0 %v8832
    %8864 = vmatpush.bf16.msra.mxu0 %v8831
    %8865 = vmatpush.bf16.msra.mxu0 %v8830
    %8866 = vmatpush.bf16.msra.mxu0 %v8829
    %8867 = vmatpush.bf16.msra.mxu0 %v8828
    %8868 = vmatmul.bf16.gmra.mxu0 %v8732
    %v8869 = vpop.f32.mrf.mxu0
    %v8870 = vadd.f32 %v8645, %v8869
    %v8871 = vpop.f32.mrf.mxu0
    %v8872 = vadd.f32 %v8647, %v8871
    %8873 = vmatmul.bf16.gmra.mxu0 %v8734
    %v8874 = vpop.f32.mrf.mxu0
    %v8875 = vadd.f32 %v8650, %v8874
    %v8876 = vpop.f32.mrf.mxu0
    %v8877 = vadd.f32 %v8652, %v8876
    %8878 = vmatmul.bf16.gmra.mxu0 %v8736
    %v8879 = vpop.f32.mrf.mxu0
    %v8880 = vadd.f32 %v8655, %v8879
    %v8881 = vpop.f32.mrf.mxu0
    %v8882 = vadd.f32 %v8657, %v8881
    %8883 = vmatmul.bf16.gmra.mxu0 %v8738
    %v8884 = vpop.f32.mrf.mxu0
    %v8885 = vadd.f32 %v8660, %v8884
    %v8886 = vpop.f32.mrf.mxu0
    %v8887 = vadd.f32 %v8662, %v8886
    %8888 = vmatmul.bf16.gmra.mxu0 %v8740
    %v8889 = vpop.f32.mrf.mxu0
    %v8890 = vadd.f32 %v8665, %v8889
    %v8891 = vpop.f32.mrf.mxu0
    %v8892 = vadd.f32 %v8667, %v8891
    %8893 = vmatmul.bf16.gmra.mxu0 %v8742
    %v8894 = vpop.f32.mrf.mxu0
    %v8895 = vadd.f32 %v8670, %v8894
    %v8896 = vpop.f32.mrf.mxu0
    %v8897 = vadd.f32 %v8672, %v8896
    %8898 = vmatmul.bf16.gmra.mxu0 %v8744
    %v8899 = vpop.f32.mrf.mxu0
    %v8900 = vadd.f32 %v8675, %v8899
    %v8901 = vpop.f32.mrf.mxu0
    %v8902 = vadd.f32 %v8677, %v8901
    %8903 = vmatmul.bf16.gmra.mxu0 %v8746
    %v8904 = vpop.f32.mrf.mxu0
    %v8905 = vadd.f32 %v8680, %v8904
    %v8906 = vpop.f32.mrf.mxu0
    %v8907 = vadd.f32 %v8682, %v8906
    %8908 = vdwg.mxu0
    %8909 = vmatpush.bf16.msra.mxu0 %v8843
    %8910 = vmatpush.bf16.msra.mxu0 %v8842
    %8911 = vmatpush.bf16.msra.mxu0 %v8841
    %8912 = vmatpush.bf16.msra.mxu0 %v8840
    %8913 = vmatpush.bf16.msra.mxu0 %v8839
    %8914 = vmatpush.bf16.msra.mxu0 %v8838
    %8915 = vmatpush.bf16.msra.mxu0 %v8837
    %8916 = vmatpush.bf16.msra.mxu0 %v8836
    %8917 = vmatmul.bf16.gmra.mxu0 %v8733
    %v8918 = vpop.f32.mrf.mxu0
    %v8919 = vadd.f32 %v8870, %v8918
    %v8920 = vpop.f32.mrf.mxu0
    %v8921 = vadd.f32 %v8872, %v8920
    %8922 = vmatmul.bf16.gmra.mxu0 %v8735
    %v8923 = vpop.f32.mrf.mxu0
    %v8924 = vadd.f32 %v8875, %v8923
    %v8925 = vpop.f32.mrf.mxu0
    %v8926 = vadd.f32 %v8877, %v8925
    %8927 = vmatmul.bf16.gmra.mxu0 %v8737
    %v8928 = vpop.f32.mrf.mxu0
    %v8929 = vadd.f32 %v8880, %v8928
    %v8930 = vpop.f32.mrf.mxu0
    %v8931 = vadd.f32 %v8882, %v8930
    %8932 = vmatmul.bf16.gmra.mxu0 %v8739
    %v8933 = vpop.f32.mrf.mxu0
    %v8934 = vadd.f32 %v8885, %v8933
    %v8935 = vpop.f32.mrf.mxu0
    %v8936 = vadd.f32 %v8887, %v8935
    %8937 = vmatmul.bf16.gmra.mxu0 %v8741
    %v8938 = vpop.f32.mrf.mxu0
    %v8939 = vadd.f32 %v8890, %v8938
    %v8940 = vpop.f32.mrf.mxu0
    %v8941 = vadd.f32 %v8892, %v8940
    %8942 = vmatmul.bf16.gmra.mxu0 %v8743
    %v8943 = vpop.f32.mrf.mxu0
    %v8944 = vadd.f32 %v8895, %v8943
    %v8945 = vpop.f32.mrf.mxu0
    %v8946 = vadd.f32 %v8897, %v8945
    %8947 = vmatmul.bf16.gmra.mxu0 %v8745
    %v8948 = vpop.f32.mrf.mxu0
    %v8949 = vadd.f32 %v8900, %v8948
    %v8950 = vpop.f32.mrf.mxu0
    %v8951 = vadd.f32 %v8902, %v8950
    %8952 = vmatmul.bf16.gmra.mxu0 %v8747
    %v8953 = vpop.f32.mrf.mxu0
    %v8954 = vadd.f32 %v8905, %v8953
    %v8955 = vpop.f32.mrf.mxu0
    %v8956 = vadd.f32 %v8907, %v8955
    %8957 = vdwg.mxu0
    %s8958 = scalar_lea.vmem [#allocation3], 16
    %v8959 = vld [vmem:[%s8958] sm:$0xff]
    %v8960 = vld [vmem:[%s8958 + $0x8] sm:$0xff]
    %v8961 = vld [vmem:[%s8958 + $0x10] sm:$0xff]
    %v8962 = vld [vmem:[%s8958 + $0x18] sm:$0xff]
    %v8963 = vld [vmem:[%s8958 + $0x20] sm:$0xff]
    %v8964 = vld [vmem:[%s8958 + $0x28] sm:$0xff]
    %v8965 = vld [vmem:[%s8958 + $0x30] sm:$0xff]
    %v8966 = vld [vmem:[%s8958 + $0x38] sm:$0xff]
    %v8967 = vld [vmem:[%s8958 + $0x40] sm:$0xff]
    %v8968 = vld [vmem:[%s8958 + $0x48] sm:$0xff]
    %v8969 = vld [vmem:[%s8958 + $0x50] sm:$0xff]
    %v8970 = vld [vmem:[%s8958 + $0x58] sm:$0xff]
    %v8971 = vld [vmem:[%s8958 + $0x60] sm:$0xff]
    %v8972 = vld [vmem:[%s8958 + $0x68] sm:$0xff]
    %v8973 = vld [vmem:[%s8958 + $0x70] sm:$0xff]
    %v8974 = vld [vmem:[%s8958 + $0x78] sm:$0xff]
    %s8975 = scalar_lea.vmem [#allocation16], 256
    %v8976 = vld [vmem:[%s8975] sm:$0xf]
    %v8977 = vld [vmem:[%s8975 + $0x4] sm:$0xf]
    %v8978 = vld [vmem:[%s8975 + $0x8] sm:$0xf]
    %v8979 = vld [vmem:[%s8975 + $0xc] sm:$0xf]
    %v8980 = vld [vmem:[%s8975 + $0x10] sm:$0xf]
    %v8981 = vld [vmem:[%s8975 + $0x14] sm:$0xf]
    %v8982 = vld [vmem:[%s8975 + $0x18] sm:$0xf]
    %v8983 = vld [vmem:[%s8975 + $0x1c] sm:$0xf]
    %v8984 = vld [vmem:[%s8975 + $0x20] sm:$0xf]
    %v8985 = vld [vmem:[%s8975 + $0x24] sm:$0xf]
    %v8986 = vld [vmem:[%s8975 + $0x28] sm:$0xf]
    %v8987 = vld [vmem:[%s8975 + $0x2c] sm:$0xf]
    %v8988 = vld [vmem:[%s8975 + $0x30] sm:$0xf]
    %v8989 = vld [vmem:[%s8975 + $0x34] sm:$0xf]
    %v8990 = vld [vmem:[%s8975 + $0x38] sm:$0xf]
    %v8991 = vld [vmem:[%s8975 + $0x3c] sm:$0xf]
    %v8992 = vld [vmem:[%s8975 + $0x40] sm:$0xf]
    %v8993 = vld [vmem:[%s8975 + $0x44] sm:$0xf]
    %v8994 = vld [vmem:[%s8975 + $0x48] sm:$0xf]
    %v8995 = vld [vmem:[%s8975 + $0x4c] sm:$0xf]
    %v8996 = vld [vmem:[%s8975 + $0x50] sm:$0xf]
    %v8997 = vld [vmem:[%s8975 + $0x54] sm:$0xf]
    %v8998 = vld [vmem:[%s8975 + $0x58] sm:$0xf]
    %v8999 = vld [vmem:[%s8975 + $0x5c] sm:$0xf]
    %v9000 = vld [vmem:[%s8975 + $0x60] sm:$0xf]
    %v9001 = vld [vmem:[%s8975 + $0x64] sm:$0xf]
    %v9002 = vld [vmem:[%s8975 + $0x68] sm:$0xf]
    %v9003 = vld [vmem:[%s8975 + $0x6c] sm:$0xf]
    %v9004 = vld [vmem:[%s8975 + $0x70] sm:$0xf]
    %v9005 = vld [vmem:[%s8975 + $0x74] sm:$0xf]
    %v9006 = vld [vmem:[%s8975 + $0x78] sm:$0xf]
    %v9007 = vld [vmem:[%s8975 + $0x7c] sm:$0xf]
    %v9024 = vunpack.c.l.b16 %v8959
    %v9025 = vunpack.c.h.b16 %v8959
    %v9026 = vunpack.c.l.b16 %v8960
    %v9027 = vunpack.c.h.b16 %v8960
    %v9028 = vunpack.c.l.b16 %v8961
    %v9029 = vunpack.c.h.b16 %v8961
    %v9030 = vunpack.c.l.b16 %v8962
    %v9031 = vunpack.c.h.b16 %v8962
    %v9032 = vunpack.c.l.b16 %v8963
    %v9033 = vunpack.c.h.b16 %v8963
    %v9034 = vunpack.c.l.b16 %v8964
    %v9035 = vunpack.c.h.b16 %v8964
    %v9036 = vunpack.c.l.b16 %v8965
    %v9037 = vunpack.c.h.b16 %v8965
    %v9038 = vunpack.c.l.b16 %v8966
    %v9039 = vunpack.c.h.b16 %v8966
    %v9040 = vunpack.c.l.b16 %v8967
    %v9041 = vunpack.c.h.b16 %v8967
    %v9042 = vunpack.c.l.b16 %v8968
    %v9043 = vunpack.c.h.b16 %v8968
    %v9044 = vunpack.c.l.b16 %v8969
    %v9045 = vunpack.c.h.b16 %v8969
    %v9046 = vunpack.c.l.b16 %v8970
    %v9047 = vunpack.c.h.b16 %v8970
    %v9048 = vunpack.c.l.b16 %v8971
    %v9049 = vunpack.c.h.b16 %v8971
    %v9050 = vunpack.c.l.b16 %v8972
    %v9051 = vunpack.c.h.b16 %v8972
    %v9052 = vunpack.c.l.b16 %v8973
    %v9053 = vunpack.c.h.b16 %v8973
    %v9054 = vunpack.c.l.b16 %v8974
    %v9055 = vunpack.c.h.b16 %v8974
    %v9056 = vpack.c.b16 %v9026, %v9024
    %v9057 = vpack.c.b16 %v9027, %v9025
    %v9058 = vpack.c.b16 %v9030, %v9028
    %v9059 = vpack.c.b16 %v9031, %v9029
    %v9060 = vpack.c.b16 %v9034, %v9032
    %v9061 = vpack.c.b16 %v9035, %v9033
    %v9062 = vpack.c.b16 %v9038, %v9036
    %v9063 = vpack.c.b16 %v9039, %v9037
    %v9064 = vpack.c.b16 %v9042, %v9040
    %v9065 = vpack.c.b16 %v9043, %v9041
    %v9066 = vpack.c.b16 %v9046, %v9044
    %v9067 = vpack.c.b16 %v9047, %v9045
    %v9068 = vpack.c.b16 %v9050, %v9048
    %v9069 = vpack.c.b16 %v9051, %v9049
    %v9070 = vpack.c.b16 %v9054, %v9052
    %v9071 = vpack.c.b16 %v9055, %v9053
    %v9120 = vunpack.c.l.b16 %v8976
    %v9121 = vunpack.c.l.b16 %v8977
    %v9122 = vunpack.c.l.b16 %v8978
    %v9123 = vunpack.c.l.b16 %v8979
    %v9124 = vunpack.c.l.b16 %v8980
    %v9125 = vunpack.c.l.b16 %v8981
    %v9126 = vunpack.c.l.b16 %v8982
    %v9127 = vunpack.c.l.b16 %v8983
    %v9128 = vunpack.c.l.b16 %v8984
    %v9129 = vunpack.c.l.b16 %v8985
    %v9130 = vunpack.c.l.b16 %v8986
    %v9131 = vunpack.c.l.b16 %v8987
    %v9132 = vunpack.c.l.b16 %v8988
    %v9133 = vunpack.c.l.b16 %v8989
    %v9134 = vunpack.c.l.b16 %v8990
    %v9135 = vunpack.c.l.b16 %v8991
    %v9136 = vunpack.c.l.b16 %v8992
    %v9137 = vunpack.c.l.b16 %v8993
    %v9138 = vunpack.c.l.b16 %v8994
    %v9139 = vunpack.c.l.b16 %v8995
    %v9140 = vunpack.c.l.b16 %v8996
    %v9141 = vunpack.c.l.b16 %v8997
    %v9142 = vunpack.c.l.b16 %v8998
    %v9143 = vunpack.c.l.b16 %v8999
    %v9144 = vunpack.c.l.b16 %v9000
    %v9145 = vunpack.c.l.b16 %v9001
    %v9146 = vunpack.c.l.b16 %v9002
    %v9147 = vunpack.c.l.b16 %v9003
    %v9148 = vunpack.c.l.b16 %v9004
    %v9149 = vunpack.c.l.b16 %v9005
    %v9150 = vunpack.c.l.b16 %v9006
    %v9151 = vunpack.c.l.b16 %v9007
    %v9152 = vpack.c.b16 %v9121, %v9120
    %v9153 = vpack.c.b16 %v9123, %v9122
    %v9154 = vpack.c.b16 %v9125, %v9124
    %v9155 = vpack.c.b16 %v9127, %v9126
    %v9156 = vpack.c.b16 %v9129, %v9128
    %v9157 = vpack.c.b16 %v9131, %v9130
    %v9158 = vpack.c.b16 %v9133, %v9132
    %v9159 = vpack.c.b16 %v9135, %v9134
    %v9160 = vpack.c.b16 %v9137, %v9136
    %v9161 = vpack.c.b16 %v9139, %v9138
    %v9162 = vpack.c.b16 %v9141, %v9140
    %v9163 = vpack.c.b16 %v9143, %v9142
    %v9164 = vpack.c.b16 %v9145, %v9144
    %v9165 = vpack.c.b16 %v9147, %v9146
    %v9166 = vpack.c.b16 %v9149, %v9148
    %v9167 = vpack.c.b16 %v9151, %v9150
    %9184 = vmatpush.bf16.msra.mxu0 %v9159
    %9185 = vmatpush.bf16.msra.mxu0 %v9158
    %9186 = vmatpush.bf16.msra.mxu0 %v9157
    %9187 = vmatpush.bf16.msra.mxu0 %v9156
    %9188 = vmatpush.bf16.msra.mxu0 %v9155
    %9189 = vmatpush.bf16.msra.mxu0 %v9154
    %9190 = vmatpush.bf16.msra.mxu0 %v9153
    %9191 = vmatpush.bf16.msra.mxu0 %v9152
    %9192 = vmatmul.bf16.gmra.mxu0 %v9056
    %v9193 = vpop.f32.mrf.mxu0
    %v9194 = vadd.f32 0.0, %v9193
    %v9195 = vpop.f32.mrf.mxu0
    %v9196 = vadd.f32 0.0, %v9195
    %9197 = vmatmul.bf16.gmra.mxu0 %v9058
    %v9198 = vpop.f32.mrf.mxu0
    %v9199 = vadd.f32 0.0, %v9198
    %v9200 = vpop.f32.mrf.mxu0
    %v9201 = vadd.f32 0.0, %v9200
    %9202 = vmatmul.bf16.gmra.mxu0 %v9060
    %v9203 = vpop.f32.mrf.mxu0
    %v9204 = vadd.f32 0.0, %v9203
    %v9205 = vpop.f32.mrf.mxu0
    %v9206 = vadd.f32 0.0, %v9205
    %9207 = vmatmul.bf16.gmra.mxu0 %v9062
    %v9208 = vpop.f32.mrf.mxu0
    %v9209 = vadd.f32 0.0, %v9208
    %v9210 = vpop.f32.mrf.mxu0
    %v9211 = vadd.f32 0.0, %v9210
    %9212 = vmatmul.bf16.gmra.mxu0 %v9064
    %v9213 = vpop.f32.mrf.mxu0
    %v9214 = vadd.f32 0.0, %v9213
    %v9215 = vpop.f32.mrf.mxu0
    %v9216 = vadd.f32 0.0, %v9215
    %9217 = vmatmul.bf16.gmra.mxu0 %v9066
    %v9218 = vpop.f32.mrf.mxu0
    %v9219 = vadd.f32 0.0, %v9218
    %v9220 = vpop.f32.mrf.mxu0
    %v9221 = vadd.f32 0.0, %v9220
    %9222 = vmatmul.bf16.gmra.mxu0 %v9068
    %v9223 = vpop.f32.mrf.mxu0
    %v9224 = vadd.f32 0.0, %v9223
    %v9225 = vpop.f32.mrf.mxu0
    %v9226 = vadd.f32 0.0, %v9225
    %9227 = vmatmul.bf16.gmra.mxu0 %v9070
    %v9228 = vpop.f32.mrf.mxu0
    %v9229 = vadd.f32 0.0, %v9228
    %v9230 = vpop.f32.mrf.mxu0
    %v9231 = vadd.f32 0.0, %v9230
    %9232 = vdwg.mxu0
    %9233 = vmatpush.bf16.msra.mxu0 %v9167
    %9234 = vmatpush.bf16.msra.mxu0 %v9166
    %9235 = vmatpush.bf16.msra.mxu0 %v9165
    %9236 = vmatpush.bf16.msra.mxu0 %v9164
    %9237 = vmatpush.bf16.msra.mxu0 %v9163
    %9238 = vmatpush.bf16.msra.mxu0 %v9162
    %9239 = vmatpush.bf16.msra.mxu0 %v9161
    %9240 = vmatpush.bf16.msra.mxu0 %v9160
    %9241 = vmatmul.bf16.gmra.mxu0 %v9057
    %v9242 = vpop.f32.mrf.mxu0
    %v9243 = vadd.f32 %v9194, %v9242
    %v9244 = vpop.f32.mrf.mxu0
    %v9245 = vadd.f32 %v9196, %v9244
    %9246 = vmatmul.bf16.gmra.mxu0 %v9059
    %v9247 = vpop.f32.mrf.mxu0
    %v9248 = vadd.f32 %v9199, %v9247
    %v9249 = vpop.f32.mrf.mxu0
    %v9250 = vadd.f32 %v9201, %v9249
    %9251 = vmatmul.bf16.gmra.mxu0 %v9061
    %v9252 = vpop.f32.mrf.mxu0
    %v9253 = vadd.f32 %v9204, %v9252
    %v9254 = vpop.f32.mrf.mxu0
    %v9255 = vadd.f32 %v9206, %v9254
    %9256 = vmatmul.bf16.gmra.mxu0 %v9063
    %v9257 = vpop.f32.mrf.mxu0
    %v9258 = vadd.f32 %v9209, %v9257
    %v9259 = vpop.f32.mrf.mxu0
    %v9260 = vadd.f32 %v9211, %v9259
    %9261 = vmatmul.bf16.gmra.mxu0 %v9065
    %v9262 = vpop.f32.mrf.mxu0
    %v9263 = vadd.f32 %v9214, %v9262
    %v9264 = vpop.f32.mrf.mxu0
    %v9265 = vadd.f32 %v9216, %v9264
    %9266 = vmatmul.bf16.gmra.mxu0 %v9067
    %v9267 = vpop.f32.mrf.mxu0
    %v9268 = vadd.f32 %v9219, %v9267
    %v9269 = vpop.f32.mrf.mxu0
    %v9270 = vadd.f32 %v9221, %v9269
    %9271 = vmatmul.bf16.gmra.mxu0 %v9069
    %v9272 = vpop.f32.mrf.mxu0
    %v9273 = vadd.f32 %v9224, %v9272
    %v9274 = vpop.f32.mrf.mxu0
    %v9275 = vadd.f32 %v9226, %v9274
    %9276 = vmatmul.bf16.gmra.mxu0 %v9071
    %v9277 = vpop.f32.mrf.mxu0
    %v9278 = vadd.f32 %v9229, %v9277
    %v9279 = vpop.f32.mrf.mxu0
    %v9280 = vadd.f32 %v9231, %v9279
    %9281 = vdwg.mxu0
    %v9282 = vadd.f32 %v8919, %v9243
    %v9283 = vadd.f32 %v8921, %v9245
    %v9284 = vadd.f32 %v8924, %v9248
    %v9285 = vadd.f32 %v8926, %v9250
    %v9286 = vadd.f32 %v8929, %v9253
    %v9287 = vadd.f32 %v8931, %v9255
    %v9288 = vadd.f32 %v8934, %v9258
    %v9289 = vadd.f32 %v8936, %v9260
    %v9290 = vadd.f32 %v8939, %v9263
    %v9291 = vadd.f32 %v8941, %v9265
    %v9292 = vadd.f32 %v8944, %v9268
    %v9293 = vadd.f32 %v8946, %v9270
    %v9294 = vadd.f32 %v8949, %v9273
    %v9295 = vadd.f32 %v8951, %v9275
    %v9296 = vadd.f32 %v8954, %v9278
    %v9297 = vadd.f32 %v8956, %v9280
    %v9298 = vld [vmem:[#allocation18] sm:$0x1]
    %v9300 = vperm.slane %v9298, 0
    %v9302 = vadd.f32 %v9282, %v9300
    %v9303 = vadd.f32 %v9283, %v9300
    %v9304 = vadd.f32 %v9284, %v9300
    %v9305 = vadd.f32 %v9285, %v9300
    %v9306 = vadd.f32 %v9286, %v9300
    %v9307 = vadd.f32 %v9287, %v9300
    %v9308 = vadd.f32 %v9288, %v9300
    %v9309 = vadd.f32 %v9289, %v9300
    %v9310 = vadd.f32 %v9290, %v9300
    %v9311 = vadd.f32 %v9291, %v9300
    %v9312 = vadd.f32 %v9292, %v9300
    %v9313 = vadd.f32 %v9293, %v9300
    %v9314 = vadd.f32 %v9294, %v9300
    %v9315 = vadd.f32 %v9295, %v9300
    %v9316 = vadd.f32 %v9296, %v9300
    %v9317 = vadd.f32 %v9297, %v9300
    %v9318 = vmax.f32 %v9302, 0.0
    %v9319 = vmax.f32 %v9303, 0.0
    %v9320 = vmax.f32 %v9304, 0.0
    %v9321 = vmax.f32 %v9305, 0.0
    %v9322 = vmax.f32 %v9306, 0.0
    %v9323 = vmax.f32 %v9307, 0.0
    %v9324 = vmax.f32 %v9308, 0.0
    %v9325 = vmax.f32 %v9309, 0.0
    %v9326 = vmax.f32 %v9310, 0.0
    %v9327 = vmax.f32 %v9311, 0.0
    %v9328 = vmax.f32 %v9312, 0.0
    %v9329 = vmax.f32 %v9313, 0.0
    %v9330 = vmax.f32 %v9314, 0.0
    %v9331 = vmax.f32 %v9315, 0.0
    %v9332 = vmax.f32 %v9316, 0.0
    %v9333 = vmax.f32 %v9317, 0.0
    %9334 = vadd.xlane.f32.xlu0 %v9318
    %v9335 = vpop.xlane.xlu0 %9334
    %9336 = vadd.xlane.f32.xlu0 %v9319
    %v9337 = vpop.xlane.xlu0 %9336
    %9338 = vadd.xlane.f32.xlu0 %v9320
    %v9339 = vpop.xlane.xlu0 %9338
    %9340 = vadd.xlane.f32.xlu0 %v9321
    %v9341 = vpop.xlane.xlu0 %9340
    %9342 = vadd.xlane.f32.xlu0 %v9322
    %v9343 = vpop.xlane.xlu0 %9342
    %9344 = vadd.xlane.f32.xlu0 %v9323
    %v9345 = vpop.xlane.xlu0 %9344
    %9346 = vadd.xlane.f32.xlu0 %v9324
    %v9347 = vpop.xlane.xlu0 %9346
    %9348 = vadd.xlane.f32.xlu0 %v9325
    %v9349 = vpop.xlane.xlu0 %9348
    %9350 = vadd.xlane.f32.xlu0 %v9326
    %v9351 = vpop.xlane.xlu0 %9350
    %9352 = vadd.xlane.f32.xlu0 %v9327
    %v9353 = vpop.xlane.xlu0 %9352
    %9354 = vadd.xlane.f32.xlu0 %v9328
    %v9355 = vpop.xlane.xlu0 %9354
    %9356 = vadd.xlane.f32.xlu0 %v9329
    %v9357 = vpop.xlane.xlu0 %9356
    %9358 = vadd.xlane.f32.xlu0 %v9330
    %v9359 = vpop.xlane.xlu0 %9358
    %9360 = vadd.xlane.f32.xlu0 %v9331
    %v9361 = vpop.xlane.xlu0 %9360
    %9362 = vadd.xlane.f32.xlu0 %v9332
    %v9363 = vpop.xlane.xlu0 %9362
    %9364 = vadd.xlane.f32.xlu0 %v9333
    %v9365 = vpop.xlane.xlu0 %9364
    %v9366 = vadd.f32 %v9335, %v9337
    %v9367 = vadd.f32 %v9366, %v9339
    %v9368 = vadd.f32 %v9367, %v9341
    %v9369 = vadd.f32 %v9368, %v9343
    %v9370 = vadd.f32 %v9369, %v9345
    %v9371 = vadd.f32 %v9370, %v9347
    %v9372 = vadd.f32 %v9371, %v9349
    %v9373 = vadd.f32 %v9372, %v9351
    %v9374 = vadd.f32 %v9373, %v9353
    %v9375 = vadd.f32 %v9374, %v9355
    %v9376 = vadd.f32 %v9375, %v9357
    %v9377 = vadd.f32 %v9376, %v9359
    %v9378 = vadd.f32 %v9377, %v9361
    %v9379 = vadd.f32 %v9378, %v9363
    %v9380 = vadd.f32 %v9379, %v9365
    %v9381 = vrcp.pop 2048.0
    %v9382 = vmul.f32 2048.0, %v9381
    %v9383 = vsub.f32 1.0, %v9382
    %v9384 = vmul.f32 %v9381, %v9383
    %v9385 = vadd.f32 %v9381, %v9384
    %vm9386 = vweird.f32 %v9381
    %v9387 = vsel %vm9386, %v9381, %v9385
    %v9388 = vmul.f32 %v9380, %v9387
    %v9389 = vsub.f32 %v9318, %v9388
    %v9390 = vsub.f32 %v9319, %v9388
    %v9391 = vsub.f32 %v9320, %v9388
    %v9392 = vsub.f32 %v9321, %v9388
    %v9393 = vsub.f32 %v9322, %v9388
    %v9394 = vsub.f32 %v9323, %v9388
    %v9395 = vsub.f32 %v9324, %v9388
    %v9396 = vsub.f32 %v9325, %v9388
    %v9397 = vsub.f32 %v9326, %v9388
    %v9398 = vsub.f32 %v9327, %v9388
    %v9399 = vsub.f32 %v9328, %v9388
    %v9400 = vsub.f32 %v9329, %v9388
    %v9401 = vsub.f32 %v9330, %v9388
    %v9402 = vsub.f32 %v9331, %v9388
    %v9403 = vsub.f32 %v9332, %v9388
    %v9404 = vsub.f32 %v9333, %v9388
    %v9405 = vmul.f32 %v9389, %v9389
    %v9406 = vmul.f32 %v9390, %v9390
    %v9407 = vmul.f32 %v9391, %v9391
    %v9408 = vmul.f32 %v9392, %v9392
    %v9409 = vmul.f32 %v9393, %v9393
    %v9410 = vmul.f32 %v9394, %v9394
    %v9411 = vmul.f32 %v9395, %v9395
    %v9412 = vmul.f32 %v9396, %v9396
    %v9413 = vmul.f32 %v9397, %v9397
    %v9414 = vmul.f32 %v9398, %v9398
    %v9415 = vmul.f32 %v9399, %v9399
    %v9416 = vmul.f32 %v9400, %v9400
    %v9417 = vmul.f32 %v9401, %v9401
    %v9418 = vmul.f32 %v9402, %v9402
    %v9419 = vmul.f32 %v9403, %v9403
    %v9420 = vmul.f32 %v9404, %v9404
    %9421 = vadd.xlane.f32.xlu0 %v9405
    %v9422 = vpop.xlane.xlu0 %9421
    %9423 = vadd.xlane.f32.xlu0 %v9406
    %v9424 = vpop.xlane.xlu0 %9423
    %9425 = vadd.xlane.f32.xlu0 %v9407
    %v9426 = vpop.xlane.xlu0 %9425
    %9427 = vadd.xlane.f32.xlu0 %v9408
    %v9428 = vpop.xlane.xlu0 %9427
    %9429 = vadd.xlane.f32.xlu0 %v9409
    %v9430 = vpop.xlane.xlu0 %9429
    %9431 = vadd.xlane.f32.xlu0 %v9410
    %v9432 = vpop.xlane.xlu0 %9431
    %9433 = vadd.xlane.f32.xlu0 %v9411
    %v9434 = vpop.xlane.xlu0 %9433
    %9435 = vadd.xlane.f32.xlu0 %v9412
    %v9436 = vpop.xlane.xlu0 %9435
    %9437 = vadd.xlane.f32.xlu0 %v9413
    %v9438 = vpop.xlane.xlu0 %9437
    %9439 = vadd.xlane.f32.xlu0 %v9414
    %v9440 = vpop.xlane.xlu0 %9439
    %9441 = vadd.xlane.f32.xlu0 %v9415
    %v9442 = vpop.xlane.xlu0 %9441
    %9443 = vadd.xlane.f32.xlu0 %v9416
    %v9444 = vpop.xlane.xlu0 %9443
    %9445 = vadd.xlane.f32.xlu0 %v9417
    %v9446 = vpop.xlane.xlu0 %9445
    %9447 = vadd.xlane.f32.xlu0 %v9418
    %v9448 = vpop.xlane.xlu0 %9447
    %9449 = vadd.xlane.f32.xlu0 %v9419
    %v9450 = vpop.xlane.xlu0 %9449
    %9451 = vadd.xlane.f32.xlu0 %v9420
    %v9452 = vpop.xlane.xlu0 %9451
    %v9453 = vadd.f32 %v9422, %v9424
    %v9454 = vadd.f32 %v9453, %v9426
    %v9455 = vadd.f32 %v9454, %v9428
    %v9456 = vadd.f32 %v9455, %v9430
    %v9457 = vadd.f32 %v9456, %v9432
    %v9458 = vadd.f32 %v9457, %v9434
    %v9459 = vadd.f32 %v9458, %v9436
    %v9460 = vadd.f32 %v9459, %v9438
    %v9461 = vadd.f32 %v9460, %v9440
    %v9462 = vadd.f32 %v9461, %v9442
    %v9463 = vadd.f32 %v9462, %v9444
    %v9464 = vadd.f32 %v9463, %v9446
    %v9465 = vadd.f32 %v9464, %v9448
    %v9466 = vadd.f32 %v9465, %v9450
    %v9467 = vadd.f32 %v9466, %v9452
    %v9468 = vmul.f32 %v9467, %v9387
    %v9469 = vadd.f32 %v9468, 1e-05
    %v9470 = vrsqrt.pop %v9469
    %v9471 = vmul.f32 %v9470, %v9469
    %v9472 = vmul.f32 %v9471, %v9470
    %v9473 = vmul.f32 0.5, %v9472
    %v9474 = vsub.f32 1.5, %v9473
    %v9475 = vmul.f32 %v9470, %v9474
    %vm9476 = vweird.f32 %v9469
    %vm9477 = vweird.f32 %v9470
    %vm9478 = vmor %vm9476, %vm9477
    %v9479 = vsel %vm9478, %v9470, %v9475
    %v9480 = vmul.f32 %v9389, %v9479
    %v9481 = vmul.f32 %v9390, %v9479
    %v9482 = vmul.f32 %v9391, %v9479
    %v9483 = vmul.f32 %v9392, %v9479
    %v9484 = vmul.f32 %v9393, %v9479
    %v9485 = vmul.f32 %v9394, %v9479
    %v9486 = vmul.f32 %v9395, %v9479
    %v9487 = vmul.f32 %v9396, %v9479
    %v9488 = vmul.f32 %v9397, %v9479
    %v9489 = vmul.f32 %v9398, %v9479
    %v9490 = vmul.f32 %v9399, %v9479
    %v9491 = vmul.f32 %v9400, %v9479
    %v9492 = vmul.f32 %v9401, %v9479
    %v9493 = vmul.f32 %v9402, %v9479
    %v9494 = vmul.f32 %v9403, %v9479
    %v9495 = vmul.f32 %v9404, %v9479
    %v9496 = vld [vmem:[#allocation19] sm:$0x1]
    %v9497 = vld [vmem:[#allocation19 + $0x1] sm:$0x1]
    %v9498 = vld [vmem:[#allocation19 + $0x2] sm:$0x1]
    %v9499 = vld [vmem:[#allocation19 + $0x3] sm:$0x1]
    %v9500 = vld [vmem:[#allocation19 + $0x4] sm:$0x1]
    %v9501 = vld [vmem:[#allocation19 + $0x5] sm:$0x1]
    %v9502 = vld [vmem:[#allocation19 + $0x6] sm:$0x1]
    %v9503 = vld [vmem:[#allocation19 + $0x7] sm:$0x1]
    %v9504 = vld [vmem:[#allocation19 + $0x8] sm:$0x1]
    %v9505 = vld [vmem:[#allocation19 + $0x9] sm:$0x1]
    %v9506 = vld [vmem:[#allocation19 + $0xa] sm:$0x1]
    %v9507 = vld [vmem:[#allocation19 + $0xb] sm:$0x1]
    %v9508 = vld [vmem:[#allocation19 + $0xc] sm:$0x1]
    %v9509 = vld [vmem:[#allocation19 + $0xd] sm:$0x1]
    %v9510 = vld [vmem:[#allocation19 + $0xe] sm:$0x1]
    %v9511 = vld [vmem:[#allocation19 + $0xf] sm:$0x1]
    %v9528 = vperm.slane %v9496, 0
    %v9529 = vperm.slane %v9497, 0
    %v9530 = vperm.slane %v9498, 0
    %v9531 = vperm.slane %v9499, 0
    %v9532 = vperm.slane %v9500, 0
    %v9533 = vperm.slane %v9501, 0
    %v9534 = vperm.slane %v9502, 0
    %v9535 = vperm.slane %v9503, 0
    %v9536 = vperm.slane %v9504, 0
    %v9537 = vperm.slane %v9505, 0
    %v9538 = vperm.slane %v9506, 0
    %v9539 = vperm.slane %v9507, 0
    %v9540 = vperm.slane %v9508, 0
    %v9541 = vperm.slane %v9509, 0
    %v9542 = vperm.slane %v9510, 0
    %v9543 = vperm.slane %v9511, 0
    %v9560 = vmul.f32 %v9480, %v9528
    %v9561 = vmul.f32 %v9481, %v9529
    %v9562 = vmul.f32 %v9482, %v9530
    %v9563 = vmul.f32 %v9483, %v9531
    %v9564 = vmul.f32 %v9484, %v9532
    %v9565 = vmul.f32 %v9485, %v9533
    %v9566 = vmul.f32 %v9486, %v9534
    %v9567 = vmul.f32 %v9487, %v9535
    %v9568 = vmul.f32 %v9488, %v9536
    %v9569 = vmul.f32 %v9489, %v9537
    %v9570 = vmul.f32 %v9490, %v9538
    %v9571 = vmul.f32 %v9491, %v9539
    %v9572 = vmul.f32 %v9492, %v9540
    %v9573 = vmul.f32 %v9493, %v9541
    %v9574 = vmul.f32 %v9494, %v9542
    %v9575 = vmul.f32 %v9495, %v9543
    %v9576 = vld [vmem:[#allocation21] sm:$0x1]
    %v9577 = vld [vmem:[#allocation21 + $0x1] sm:$0x1]
    %v9578 = vld [vmem:[#allocation21 + $0x2] sm:$0x1]
    %v9579 = vld [vmem:[#allocation21 + $0x3] sm:$0x1]
    %v9580 = vld [vmem:[#allocation21 + $0x4] sm:$0x1]
    %v9581 = vld [vmem:[#allocation21 + $0x5] sm:$0x1]
    %v9582 = vld [vmem:[#allocation21 + $0x6] sm:$0x1]
    %v9583 = vld [vmem:[#allocation21 + $0x7] sm:$0x1]
    %v9584 = vld [vmem:[#allocation21 + $0x8] sm:$0x1]
    %v9585 = vld [vmem:[#allocation21 + $0x9] sm:$0x1]
    %v9586 = vld [vmem:[#allocation21 + $0xa] sm:$0x1]
    %v9587 = vld [vmem:[#allocation21 + $0xb] sm:$0x1]
    %v9588 = vld [vmem:[#allocation21 + $0xc] sm:$0x1]
    %v9589 = vld [vmem:[#allocation21 + $0xd] sm:$0x1]
    %v9590 = vld [vmem:[#allocation21 + $0xe] sm:$0x1]
    %v9591 = vld [vmem:[#allocation21 + $0xf] sm:$0x1]
    %v9608 = vperm.slane %v9576, 0
    %v9609 = vperm.slane %v9577, 0
    %v9610 = vperm.slane %v9578, 0
    %v9611 = vperm.slane %v9579, 0
    %v9612 = vperm.slane %v9580, 0
    %v9613 = vperm.slane %v9581, 0
    %v9614 = vperm.slane %v9582, 0
    %v9615 = vperm.slane %v9583, 0
    %v9616 = vperm.slane %v9584, 0
    %v9617 = vperm.slane %v9585, 0
    %v9618 = vperm.slane %v9586, 0
    %v9619 = vperm.slane %v9587, 0
    %v9620 = vperm.slane %v9588, 0
    %v9621 = vperm.slane %v9589, 0
    %v9622 = vperm.slane %v9590, 0
    %v9623 = vperm.slane %v9591, 0
    %v9640 = vadd.f32 %v9560, %v9608
    %v9641 = vadd.f32 %v9561, %v9609
    %v9642 = vadd.f32 %v9562, %v9610
    %v9643 = vadd.f32 %v9563, %v9611
    %v9644 = vadd.f32 %v9564, %v9612
    %v9645 = vadd.f32 %v9565, %v9613
    %v9646 = vadd.f32 %v9566, %v9614
    %v9647 = vadd.f32 %v9567, %v9615
    %v9648 = vadd.f32 %v9568, %v9616
    %v9649 = vadd.f32 %v9569, %v9617
    %v9650 = vadd.f32 %v9570, %v9618
    %v9651 = vadd.f32 %v9571, %v9619
    %v9652 = vadd.f32 %v9572, %v9620
    %v9653 = vadd.f32 %v9573, %v9621
    %v9654 = vadd.f32 %v9574, %v9622
    %v9655 = vadd.f32 %v9575, %v9623
    %v9656 = vpack.c.bf16 %v9640, %v9640
    %v9657 = vpack.c.bf16 %v9641, %v9641
    %v9658 = vpack.c.bf16 %v9642, %v9642
    %v9659 = vpack.c.bf16 %v9643, %v9643
    %v9660 = vpack.c.bf16 %v9644, %v9644
    %v9661 = vpack.c.bf16 %v9645, %v9645
    %v9662 = vpack.c.bf16 %v9646, %v9646
    %v9663 = vpack.c.bf16 %v9647, %v9647
    %v9664 = vpack.c.bf16 %v9648, %v9648
    %v9665 = vpack.c.bf16 %v9649, %v9649
    %v9666 = vpack.c.bf16 %v9650, %v9650
    %v9667 = vpack.c.bf16 %v9651, %v9651
    %v9668 = vpack.c.bf16 %v9652, %v9652
    %v9669 = vpack.c.bf16 %v9653, %v9653
    %v9670 = vpack.c.bf16 %v9654, %v9654
    %v9671 = vpack.c.bf16 %v9655, %v9655
    %v9672 = vld [vmem:[#allocation22] sm:$0xf]
    %v9673 = vld [vmem:[#allocation22 + $0x4] sm:$0xf]
    %v9674 = vld [vmem:[#allocation22 + $0x8] sm:$0xf]
    %v9675 = vld [vmem:[#allocation22 + $0xc] sm:$0xf]
    %v9676 = vld [vmem:[#allocation22 + $0x10] sm:$0xf]
    %v9677 = vld [vmem:[#allocation22 + $0x14] sm:$0xf]
    %v9678 = vld [vmem:[#allocation22 + $0x18] sm:$0xf]
    %v9679 = vld [vmem:[#allocation22 + $0x1c] sm:$0xf]
    %v9680 = vld [vmem:[#allocation22 + $0x20] sm:$0xf]
    %v9681 = vld [vmem:[#allocation22 + $0x24] sm:$0xf]
    %v9682 = vld [vmem:[#allocation22 + $0x28] sm:$0xf]
    %v9683 = vld [vmem:[#allocation22 + $0x2c] sm:$0xf]
    %v9684 = vld [vmem:[#allocation22 + $0x30] sm:$0xf]
    %v9685 = vld [vmem:[#allocation22 + $0x34] sm:$0xf]
    %v9686 = vld [vmem:[#allocation22 + $0x38] sm:$0xf]
    %v9687 = vld [vmem:[#allocation22 + $0x3c] sm:$0xf]
    %s9688 = scalar_lea.vmem [#allocation22], 64
    %v9689 = vld [vmem:[%s9688] sm:$0xf]
    %v9690 = vld [vmem:[%s9688 + $0x4] sm:$0xf]
    %v9691 = vld [vmem:[%s9688 + $0x8] sm:$0xf]
    %v9692 = vld [vmem:[%s9688 + $0xc] sm:$0xf]
    %v9693 = vld [vmem:[%s9688 + $0x10] sm:$0xf]
    %v9694 = vld [vmem:[%s9688 + $0x14] sm:$0xf]
    %v9695 = vld [vmem:[%s9688 + $0x18] sm:$0xf]
    %v9696 = vld [vmem:[%s9688 + $0x1c] sm:$0xf]
    %v9697 = vld [vmem:[%s9688 + $0x20] sm:$0xf]
    %v9698 = vld [vmem:[%s9688 + $0x24] sm:$0xf]
    %v9699 = vld [vmem:[%s9688 + $0x28] sm:$0xf]
    %v9700 = vld [vmem:[%s9688 + $0x2c] sm:$0xf]
    %v9701 = vld [vmem:[%s9688 + $0x30] sm:$0xf]
    %v9702 = vld [vmem:[%s9688 + $0x34] sm:$0xf]
    %v9703 = vld [vmem:[%s9688 + $0x38] sm:$0xf]
    %v9704 = vld [vmem:[%s9688 + $0x3c] sm:$0xf]
    %v9721 = vunpack.c.l.b16 %v9689
    %v9722 = vunpack.c.l.b16 %v9690
    %v9723 = vunpack.c.l.b16 %v9691
    %v9724 = vunpack.c.l.b16 %v9692
    %v9725 = vunpack.c.l.b16 %v9693
    %v9726 = vunpack.c.l.b16 %v9694
    %v9727 = vunpack.c.l.b16 %v9695
    %v9728 = vunpack.c.l.b16 %v9696
    %v9729 = vunpack.c.l.b16 %v9697
    %v9730 = vunpack.c.l.b16 %v9698
    %v9731 = vunpack.c.l.b16 %v9699
    %v9732 = vunpack.c.l.b16 %v9700
    %v9733 = vunpack.c.l.b16 %v9701
    %v9734 = vunpack.c.l.b16 %v9702
    %v9735 = vunpack.c.l.b16 %v9703
    %v9736 = vunpack.c.l.b16 %v9704
    %v9737 = vpack.c.b16 %v9722, %v9721
    %v9738 = vpack.c.b16 %v9724, %v9723
    %v9739 = vpack.c.b16 %v9726, %v9725
    %v9740 = vpack.c.b16 %v9728, %v9727
    %v9741 = vpack.c.b16 %v9730, %v9729
    %v9742 = vpack.c.b16 %v9732, %v9731
    %v9743 = vpack.c.b16 %v9734, %v9733
    %v9744 = vpack.c.b16 %v9736, %v9735
    %9753 = vmatpush.bf16.msra.mxu0 %v9744
    %9754 = vmatpush.bf16.msra.mxu0 %v9743
    %9755 = vmatpush.bf16.msra.mxu0 %v9742
    %9756 = vmatpush.bf16.msra.mxu0 %v9741
    %9757 = vmatpush.bf16.msra.mxu0 %v9740
    %9758 = vmatpush.bf16.msra.mxu0 %v9739
    %9759 = vmatpush.bf16.msra.mxu0 %v9738
    %9760 = vmatpush.bf16.msra.mxu0 %v9737
    %9761 = vmatmul.bf16.gmra.mxu0 %v9657
    %v9762 = vpop.f32.mrf.mxu0
    %v9763 = vadd.f32 0.0, %v9762
    %v9764 = vpop.f32.mrf.mxu0
    %9765 = vdwg.mxu0
    %v9782 = vunpack.c.l.b16 %v9672
    %v9783 = vunpack.c.l.b16 %v9673
    %v9784 = vunpack.c.l.b16 %v9674
    %v9785 = vunpack.c.l.b16 %v9675
    %v9786 = vunpack.c.l.b16 %v9676
    %v9787 = vunpack.c.l.b16 %v9677
    %v9788 = vunpack.c.l.b16 %v9678
    %v9789 = vunpack.c.l.b16 %v9679
    %v9790 = vunpack.c.l.b16 %v9680
    %v9791 = vunpack.c.l.b16 %v9681
    %v9792 = vunpack.c.l.b16 %v9682
    %v9793 = vunpack.c.l.b16 %v9683
    %v9794 = vunpack.c.l.b16 %v9684
    %v9795 = vunpack.c.l.b16 %v9685
    %v9796 = vunpack.c.l.b16 %v9686
    %v9797 = vunpack.c.l.b16 %v9687
    %v9798 = vpack.c.b16 %v9783, %v9782
    %v9799 = vpack.c.b16 %v9785, %v9784
    %v9800 = vpack.c.b16 %v9787, %v9786
    %v9801 = vpack.c.b16 %v9789, %v9788
    %v9802 = vpack.c.b16 %v9791, %v9790
    %v9803 = vpack.c.b16 %v9793, %v9792
    %v9804 = vpack.c.b16 %v9795, %v9794
    %v9805 = vpack.c.b16 %v9797, %v9796
    %9814 = vmatpush.bf16.msra.mxu0 %v9805
    %9815 = vmatpush.bf16.msra.mxu0 %v9804
    %9816 = vmatpush.bf16.msra.mxu0 %v9803
    %9817 = vmatpush.bf16.msra.mxu0 %v9802
    %9818 = vmatpush.bf16.msra.mxu0 %v9801
    %9819 = vmatpush.bf16.msra.mxu0 %v9800
    %9820 = vmatpush.bf16.msra.mxu0 %v9799
    %9821 = vmatpush.bf16.msra.mxu0 %v9798
    %9822 = vmatmul.bf16.gmra.mxu0 %v9656
    %v9823 = vpop.f32.mrf.mxu0
    %v9824 = vadd.f32 %v9763, %v9823
    %v9825 = vpop.f32.mrf.mxu0
    %9826 = vdwg.mxu0
    %s9827 = scalar_lea.vmem [#allocation22], 128
    %v9828 = vld [vmem:[%s9827] sm:$0xf]
    %v9829 = vld [vmem:[%s9827 + $0x4] sm:$0xf]
    %v9830 = vld [vmem:[%s9827 + $0x8] sm:$0xf]
    %v9831 = vld [vmem:[%s9827 + $0xc] sm:$0xf]
    %v9832 = vld [vmem:[%s9827 + $0x10] sm:$0xf]
    %v9833 = vld [vmem:[%s9827 + $0x14] sm:$0xf]
    %v9834 = vld [vmem:[%s9827 + $0x18] sm:$0xf]
    %v9835 = vld [vmem:[%s9827 + $0x1c] sm:$0xf]
    %v9836 = vld [vmem:[%s9827 + $0x20] sm:$0xf]
    %v9837 = vld [vmem:[%s9827 + $0x24] sm:$0xf]
    %v9838 = vld [vmem:[%s9827 + $0x28] sm:$0xf]
    %v9839 = vld [vmem:[%s9827 + $0x2c] sm:$0xf]
    %v9840 = vld [vmem:[%s9827 + $0x30] sm:$0xf]
    %v9841 = vld [vmem:[%s9827 + $0x34] sm:$0xf]
    %v9842 = vld [vmem:[%s9827 + $0x38] sm:$0xf]
    %v9843 = vld [vmem:[%s9827 + $0x3c] sm:$0xf]
    %v9860 = vunpack.c.l.b16 %v9828
    %v9861 = vunpack.c.l.b16 %v9829
    %v9862 = vunpack.c.l.b16 %v9830
    %v9863 = vunpack.c.l.b16 %v9831
    %v9864 = vunpack.c.l.b16 %v9832
    %v9865 = vunpack.c.l.b16 %v9833
    %v9866 = vunpack.c.l.b16 %v9834
    %v9867 = vunpack.c.l.b16 %v9835
    %v9868 = vunpack.c.l.b16 %v9836
    %v9869 = vunpack.c.l.b16 %v9837
    %v9870 = vunpack.c.l.b16 %v9838
    %v9871 = vunpack.c.l.b16 %v9839
    %v9872 = vunpack.c.l.b16 %v9840
    %v9873 = vunpack.c.l.b16 %v9841
    %v9874 = vunpack.c.l.b16 %v9842
    %v9875 = vunpack.c.l.b16 %v9843
    %v9876 = vpack.c.b16 %v9861, %v9860
    %v9877 = vpack.c.b16 %v9863, %v9862
    %v9878 = vpack.c.b16 %v9865, %v9864
    %v9879 = vpack.c.b16 %v9867, %v9866
    %v9880 = vpack.c.b16 %v9869, %v9868
    %v9881 = vpack.c.b16 %v9871, %v9870
    %v9882 = vpack.c.b16 %v9873, %v9872
    %v9883 = vpack.c.b16 %v9875, %v9874
    %9892 = vmatpush.bf16.msra.mxu0 %v9883
    %9893 = vmatpush.bf16.msra.mxu0 %v9882
    %9894 = vmatpush.bf16.msra.mxu0 %v9881
    %9895 = vmatpush.bf16.msra.mxu0 %v9880
    %9896 = vmatpush.bf16.msra.mxu0 %v9879
    %9897 = vmatpush.bf16.msra.mxu0 %v9878
    %9898 = vmatpush.bf16.msra.mxu0 %v9877
    %9899 = vmatpush.bf16.msra.mxu0 %v9876
    %9900 = vmatmul.bf16.gmra.mxu0 %v9658
    %v9901 = vpop.f32.mrf.mxu0
    %v9902 = vadd.f32 0.0, %v9901
    %v9903 = vpop.f32.mrf.mxu0
    %9904 = vdwg.mxu0
    %v9905 = vadd.f32 %v9824, %v9902
    %s9906 = scalar_lea.vmem [#allocation22], 192
    %v9907 = vld [vmem:[%s9906] sm:$0xf]
    %v9908 = vld [vmem:[%s9906 + $0x4] sm:$0xf]
    %v9909 = vld [vmem:[%s9906 + $0x8] sm:$0xf]
    %v9910 = vld [vmem:[%s9906 + $0xc] sm:$0xf]
    %v9911 = vld [vmem:[%s9906 + $0x10] sm:$0xf]
    %v9912 = vld [vmem:[%s9906 + $0x14] sm:$0xf]
    %v9913 = vld [vmem:[%s9906 + $0x18] sm:$0xf]
    %v9914 = vld [vmem:[%s9906 + $0x1c] sm:$0xf]
    %v9915 = vld [vmem:[%s9906 + $0x20] sm:$0xf]
    %v9916 = vld [vmem:[%s9906 + $0x24] sm:$0xf]
    %v9917 = vld [vmem:[%s9906 + $0x28] sm:$0xf]
    %v9918 = vld [vmem:[%s9906 + $0x2c] sm:$0xf]
    %v9919 = vld [vmem:[%s9906 + $0x30] sm:$0xf]
    %v9920 = vld [vmem:[%s9906 + $0x34] sm:$0xf]
    %v9921 = vld [vmem:[%s9906 + $0x38] sm:$0xf]
    %v9922 = vld [vmem:[%s9906 + $0x3c] sm:$0xf]
    %v9939 = vunpack.c.l.b16 %v9907
    %v9940 = vunpack.c.l.b16 %v9908
    %v9941 = vunpack.c.l.b16 %v9909
    %v9942 = vunpack.c.l.b16 %v9910
    %v9943 = vunpack.c.l.b16 %v9911
    %v9944 = vunpack.c.l.b16 %v9912
    %v9945 = vunpack.c.l.b16 %v9913
    %v9946 = vunpack.c.l.b16 %v9914
    %v9947 = vunpack.c.l.b16 %v9915
    %v9948 = vunpack.c.l.b16 %v9916
    %v9949 = vunpack.c.l.b16 %v9917
    %v9950 = vunpack.c.l.b16 %v9918
    %v9951 = vunpack.c.l.b16 %v9919
    %v9952 = vunpack.c.l.b16 %v9920
    %v9953 = vunpack.c.l.b16 %v9921
    %v9954 = vunpack.c.l.b16 %v9922
    %v9955 = vpack.c.b16 %v9940, %v9939
    %v9956 = vpack.c.b16 %v9942, %v9941
    %v9957 = vpack.c.b16 %v9944, %v9943
    %v9958 = vpack.c.b16 %v9946, %v9945
    %v9959 = vpack.c.b16 %v9948, %v9947
    %v9960 = vpack.c.b16 %v9950, %v9949
    %v9961 = vpack.c.b16 %v9952, %v9951
    %v9962 = vpack.c.b16 %v9954, %v9953
    %9971 = vmatpush.bf16.msra.mxu0 %v9962
    %9972 = vmatpush.bf16.msra.mxu0 %v9961
    %9973 = vmatpush.bf16.msra.mxu0 %v9960
    %9974 = vmatpush.bf16.msra.mxu0 %v9959
    %9975 = vmatpush.bf16.msra.mxu0 %v9958
    %9976 = vmatpush.bf16.msra.mxu0 %v9957
    %9977 = vmatpush.bf16.msra.mxu0 %v9956
    %9978 = vmatpush.bf16.msra.mxu0 %v9955
    %9979 = vmatmul.bf16.gmra.mxu0 %v9659
    %v9980 = vpop.f32.mrf.mxu0
    %v9981 = vadd.f32 0.0, %v9980
    %v9982 = vpop.f32.mrf.mxu0
    %9983 = vdwg.mxu0
    %v9984 = vadd.f32 %v9905, %v9981
    %s9985 = scalar_lea.vmem [#allocation22], 256
    %v9986 = vld [vmem:[%s9985] sm:$0xf]
    %v9987 = vld [vmem:[%s9985 + $0x4] sm:$0xf]
    %v9988 = vld [vmem:[%s9985 + $0x8] sm:$0xf]
    %v9989 = vld [vmem:[%s9985 + $0xc] sm:$0xf]
    %v9990 = vld [vmem:[%s9985 + $0x10] sm:$0xf]
    %v9991 = vld [vmem:[%s9985 + $0x14] sm:$0xf]
    %v9992 = vld [vmem:[%s9985 + $0x18] sm:$0xf]
    %v9993 = vld [vmem:[%s9985 + $0x1c] sm:$0xf]
    %v9994 = vld [vmem:[%s9985 + $0x20] sm:$0xf]
    %v9995 = vld [vmem:[%s9985 + $0x24] sm:$0xf]
    %v9996 = vld [vmem:[%s9985 + $0x28] sm:$0xf]
    %v9997 = vld [vmem:[%s9985 + $0x2c] sm:$0xf]
    %v9998 = vld [vmem:[%s9985 + $0x30] sm:$0xf]
    %v9999 = vld [vmem:[%s9985 + $0x34] sm:$0xf]
    %v10000 = vld [vmem:[%s9985 + $0x38] sm:$0xf]
    %v10001 = vld [vmem:[%s9985 + $0x3c] sm:$0xf]
    %v10018 = vunpack.c.l.b16 %v9986
    %v10019 = vunpack.c.l.b16 %v9987
    %v10020 = vunpack.c.l.b16 %v9988
    %v10021 = vunpack.c.l.b16 %v9989
    %v10022 = vunpack.c.l.b16 %v9990
    %v10023 = vunpack.c.l.b16 %v9991
    %v10024 = vunpack.c.l.b16 %v9992
    %v10025 = vunpack.c.l.b16 %v9993
    %v10026 = vunpack.c.l.b16 %v9994
    %v10027 = vunpack.c.l.b16 %v9995
    %v10028 = vunpack.c.l.b16 %v9996
    %v10029 = vunpack.c.l.b16 %v9997
    %v10030 = vunpack.c.l.b16 %v9998
    %v10031 = vunpack.c.l.b16 %v9999
    %v10032 = vunpack.c.l.b16 %v10000
    %v10033 = vunpack.c.l.b16 %v10001
    %v10034 = vpack.c.b16 %v10019, %v10018
    %v10035 = vpack.c.b16 %v10021, %v10020
    %v10036 = vpack.c.b16 %v10023, %v10022
    %v10037 = vpack.c.b16 %v10025, %v10024
    %v10038 = vpack.c.b16 %v10027, %v10026
    %v10039 = vpack.c.b16 %v10029, %v10028
    %v10040 = vpack.c.b16 %v10031, %v10030
    %v10041 = vpack.c.b16 %v10033, %v10032
    %10050 = vmatpush.bf16.msra.mxu0 %v10041
    %10051 = vmatpush.bf16.msra.mxu0 %v10040
    %10052 = vmatpush.bf16.msra.mxu0 %v10039
    %10053 = vmatpush.bf16.msra.mxu0 %v10038
    %10054 = vmatpush.bf16.msra.mxu0 %v10037
    %10055 = vmatpush.bf16.msra.mxu0 %v10036
    %10056 = vmatpush.bf16.msra.mxu0 %v10035
    %10057 = vmatpush.bf16.msra.mxu0 %v10034
    %10058 = vmatmul.bf16.gmra.mxu0 %v9660
    %v10059 = vpop.f32.mrf.mxu0
    %v10060 = vadd.f32 0.0, %v10059
    %v10061 = vpop.f32.mrf.mxu0
    %10062 = vdwg.mxu0
    %v10063 = vadd.f32 %v9984, %v10060
    %s10064 = scalar_lea.vmem [#allocation22], 320
    %v10065 = vld [vmem:[%s10064] sm:$0xf]
    %v10066 = vld [vmem:[%s10064 + $0x4] sm:$0xf]
    %v10067 = vld [vmem:[%s10064 + $0x8] sm:$0xf]
    %v10068 = vld [vmem:[%s10064 + $0xc] sm:$0xf]
    %v10069 = vld [vmem:[%s10064 + $0x10] sm:$0xf]
    %v10070 = vld [vmem:[%s10064 + $0x14] sm:$0xf]
    %v10071 = vld [vmem:[%s10064 + $0x18] sm:$0xf]
    %v10072 = vld [vmem:[%s10064 + $0x1c] sm:$0xf]
    %v10073 = vld [vmem:[%s10064 + $0x20] sm:$0xf]
    %v10074 = vld [vmem:[%s10064 + $0x24] sm:$0xf]
    %v10075 = vld [vmem:[%s10064 + $0x28] sm:$0xf]
    %v10076 = vld [vmem:[%s10064 + $0x2c] sm:$0xf]
    %v10077 = vld [vmem:[%s10064 + $0x30] sm:$0xf]
    %v10078 = vld [vmem:[%s10064 + $0x34] sm:$0xf]
    %v10079 = vld [vmem:[%s10064 + $0x38] sm:$0xf]
    %v10080 = vld [vmem:[%s10064 + $0x3c] sm:$0xf]
    %v10097 = vunpack.c.l.b16 %v10065
    %v10098 = vunpack.c.l.b16 %v10066
    %v10099 = vunpack.c.l.b16 %v10067
    %v10100 = vunpack.c.l.b16 %v10068
    %v10101 = vunpack.c.l.b16 %v10069
    %v10102 = vunpack.c.l.b16 %v10070
    %v10103 = vunpack.c.l.b16 %v10071
    %v10104 = vunpack.c.l.b16 %v10072
    %v10105 = vunpack.c.l.b16 %v10073
    %v10106 = vunpack.c.l.b16 %v10074
    %v10107 = vunpack.c.l.b16 %v10075
    %v10108 = vunpack.c.l.b16 %v10076
    %v10109 = vunpack.c.l.b16 %v10077
    %v10110 = vunpack.c.l.b16 %v10078
    %v10111 = vunpack.c.l.b16 %v10079
    %v10112 = vunpack.c.l.b16 %v10080
    %v10113 = vpack.c.b16 %v10098, %v10097
    %v10114 = vpack.c.b16 %v10100, %v10099
    %v10115 = vpack.c.b16 %v10102, %v10101
    %v10116 = vpack.c.b16 %v10104, %v10103
    %v10117 = vpack.c.b16 %v10106, %v10105
    %v10118 = vpack.c.b16 %v10108, %v10107
    %v10119 = vpack.c.b16 %v10110, %v10109
    %v10120 = vpack.c.b16 %v10112, %v10111
    %10129 = vmatpush.bf16.msra.mxu0 %v10120
    %10130 = vmatpush.bf16.msra.mxu0 %v10119
    %10131 = vmatpush.bf16.msra.mxu0 %v10118
    %10132 = vmatpush.bf16.msra.mxu0 %v10117
    %10133 = vmatpush.bf16.msra.mxu0 %v10116
    %10134 = vmatpush.bf16.msra.mxu0 %v10115
    %10135 = vmatpush.bf16.msra.mxu0 %v10114
    %10136 = vmatpush.bf16.msra.mxu0 %v10113
    %10137 = vmatmul.bf16.gmra.mxu0 %v9661
    %v10138 = vpop.f32.mrf.mxu0
    %v10139 = vadd.f32 0.0, %v10138
    %v10140 = vpop.f32.mrf.mxu0
    %10141 = vdwg.mxu0
    %v10142 = vadd.f32 %v10063, %v10139
    %s10143 = scalar_lea.vmem [#allocation22], 384
    %v10144 = vld [vmem:[%s10143] sm:$0xf]
    %v10145 = vld [vmem:[%s10143 + $0x4] sm:$0xf]
    %v10146 = vld [vmem:[%s10143 + $0x8] sm:$0xf]
    %v10147 = vld [vmem:[%s10143 + $0xc] sm:$0xf]
    %v10148 = vld [vmem:[%s10143 + $0x10] sm:$0xf]
    %v10149 = vld [vmem:[%s10143 + $0x14] sm:$0xf]
    %v10150 = vld [vmem:[%s10143 + $0x18] sm:$0xf]
    %v10151 = vld [vmem:[%s10143 + $0x1c] sm:$0xf]
    %v10152 = vld [vmem:[%s10143 + $0x20] sm:$0xf]
    %v10153 = vld [vmem:[%s10143 + $0x24] sm:$0xf]
    %v10154 = vld [vmem:[%s10143 + $0x28] sm:$0xf]
    %v10155 = vld [vmem:[%s10143 + $0x2c] sm:$0xf]
    %v10156 = vld [vmem:[%s10143 + $0x30] sm:$0xf]
    %v10157 = vld [vmem:[%s10143 + $0x34] sm:$0xf]
    %v10158 = vld [vmem:[%s10143 + $0x38] sm:$0xf]
    %v10159 = vld [vmem:[%s10143 + $0x3c] sm:$0xf]
    %v10176 = vunpack.c.l.b16 %v10144
    %v10177 = vunpack.c.l.b16 %v10145
    %v10178 = vunpack.c.l.b16 %v10146
    %v10179 = vunpack.c.l.b16 %v10147
    %v10180 = vunpack.c.l.b16 %v10148
    %v10181 = vunpack.c.l.b16 %v10149
    %v10182 = vunpack.c.l.b16 %v10150
    %v10183 = vunpack.c.l.b16 %v10151
    %v10184 = vunpack.c.l.b16 %v10152
    %v10185 = vunpack.c.l.b16 %v10153
    %v10186 = vunpack.c.l.b16 %v10154
    %v10187 = vunpack.c.l.b16 %v10155
    %v10188 = vunpack.c.l.b16 %v10156
    %v10189 = vunpack.c.l.b16 %v10157
    %v10190 = vunpack.c.l.b16 %v10158
    %v10191 = vunpack.c.l.b16 %v10159
    %v10192 = vpack.c.b16 %v10177, %v10176
    %v10193 = vpack.c.b16 %v10179, %v10178
    %v10194 = vpack.c.b16 %v10181, %v10180
    %v10195 = vpack.c.b16 %v10183, %v10182
    %v10196 = vpack.c.b16 %v10185, %v10184
    %v10197 = vpack.c.b16 %v10187, %v10186
    %v10198 = vpack.c.b16 %v10189, %v10188
    %v10199 = vpack.c.b16 %v10191, %v10190
    %10208 = vmatpush.bf16.msra.mxu0 %v10199
    %10209 = vmatpush.bf16.msra.mxu0 %v10198
    %10210 = vmatpush.bf16.msra.mxu0 %v10197
    %10211 = vmatpush.bf16.msra.mxu0 %v10196
    %10212 = vmatpush.bf16.msra.mxu0 %v10195
    %10213 = vmatpush.bf16.msra.mxu0 %v10194
    %10214 = vmatpush.bf16.msra.mxu0 %v10193
    %10215 = vmatpush.bf16.msra.mxu0 %v10192
    %10216 = vmatmul.bf16.gmra.mxu0 %v9662
    %v10217 = vpop.f32.mrf.mxu0
    %v10218 = vadd.f32 0.0, %v10217
    %v10219 = vpop.f32.mrf.mxu0
    %10220 = vdwg.mxu0
    %v10221 = vadd.f32 %v10142, %v10218
    %s10222 = scalar_lea.vmem [#allocation22], 448
    %v10223 = vld [vmem:[%s10222] sm:$0xf]
    %v10224 = vld [vmem:[%s10222 + $0x4] sm:$0xf]
    %v10225 = vld [vmem:[%s10222 + $0x8] sm:$0xf]
    %v10226 = vld [vmem:[%s10222 + $0xc] sm:$0xf]
    %v10227 = vld [vmem:[%s10222 + $0x10] sm:$0xf]
    %v10228 = vld [vmem:[%s10222 + $0x14] sm:$0xf]
    %v10229 = vld [vmem:[%s10222 + $0x18] sm:$0xf]
    %v10230 = vld [vmem:[%s10222 + $0x1c] sm:$0xf]
    %v10231 = vld [vmem:[%s10222 + $0x20] sm:$0xf]
    %v10232 = vld [vmem:[%s10222 + $0x24] sm:$0xf]
    %v10233 = vld [vmem:[%s10222 + $0x28] sm:$0xf]
    %v10234 = vld [vmem:[%s10222 + $0x2c] sm:$0xf]
    %v10235 = vld [vmem:[%s10222 + $0x30] sm:$0xf]
    %v10236 = vld [vmem:[%s10222 + $0x34] sm:$0xf]
    %v10237 = vld [vmem:[%s10222 + $0x38] sm:$0xf]
    %v10238 = vld [vmem:[%s10222 + $0x3c] sm:$0xf]
    %v10255 = vunpack.c.l.b16 %v10223
    %v10256 = vunpack.c.l.b16 %v10224
    %v10257 = vunpack.c.l.b16 %v10225
    %v10258 = vunpack.c.l.b16 %v10226
    %v10259 = vunpack.c.l.b16 %v10227
    %v10260 = vunpack.c.l.b16 %v10228
    %v10261 = vunpack.c.l.b16 %v10229
    %v10262 = vunpack.c.l.b16 %v10230
    %v10263 = vunpack.c.l.b16 %v10231
    %v10264 = vunpack.c.l.b16 %v10232
    %v10265 = vunpack.c.l.b16 %v10233
    %v10266 = vunpack.c.l.b16 %v10234
    %v10267 = vunpack.c.l.b16 %v10235
    %v10268 = vunpack.c.l.b16 %v10236
    %v10269 = vunpack.c.l.b16 %v10237
    %v10270 = vunpack.c.l.b16 %v10238
    %v10271 = vpack.c.b16 %v10256, %v10255
    %v10272 = vpack.c.b16 %v10258, %v10257
    %v10273 = vpack.c.b16 %v10260, %v10259
    %v10274 = vpack.c.b16 %v10262, %v10261
    %v10275 = vpack.c.b16 %v10264, %v10263
    %v10276 = vpack.c.b16 %v10266, %v10265
    %v10277 = vpack.c.b16 %v10268, %v10267
    %v10278 = vpack.c.b16 %v10270, %v10269
    %10287 = vmatpush.bf16.msra.mxu0 %v10278
    %10288 = vmatpush.bf16.msra.mxu0 %v10277
    %10289 = vmatpush.bf16.msra.mxu0 %v10276
    %10290 = vmatpush.bf16.msra.mxu0 %v10275
    %10291 = vmatpush.bf16.msra.mxu0 %v10274
    %10292 = vmatpush.bf16.msra.mxu0 %v10273
    %10293 = vmatpush.bf16.msra.mxu0 %v10272
    %10294 = vmatpush.bf16.msra.mxu0 %v10271
    %10295 = vmatmul.bf16.gmra.mxu0 %v9663
    %v10296 = vpop.f32.mrf.mxu0
    %v10297 = vadd.f32 0.0, %v10296
    %v10298 = vpop.f32.mrf.mxu0
    %10299 = vdwg.mxu0
    %v10300 = vadd.f32 %v10221, %v10297
    %s10301 = scalar_lea.vmem [#allocation22], 512
    %v10302 = vld [vmem:[%s10301] sm:$0xf]
    %v10303 = vld [vmem:[%s10301 + $0x4] sm:$0xf]
    %v10304 = vld [vmem:[%s10301 + $0x8] sm:$0xf]
    %v10305 = vld [vmem:[%s10301 + $0xc] sm:$0xf]
    %v10306 = vld [vmem:[%s10301 + $0x10] sm:$0xf]
    %v10307 = vld [vmem:[%s10301 + $0x14] sm:$0xf]
    %v10308 = vld [vmem:[%s10301 + $0x18] sm:$0xf]
    %v10309 = vld [vmem:[%s10301 + $0x1c] sm:$0xf]
    %v10310 = vld [vmem:[%s10301 + $0x20] sm:$0xf]
    %v10311 = vld [vmem:[%s10301 + $0x24] sm:$0xf]
    %v10312 = vld [vmem:[%s10301 + $0x28] sm:$0xf]
    %v10313 = vld [vmem:[%s10301 + $0x2c] sm:$0xf]
    %v10314 = vld [vmem:[%s10301 + $0x30] sm:$0xf]
    %v10315 = vld [vmem:[%s10301 + $0x34] sm:$0xf]
    %v10316 = vld [vmem:[%s10301 + $0x38] sm:$0xf]
    %v10317 = vld [vmem:[%s10301 + $0x3c] sm:$0xf]
    %v10334 = vunpack.c.l.b16 %v10302
    %v10335 = vunpack.c.l.b16 %v10303
    %v10336 = vunpack.c.l.b16 %v10304
    %v10337 = vunpack.c.l.b16 %v10305
    %v10338 = vunpack.c.l.b16 %v10306
    %v10339 = vunpack.c.l.b16 %v10307
    %v10340 = vunpack.c.l.b16 %v10308
    %v10341 = vunpack.c.l.b16 %v10309
    %v10342 = vunpack.c.l.b16 %v10310
    %v10343 = vunpack.c.l.b16 %v10311
    %v10344 = vunpack.c.l.b16 %v10312
    %v10345 = vunpack.c.l.b16 %v10313
    %v10346 = vunpack.c.l.b16 %v10314
    %v10347 = vunpack.c.l.b16 %v10315
    %v10348 = vunpack.c.l.b16 %v10316
    %v10349 = vunpack.c.l.b16 %v10317
    %v10350 = vpack.c.b16 %v10335, %v10334
    %v10351 = vpack.c.b16 %v10337, %v10336
    %v10352 = vpack.c.b16 %v10339, %v10338
    %v10353 = vpack.c.b16 %v10341, %v10340
    %v10354 = vpack.c.b16 %v10343, %v10342
    %v10355 = vpack.c.b16 %v10345, %v10344
    %v10356 = vpack.c.b16 %v10347, %v10346
    %v10357 = vpack.c.b16 %v10349, %v10348
    %10366 = vmatpush.bf16.msra.mxu0 %v10357
    %10367 = vmatpush.bf16.msra.mxu0 %v10356
    %10368 = vmatpush.bf16.msra.mxu0 %v10355
    %10369 = vmatpush.bf16.msra.mxu0 %v10354
    %10370 = vmatpush.bf16.msra.mxu0 %v10353
    %10371 = vmatpush.bf16.msra.mxu0 %v10352
    %10372 = vmatpush.bf16.msra.mxu0 %v10351
    %10373 = vmatpush.bf16.msra.mxu0 %v10350
    %10374 = vmatmul.bf16.gmra.mxu0 %v9664
    %v10375 = vpop.f32.mrf.mxu0
    %v10376 = vadd.f32 0.0, %v10375
    %v10377 = vpop.f32.mrf.mxu0
    %10378 = vdwg.mxu0
    %v10379 = vadd.f32 %v10300, %v10376
    %s10380 = scalar_lea.vmem [#allocation22], 576
    %v10381 = vld [vmem:[%s10380] sm:$0xf]
    %v10382 = vld [vmem:[%s10380 + $0x4] sm:$0xf]
    %v10383 = vld [vmem:[%s10380 + $0x8] sm:$0xf]
    %v10384 = vld [vmem:[%s10380 + $0xc] sm:$0xf]
    %v10385 = vld [vmem:[%s10380 + $0x10] sm:$0xf]
    %v10386 = vld [vmem:[%s10380 + $0x14] sm:$0xf]
    %v10387 = vld [vmem:[%s10380 + $0x18] sm:$0xf]
    %v10388 = vld [vmem:[%s10380 + $0x1c] sm:$0xf]
    %v10389 = vld [vmem:[%s10380 + $0x20] sm:$0xf]
    %v10390 = vld [vmem:[%s10380 + $0x24] sm:$0xf]
    %v10391 = vld [vmem:[%s10380 + $0x28] sm:$0xf]
    %v10392 = vld [vmem:[%s10380 + $0x2c] sm:$0xf]
    %v10393 = vld [vmem:[%s10380 + $0x30] sm:$0xf]
    %v10394 = vld [vmem:[%s10380 + $0x34] sm:$0xf]
    %v10395 = vld [vmem:[%s10380 + $0x38] sm:$0xf]
    %v10396 = vld [vmem:[%s10380 + $0x3c] sm:$0xf]
    %v10413 = vunpack.c.l.b16 %v10381
    %v10414 = vunpack.c.l.b16 %v10382
    %v10415 = vunpack.c.l.b16 %v10383
    %v10416 = vunpack.c.l.b16 %v10384
    %v10417 = vunpack.c.l.b16 %v10385
    %v10418 = vunpack.c.l.b16 %v10386
    %v10419 = vunpack.c.l.b16 %v10387
    %v10420 = vunpack.c.l.b16 %v10388
    %v10421 = vunpack.c.l.b16 %v10389
    %v10422 = vunpack.c.l.b16 %v10390
    %v10423 = vunpack.c.l.b16 %v10391
    %v10424 = vunpack.c.l.b16 %v10392
    %v10425 = vunpack.c.l.b16 %v10393
    %v10426 = vunpack.c.l.b16 %v10394
    %v10427 = vunpack.c.l.b16 %v10395
    %v10428 = vunpack.c.l.b16 %v10396
    %v10429 = vpack.c.b16 %v10414, %v10413
    %v10430 = vpack.c.b16 %v10416, %v10415
    %v10431 = vpack.c.b16 %v10418, %v10417
    %v10432 = vpack.c.b16 %v10420, %v10419
    %v10433 = vpack.c.b16 %v10422, %v10421
    %v10434 = vpack.c.b16 %v10424, %v10423
    %v10435 = vpack.c.b16 %v10426, %v10425
    %v10436 = vpack.c.b16 %v10428, %v10427
    %10445 = vmatpush.bf16.msra.mxu0 %v10436
    %10446 = vmatpush.bf16.msra.mxu0 %v10435
    %10447 = vmatpush.bf16.msra.mxu0 %v10434
    %10448 = vmatpush.bf16.msra.mxu0 %v10433
    %10449 = vmatpush.bf16.msra.mxu0 %v10432
    %10450 = vmatpush.bf16.msra.mxu0 %v10431
    %10451 = vmatpush.bf16.msra.mxu0 %v10430
    %10452 = vmatpush.bf16.msra.mxu0 %v10429
    %10453 = vmatmul.bf16.gmra.mxu0 %v9665
    %v10454 = vpop.f32.mrf.mxu0
    %v10455 = vadd.f32 0.0, %v10454
    %v10456 = vpop.f32.mrf.mxu0
    %10457 = vdwg.mxu0
    %v10458 = vadd.f32 %v10379, %v10455
    %s10459 = scalar_lea.vmem [#allocation22], 640
    %v10460 = vld [vmem:[%s10459] sm:$0xf]
    %v10461 = vld [vmem:[%s10459 + $0x4] sm:$0xf]
    %v10462 = vld [vmem:[%s10459 + $0x8] sm:$0xf]
    %v10463 = vld [vmem:[%s10459 + $0xc] sm:$0xf]
    %v10464 = vld [vmem:[%s10459 + $0x10] sm:$0xf]
    %v10465 = vld [vmem:[%s10459 + $0x14] sm:$0xf]
    %v10466 = vld [vmem:[%s10459 + $0x18] sm:$0xf]
    %v10467 = vld [vmem:[%s10459 + $0x1c] sm:$0xf]
    %v10468 = vld [vmem:[%s10459 + $0x20] sm:$0xf]
    %v10469 = vld [vmem:[%s10459 + $0x24] sm:$0xf]
    %v10470 = vld [vmem:[%s10459 + $0x28] sm:$0xf]
    %v10471 = vld [vmem:[%s10459 + $0x2c] sm:$0xf]
    %v10472 = vld [vmem:[%s10459 + $0x30] sm:$0xf]
    %v10473 = vld [vmem:[%s10459 + $0x34] sm:$0xf]
    %v10474 = vld [vmem:[%s10459 + $0x38] sm:$0xf]
    %v10475 = vld [vmem:[%s10459 + $0x3c] sm:$0xf]
    %v10492 = vunpack.c.l.b16 %v10460
    %v10493 = vunpack.c.l.b16 %v10461
    %v10494 = vunpack.c.l.b16 %v10462
    %v10495 = vunpack.c.l.b16 %v10463
    %v10496 = vunpack.c.l.b16 %v10464
    %v10497 = vunpack.c.l.b16 %v10465
    %v10498 = vunpack.c.l.b16 %v10466
    %v10499 = vunpack.c.l.b16 %v10467
    %v10500 = vunpack.c.l.b16 %v10468
    %v10501 = vunpack.c.l.b16 %v10469
    %v10502 = vunpack.c.l.b16 %v10470
    %v10503 = vunpack.c.l.b16 %v10471
    %v10504 = vunpack.c.l.b16 %v10472
    %v10505 = vunpack.c.l.b16 %v10473
    %v10506 = vunpack.c.l.b16 %v10474
    %v10507 = vunpack.c.l.b16 %v10475
    %v10508 = vpack.c.b16 %v10493, %v10492
    %v10509 = vpack.c.b16 %v10495, %v10494
    %v10510 = vpack.c.b16 %v10497, %v10496
    %v10511 = vpack.c.b16 %v10499, %v10498
    %v10512 = vpack.c.b16 %v10501, %v10500
    %v10513 = vpack.c.b16 %v10503, %v10502
    %v10514 = vpack.c.b16 %v10505, %v10504
    %v10515 = vpack.c.b16 %v10507, %v10506
    %10524 = vmatpush.bf16.msra.mxu0 %v10515
    %10525 = vmatpush.bf16.msra.mxu0 %v10514
    %10526 = vmatpush.bf16.msra.mxu0 %v10513
    %10527 = vmatpush.bf16.msra.mxu0 %v10512
    %10528 = vmatpush.bf16.msra.mxu0 %v10511
    %10529 = vmatpush.bf16.msra.mxu0 %v10510
    %10530 = vmatpush.bf16.msra.mxu0 %v10509
    %10531 = vmatpush.bf16.msra.mxu0 %v10508
    %10532 = vmatmul.bf16.gmra.mxu0 %v9666
    %v10533 = vpop.f32.mrf.mxu0
    %v10534 = vadd.f32 0.0, %v10533
    %v10535 = vpop.f32.mrf.mxu0
    %10536 = vdwg.mxu0
    %v10537 = vadd.f32 %v10458, %v10534
    %s10538 = scalar_lea.vmem [#allocation22], 704
    %v10539 = vld [vmem:[%s10538] sm:$0xf]
    %v10540 = vld [vmem:[%s10538 + $0x4] sm:$0xf]
    %v10541 = vld [vmem:[%s10538 + $0x8] sm:$0xf]
    %v10542 = vld [vmem:[%s10538 + $0xc] sm:$0xf]
    %v10543 = vld [vmem:[%s10538 + $0x10] sm:$0xf]
    %v10544 = vld [vmem:[%s10538 + $0x14] sm:$0xf]
    %v10545 = vld [vmem:[%s10538 + $0x18] sm:$0xf]
    %v10546 = vld [vmem:[%s10538 + $0x1c] sm:$0xf]
    %v10547 = vld [vmem:[%s10538 + $0x20] sm:$0xf]
    %v10548 = vld [vmem:[%s10538 + $0x24] sm:$0xf]
    %v10549 = vld [vmem:[%s10538 + $0x28] sm:$0xf]
    %v10550 = vld [vmem:[%s10538 + $0x2c] sm:$0xf]
    %v10551 = vld [vmem:[%s10538 + $0x30] sm:$0xf]
    %v10552 = vld [vmem:[%s10538 + $0x34] sm:$0xf]
    %v10553 = vld [vmem:[%s10538 + $0x38] sm:$0xf]
    %v10554 = vld [vmem:[%s10538 + $0x3c] sm:$0xf]
    %v10571 = vunpack.c.l.b16 %v10539
    %v10572 = vunpack.c.l.b16 %v10540
    %v10573 = vunpack.c.l.b16 %v10541
    %v10574 = vunpack.c.l.b16 %v10542
    %v10575 = vunpack.c.l.b16 %v10543
    %v10576 = vunpack.c.l.b16 %v10544
    %v10577 = vunpack.c.l.b16 %v10545
    %v10578 = vunpack.c.l.b16 %v10546
    %v10579 = vunpack.c.l.b16 %v10547
    %v10580 = vunpack.c.l.b16 %v10548
    %v10581 = vunpack.c.l.b16 %v10549
    %v10582 = vunpack.c.l.b16 %v10550
    %v10583 = vunpack.c.l.b16 %v10551
    %v10584 = vunpack.c.l.b16 %v10552
    %v10585 = vunpack.c.l.b16 %v10553
    %v10586 = vunpack.c.l.b16 %v10554
    %v10587 = vpack.c.b16 %v10572, %v10571
    %v10588 = vpack.c.b16 %v10574, %v10573
    %v10589 = vpack.c.b16 %v10576, %v10575
    %v10590 = vpack.c.b16 %v10578, %v10577
    %v10591 = vpack.c.b16 %v10580, %v10579
    %v10592 = vpack.c.b16 %v10582, %v10581
    %v10593 = vpack.c.b16 %v10584, %v10583
    %v10594 = vpack.c.b16 %v10586, %v10585
    %10603 = vmatpush.bf16.msra.mxu0 %v10594
    %10604 = vmatpush.bf16.msra.mxu0 %v10593
    %10605 = vmatpush.bf16.msra.mxu0 %v10592
    %10606 = vmatpush.bf16.msra.mxu0 %v10591
    %10607 = vmatpush.bf16.msra.mxu0 %v10590
    %10608 = vmatpush.bf16.msra.mxu0 %v10589
    %10609 = vmatpush.bf16.msra.mxu0 %v10588
    %10610 = vmatpush.bf16.msra.mxu0 %v10587
    %10611 = vmatmul.bf16.gmra.mxu0 %v9667
    %v10612 = vpop.f32.mrf.mxu0
    %v10613 = vadd.f32 0.0, %v10612
    %v10614 = vpop.f32.mrf.mxu0
    %10615 = vdwg.mxu0
    %v10616 = vadd.f32 %v10537, %v10613
    %s10617 = scalar_lea.vmem [#allocation22], 768
    %v10618 = vld [vmem:[%s10617] sm:$0xf]
    %v10619 = vld [vmem:[%s10617 + $0x4] sm:$0xf]
    %v10620 = vld [vmem:[%s10617 + $0x8] sm:$0xf]
    %v10621 = vld [vmem:[%s10617 + $0xc] sm:$0xf]
    %v10622 = vld [vmem:[%s10617 + $0x10] sm:$0xf]
    %v10623 = vld [vmem:[%s10617 + $0x14] sm:$0xf]
    %v10624 = vld [vmem:[%s10617 + $0x18] sm:$0xf]
    %v10625 = vld [vmem:[%s10617 + $0x1c] sm:$0xf]
    %v10626 = vld [vmem:[%s10617 + $0x20] sm:$0xf]
    %v10627 = vld [vmem:[%s10617 + $0x24] sm:$0xf]
    %v10628 = vld [vmem:[%s10617 + $0x28] sm:$0xf]
    %v10629 = vld [vmem:[%s10617 + $0x2c] sm:$0xf]
    %v10630 = vld [vmem:[%s10617 + $0x30] sm:$0xf]
    %v10631 = vld [vmem:[%s10617 + $0x34] sm:$0xf]
    %v10632 = vld [vmem:[%s10617 + $0x38] sm:$0xf]
    %v10633 = vld [vmem:[%s10617 + $0x3c] sm:$0xf]
    %v10650 = vunpack.c.l.b16 %v10618
    %v10651 = vunpack.c.l.b16 %v10619
    %v10652 = vunpack.c.l.b16 %v10620
    %v10653 = vunpack.c.l.b16 %v10621
    %v10654 = vunpack.c.l.b16 %v10622
    %v10655 = vunpack.c.l.b16 %v10623
    %v10656 = vunpack.c.l.b16 %v10624
    %v10657 = vunpack.c.l.b16 %v10625
    %v10658 = vunpack.c.l.b16 %v10626
    %v10659 = vunpack.c.l.b16 %v10627
    %v10660 = vunpack.c.l.b16 %v10628
    %v10661 = vunpack.c.l.b16 %v10629
    %v10662 = vunpack.c.l.b16 %v10630
    %v10663 = vunpack.c.l.b16 %v10631
    %v10664 = vunpack.c.l.b16 %v10632
    %v10665 = vunpack.c.l.b16 %v10633
    %v10666 = vpack.c.b16 %v10651, %v10650
    %v10667 = vpack.c.b16 %v10653, %v10652
    %v10668 = vpack.c.b16 %v10655, %v10654
    %v10669 = vpack.c.b16 %v10657, %v10656
    %v10670 = vpack.c.b16 %v10659, %v10658
    %v10671 = vpack.c.b16 %v10661, %v10660
    %v10672 = vpack.c.b16 %v10663, %v10662
    %v10673 = vpack.c.b16 %v10665, %v10664
    %10682 = vmatpush.bf16.msra.mxu0 %v10673
    %10683 = vmatpush.bf16.msra.mxu0 %v10672
    %10684 = vmatpush.bf16.msra.mxu0 %v10671
    %10685 = vmatpush.bf16.msra.mxu0 %v10670
    %10686 = vmatpush.bf16.msra.mxu0 %v10669
    %10687 = vmatpush.bf16.msra.mxu0 %v10668
    %10688 = vmatpush.bf16.msra.mxu0 %v10667
    %10689 = vmatpush.bf16.msra.mxu0 %v10666
    %10690 = vmatmul.bf16.gmra.mxu0 %v9668
    %v10691 = vpop.f32.mrf.mxu0
    %v10692 = vadd.f32 0.0, %v10691
    %v10693 = vpop.f32.mrf.mxu0
    %10694 = vdwg.mxu0
    %v10695 = vadd.f32 %v10616, %v10692
    %s10696 = scalar_lea.vmem [#allocation22], 832
    %v10697 = vld [vmem:[%s10696] sm:$0xf]
    %v10698 = vld [vmem:[%s10696 + $0x4] sm:$0xf]
    %v10699 = vld [vmem:[%s10696 + $0x8] sm:$0xf]
    %v10700 = vld [vmem:[%s10696 + $0xc] sm:$0xf]
    %v10701 = vld [vmem:[%s10696 + $0x10] sm:$0xf]
    %v10702 = vld [vmem:[%s10696 + $0x14] sm:$0xf]
    %v10703 = vld [vmem:[%s10696 + $0x18] sm:$0xf]
    %v10704 = vld [vmem:[%s10696 + $0x1c] sm:$0xf]
    %v10705 = vld [vmem:[%s10696 + $0x20] sm:$0xf]
    %v10706 = vld [vmem:[%s10696 + $0x24] sm:$0xf]
    %v10707 = vld [vmem:[%s10696 + $0x28] sm:$0xf]
    %v10708 = vld [vmem:[%s10696 + $0x2c] sm:$0xf]
    %v10709 = vld [vmem:[%s10696 + $0x30] sm:$0xf]
    %v10710 = vld [vmem:[%s10696 + $0x34] sm:$0xf]
    %v10711 = vld [vmem:[%s10696 + $0x38] sm:$0xf]
    %v10712 = vld [vmem:[%s10696 + $0x3c] sm:$0xf]
    %v10729 = vunpack.c.l.b16 %v10697
    %v10730 = vunpack.c.l.b16 %v10698
    %v10731 = vunpack.c.l.b16 %v10699
    %v10732 = vunpack.c.l.b16 %v10700
    %v10733 = vunpack.c.l.b16 %v10701
    %v10734 = vunpack.c.l.b16 %v10702
    %v10735 = vunpack.c.l.b16 %v10703
    %v10736 = vunpack.c.l.b16 %v10704
    %v10737 = vunpack.c.l.b16 %v10705
    %v10738 = vunpack.c.l.b16 %v10706
    %v10739 = vunpack.c.l.b16 %v10707
    %v10740 = vunpack.c.l.b16 %v10708
    %v10741 = vunpack.c.l.b16 %v10709
    %v10742 = vunpack.c.l.b16 %v10710
    %v10743 = vunpack.c.l.b16 %v10711
    %v10744 = vunpack.c.l.b16 %v10712
    %v10745 = vpack.c.b16 %v10730, %v10729
    %v10746 = vpack.c.b16 %v10732, %v10731
    %v10747 = vpack.c.b16 %v10734, %v10733
    %v10748 = vpack.c.b16 %v10736, %v10735
    %v10749 = vpack.c.b16 %v10738, %v10737
    %v10750 = vpack.c.b16 %v10740, %v10739
    %v10751 = vpack.c.b16 %v10742, %v10741
    %v10752 = vpack.c.b16 %v10744, %v10743
    %10761 = vmatpush.bf16.msra.mxu0 %v10752
    %10762 = vmatpush.bf16.msra.mxu0 %v10751
    %10763 = vmatpush.bf16.msra.mxu0 %v10750
    %10764 = vmatpush.bf16.msra.mxu0 %v10749
    %10765 = vmatpush.bf16.msra.mxu0 %v10748
    %10766 = vmatpush.bf16.msra.mxu0 %v10747
    %10767 = vmatpush.bf16.msra.mxu0 %v10746
    %10768 = vmatpush.bf16.msra.mxu0 %v10745
    %10769 = vmatmul.bf16.gmra.mxu0 %v9669
    %v10770 = vpop.f32.mrf.mxu0
    %v10771 = vadd.f32 0.0, %v10770
    %v10772 = vpop.f32.mrf.mxu0
    %10773 = vdwg.mxu0
    %v10774 = vadd.f32 %v10695, %v10771
    %s10775 = scalar_lea.vmem [#allocation22], 896
    %v10776 = vld [vmem:[%s10775] sm:$0xf]
    %v10777 = vld [vmem:[%s10775 + $0x4] sm:$0xf]
    %v10778 = vld [vmem:[%s10775 + $0x8] sm:$0xf]
    %v10779 = vld [vmem:[%s10775 + $0xc] sm:$0xf]
    %v10780 = vld [vmem:[%s10775 + $0x10] sm:$0xf]
    %v10781 = vld [vmem:[%s10775 + $0x14] sm:$0xf]
    %v10782 = vld [vmem:[%s10775 + $0x18] sm:$0xf]
    %v10783 = vld [vmem:[%s10775 + $0x1c] sm:$0xf]
    %v10784 = vld [vmem:[%s10775 + $0x20] sm:$0xf]
    %v10785 = vld [vmem:[%s10775 + $0x24] sm:$0xf]
    %v10786 = vld [vmem:[%s10775 + $0x28] sm:$0xf]
    %v10787 = vld [vmem:[%s10775 + $0x2c] sm:$0xf]
    %v10788 = vld [vmem:[%s10775 + $0x30] sm:$0xf]
    %v10789 = vld [vmem:[%s10775 + $0x34] sm:$0xf]
    %v10790 = vld [vmem:[%s10775 + $0x38] sm:$0xf]
    %v10791 = vld [vmem:[%s10775 + $0x3c] sm:$0xf]
    %v10808 = vunpack.c.l.b16 %v10776
    %v10809 = vunpack.c.l.b16 %v10777
    %v10810 = vunpack.c.l.b16 %v10778
    %v10811 = vunpack.c.l.b16 %v10779
    %v10812 = vunpack.c.l.b16 %v10780
    %v10813 = vunpack.c.l.b16 %v10781
    %v10814 = vunpack.c.l.b16 %v10782
    %v10815 = vunpack.c.l.b16 %v10783
    %v10816 = vunpack.c.l.b16 %v10784
    %v10817 = vunpack.c.l.b16 %v10785
    %v10818 = vunpack.c.l.b16 %v10786
    %v10819 = vunpack.c.l.b16 %v10787
    %v10820 = vunpack.c.l.b16 %v10788
    %v10821 = vunpack.c.l.b16 %v10789
    %v10822 = vunpack.c.l.b16 %v10790
    %v10823 = vunpack.c.l.b16 %v10791
    %v10824 = vpack.c.b16 %v10809, %v10808
    %v10825 = vpack.c.b16 %v10811, %v10810
    %v10826 = vpack.c.b16 %v10813, %v10812
    %v10827 = vpack.c.b16 %v10815, %v10814
    %v10828 = vpack.c.b16 %v10817, %v10816
    %v10829 = vpack.c.b16 %v10819, %v10818
    %v10830 = vpack.c.b16 %v10821, %v10820
    %v10831 = vpack.c.b16 %v10823, %v10822
    %10840 = vmatpush.bf16.msra.mxu0 %v10831
    %10841 = vmatpush.bf16.msra.mxu0 %v10830
    %10842 = vmatpush.bf16.msra.mxu0 %v10829
    %10843 = vmatpush.bf16.msra.mxu0 %v10828
    %10844 = vmatpush.bf16.msra.mxu0 %v10827
    %10845 = vmatpush.bf16.msra.mxu0 %v10826
    %10846 = vmatpush.bf16.msra.mxu0 %v10825
    %10847 = vmatpush.bf16.msra.mxu0 %v10824
    %10848 = vmatmul.bf16.gmra.mxu0 %v9670
    %v10849 = vpop.f32.mrf.mxu0
    %v10850 = vadd.f32 0.0, %v10849
    %v10851 = vpop.f32.mrf.mxu0
    %10852 = vdwg.mxu0
    %v10853 = vadd.f32 %v10774, %v10850
    %s10854 = scalar_lea.vmem [#allocation22], 960
    %v10855 = vld [vmem:[%s10854] sm:$0xf]
    %v10856 = vld [vmem:[%s10854 + $0x4] sm:$0xf]
    %v10857 = vld [vmem:[%s10854 + $0x8] sm:$0xf]
    %v10858 = vld [vmem:[%s10854 + $0xc] sm:$0xf]
    %v10859 = vld [vmem:[%s10854 + $0x10] sm:$0xf]
    %v10860 = vld [vmem:[%s10854 + $0x14] sm:$0xf]
    %v10861 = vld [vmem:[%s10854 + $0x18] sm:$0xf]
    %v10862 = vld [vmem:[%s10854 + $0x1c] sm:$0xf]
    %v10863 = vld [vmem:[%s10854 + $0x20] sm:$0xf]
    %v10864 = vld [vmem:[%s10854 + $0x24] sm:$0xf]
    %v10865 = vld [vmem:[%s10854 + $0x28] sm:$0xf]
    %v10866 = vld [vmem:[%s10854 + $0x2c] sm:$0xf]
    %v10867 = vld [vmem:[%s10854 + $0x30] sm:$0xf]
    %v10868 = vld [vmem:[%s10854 + $0x34] sm:$0xf]
    %v10869 = vld [vmem:[%s10854 + $0x38] sm:$0xf]
    %v10870 = vld [vmem:[%s10854 + $0x3c] sm:$0xf]
    %v10887 = vunpack.c.l.b16 %v10855
    %v10888 = vunpack.c.l.b16 %v10856
    %v10889 = vunpack.c.l.b16 %v10857
    %v10890 = vunpack.c.l.b16 %v10858
    %v10891 = vunpack.c.l.b16 %v10859
    %v10892 = vunpack.c.l.b16 %v10860
    %v10893 = vunpack.c.l.b16 %v10861
    %v10894 = vunpack.c.l.b16 %v10862
    %v10895 = vunpack.c.l.b16 %v10863
    %v10896 = vunpack.c.l.b16 %v10864
    %v10897 = vunpack.c.l.b16 %v10865
    %v10898 = vunpack.c.l.b16 %v10866
    %v10899 = vunpack.c.l.b16 %v10867
    %v10900 = vunpack.c.l.b16 %v10868
    %v10901 = vunpack.c.l.b16 %v10869
    %v10902 = vunpack.c.l.b16 %v10870
    %v10903 = vpack.c.b16 %v10888, %v10887
    %v10904 = vpack.c.b16 %v10890, %v10889
    %v10905 = vpack.c.b16 %v10892, %v10891
    %v10906 = vpack.c.b16 %v10894, %v10893
    %v10907 = vpack.c.b16 %v10896, %v10895
    %v10908 = vpack.c.b16 %v10898, %v10897
    %v10909 = vpack.c.b16 %v10900, %v10899
    %v10910 = vpack.c.b16 %v10902, %v10901
    %10919 = vmatpush.bf16.msra.mxu0 %v10910
    %10920 = vmatpush.bf16.msra.mxu0 %v10909
    %10921 = vmatpush.bf16.msra.mxu0 %v10908
    %10922 = vmatpush.bf16.msra.mxu0 %v10907
    %10923 = vmatpush.bf16.msra.mxu0 %v10906
    %10924 = vmatpush.bf16.msra.mxu0 %v10905
    %10925 = vmatpush.bf16.msra.mxu0 %v10904
    %10926 = vmatpush.bf16.msra.mxu0 %v10903
    %10927 = vmatmul.bf16.gmra.mxu0 %v9671
    %v10928 = vpop.f32.mrf.mxu0
    %v10929 = vadd.f32 0.0, %v10928
    %v10930 = vpop.f32.mrf.mxu0
    %10931 = vdwg.mxu0
    %v10932 = vadd.f32 %v10853, %v10929
    %v10933 = vld [vmem:[#allocation24] sm:$0x1]
    %v10935 = vperm.slane %v10933, 0
    %v10937 = vadd.f32 %v10932, %v10935
    %10938 = vst [vmem:[#allocation25] sm:$0xff] %v10937
    // Predicated region
    $region106: #{tpu_custom_call.1} parent=1 // pred_check
      _
    $region107: #{tpu_custom_call.1} parent=1 // pred_check_branch
      %10940 = sbr.rel (0) target = $region109
    $region108: #{tpu_custom_call.1} parent=1 // pred_region
      %10942 = vsyncadd [#allocation6], 0
      %s10944 = sshll.u32 [#allocation25], 4
      %s10945 = int_to_ptr.vmem [resolvable:$true] %s10944
      %s10946 = sshll.u32 %s13, 4
      %s10947 = int_to_ptr.hbm [resolvable:$true] %s10946
      %10949 = dma.vmem_to_hbm [thread:$0]  %s10945, 128, %s10947, [#allocation6]
    $region109: #{tpu_custom_call.1} parent=1 // pred_fallthru
      _
    // Predicated region
    $region110: #{tpu_custom_call.1} parent=1 // pred_check
      _
    $region111: #{tpu_custom_call.1} parent=1 // pred_check_branch
      %10951 = sbr.rel (0) target = $region113
    $region112: #{tpu_custom_call.1} parent=1 // pred_region
      %10953 = dma.done [#allocation6], 128
    $region113: #{tpu_custom_call.1} parent=1 // pred_fallthru
      _
    %10954 = vsyncpa [#allocation5], 1
    %10955 = vsyncpa [#allocation8], 1
    %10956 = vsyncpa [#allocation11], 1
    %10957 = vsyncpa [#allocation14], 1
    %10958 = vsyncpa [#allocation17], 1
    %10959 = vsyncpa [#allocation20], 1
    %10960 = vsyncpa [#allocation23], 1
    %10961 = vsyncpa [#allocation6], 1

</llo_original>
